<compile_context>
chip_gen: v7x
topology: tpu7x:2x2x1
jax: 0.10.0
libtpu: 0.0.40
codegen_flags: <defaults>
</compile_context>

<pallas_src>
import numpy as np
import jax
import jax.numpy as jnp
from jax import lax
from jax.experimental import pallas as pl
from jax.experimental.pallas import tpu as pltpu

BT_MAX = 64     # max samples per grid step (64 is safe on v5e/v6e/v7x VMEM)
LANES = 128     # padded class lanes for the output store


# ------------------------------ Pallas kernel ------------------------------ #

def ocr_fused_kernel(xc_ref, t1_ref, b1_ref, t2_ref, b2_ref,
                     wf1_ref, bf1_ref, wf2_ref, bf2_ref, o_ref, qsc_ref):
    """Whole OCRModel forward for one tile of B samples.

    xc_ref : (1, 4, 8*B, 96)  conv1 LHS: for hsub=0..3, rows (m, sample) with
                              m=0..7, lanes = 3 consecutive padded image rows
                              (kh*32 + w) starting at padded height 4*m+hsub.
    t1_ref : (96, 1024) bf16  conv1 band matrix, cols = (col parity, pooled w, ch).
    t2_ref : (3, 512, 1024) bf16  conv2 band matrices per kh,
                              rows = (pooled1 w, ch), cols = (col parity, v, ch).
    wf1_ref: (8, 512, 128) bf16  fc1 weights per pooled-h row (kernel order).
    wf2_ref: (128, 128) bf16     fc2 weights, classes zero-padded to 128.
    o_ref  : (B, 128)            logits (classes padded to 128 lanes).
    qsc_ref: (2, 9*B, 512) f32   scratch: zero-padded, row-parity-split pooled1.
    """
    f32, bf16 = jnp.float32, jnp.bfloat16
    B = o_ref.shape[0]

    # ---------------- conv1 + bias + relu + 2x2 maxpool ---------------- #
    t1 = t1_ref[...]
    b1 = b1_ref[...]

    def conv1_rows(hsub):
        # conv1 output rows 4m+hsub (m=0..7), both column parities in lanes.
        lhs = xc_ref[0, hsub, :, :].astype(bf16)                  # (8B, 96)
        r = jnp.dot(lhs, t1, preferred_element_type=f32)          # (8B, 1024)
        return jnp.maximum(r[:, :512], r[:, 512:])                # max over col parity

    # Parity-split, height-zero-padded pooled1 written straight into scratch.
    zpad = jnp.zeros((B, 512), f32)
    qsc_ref[0, 0:B, :] = zpad                                     # top pad row
    qsc_ref[0, B:9 * B, :] = jnp.maximum(                         # odd pooled rows
        jnp.maximum(conv1_rows(2), conv1_rows(3)) + b1, 0.0)
    qsc_ref[1, 0:8 * B, :] = jnp.maximum(                         # even pooled rows
        jnp.maximum(conv1_rows(0), conv1_rows(1)) + b1, 0.0)
    qsc_ref[1, 8 * B:9 * B, :] = zpad                             # bottom pad row

    # ---------------- conv2 + bias + relu + 2x2 maxpool ---------------- #
    # TODO(synk): if MXU-bound, a per-kw formulation using pltpu.roll would
    # recover the ~5x structural-zero FLOPs inside the conv2 band matrices.
    t2k = (t2_ref[0], t2_ref[1], t2_ref[2])
    # The four distinct (row parity, row offset) LHS slabs reused across ey/kh.
    q00 = qsc_ref[0, 0:8 * B, :].astype(bf16)
    q10 = qsc_ref[1, 0:8 * B, :].astype(bf16)
    q01 = qsc_ref[0, B:9 * B, :].astype(bf16)
    q11 = qsc_ref[1, B:9 * B, :].astype(bf16)
    lhs_by_ey = ((q00, q10, q01),          # conv2 rows 2u   : kh = 0, 1, 2
                 (q10, q01, q11))          # conv2 rows 2u+1 : kh = 0, 1, 2

    b2 = b2_ref[...]
    p2 = None
    for ey in range(2):
        acc = None
        for kh in range(3):
            d = jnp.dot(lhs_by_ey[ey][kh], t2k[kh],
                        preferred_element_type=f32)               # (8B, 1024)
            acc = d if acc is None else acc + d
        m = jnp.maximum(acc[:, :512], acc[:, 512:])               # max over col parity
        p2 = m if p2 is None else jnp.maximum(p2, m)
    p2 = jnp.maximum(p2 + b2, 0.0)        # (8B, 512): rows (u, b), lanes (v, ch)

    # ------------------------ fc1 + relu + fc2 ------------------------- #
    # TODO(synk): could be a single K=4096 contraction (dot_general over both
    # u and lanes); at ~2% of the FLOPs the 8-dot loop is fine at this M.
    h1 = None
    for u in range(8):
        d = jnp.dot(p2[u * B:(u + 1) * B, :].astype(bf16), wf1_ref[u],
                    preferred_element_type=f32)
        h1 = d if h1 is None else h1 + d
    h1 = jnp.maximum(h1 + bf1_ref[...], 0.0)
    out = jnp.dot(h1.astype(bf16), wf2_ref[...],
                  preferred_element_type=f32) + bf2_ref[...]
    o_ref[...] = out.astype(o_ref.dtype)


# --------------------------- parameter preparation -------------------------- #

def prepare_kernel_params(c1w, c1b, c2w, c2b, f1w, f1b, f2w, f2b, num_classes):
    """One-time (eager) repack of PyTorch-layout weights into kernel layout."""
    w1 = np.asarray(c1w, np.float32)            # (32, 1, 3, 3)
    w2 = np.asarray(c2w, np.float32)            # (64, 32, 3, 3)

    # conv1 fused band matrix: rows (kh, w_in)=96, cols (wpar, q, co)=1024
    #   T1[kh*32 + w_in, wpar*512 + q*32 + co] = W1[co, 0, kh, kw]
    #   with w_in = 2*q + wpar + kw - 1 (out-of-range taps = SAME zero pad).
    t1 = np.zeros((3, 32, 2, 16, 32), np.float32)
    for kh in range(3):
        for kw in range(3):
            for wpar in range(2):
                for q in range(16):
                    w_in = 2 * q + wpar + kw - 1
                    if 0 <= w_in < 32:
                        t1[kh, w_in, wpar, q, :] = w1[:, 0, kh, kw]
    t1 = t1.reshape(96, 1024)

    # conv2 fused band matrices: per kh, rows (s, ci)=512, cols (ex, v, d)=1024
    #   with s = 2*v + ex + kw - 1.
    t2 = np.zeros((3, 16, 32, 2, 8, 64), np.float32)
    for kh in range(3):
        for kw in range(3):
            for ex in range(2):
                for v in range(8):
                    s = 2 * v + ex + kw - 1
                    if 0 <= s < 16:
                        t2[kh, s, :, ex, v, :] = w2[:, :, kh, kw].T   # (ci, d)
    t2 = t2.reshape(3, 512, 1024)

    b1row = np.tile(np.asarray(c1b, np.float32), 16).reshape(1, 512)
    b2row = np.tile(np.asarray(c2b, np.float32), 8).reshape(1, 512)

    # fc1: PyTorch flattens (c, h, w); kernel rows are grouped by pooled h with
    # (w, c) on lanes -> permute the weight rows once, offline.
    wf1 = (np.asarray(f1w, np.float32)           # (128, 4096) [j, c*64+h*8+w]
           .reshape(128, 64, 8, 8)               # (j, c, h, w)
           .transpose(2, 3, 1, 0)                # (h, w, c, j)
           .reshape(8, 512, 128))                # [h, w*64+c, j]
    bf1row = np.asarray(f1b, np.float32).reshape(1, 128)

    wf2 = np.zeros((128, 128), np.float32)
    wf2[:, :num_classes] = np.asarray(f2w, np.float32).T
    bf2row = np.zeros((1, 128), np.float32)
    bf2row[0, :num_classes] = np.asarray(f2b, np.float32)

    bf16 = jnp.bfloat16
    return (jnp.asarray(t1, dtype=bf16), jnp.asarray(b1row),
            jnp.asarray(t2, dtype=bf16), jnp.asarray(b2row),
            jnp.asarray(wf1, dtype=bf16), jnp.asarray(bf1row),
            jnp.asarray(wf2, dtype=bf16), jnp.asarray(bf2row))


# ------------------------------- forward pass ------------------------------- #

def _choose_bt(n):
    # Multiple of 8 (keeps every row-group slice (8,128)-tile aligned), capped
    # at BT_MAX, and roughly n/2 so the grid has >= 2 steps when possible
    # (v7x megacore shards the "parallel" axis across its 2 TensorCores).
    half = (n + 1) // 2
    bt = ((half + 7) // 8) * 8
    return int(max(8, min(BT_MAX, bt)))


def ocr_forward(x_nchw, kparams, num_classes):
    t1, b1row, t2, b2row, wf1, bf1row, wf2, bf2row = kparams
    n = x_nchw.shape[0]
    x = x_nchw[:, 0].astype(jnp.float32)                     # (N, 32, 32)

    bt = _choose_bt(n)
    n_pad = ((n + bt - 1) // bt) * bt
    if n_pad != n:
        x = jnp.concatenate(
            [x, jnp.zeros((n_pad - n, 32, 32), jnp.float32)], axis=0)
    nt = n_pad // bt

    # SAME zero padding of the height (+1 on top) and packing of the 3 input
    # rows each conv1 output row needs:
    #   xc[t, hsub, m*bt + b, kh*32 + w] = padded_row(4m + hsub + kh, sample b)
    # ~3x the 4 KiB/sample image; the conv1 LHS becomes one contiguous,
    # lane-dense slab per hsub (no in-kernel gathers or lane concats).
    xp = jnp.zeros((n_pad, 36, 32), jnp.float32).at[:, 1:33, :].set(x)
    starts = 4 * np.arange(8)[None, :] + np.arange(4)[:, None]     # (4, 8)
    rows = starts[:, :, None] + np.arange(3)[None, None, :]        # (4, 8, 3)
    xc = xp[:, rows, :]                                            # (n_pad,4,8,3,32)
    xc = (xc.reshape(nt, bt, 4, 8, 96)
            .transpose(0, 2, 3, 1, 4)                              # (nt,4,8,bt,96)
            .reshape(nt, 4, 8 * bt, 96))

    # TODO(synk): on v7x, add pipeline_mode=pl.Buffered(1) to the constant
    # weight specs below to reclaim ~4 MiB of double-buffered VMEM.
    out = pl.pallas_call(
        ocr_fused_kernel,
        out_shape=jax.ShapeDtypeStruct((n_pad, LANES), jnp.float32),
        grid=(nt,),
        in_specs=[
            pl.BlockSpec((1, 4, 8 * bt, 96), lambda t: (t, 0, 0, 0)),
            pl.BlockSpec((96, 1024), lambda t: (0, 0)),
            pl.BlockSpec((1, 512), lambda t: (0, 0)),
            pl.BlockSpec((3, 512, 1024), lambda t: (0, 0, 0)),
            pl.BlockSpec((1, 512), lambda t: (0, 0)),
            pl.BlockSpec((8, 512, 128), lambda t: (0, 0, 0)),
            pl.BlockSpec((1, 128), lambda t: (0, 0)),
            pl.BlockSpec((128, 128), lambda t: (0, 0)),
            pl.BlockSpec((1, 128), lambda t: (0, 0)),
        ],
        out_specs=pl.BlockSpec((bt, LANES), lambda t: (t, 0)),
        scratch_shapes=[pltpu.VMEM((2, 9 * bt, 512), jnp.float32)],
        compiler_params=pltpu.CompilerParams(
            dimension_semantics=("parallel",),
            vmem_limit_bytes=40 * 1024 * 1024,
        ),
    )(xc, t1, b1row, t2, b2row, wf1, bf1row, wf2, bf2row)

    return out[:n, :num_classes]


# -------------------------------- reference --------------------------------- #

def reference_forward(x_nchw, torch_params):
    (c1w, c1b, c2w, c2b, f1w, f1b, f2w, f2b) = torch_params
    dn = ("NCHW", "OIHW", "NCHW")
    y = lax.conv_general_dilated(x_nchw, c1w, (1, 1), "SAME", dimension_numbers=dn)
    y = jnp.maximum(y + c1b[None, :, None, None], 0.0)
    y = lax.reduce_window(y, -jnp.inf, lax.max, (1, 1, 2, 2), (1, 1, 2, 2), "VALID")
    y = lax.conv_general_dilated(y, c2w, (1, 1), "SAME", dimension_numbers=dn)
    y = jnp.maximum(y + c2b[None, :, None, None], 0.0)
    y = lax.reduce_window(y, -jnp.inf, lax.max, (1, 1, 2, 2), (1, 1, 2, 2), "VALID")
    flat = y.reshape(y.shape[0], -1)
    h = jnp.maximum(flat @ f1w.T + f1b, 0.0)
    return h @ f2w.T + f2b


# ---------------------------------- main ------------------------------------ #

if __name__ == "__main__":
    num_classes = 10
    N, C, H, W = 2, 1, 32, 32          # fc1 = 64*8*8 implies a 32x32, 1-ch input

    key = jax.random.PRNGKey(0)
    ks = jax.random.split(key, 9)

    # deterministic synthetic parameters (PyTorch-layout tensors)
    c1w = jax.random.normal(ks[0], (32, 1, 3, 3), jnp.float32) / 3.0
    c1b = jax.random.normal(ks[1], (32,), jnp.float32) * 0.1
    c2w = jax.random.normal(ks[2], (64, 32, 3, 3), jnp.float32) / jnp.sqrt(32.0 * 9.0)
    c2b = jax.random.normal(ks[3], (64,), jnp.float32) * 0.1
    f1w = jax.random.normal(ks[4], (128, 64 * 8 * 8), jnp.float32) / 64.0
    f1b = jax.random.normal(ks[5], (128,), jnp.float32) * 0.1
    f2w = jax.random.normal(ks[6], (num_classes, 128), jnp.float32) / jnp.sqrt(128.0)
    f2b = jax.random.normal(ks[7], (num_classes,), jnp.float32) * 0.1
    torch_params = (c1w, c1b, c2w, c2b, f1w, f1b, f2w, f2b)

    kparams = prepare_kernel_params(*torch_params, num_classes)

    x = jax.random.normal(ks[8], (N, C, H, W), jnp.float32)

    run = jax.jit(ocr_forward, static_argnums=(2,))
    out = jax.block_until_ready(run(x, kparams, num_classes))

    ref = reference_forward(x, torch_params)
    assert out.shape == (N, num_classes), out.shape
    # bf16 weights / bf16 LHS with f32 accumulation -> slightly looser tolerance.
    assert jnp.allclose(out, ref, atol=3e-2, rtol=3e-2), \
        f"max abs diff {jnp.max(jnp.abs(out - ref))}"

    print("KERNEL_OK")
</pallas_src>

<mosaic_0001>
module attributes {stable_mosaic.version = 11 : i64} {
  func.func @ocr_fused_kernel(%arg0: i32, %arg1: memref<1x4x64x96xf32, #tpu.memory_space<vmem>>, %arg2: memref<96x1024xbf16, #tpu.memory_space<vmem>>, %arg3: memref<1x512xf32, #tpu.memory_space<vmem>>, %arg4: memref<3x512x1024xbf16, #tpu.memory_space<vmem>>, %arg5: memref<1x512xf32, #tpu.memory_space<vmem>>, %arg6: memref<8x512x128xbf16, #tpu.memory_space<vmem>>, %arg7: memref<1x128xf32, #tpu.memory_space<vmem>>, %arg8: memref<128x128xbf16, #tpu.memory_space<vmem>>, %arg9: memref<1x128xf32, #tpu.memory_space<vmem>>, %arg10: memref<8x128xf32, #tpu.memory_space<vmem>>, %arg11: memref<2x72x512xf32, #tpu.memory_space<vmem>>) attributes {dimension_semantics = [#tpu.dimension_semantics<parallel>], iteration_bounds = array<i64: 1>, scalar_prefetch = 0 : i64, scratch_operands = 1 : i64, tpu.core_type = #tpu.core_type<tc>, window_params = [{transform_indices = @transform_0, window_bounds = array<i64: 1, 4, 64, 96>}, {pipeline_mode = #tpu.pipeline_mode<synchronous>, transform_indices = @transform_1, window_bounds = array<i64: 96, 1024>}, {pipeline_mode = #tpu.pipeline_mode<synchronous>, transform_indices = @transform_2, window_bounds = array<i64: 1, 512>}, {pipeline_mode = #tpu.pipeline_mode<synchronous>, transform_indices = @transform_3, window_bounds = array<i64: 3, 512, 1024>}, {pipeline_mode = #tpu.pipeline_mode<synchronous>, transform_indices = @transform_4, window_bounds = array<i64: 1, 512>}, {pipeline_mode = #tpu.pipeline_mode<synchronous>, transform_indices = @transform_5, window_bounds = array<i64: 8, 512, 128>}, {pipeline_mode = #tpu.pipeline_mode<synchronous>, transform_indices = @transform_6, window_bounds = array<i64: 1, 128>}, {pipeline_mode = #tpu.pipeline_mode<synchronous>, transform_indices = @transform_7, window_bounds = array<i64: 128, 128>}, {pipeline_mode = #tpu.pipeline_mode<synchronous>, transform_indices = @transform_8, window_bounds = array<i64: 1, 128>}, {transform_indices = @transform_9, window_bounds = array<i64: 8, 128>}]} {
    %c0 = arith.constant 0 : index
    %c0_0 = arith.constant 0 : index
    %0 = vector.load %arg2[%c0, %c0_0] : memref<96x1024xbf16, #tpu.memory_space<vmem>>, vector<96x1024xbf16>
    %c0_1 = arith.constant 0 : index
    %c0_2 = arith.constant 0 : index
    %1 = vector.load %arg3[%c0_1, %c0_2] : memref<1x512xf32, #tpu.memory_space<vmem>>, vector<1x512xf32>
    %cst = arith.constant 0.000000e+00 : f32
    %2 = vector.broadcast %cst : f32 to vector<8x512xf32>
    %c0_3 = arith.constant 0 : index
    %c0_4 = arith.constant 0 : index
    %c0_5 = arith.constant 0 : index
    %3 = vector.load %arg11[%c0_3, %c0_4, %c0_5] : memref<2x72x512xf32, #tpu.memory_space<vmem>>, vector<1x8x512xf32>
    %4 = vector.shape_cast %3 : vector<1x8x512xf32> to vector<8x512xf32>
    %5 = vector.shape_cast %2 : vector<8x512xf32> to vector<1x8x512xf32>
    tpu.vector_store %arg11[%c0_3, %c0_4, %c0_5], %5 {strides = array<i32>} : memref<2x72x512xf32, #tpu.memory_space<vmem>>, vector<1x8x512xf32>,
    %c0_6 = arith.constant 0 : index
    %c2 = arith.constant 2 : index
    %c0_7 = arith.constant 0 : index
    %c0_8 = arith.constant 0 : index
    %6 = vector.load %arg1[%c0_6, %c2, %c0_7, %c0_8] : memref<1x4x64x96xf32, #tpu.memory_space<vmem>>, vector<1x1x64x96xf32>
    %7 = vector.shape_cast %6 : vector<1x1x64x96xf32> to vector<64x96xf32>
    %8 = arith.truncf %7 : vector<64x96xf32> to vector<64x96xbf16>
    %cst_9 = arith.constant dense<0.000000e+00> : vector<64x1024xf32>
    %9 = tpu.matmul %8, %0, %cst_9 {dimension_numbers = #tpu.dot_dimension_numbers<[1], [0], [0], [1], [0, 0, 1, 1], [], []>} : vector<64x96xbf16>, vector<96x1024xbf16>, vector<64x1024xf32> -> vector<64x1024xf32>
    %10 = vector.extract_strided_slice %9 {offsets = [0, 0], sizes = [64, 512], strides = [1, 1]} : vector<64x1024xf32> to vector<64x512xf32>
    %11 = vector.extract_strided_slice %9 {offsets = [0, 512], sizes = [64, 512], strides = [1, 1]} : vector<64x1024xf32> to vector<64x512xf32>
    %12 = arith.maximumf %10, %11 : vector<64x512xf32>
    %c0_10 = arith.constant 0 : index
    %c3 = arith.constant 3 : index
    %c0_11 = arith.constant 0 : index
    %c0_12 = arith.constant 0 : index
    %13 = vector.load %arg1[%c0_10, %c3, %c0_11, %c0_12] : memref<1x4x64x96xf32, #tpu.memory_space<vmem>>, vector<1x1x64x96xf32>
    %14 = vector.shape_cast %13 : vector<1x1x64x96xf32> to vector<64x96xf32>
    %15 = arith.truncf %14 : vector<64x96xf32> to vector<64x96xbf16>
    %cst_13 = arith.constant dense<0.000000e+00> : vector<64x1024xf32>
    %16 = tpu.matmul %15, %0, %cst_13 {dimension_numbers = #tpu.dot_dimension_numbers<[1], [0], [0], [1], [0, 0, 1, 1], [], []>} : vector<64x96xbf16>, vector<96x1024xbf16>, vector<64x1024xf32> -> vector<64x1024xf32>
    %17 = vector.extract_strided_slice %16 {offsets = [0, 0], sizes = [64, 512], strides = [1, 1]} : vector<64x1024xf32> to vector<64x512xf32>
    %18 = vector.extract_strided_slice %16 {offsets = [0, 512], sizes = [64, 512], strides = [1, 1]} : vector<64x1024xf32> to vector<64x512xf32>
    %19 = arith.maximumf %17, %18 : vector<64x512xf32>
    %20 = arith.maximumf %12, %19 : vector<64x512xf32>
    %21 = vector.broadcast %1 : vector<1x512xf32> to vector<64x512xf32>
    %22 = arith.addf %20, %21 : vector<64x512xf32>
    %cst_14 = arith.constant 0.000000e+00 : f32
    %23 = vector.broadcast %cst_14 : f32 to vector<64x512xf32>
    %24 = arith.maximumf %22, %23 : vector<64x512xf32>
    %c0_15 = arith.constant 0 : index
    %c8 = arith.constant 8 : index
    %c0_16 = arith.constant 0 : index
    %25 = vector.load %arg11[%c0_15, %c8, %c0_16] : memref<2x72x512xf32, #tpu.memory_space<vmem>>, vector<1x64x512xf32>
    %26 = vector.shape_cast %25 : vector<1x64x512xf32> to vector<64x512xf32>
    %27 = vector.shape_cast %24 : vector<64x512xf32> to vector<1x64x512xf32>
    tpu.vector_store %arg11[%c0_15, %c8, %c0_16], %27 {strides = array<i32>} : memref<2x72x512xf32, #tpu.memory_space<vmem>>, vector<1x64x512xf32>,
    %c0_17 = arith.constant 0 : index
    %c0_18 = arith.constant 0 : index
    %c0_19 = arith.constant 0 : index
    %c0_20 = arith.constant 0 : index
    %28 = vector.load %arg1[%c0_17, %c0_18, %c0_19, %c0_20] : memref<1x4x64x96xf32, #tpu.memory_space<vmem>>, vector<1x1x64x96xf32>
    %29 = vector.shape_cast %28 : vector<1x1x64x96xf32> to vector<64x96xf32>
    %30 = arith.truncf %29 : vector<64x96xf32> to vector<64x96xbf16>
    %cst_21 = arith.constant dense<0.000000e+00> : vector<64x1024xf32>
    %31 = tpu.matmul %30, %0, %cst_21 {dimension_numbers = #tpu.dot_dimension_numbers<[1], [0], [0], [1], [0, 0, 1, 1], [], []>} : vector<64x96xbf16>, vector<96x1024xbf16>, vector<64x1024xf32> -> vector<64x1024xf32>
    %32 = vector.extract_strided_slice %31 {offsets = [0, 0], sizes = [64, 512], strides = [1, 1]} : vector<64x1024xf32> to vector<64x512xf32>
    %33 = vector.extract_strided_slice %31 {offsets = [0, 512], sizes = [64, 512], strides = [1, 1]} : vector<64x1024xf32> to vector<64x512xf32>
    %34 = arith.maximumf %32, %33 : vector<64x512xf32>
    %c0_22 = arith.constant 0 : index
    %c1 = arith.constant 1 : index
    %c0_23 = arith.constant 0 : index
    %c0_24 = arith.constant 0 : index
    %35 = vector.load %arg1[%c0_22, %c1, %c0_23, %c0_24] : memref<1x4x64x96xf32, #tpu.memory_space<vmem>>, vector<1x1x64x96xf32>
    %36 = vector.shape_cast %35 : vector<1x1x64x96xf32> to vector<64x96xf32>
    %37 = arith.truncf %36 : vector<64x96xf32> to vector<64x96xbf16>
    %cst_25 = arith.constant dense<0.000000e+00> : vector<64x1024xf32>
    %38 = tpu.matmul %37, %0, %cst_25 {dimension_numbers = #tpu.dot_dimension_numbers<[1], [0], [0], [1], [0, 0, 1, 1], [], []>} : vector<64x96xbf16>, vector<96x1024xbf16>, vector<64x1024xf32> -> vector<64x1024xf32>
    %39 = vector.extract_strided_slice %38 {offsets = [0, 0], sizes = [64, 512], strides = [1, 1]} : vector<64x1024xf32> to vector<64x512xf32>
    %40 = vector.extract_strided_slice %38 {offsets = [0, 512], sizes = [64, 512], strides = [1, 1]} : vector<64x1024xf32> to vector<64x512xf32>
    %41 = arith.maximumf %39, %40 : vector<64x512xf32>
    %42 = arith.maximumf %34, %41 : vector<64x512xf32>
    %43 = vector.broadcast %1 : vector<1x512xf32> to vector<64x512xf32>
    %44 = arith.addf %42, %43 : vector<64x512xf32>
    %cst_26 = arith.constant 0.000000e+00 : f32
    %45 = vector.broadcast %cst_26 : f32 to vector<64x512xf32>
    %46 = arith.maximumf %44, %45 : vector<64x512xf32>
    %c1_27 = arith.constant 1 : index
    %c0_28 = arith.constant 0 : index
    %c0_29 = arith.constant 0 : index
    %47 = vector.load %arg11[%c1_27, %c0_28, %c0_29] : memref<2x72x512xf32, #tpu.memory_space<vmem>>, vector<1x64x512xf32>
    %48 = vector.shape_cast %47 : vector<1x64x512xf32> to vector<64x512xf32>
    %49 = vector.shape_cast %46 : vector<64x512xf32> to vector<1x64x512xf32>
    tpu.vector_store %arg11[%c1_27, %c0_28, %c0_29], %49 {strides = array<i32>} : memref<2x72x512xf32, #tpu.memory_space<vmem>>, vector<1x64x512xf32>,
    %c1_30 = arith.constant 1 : index
    %c64 = arith.constant 64 : index
    %c0_31 = arith.constant 0 : index
    %50 = vector.load %arg11[%c1_30, %c64, %c0_31] : memref<2x72x512xf32, #tpu.memory_space<vmem>>, vector<1x8x512xf32>
    %51 = vector.shape_cast %50 : vector<1x8x512xf32> to vector<8x512xf32>
    %52 = vector.shape_cast %2 : vector<8x512xf32> to vector<1x8x512xf32>
    tpu.vector_store %arg11[%c1_30, %c64, %c0_31], %52 {strides = array<i32>} : memref<2x72x512xf32, #tpu.memory_space<vmem>>, vector<1x8x512xf32>,
    %c0_32 = arith.constant 0 : index
    %c0_33 = arith.constant 0 : index
    %c0_34 = arith.constant 0 : index
    %53 = vector.load %arg4[%c0_32, %c0_33, %c0_34] : memref<3x512x1024xbf16, #tpu.memory_space<vmem>>, vector<1x512x1024xbf16>
    %54 = vector.shape_cast %53 : vector<1x512x1024xbf16> to vector<512x1024xbf16>
    %c1_35 = arith.constant 1 : index
    %c0_36 = arith.constant 0 : index
    %c0_37 = arith.constant 0 : index
    %55 = vector.load %arg4[%c1_35, %c0_36, %c0_37] : memref<3x512x1024xbf16, #tpu.memory_space<vmem>>, vector<1x512x1024xbf16>
    %56 = vector.shape_cast %55 : vector<1x512x1024xbf16> to vector<512x1024xbf16>
    %c2_38 = arith.constant 2 : index
    %c0_39 = arith.constant 0 : index
    %c0_40 = arith.constant 0 : index
    %57 = vector.load %arg4[%c2_38, %c0_39, %c0_40] : memref<3x512x1024xbf16, #tpu.memory_space<vmem>>, vector<1x512x1024xbf16>
    %58 = vector.shape_cast %57 : vector<1x512x1024xbf16> to vector<512x1024xbf16>
    %c0_41 = arith.constant 0 : index
    %c0_42 = arith.constant 0 : index
    %c0_43 = arith.constant 0 : index
    %59 = vector.load %arg11[%c0_41, %c0_42, %c0_43] : memref<2x72x512xf32, #tpu.memory_space<vmem>>, vector<1x64x512xf32>
    %60 = vector.shape_cast %59 : vector<1x64x512xf32> to vector<64x512xf32>
    %61 = arith.truncf %60 : vector<64x512xf32> to vector<64x512xbf16>
    %c1_44 = arith.constant 1 : index
    %c0_45 = arith.constant 0 : index
    %c0_46 = arith.constant 0 : index
    %62 = vector.load %arg11[%c1_44, %c0_45, %c0_46] : memref<2x72x512xf32, #tpu.memory_space<vmem>>, vector<1x64x512xf32>
    %63 = vector.shape_cast %62 : vector<1x64x512xf32> to vector<64x512xf32>
    %64 = arith.truncf %63 : vector<64x512xf32> to vector<64x512xbf16>
    %c0_47 = arith.constant 0 : index
    %c8_48 = arith.constant 8 : index
    %c0_49 = arith.constant 0 : index
    %65 = vector.load %arg11[%c0_47, %c8_48, %c0_49] : memref<2x72x512xf32, #tpu.memory_space<vmem>>, vector<1x64x512xf32>
    %66 = vector.shape_cast %65 : vector<1x64x512xf32> to vector<64x512xf32>
    %67 = arith.truncf %66 : vector<64x512xf32> to vector<64x512xbf16>
    %c1_50 = arith.constant 1 : index
    %c8_51 = arith.constant 8 : index
    %c0_52 = arith.constant 0 : index
    %68 = vector.load %arg11[%c1_50, %c8_51, %c0_52] : memref<2x72x512xf32, #tpu.memory_space<vmem>>, vector<1x64x512xf32>
    %69 = vector.shape_cast %68 : vector<1x64x512xf32> to vector<64x512xf32>
    %70 = arith.truncf %69 : vector<64x512xf32> to vector<64x512xbf16>
    %c0_53 = arith.constant 0 : index
    %c0_54 = arith.constant 0 : index
    %71 = vector.load %arg5[%c0_53, %c0_54] : memref<1x512xf32, #tpu.memory_space<vmem>>, vector<1x512xf32>
    %cst_55 = arith.constant dense<0.000000e+00> : vector<64x1024xf32>
    %72 = tpu.matmul %61, %54, %cst_55 {dimension_numbers = #tpu.dot_dimension_numbers<[1], [0], [0], [1], [0, 0, 1, 1], [], []>} : vector<64x512xbf16>, vector<512x1024xbf16>, vector<64x1024xf32> -> vector<64x1024xf32>
    %cst_56 = arith.constant dense<0.000000e+00> : vector<64x1024xf32>
    %73 = tpu.matmul %64, %56, %cst_56 {dimension_numbers = #tpu.dot_dimension_numbers<[1], [0], [0], [1], [0, 0, 1, 1], [], []>} : vector<64x512xbf16>, vector<512x1024xbf16>, vector<64x1024xf32> -> vector<64x1024xf32>
    %74 = arith.addf %72, %73 : vector<64x1024xf32>
    %cst_57 = arith.constant dense<0.000000e+00> : vector<64x1024xf32>
    %75 = tpu.matmul %67, %58, %cst_57 {dimension_numbers = #tpu.dot_dimension_numbers<[1], [0], [0], [1], [0, 0, 1, 1], [], []>} : vector<64x512xbf16>, vector<512x1024xbf16>, vector<64x1024xf32> -> vector<64x1024xf32>
    %76 = arith.addf %74, %75 : vector<64x1024xf32>
    %77 = vector.extract_strided_slice %76 {offsets = [0, 0], sizes = [64, 512], strides = [1, 1]} : vector<64x1024xf32> to vector<64x512xf32>
    %78 = vector.extract_strided_slice %76 {offsets = [0, 512], sizes = [64, 512], strides = [1, 1]} : vector<64x1024xf32> to vector<64x512xf32>
    %79 = arith.maximumf %77, %78 : vector<64x512xf32>
    %cst_58 = arith.constant dense<0.000000e+00> : vector<64x1024xf32>
    %80 = tpu.matmul %64, %54, %cst_58 {dimension_numbers = #tpu.dot_dimension_numbers<[1], [0], [0], [1], [0, 0, 1, 1], [], []>} : vector<64x512xbf16>, vector<512x1024xbf16>, vector<64x1024xf32> -> vector<64x1024xf32>
    %cst_59 = arith.constant dense<0.000000e+00> : vector<64x1024xf32>
    %81 = tpu.matmul %67, %56, %cst_59 {dimension_numbers = #tpu.dot_dimension_numbers<[1], [0], [0], [1], [0, 0, 1, 1], [], []>} : vector<64x512xbf16>, vector<512x1024xbf16>, vector<64x1024xf32> -> vector<64x1024xf32>
    %82 = arith.addf %80, %81 : vector<64x1024xf32>
    %cst_60 = arith.constant dense<0.000000e+00> : vector<64x1024xf32>
    %83 = tpu.matmul %70, %58, %cst_60 {dimension_numbers = #tpu.dot_dimension_numbers<[1], [0], [0], [1], [0, 0, 1, 1], [], []>} : vector<64x512xbf16>, vector<512x1024xbf16>, vector<64x1024xf32> -> vector<64x1024xf32>
    %84 = arith.addf %82, %83 : vector<64x1024xf32>
    %85 = vector.extract_strided_slice %84 {offsets = [0, 0], sizes = [64, 512], strides = [1, 1]} : vector<64x1024xf32> to vector<64x512xf32>
    %86 = vector.extract_strided_slice %84 {offsets = [0, 512], sizes = [64, 512], strides = [1, 1]} : vector<64x1024xf32> to vector<64x512xf32>
    %87 = arith.maximumf %85, %86 : vector<64x512xf32>
    %88 = arith.maximumf %79, %87 : vector<64x512xf32>
    %89 = vector.broadcast %71 : vector<1x512xf32> to vector<64x512xf32>
    %90 = arith.addf %88, %89 : vector<64x512xf32>
    %cst_61 = arith.constant 0.000000e+00 : f32
    %91 = vector.broadcast %cst_61 : f32 to vector<64x512xf32>
    %92 = arith.maximumf %90, %91 : vector<64x512xf32>
    %93 = vector.extract_strided_slice %92 {offsets = [0, 0], sizes = [8, 512], strides = [1, 1]} : vector<64x512xf32> to vector<8x512xf32>
    %94 = arith.truncf %93 : vector<8x512xf32> to vector<8x512xbf16>
    %c0_62 = arith.constant 0 : index
    %c0_63 = arith.constant 0 : index
    %c0_64 = arith.constant 0 : index
    %95 = vector.load %arg6[%c0_62, %c0_63, %c0_64] : memref<8x512x128xbf16, #tpu.memory_space<vmem>>, vector<1x512x128xbf16>
    %96 = vector.shape_cast %95 : vector<1x512x128xbf16> to vector<512x128xbf16>
    %cst_65 = arith.constant dense<0.000000e+00> : vector<8x128xf32>
    %97 = tpu.matmul %94, %96, %cst_65 {dimension_numbers = #tpu.dot_dimension_numbers<[1], [0], [0], [1], [0, 0, 1, 1], [], []>} : vector<8x512xbf16>, vector<512x128xbf16>, vector<8x128xf32> -> vector<8x128xf32>
    %98 = vector.extract_strided_slice %92 {offsets = [8, 0], sizes = [8, 512], strides = [1, 1]} : vector<64x512xf32> to vector<8x512xf32>
    %99 = arith.truncf %98 : vector<8x512xf32> to vector<8x512xbf16>
    %c1_66 = arith.constant 1 : index
    %c0_67 = arith.constant 0 : index
    %c0_68 = arith.constant 0 : index
    %100 = vector.load %arg6[%c1_66, %c0_67, %c0_68] : memref<8x512x128xbf16, #tpu.memory_space<vmem>>, vector<1x512x128xbf16>
    %101 = vector.shape_cast %100 : vector<1x512x128xbf16> to vector<512x128xbf16>
    %cst_69 = arith.constant dense<0.000000e+00> : vector<8x128xf32>
    %102 = tpu.matmul %99, %101, %cst_69 {dimension_numbers = #tpu.dot_dimension_numbers<[1], [0], [0], [1], [0, 0, 1, 1], [], []>} : vector<8x512xbf16>, vector<512x128xbf16>, vector<8x128xf32> -> vector<8x128xf32>
    %103 = arith.addf %97, %102 : vector<8x128xf32>
    %104 = vector.extract_strided_slice %92 {offsets = [16, 0], sizes = [8, 512], strides = [1, 1]} : vector<64x512xf32> to vector<8x512xf32>
    %105 = arith.truncf %104 : vector<8x512xf32> to vector<8x512xbf16>
    %c2_70 = arith.constant 2 : index
    %c0_71 = arith.constant 0 : index
    %c0_72 = arith.constant 0 : index
    %106 = vector.load %arg6[%c2_70, %c0_71, %c0_72] : memref<8x512x128xbf16, #tpu.memory_space<vmem>>, vector<1x512x128xbf16>
    %107 = vector.shape_cast %106 : vector<1x512x128xbf16> to vector<512x128xbf16>
    %cst_73 = arith.constant dense<0.000000e+00> : vector<8x128xf32>
    %108 = tpu.matmul %105, %107, %cst_73 {dimension_numbers = #tpu.dot_dimension_numbers<[1], [0], [0], [1], [0, 0, 1, 1], [], []>} : vector<8x512xbf16>, vector<512x128xbf16>, vector<8x128xf32> -> vector<8x128xf32>
    %109 = arith.addf %103, %108 : vector<8x128xf32>
    %110 = vector.extract_strided_slice %92 {offsets = [24, 0], sizes = [8, 512], strides = [1, 1]} : vector<64x512xf32> to vector<8x512xf32>
    %111 = arith.truncf %110 : vector<8x512xf32> to vector<8x512xbf16>
    %c3_74 = arith.constant 3 : index
    %c0_75 = arith.constant 0 : index
    %c0_76 = arith.constant 0 : index
    %112 = vector.load %arg6[%c3_74, %c0_75, %c0_76] : memref<8x512x128xbf16, #tpu.memory_space<vmem>>, vector<1x512x128xbf16>
    %113 = vector.shape_cast %112 : vector<1x512x128xbf16> to vector<512x128xbf16>
    %cst_77 = arith.constant dense<0.000000e+00> : vector<8x128xf32>
    %114 = tpu.matmul %111, %113, %cst_77 {dimension_numbers = #tpu.dot_dimension_numbers<[1], [0], [0], [1], [0, 0, 1, 1], [], []>} : vector<8x512xbf16>, vector<512x128xbf16>, vector<8x128xf32> -> vector<8x128xf32>
    %115 = arith.addf %109, %114 : vector<8x128xf32>
    %116 = vector.extract_strided_slice %92 {offsets = [32, 0], sizes = [8, 512], strides = [1, 1]} : vector<64x512xf32> to vector<8x512xf32>
    %117 = arith.truncf %116 : vector<8x512xf32> to vector<8x512xbf16>
    %c4 = arith.constant 4 : index
    %c0_78 = arith.constant 0 : index
    %c0_79 = arith.constant 0 : index
    %118 = vector.load %arg6[%c4, %c0_78, %c0_79] : memref<8x512x128xbf16, #tpu.memory_space<vmem>>, vector<1x512x128xbf16>
    %119 = vector.shape_cast %118 : vector<1x512x128xbf16> to vector<512x128xbf16>
    %cst_80 = arith.constant dense<0.000000e+00> : vector<8x128xf32>
    %120 = tpu.matmul %117, %119, %cst_80 {dimension_numbers = #tpu.dot_dimension_numbers<[1], [0], [0], [1], [0, 0, 1, 1], [], []>} : vector<8x512xbf16>, vector<512x128xbf16>, vector<8x128xf32> -> vector<8x128xf32>
    %121 = arith.addf %115, %120 : vector<8x128xf32>
    %122 = vector.extract_strided_slice %92 {offsets = [40, 0], sizes = [8, 512], strides = [1, 1]} : vector<64x512xf32> to vector<8x512xf32>
    %123 = arith.truncf %122 : vector<8x512xf32> to vector<8x512xbf16>
    %c5 = arith.constant 5 : index
    %c0_81 = arith.constant 0 : index
    %c0_82 = arith.constant 0 : index
    %124 = vector.load %arg6[%c5, %c0_81, %c0_82] : memref<8x512x128xbf16, #tpu.memory_space<vmem>>, vector<1x512x128xbf16>
    %125 = vector.shape_cast %124 : vector<1x512x128xbf16> to vector<512x128xbf16>
    %cst_83 = arith.constant dense<0.000000e+00> : vector<8x128xf32>
    %126 = tpu.matmul %123, %125, %cst_83 {dimension_numbers = #tpu.dot_dimension_numbers<[1], [0], [0], [1], [0, 0, 1, 1], [], []>} : vector<8x512xbf16>, vector<512x128xbf16>, vector<8x128xf32> -> vector<8x128xf32>
    %127 = arith.addf %121, %126 : vector<8x128xf32>
    %128 = vector.extract_strided_slice %92 {offsets = [48, 0], sizes = [8, 512], strides = [1, 1]} : vector<64x512xf32> to vector<8x512xf32>
    %129 = arith.truncf %128 : vector<8x512xf32> to vector<8x512xbf16>
    %c6 = arith.constant 6 : index
    %c0_84 = arith.constant 0 : index
    %c0_85 = arith.constant 0 : index
    %130 = vector.load %arg6[%c6, %c0_84, %c0_85] : memref<8x512x128xbf16, #tpu.memory_space<vmem>>, vector<1x512x128xbf16>
    %131 = vector.shape_cast %130 : vector<1x512x128xbf16> to vector<512x128xbf16>
    %cst_86 = arith.constant dense<0.000000e+00> : vector<8x128xf32>
    %132 = tpu.matmul %129, %131, %cst_86 {dimension_numbers = #tpu.dot_dimension_numbers<[1], [0], [0], [1], [0, 0, 1, 1], [], []>} : vector<8x512xbf16>, vector<512x128xbf16>, vector<8x128xf32> -> vector<8x128xf32>
    %133 = arith.addf %127, %132 : vector<8x128xf32>
    %134 = vector.extract_strided_slice %92 {offsets = [56, 0], sizes = [8, 512], strides = [1, 1]} : vector<64x512xf32> to vector<8x512xf32>
    %135 = arith.truncf %134 : vector<8x512xf32> to vector<8x512xbf16>
    %c7 = arith.constant 7 : index
    %c0_87 = arith.constant 0 : index
    %c0_88 = arith.constant 0 : index
    %136 = vector.load %arg6[%c7, %c0_87, %c0_88] : memref<8x512x128xbf16, #tpu.memory_space<vmem>>, vector<1x512x128xbf16>
    %137 = vector.shape_cast %136 : vector<1x512x128xbf16> to vector<512x128xbf16>
    %cst_89 = arith.constant dense<0.000000e+00> : vector<8x128xf32>
    %138 = tpu.matmul %135, %137, %cst_89 {dimension_numbers = #tpu.dot_dimension_numbers<[1], [0], [0], [1], [0, 0, 1, 1], [], []>} : vector<8x512xbf16>, vector<512x128xbf16>, vector<8x128xf32> -> vector<8x128xf32>
    %139 = arith.addf %133, %138 : vector<8x128xf32>
    %c0_90 = arith.constant 0 : index
    %c0_91 = arith.constant 0 : index
    %140 = vector.load %arg7[%c0_90, %c0_91] : memref<1x128xf32, #tpu.memory_space<vmem>>, vector<1x128xf32>
    %141 = vector.broadcast %140 : vector<1x128xf32> to vector<8x128xf32>
    %142 = arith.addf %139, %141 : vector<8x128xf32>
    %cst_92 = arith.constant 0.000000e+00 : f32
    %143 = vector.broadcast %cst_92 : f32 to vector<8x128xf32>
    %144 = arith.maximumf %142, %143 : vector<8x128xf32>
    %145 = arith.truncf %144 : vector<8x128xf32> to vector<8x128xbf16>
    %c0_93 = arith.constant 0 : index
    %c0_94 = arith.constant 0 : index
    %146 = vector.load %arg8[%c0_93, %c0_94] : memref<128x128xbf16, #tpu.memory_space<vmem>>, vector<128x128xbf16>
    %cst_95 = arith.constant dense<0.000000e+00> : vector<8x128xf32>
    %147 = tpu.matmul %145, %146, %cst_95 {dimension_numbers = #tpu.dot_dimension_numbers<[1], [0], [0], [1], [0, 0, 1, 1], [], []>} : vector<8x128xbf16>, vector<128x128xbf16>, vector<8x128xf32> -> vector<8x128xf32>
    %c0_96 = arith.constant 0 : index
    %c0_97 = arith.constant 0 : index
    %148 = vector.load %arg9[%c0_96, %c0_97] : memref<1x128xf32, #tpu.memory_space<vmem>>, vector<1x128xf32>
    %149 = vector.broadcast %148 : vector<1x128xf32> to vector<8x128xf32>
    %150 = arith.addf %147, %149 : vector<8x128xf32>
    %c0_98 = arith.constant 0 : index
    %c0_99 = arith.constant 0 : index
    %151 = vector.load %arg10[%c0_98, %c0_99] : memref<8x128xf32, #tpu.memory_space<vmem>>, vector<8x128xf32>
    tpu.vector_store %arg10[%c0_98, %c0_99], %150 {strides = array<i32>} : memref<8x128xf32, #tpu.memory_space<vmem>>, vector<8x128xf32>,
    return
  }
  func.func @transform_0(%arg0: i32) -> (i32, i32, i32, i32) {
    %c0_i32 = arith.constant 0 : i32
    %c0_i32_0 = arith.constant 0 : i32
    %c0_i32_1 = arith.constant 0 : i32
    %c0_i32_2 = arith.constant 0 : i32
    return %arg0, %c0_i32, %c0_i32_0, %c0_i32_1 : i32, i32, i32, i32
  }
  func.func @transform_1(%arg0: i32) -> (i32, i32) {
    %c0_i32 = arith.constant 0 : i32
    %c0_i32_0 = arith.constant 0 : i32
    %c0_i32_1 = arith.constant 0 : i32
    return %c0_i32, %c0_i32_0 : i32, i32
  }
  func.func @transform_2(%arg0: i32) -> (i32, i32) {
    %c0_i32 = arith.constant 0 : i32
    %c0_i32_0 = arith.constant 0 : i32
    %c0_i32_1 = arith.constant 0 : i32
    return %c0_i32, %c0_i32_0 : i32, i32
  }
  func.func @transform_3(%arg0: i32) -> (i32, i32, i32) {
    %c0_i32 = arith.constant 0 : i32
    %c0_i32_0 = arith.constant 0 : i32
    %c0_i32_1 = arith.constant 0 : i32
    %c0_i32_2 = arith.constant 0 : i32
    return %c0_i32, %c0_i32_0, %c0_i32_1 : i32, i32, i32
  }
  func.func @transform_4(%arg0: i32) -> (i32, i32) {
    %c0_i32 = arith.constant 0 : i32
    %c0_i32_0 = arith.constant 0 : i32
    %c0_i32_1 = arith.constant 0 : i32
    return %c0_i32, %c0_i32_0 : i32, i32
  }
  func.func @transform_5(%arg0: i32) -> (i32, i32, i32) {
    %c0_i32 = arith.constant 0 : i32
    %c0_i32_0 = arith.constant 0 : i32
    %c0_i32_1 = arith.constant 0 : i32
    %c0_i32_2 = arith.constant 0 : i32
    return %c0_i32, %c0_i32_0, %c0_i32_1 : i32, i32, i32
  }
  func.func @transform_6(%arg0: i32) -> (i32, i32) {
    %c0_i32 = arith.constant 0 : i32
    %c0_i32_0 = arith.constant 0 : i32
    %c0_i32_1 = arith.constant 0 : i32
    return %c0_i32, %c0_i32_0 : i32, i32
  }
  func.func @transform_7(%arg0: i32) -> (i32, i32) {
    %c0_i32 = arith.constant 0 : i32
    %c0_i32_0 = arith.constant 0 : i32
    %c0_i32_1 = arith.constant 0 : i32
    return %c0_i32, %c0_i32_0 : i32, i32
  }
  func.func @transform_8(%arg0: i32) -> (i32, i32) {
    %c0_i32 = arith.constant 0 : i32
    %c0_i32_0 = arith.constant 0 : i32
    %c0_i32_1 = arith.constant 0 : i32
    return %c0_i32, %c0_i32_0 : i32, i32
  }
  func.func @transform_9(%arg0: i32) -> (i32, i32) {
    %c0_i32 = arith.constant 0 : i32
    %c0_i32_0 = arith.constant 0 : i32
    return %arg0, %c0_i32 : i32, i32
  }
}

</mosaic_0001>

<llo_original>
// kernel: ocr_forward.1
$region0: #{ocr_forward.1}
  #allocation0 [shape = 'u32[]', space=smem, size = 0x4, offset = 0x4, fixed_abs, tag = 'smem constant byte address 0x4 - core index']
  #allocation1 [shape = 'u32[144,128]{1,0:T(1,128)}', space=vmem, size = 0x12000, scoped, tag = 'internal scratch']
  #allocation2 [shape = 'f32[2,72,512]{2,1,0:T(8,128)}', space=vmem, size = 0x48000, scoped, tag = 'scratch operand']
  %s0 = inlined_call_operand.vmem [shape: f32[1,4,64,96], index: 0, kind: input, shape index: {}]
  %s1 = inlined_call_operand.hbm [shape: bf16[96,1024], index: 1, kind: input, shape index: {}]
  %s2 = inlined_call_operand.vmem [shape: f32[1,512], index: 2, kind: input, shape index: {}]
  %s3 = inlined_call_operand.vmem [shape: bf16[3,512,1024], index: 3, kind: input, shape index: {}]
  %s4 = inlined_call_operand.vmem [shape: f32[1,512], index: 4, kind: input, shape index: {}]
  %s5 = inlined_call_operand.hbm [shape: bf16[8,512,128], index: 5, kind: input, shape index: {}]
  %s6 = inlined_call_operand.vmem [shape: f32[1,128], index: 6, kind: input, shape index: {}]
  %s7 = inlined_call_operand.hbm [shape: bf16[128,128], index: 7, kind: input, shape index: {}]
  %s8 = inlined_call_operand.vmem [shape: f32[1,128], index: 8, kind: input, shape index: {}]
  %s9 = inlined_call_operand.vmem [shape: f32[8,128], index: 9, kind: output, shape index: {}]
  %s10 = sld [smem:[#allocation0]]
  $region58: #{ocr_forward.1} parent=0
    _
  %s12 = ssub.s32 1, %s10
  %s13 = scalar_select 0, %s12, %s10
  $region1: #{ocr_forward.1} parent=0
    #allocation3 [shape = 'u8[196608]{0}', space=vmem, size = 0x30000, scoped, tag = 'input window, operand 1, single buffered']
    #allocation4 [shape = 's32[1]{0}', space=sflag, size = 0x4, scoped, tag = 'scoped memory for ocr_forward.1']
    #allocation5 [shape = 'u8[1048576]{0}', space=vmem, size = 0x100000, scoped, tag = 'input window, operand 5, single buffered']
    #allocation6 [shape = 's32[1]{0}', space=sflag, size = 0x4, scoped, tag = 'scoped memory for ocr_forward.1']
    #allocation7 [shape = 'u8[32768]{0}', space=vmem, size = 0x8000, scoped, tag = 'input window, operand 7, single buffered']
    %14 = vsyncpa [#allocation4], 0
    %15 = vsyncpa [#allocation6], 0
    // Predicated region
    $region2: #{ocr_forward.1} parent=1 // pred_check
      _
    $region3: #{ocr_forward.1} parent=1 // pred_check_branch
      %17 = sbr.rel (0) target = $region5
    $region4: #{ocr_forward.1} parent=1 // pred_region
      _
    $region5: #{ocr_forward.1} parent=1 // pred_fallthru
      _
    // Predicated region
    $region6: #{ocr_forward.1} parent=1 // pred_check
      _
    $region7: #{ocr_forward.1} parent=1 // pred_check_branch
      %19 = sbr.rel (0) target = $region9
    $region8: #{ocr_forward.1} parent=1 // pred_region
      %s21 = ssub.s32 6144, 6144
      %22 = vsyncadd [#allocation4], %s21
      %s23 = sshll.u32 [#allocation3], 4
      %s24 = int_to_ptr.vmem [resolvable:$true] %s23
      %29 = dma.hbm_to_vmem [thread:$0]  %s1, 6144, %s24, [#allocation4], 512, 512, 32
    $region9: #{ocr_forward.1} parent=1 // pred_fallthru
      _
    // Predicated region
    $region10: #{ocr_forward.1} parent=1 // pred_check
      _
    $region11: #{ocr_forward.1} parent=1 // pred_check_branch
      %31 = sbr.rel (0) target = $region13
    $region12: #{ocr_forward.1} parent=1 // pred_region
      _
    $region13: #{ocr_forward.1} parent=1 // pred_fallthru
      _
    // Predicated region
    $region14: #{ocr_forward.1} parent=1 // pred_check
      _
    $region15: #{ocr_forward.1} parent=1 // pred_check_branch
      %33 = sbr.rel (0) target = $region17
    $region16: #{ocr_forward.1} parent=1 // pred_region
      _
    $region17: #{ocr_forward.1} parent=1 // pred_fallthru
      _
    // Predicated region
    $region18: #{ocr_forward.1} parent=1 // pred_check
      _
    $region19: #{ocr_forward.1} parent=1 // pred_check_branch
      %35 = sbr.rel (0) target = $region21
    $region20: #{ocr_forward.1} parent=1 // pred_region
      _
    $region21: #{ocr_forward.1} parent=1 // pred_fallthru
      _
    // Predicated region
    $region22: #{ocr_forward.1} parent=1 // pred_check
      _
    $region23: #{ocr_forward.1} parent=1 // pred_check_branch
      %37 = sbr.rel (0) target = $region25
    $region24: #{ocr_forward.1} parent=1 // pred_region
      %s39 = ssub.s32 32768, 32768
      %40 = vsyncadd [#allocation6], %s39
      %s41 = sshll.u32 [#allocation5], 4
      %s42 = int_to_ptr.vmem [resolvable:$true] %s41
      %47 = dma.hbm_to_vmem [thread:$0]  %s5, 32768, %s42, [#allocation6], 64, 64, 4
    $region25: #{ocr_forward.1} parent=1 // pred_fallthru
      _
    // Predicated region
    $region26: #{ocr_forward.1} parent=1 // pred_check
      _
    $region27: #{ocr_forward.1} parent=1 // pred_check_branch
      %49 = sbr.rel (0) target = $region29
    $region28: #{ocr_forward.1} parent=1 // pred_region
      _
    $region29: #{ocr_forward.1} parent=1 // pred_fallthru
      _
    // Predicated region
    $region30: #{ocr_forward.1} parent=1 // pred_check
      _
    $region31: #{ocr_forward.1} parent=1 // pred_check_branch
      %51 = sbr.rel (0) target = $region33
    $region32: #{ocr_forward.1} parent=1 // pred_region
      %s53 = ssub.s32 1024, 1024
      %54 = vsyncadd [#allocation6], %s53
      %s55 = sshll.u32 [#allocation7], 4
      %s56 = int_to_ptr.vmem [resolvable:$true] %s55
      %61 = dma.hbm_to_vmem [thread:$0]  %s7, 1024, %s56, [#allocation6], 64, 64, 4
    $region33: #{ocr_forward.1} parent=1 // pred_fallthru
      _
    // Predicated region
    $region34: #{ocr_forward.1} parent=1 // pred_check
      _
    $region35: #{ocr_forward.1} parent=1 // pred_check_branch
      %63 = sbr.rel (0) target = $region37
    $region36: #{ocr_forward.1} parent=1 // pred_region
      _
    $region37: #{ocr_forward.1} parent=1 // pred_fallthru
      _
    // Predicated region
    $region38: #{ocr_forward.1} parent=1 // pred_check
      _
    $region39: #{ocr_forward.1} parent=1 // pred_check_branch
      %65 = sbr.rel (0) target = $region41
    $region40: #{ocr_forward.1} parent=1 // pred_region
      %66 = dma.done [#allocation4], 6144
    $region41: #{ocr_forward.1} parent=1 // pred_fallthru
      _
    // Predicated region
    $region42: #{ocr_forward.1} parent=1 // pred_check
      _
    $region43: #{ocr_forward.1} parent=1 // pred_check_branch
      %68 = sbr.rel (0) target = $region45
    $region44: #{ocr_forward.1} parent=1 // pred_region
      %69 = dma.done [#allocation6], 32768
    $region45: #{ocr_forward.1} parent=1 // pred_fallthru
      _
    // Predicated region
    $region46: #{ocr_forward.1} parent=1 // pred_check
      _
    $region47: #{ocr_forward.1} parent=1 // pred_check_branch
      %71 = sbr.rel (0) target = $region49
    $region48: #{ocr_forward.1} parent=1 // pred_region
      %72 = dma.done [#allocation6], 1024
    $region49: #{ocr_forward.1} parent=1 // pred_fallthru
      _
    %v74 = vld [vmem:[#allocation3] sm:$0xff]
    %v75 = vld [vmem:[#allocation3 + $0x8] sm:$0xff]
    %v76 = vld [vmem:[#allocation3 + $0x10] sm:$0xff]
    %v77 = vld [vmem:[#allocation3 + $0x18] sm:$0xff]
    %v78 = vld [vmem:[#allocation3 + $0x20] sm:$0xff]
    %v79 = vld [vmem:[#allocation3 + $0x28] sm:$0xff]
    %v80 = vld [vmem:[#allocation3 + $0x30] sm:$0xff]
    %v81 = vld [vmem:[#allocation3 + $0x38] sm:$0xff]
    %v82 = vld [vmem:[#allocation3 + $0x40] sm:$0xff]
    %v83 = vld [vmem:[#allocation3 + $0x48] sm:$0xff]
    %v84 = vld [vmem:[#allocation3 + $0x50] sm:$0xff]
    %v85 = vld [vmem:[#allocation3 + $0x58] sm:$0xff]
    %v86 = vld [vmem:[#allocation3 + $0x60] sm:$0xff]
    %v87 = vld [vmem:[#allocation3 + $0x68] sm:$0xff]
    %v88 = vld [vmem:[#allocation3 + $0x70] sm:$0xff]
    %v89 = vld [vmem:[#allocation3 + $0x78] sm:$0xff]
    %v90 = vld [vmem:[#allocation3 + $0x80] sm:$0xff]
    %v91 = vld [vmem:[#allocation3 + $0x88] sm:$0xff]
    %v92 = vld [vmem:[#allocation3 + $0x90] sm:$0xff]
    %v93 = vld [vmem:[#allocation3 + $0x98] sm:$0xff]
    %v94 = vld [vmem:[#allocation3 + $0xa0] sm:$0xff]
    %v95 = vld [vmem:[#allocation3 + $0xa8] sm:$0xff]
    %v96 = vld [vmem:[#allocation3 + $0xb0] sm:$0xff]
    %v97 = vld [vmem:[#allocation3 + $0xb8] sm:$0xff]
    %v98 = vld [vmem:[#allocation3 + $0xc0] sm:$0xff]
    %v99 = vld [vmem:[#allocation3 + $0xc8] sm:$0xff]
    %v100 = vld [vmem:[#allocation3 + $0xd0] sm:$0xff]
    %v101 = vld [vmem:[#allocation3 + $0xd8] sm:$0xff]
    %v102 = vld [vmem:[#allocation3 + $0xe0] sm:$0xff]
    %v103 = vld [vmem:[#allocation3 + $0xe8] sm:$0xff]
    %v104 = vld [vmem:[#allocation3 + $0xf0] sm:$0xff]
    %v105 = vld [vmem:[#allocation3 + $0xf8] sm:$0xff]
    %v106 = vld [vmem:[#allocation3 + $0x100] sm:$0xff]
    %v107 = vld [vmem:[#allocation3 + $0x108] sm:$0xff]
    %v108 = vld [vmem:[#allocation3 + $0x110] sm:$0xff]
    %v109 = vld [vmem:[#allocation3 + $0x118] sm:$0xff]
    %v110 = vld [vmem:[#allocation3 + $0x120] sm:$0xff]
    %v111 = vld [vmem:[#allocation3 + $0x128] sm:$0xff]
    %v112 = vld [vmem:[#allocation3 + $0x130] sm:$0xff]
    %v113 = vld [vmem:[#allocation3 + $0x138] sm:$0xff]
    %v114 = vld [vmem:[#allocation3 + $0x140] sm:$0xff]
    %v115 = vld [vmem:[#allocation3 + $0x148] sm:$0xff]
    %v116 = vld [vmem:[#allocation3 + $0x150] sm:$0xff]
    %v117 = vld [vmem:[#allocation3 + $0x158] sm:$0xff]
    %v118 = vld [vmem:[#allocation3 + $0x160] sm:$0xff]
    %v119 = vld [vmem:[#allocation3 + $0x168] sm:$0xff]
    %v120 = vld [vmem:[#allocation3 + $0x170] sm:$0xff]
    %v121 = vld [vmem:[#allocation3 + $0x178] sm:$0xff]
    %v122 = vld [vmem:[%s2] sm:$0xf]
    %123 = vst [vmem:[#allocation2] sm:$0xff] 0.0
    %124 = vst [vmem:[#allocation2 + $0x8] sm:$0xff] 0.0
    %125 = vst [vmem:[#allocation2 + $0x10] sm:$0xff] 0.0
    %126 = vst [vmem:[#allocation2 + $0x18] sm:$0xff] 0.0
    %s127 = scalar_lea.vmem %s0, 128
    %v128 = vld [vmem:[%s127] sm:$0xff]
    %v129 = vld [vmem:[%s127 + $0x8] sm:$0xff]
    %v130 = vld [vmem:[%s127 + $0x10] sm:$0xff]
    %v131 = vld [vmem:[%s127 + $0x18] sm:$0xff]
    %v132 = vld [vmem:[%s127 + $0x20] sm:$0xff]
    %v133 = vld [vmem:[%s127 + $0x28] sm:$0xff]
    %v134 = vld [vmem:[%s127 + $0x30] sm:$0xff]
    %v135 = vld [vmem:[%s127 + $0x38] sm:$0xff]
    %v136 = vpack.c.bf16 %v129, %v128
    %v137 = vpack.c.bf16 %v131, %v130
    %v138 = vpack.c.bf16 %v133, %v132
    %v139 = vpack.c.bf16 %v135, %v134
    %v188 = vunpack.c.l.b16 %v74
    %v189 = vunpack.c.h.b16 %v74
    %v190 = vunpack.c.l.b16 %v75
    %v191 = vunpack.c.h.b16 %v75
    %v192 = vunpack.c.l.b16 %v76
    %v193 = vunpack.c.h.b16 %v76
    %v194 = vunpack.c.l.b16 %v77
    %v195 = vunpack.c.h.b16 %v77
    %v196 = vunpack.c.l.b16 %v78
    %v197 = vunpack.c.h.b16 %v78
    %v198 = vunpack.c.l.b16 %v79
    %v199 = vunpack.c.h.b16 %v79
    %v200 = vunpack.c.l.b16 %v80
    %v201 = vunpack.c.h.b16 %v80
    %v202 = vunpack.c.l.b16 %v81
    %v203 = vunpack.c.h.b16 %v81
    %v204 = vunpack.c.l.b16 %v82
    %v205 = vunpack.c.h.b16 %v82
    %v206 = vunpack.c.l.b16 %v83
    %v207 = vunpack.c.h.b16 %v83
    %v208 = vunpack.c.l.b16 %v84
    %v209 = vunpack.c.h.b16 %v84
    %v210 = vunpack.c.l.b16 %v85
    %v211 = vunpack.c.h.b16 %v85
    %v212 = vunpack.c.l.b16 %v86
    %v213 = vunpack.c.h.b16 %v86
    %v214 = vunpack.c.l.b16 %v87
    %v215 = vunpack.c.h.b16 %v87
    %v216 = vunpack.c.l.b16 %v88
    %v217 = vunpack.c.h.b16 %v88
    %v218 = vunpack.c.l.b16 %v89
    %v219 = vunpack.c.h.b16 %v89
    %v220 = vunpack.c.l.b16 %v90
    %v221 = vunpack.c.h.b16 %v90
    %v222 = vunpack.c.l.b16 %v91
    %v223 = vunpack.c.h.b16 %v91
    %v224 = vunpack.c.l.b16 %v92
    %v225 = vunpack.c.h.b16 %v92
    %v226 = vunpack.c.l.b16 %v93
    %v227 = vunpack.c.h.b16 %v93
    %v228 = vunpack.c.l.b16 %v94
    %v229 = vunpack.c.h.b16 %v94
    %v230 = vunpack.c.l.b16 %v95
    %v231 = vunpack.c.h.b16 %v95
    %v232 = vunpack.c.l.b16 %v96
    %v233 = vunpack.c.h.b16 %v96
    %v234 = vunpack.c.l.b16 %v97
    %v235 = vunpack.c.h.b16 %v97
    %v236 = vunpack.c.l.b16 %v98
    %v237 = vunpack.c.h.b16 %v98
    %v238 = vunpack.c.l.b16 %v99
    %v239 = vunpack.c.h.b16 %v99
    %v240 = vunpack.c.l.b16 %v100
    %v241 = vunpack.c.h.b16 %v100
    %v242 = vunpack.c.l.b16 %v101
    %v243 = vunpack.c.h.b16 %v101
    %v244 = vunpack.c.l.b16 %v102
    %v245 = vunpack.c.h.b16 %v102
    %v246 = vunpack.c.l.b16 %v103
    %v247 = vunpack.c.h.b16 %v103
    %v248 = vunpack.c.l.b16 %v104
    %v249 = vunpack.c.h.b16 %v104
    %v250 = vunpack.c.l.b16 %v105
    %v251 = vunpack.c.h.b16 %v105
    %v252 = vunpack.c.l.b16 %v106
    %v253 = vunpack.c.h.b16 %v106
    %v254 = vunpack.c.l.b16 %v107
    %v255 = vunpack.c.h.b16 %v107
    %v256 = vunpack.c.l.b16 %v108
    %v257 = vunpack.c.h.b16 %v108
    %v258 = vunpack.c.l.b16 %v109
    %v259 = vunpack.c.h.b16 %v109
    %v260 = vunpack.c.l.b16 %v110
    %v261 = vunpack.c.h.b16 %v110
    %v262 = vunpack.c.l.b16 %v111
    %v263 = vunpack.c.h.b16 %v111
    %v264 = vunpack.c.l.b16 %v112
    %v265 = vunpack.c.h.b16 %v112
    %v266 = vunpack.c.l.b16 %v113
    %v267 = vunpack.c.h.b16 %v113
    %v268 = vunpack.c.l.b16 %v114
    %v269 = vunpack.c.h.b16 %v114
    %v270 = vunpack.c.l.b16 %v115
    %v271 = vunpack.c.h.b16 %v115
    %v272 = vunpack.c.l.b16 %v116
    %v273 = vunpack.c.h.b16 %v116
    %v274 = vunpack.c.l.b16 %v117
    %v275 = vunpack.c.h.b16 %v117
    %v276 = vunpack.c.l.b16 %v118
    %v277 = vunpack.c.h.b16 %v118
    %v278 = vunpack.c.l.b16 %v119
    %v279 = vunpack.c.h.b16 %v119
    %v280 = vunpack.c.l.b16 %v120
    %v281 = vunpack.c.h.b16 %v120
    %v282 = vunpack.c.l.b16 %v121
    %v283 = vunpack.c.h.b16 %v121
    %v284 = vpack.c.b16 %v196, %v188
    %v285 = vpack.c.b16 %v197, %v189
    %v286 = vpack.c.b16 %v198, %v190
    %v287 = vpack.c.b16 %v199, %v191
    %v288 = vpack.c.b16 %v200, %v192
    %v289 = vpack.c.b16 %v201, %v193
    %v290 = vpack.c.b16 %v202, %v194
    %v291 = vpack.c.b16 %v203, %v195
    %v292 = vpack.c.b16 %v212, %v204
    %v293 = vpack.c.b16 %v213, %v205
    %v294 = vpack.c.b16 %v214, %v206
    %v295 = vpack.c.b16 %v215, %v207
    %v296 = vpack.c.b16 %v216, %v208
    %v297 = vpack.c.b16 %v217, %v209
    %v298 = vpack.c.b16 %v218, %v210
    %v299 = vpack.c.b16 %v219, %v211
    %v300 = vpack.c.b16 %v228, %v220
    %v301 = vpack.c.b16 %v229, %v221
    %v302 = vpack.c.b16 %v230, %v222
    %v303 = vpack.c.b16 %v231, %v223
    %v304 = vpack.c.b16 %v232, %v224
    %v305 = vpack.c.b16 %v233, %v225
    %v306 = vpack.c.b16 %v234, %v226
    %v307 = vpack.c.b16 %v235, %v227
    %v308 = vpack.c.b16 %v244, %v236
    %v309 = vpack.c.b16 %v245, %v237
    %v310 = vpack.c.b16 %v246, %v238
    %v311 = vpack.c.b16 %v247, %v239
    %v312 = vpack.c.b16 %v248, %v240
    %v313 = vpack.c.b16 %v249, %v241
    %v314 = vpack.c.b16 %v250, %v242
    %v315 = vpack.c.b16 %v251, %v243
    %v316 = vpack.c.b16 %v260, %v252
    %v317 = vpack.c.b16 %v261, %v253
    %v318 = vpack.c.b16 %v262, %v254
    %v319 = vpack.c.b16 %v263, %v255
    %v320 = vpack.c.b16 %v264, %v256
    %v321 = vpack.c.b16 %v265, %v257
    %v322 = vpack.c.b16 %v266, %v258
    %v323 = vpack.c.b16 %v267, %v259
    %v324 = vpack.c.b16 %v276, %v268
    %v325 = vpack.c.b16 %v277, %v269
    %v326 = vpack.c.b16 %v278, %v270
    %v327 = vpack.c.b16 %v279, %v271
    %v328 = vpack.c.b16 %v280, %v272
    %v329 = vpack.c.b16 %v281, %v273
    %v330 = vpack.c.b16 %v282, %v274
    %v331 = vpack.c.b16 %v283, %v275
    %vm380 = vcmask 785408
    %v382 = vsel %vm380, %v136, 0
    %v385 = vsel %vm380, %v137, 0
    %v388 = vsel %vm380, %v138, 0
    %v391 = vsel %vm380, %v139, 0
    %393 = vmatprep.subr.bf16.mxu0 %v285
    %394 = vmatpush1.bf16.msra.mxu0 %v284
    %395 = vmatprep.subr.bf16.mxu0 %v293
    %396 = vmatpush1.bf16.msra.mxu0 %v292
    %397 = vmatprep.subr.bf16.mxu0 %v301
    %398 = vmatpush1.bf16.msra.mxu0 %v300
    %399 = vmatprep.subr.bf16.mxu0 %v309
    %400 = vmatpush1.bf16.msra.mxu0 %v308
    %401 = vmatprep.subr.bf16.mxu0 %v317
    %402 = vmatpush1.bf16.msra.mxu0 %v316
    %403 = vmatprep.subr.bf16.mxu0 %v325
    %404 = vmatpush1.bf16.msra.mxu0 %v324
    %405 = vmatprep.subr.bf16.mxu0 0
    %406 = vmatpush1.bf16.msra.mxu0 0
    %407 = vmatprep.subr.bf16.mxu0 0
    %408 = vmatpush1.bf16.msra.mxu0 0
    %409 = vmatprep.subr.bf16.mxu0 0
    %410 = vmatpush1.bf16.msra.mxu0 0
    %411 = vmatprep.subr.bf16.mxu0 0
    %412 = vmatpush1.bf16.msra.mxu0 0
    %413 = vmatprep.subr.bf16.mxu0 0
    %414 = vmatpush1.bf16.msra.mxu0 0
    %415 = vmatprep.subr.bf16.mxu0 0
    %416 = vmatpush1.bf16.msra.mxu0 0
    %417 = vmatprep.subr.bf16.mxu0 0
    %418 = vmatpush1.bf16.msra.mxu0 0
    %419 = vmatprep.subr.bf16.mxu0 0
    %420 = vmatpush1.bf16.msra.mxu0 0
    %421 = vmatprep.subr.bf16.mxu0 0
    %422 = vmatpush1.bf16.msra.mxu0 0
    %423 = vmatprep.subr.bf16.mxu0 0
    %424 = vmatpush1.bf16.msra.mxu0 0
    %425 = vmatprep.mubr.bf16.mxu0 0
    %426 = vmatmul.mubr.bf16.gmra.mrb[0].mxu0 %v382
    %v427 = vpop.f32.mrb[0].mxu0
    %v428 = vadd.f32 0.0, %v427
    %v429 = vpop.f32.mrb[0].mxu0
    %v430 = vadd.f32 0.0, %v429
    %v431 = vpop.f32.mrb[0].mxu0
    %v432 = vadd.f32 0.0, %v431
    %v433 = vpop.f32.mrb[0].mxu0
    %v434 = vadd.f32 0.0, %v433
    %435 = vmatprep.mubr.bf16.mxu0 0
    %436 = vmatmul.mubr.bf16.gmra.mrb[0].mxu0 %v385
    %v437 = vpop.f32.mrb[0].mxu0
    %v438 = vadd.f32 0.0, %v437
    %v439 = vpop.f32.mrb[0].mxu0
    %v440 = vadd.f32 0.0, %v439
    %v441 = vpop.f32.mrb[0].mxu0
    %v442 = vadd.f32 0.0, %v441
    %v443 = vpop.f32.mrb[0].mxu0
    %v444 = vadd.f32 0.0, %v443
    %445 = vmatprep.mubr.bf16.mxu0 0
    %446 = vmatmul.mubr.bf16.gmra.mrb[0].mxu0 %v388
    %v447 = vpop.f32.mrb[0].mxu0
    %v448 = vadd.f32 0.0, %v447
    %v449 = vpop.f32.mrb[0].mxu0
    %v450 = vadd.f32 0.0, %v449
    %v451 = vpop.f32.mrb[0].mxu0
    %v452 = vadd.f32 0.0, %v451
    %v453 = vpop.f32.mrb[0].mxu0
    %v454 = vadd.f32 0.0, %v453
    %455 = vmatprep.mubr.bf16.mxu0 0
    %456 = vmatmul.mubr.bf16.gmra.mrb[0].mxu0 %v391
    %v457 = vpop.f32.mrb[0].mxu0
    %v458 = vadd.f32 0.0, %v457
    %v459 = vpop.f32.mrb[0].mxu0
    %v460 = vadd.f32 0.0, %v459
    %v461 = vpop.f32.mrb[0].mxu0
    %v462 = vadd.f32 0.0, %v461
    %v463 = vpop.f32.mrb[0].mxu0
    %v464 = vadd.f32 0.0, %v463
    %465 = vdwg.mxu0
    %466 = vmatprep.subr.bf16.mxu0 %v287
    %467 = vmatpush1.bf16.msra.mxu0 %v286
    %468 = vmatprep.subr.bf16.mxu0 %v295
    %469 = vmatpush1.bf16.msra.mxu0 %v294
    %470 = vmatprep.subr.bf16.mxu0 %v303
    %471 = vmatpush1.bf16.msra.mxu0 %v302
    %472 = vmatprep.subr.bf16.mxu0 %v311
    %473 = vmatpush1.bf16.msra.mxu0 %v310
    %474 = vmatprep.subr.bf16.mxu0 %v319
    %475 = vmatpush1.bf16.msra.mxu0 %v318
    %476 = vmatprep.subr.bf16.mxu0 %v327
    %477 = vmatpush1.bf16.msra.mxu0 %v326
    %478 = vmatprep.subr.bf16.mxu0 0
    %479 = vmatpush1.bf16.msra.mxu0 0
    %480 = vmatprep.subr.bf16.mxu0 0
    %481 = vmatpush1.bf16.msra.mxu0 0
    %482 = vmatprep.subr.bf16.mxu0 0
    %483 = vmatpush1.bf16.msra.mxu0 0
    %484 = vmatprep.subr.bf16.mxu0 0
    %485 = vmatpush1.bf16.msra.mxu0 0
    %486 = vmatprep.subr.bf16.mxu0 0
    %487 = vmatpush1.bf16.msra.mxu0 0
    %488 = vmatprep.subr.bf16.mxu0 0
    %489 = vmatpush1.bf16.msra.mxu0 0
    %490 = vmatprep.subr.bf16.mxu0 0
    %491 = vmatpush1.bf16.msra.mxu0 0
    %492 = vmatprep.subr.bf16.mxu0 0
    %493 = vmatpush1.bf16.msra.mxu0 0
    %494 = vmatprep.subr.bf16.mxu0 0
    %495 = vmatpush1.bf16.msra.mxu0 0
    %496 = vmatprep.subr.bf16.mxu0 0
    %497 = vmatpush1.bf16.msra.mxu0 0
    %498 = vmatprep.mubr.bf16.mxu0 0
    %499 = vmatmul.mubr.bf16.gmra.mrb[0].mxu0 %v382
    %v500 = vpop.f32.mrb[0].mxu0
    %v501 = vadd.f32 0.0, %v500
    %v502 = vpop.f32.mrb[0].mxu0
    %v503 = vadd.f32 0.0, %v502
    %v504 = vpop.f32.mrb[0].mxu0
    %v505 = vadd.f32 0.0, %v504
    %v506 = vpop.f32.mrb[0].mxu0
    %v507 = vadd.f32 0.0, %v506
    %508 = vmatprep.mubr.bf16.mxu0 0
    %509 = vmatmul.mubr.bf16.gmra.mrb[0].mxu0 %v385
    %v510 = vpop.f32.mrb[0].mxu0
    %v511 = vadd.f32 0.0, %v510
    %v512 = vpop.f32.mrb[0].mxu0
    %v513 = vadd.f32 0.0, %v512
    %v514 = vpop.f32.mrb[0].mxu0
    %v515 = vadd.f32 0.0, %v514
    %v516 = vpop.f32.mrb[0].mxu0
    %v517 = vadd.f32 0.0, %v516
    %518 = vmatprep.mubr.bf16.mxu0 0
    %519 = vmatmul.mubr.bf16.gmra.mrb[0].mxu0 %v388
    %v520 = vpop.f32.mrb[0].mxu0
    %v521 = vadd.f32 0.0, %v520
    %v522 = vpop.f32.mrb[0].mxu0
    %v523 = vadd.f32 0.0, %v522
    %v524 = vpop.f32.mrb[0].mxu0
    %v525 = vadd.f32 0.0, %v524
    %v526 = vpop.f32.mrb[0].mxu0
    %v527 = vadd.f32 0.0, %v526
    %528 = vmatprep.mubr.bf16.mxu0 0
    %529 = vmatmul.mubr.bf16.gmra.mrb[0].mxu0 %v391
    %v530 = vpop.f32.mrb[0].mxu0
    %v531 = vadd.f32 0.0, %v530
    %v532 = vpop.f32.mrb[0].mxu0
    %v533 = vadd.f32 0.0, %v532
    %v534 = vpop.f32.mrb[0].mxu0
    %v535 = vadd.f32 0.0, %v534
    %v536 = vpop.f32.mrb[0].mxu0
    %v537 = vadd.f32 0.0, %v536
    %538 = vdwg.mxu0
    %539 = vmatprep.subr.bf16.mxu0 %v289
    %540 = vmatpush1.bf16.msra.mxu0 %v288
    %541 = vmatprep.subr.bf16.mxu0 %v297
    %542 = vmatpush1.bf16.msra.mxu0 %v296
    %543 = vmatprep.subr.bf16.mxu0 %v305
    %544 = vmatpush1.bf16.msra.mxu0 %v304
    %545 = vmatprep.subr.bf16.mxu0 %v313
    %546 = vmatpush1.bf16.msra.mxu0 %v312
    %547 = vmatprep.subr.bf16.mxu0 %v321
    %548 = vmatpush1.bf16.msra.mxu0 %v320
    %549 = vmatprep.subr.bf16.mxu0 %v329
    %550 = vmatpush1.bf16.msra.mxu0 %v328
    %551 = vmatprep.subr.bf16.mxu0 0
    %552 = vmatpush1.bf16.msra.mxu0 0
    %553 = vmatprep.subr.bf16.mxu0 0
    %554 = vmatpush1.bf16.msra.mxu0 0
    %555 = vmatprep.subr.bf16.mxu0 0
    %556 = vmatpush1.bf16.msra.mxu0 0
    %557 = vmatprep.subr.bf16.mxu0 0
    %558 = vmatpush1.bf16.msra.mxu0 0
    %559 = vmatprep.subr.bf16.mxu0 0
    %560 = vmatpush1.bf16.msra.mxu0 0
    %561 = vmatprep.subr.bf16.mxu0 0
    %562 = vmatpush1.bf16.msra.mxu0 0
    %563 = vmatprep.subr.bf16.mxu0 0
    %564 = vmatpush1.bf16.msra.mxu0 0
    %565 = vmatprep.subr.bf16.mxu0 0
    %566 = vmatpush1.bf16.msra.mxu0 0
    %567 = vmatprep.subr.bf16.mxu0 0
    %568 = vmatpush1.bf16.msra.mxu0 0
    %569 = vmatprep.subr.bf16.mxu0 0
    %570 = vmatpush1.bf16.msra.mxu0 0
    %571 = vmatprep.mubr.bf16.mxu0 0
    %572 = vmatmul.mubr.bf16.gmra.mrb[0].mxu0 %v382
    %v573 = vpop.f32.mrb[0].mxu0
    %v574 = vadd.f32 0.0, %v573
    %v575 = vpop.f32.mrb[0].mxu0
    %v576 = vadd.f32 0.0, %v575
    %v577 = vpop.f32.mrb[0].mxu0
    %v578 = vadd.f32 0.0, %v577
    %v579 = vpop.f32.mrb[0].mxu0
    %v580 = vadd.f32 0.0, %v579
    %581 = vmatprep.mubr.bf16.mxu0 0
    %582 = vmatmul.mubr.bf16.gmra.mrb[0].mxu0 %v385
    %v583 = vpop.f32.mrb[0].mxu0
    %v584 = vadd.f32 0.0, %v583
    %v585 = vpop.f32.mrb[0].mxu0
    %v586 = vadd.f32 0.0, %v585
    %v587 = vpop.f32.mrb[0].mxu0
    %v588 = vadd.f32 0.0, %v587
    %v589 = vpop.f32.mrb[0].mxu0
    %v590 = vadd.f32 0.0, %v589
    %591 = vmatprep.mubr.bf16.mxu0 0
    %592 = vmatmul.mubr.bf16.gmra.mrb[0].mxu0 %v388
    %v593 = vpop.f32.mrb[0].mxu0
    %v594 = vadd.f32 0.0, %v593
    %v595 = vpop.f32.mrb[0].mxu0
    %v596 = vadd.f32 0.0, %v595
    %v597 = vpop.f32.mrb[0].mxu0
    %v598 = vadd.f32 0.0, %v597
    %v599 = vpop.f32.mrb[0].mxu0
    %v600 = vadd.f32 0.0, %v599
    %601 = vmatprep.mubr.bf16.mxu0 0
    %602 = vmatmul.mubr.bf16.gmra.mrb[0].mxu0 %v391
    %v603 = vpop.f32.mrb[0].mxu0
    %v604 = vadd.f32 0.0, %v603
    %v605 = vpop.f32.mrb[0].mxu0
    %v606 = vadd.f32 0.0, %v605
    %v607 = vpop.f32.mrb[0].mxu0
    %v608 = vadd.f32 0.0, %v607
    %v609 = vpop.f32.mrb[0].mxu0
    %v610 = vadd.f32 0.0, %v609
    %611 = vdwg.mxu0
    %612 = vmatprep.subr.bf16.mxu0 %v291
    %613 = vmatpush1.bf16.msra.mxu0 %v290
    %614 = vmatprep.subr.bf16.mxu0 %v299
    %615 = vmatpush1.bf16.msra.mxu0 %v298
    %616 = vmatprep.subr.bf16.mxu0 %v307
    %617 = vmatpush1.bf16.msra.mxu0 %v306
    %618 = vmatprep.subr.bf16.mxu0 %v315
    %619 = vmatpush1.bf16.msra.mxu0 %v314
    %620 = vmatprep.subr.bf16.mxu0 %v323
    %621 = vmatpush1.bf16.msra.mxu0 %v322
    %622 = vmatprep.subr.bf16.mxu0 %v331
    %623 = vmatpush1.bf16.msra.mxu0 %v330
    %624 = vmatprep.subr.bf16.mxu0 0
    %625 = vmatpush1.bf16.msra.mxu0 0
    %626 = vmatprep.subr.bf16.mxu0 0
    %627 = vmatpush1.bf16.msra.mxu0 0
    %628 = vmatprep.subr.bf16.mxu0 0
    %629 = vmatpush1.bf16.msra.mxu0 0
    %630 = vmatprep.subr.bf16.mxu0 0
    %631 = vmatpush1.bf16.msra.mxu0 0
    %632 = vmatprep.subr.bf16.mxu0 0
    %633 = vmatpush1.bf16.msra.mxu0 0
    %634 = vmatprep.subr.bf16.mxu0 0
    %635 = vmatpush1.bf16.msra.mxu0 0
    %636 = vmatprep.subr.bf16.mxu0 0
    %637 = vmatpush1.bf16.msra.mxu0 0
    %638 = vmatprep.subr.bf16.mxu0 0
    %639 = vmatpush1.bf16.msra.mxu0 0
    %640 = vmatprep.subr.bf16.mxu0 0
    %641 = vmatpush1.bf16.msra.mxu0 0
    %642 = vmatprep.subr.bf16.mxu0 0
    %643 = vmatpush1.bf16.msra.mxu0 0
    %644 = vmatprep.mubr.bf16.mxu0 0
    %645 = vmatmul.mubr.bf16.gmra.mrb[0].mxu0 %v382
    %v646 = vpop.f32.mrb[0].mxu0
    %v647 = vadd.f32 0.0, %v646
    %v648 = vpop.f32.mrb[0].mxu0
    %v649 = vadd.f32 0.0, %v648
    %v650 = vpop.f32.mrb[0].mxu0
    %v651 = vadd.f32 0.0, %v650
    %v652 = vpop.f32.mrb[0].mxu0
    %v653 = vadd.f32 0.0, %v652
    %654 = vmatprep.mubr.bf16.mxu0 0
    %655 = vmatmul.mubr.bf16.gmra.mrb[0].mxu0 %v385
    %v656 = vpop.f32.mrb[0].mxu0
    %v657 = vadd.f32 0.0, %v656
    %v658 = vpop.f32.mrb[0].mxu0
    %v659 = vadd.f32 0.0, %v658
    %v660 = vpop.f32.mrb[0].mxu0
    %v661 = vadd.f32 0.0, %v660
    %v662 = vpop.f32.mrb[0].mxu0
    %v663 = vadd.f32 0.0, %v662
    %664 = vmatprep.mubr.bf16.mxu0 0
    %665 = vmatmul.mubr.bf16.gmra.mrb[0].mxu0 %v388
    %v666 = vpop.f32.mrb[0].mxu0
    %v667 = vadd.f32 0.0, %v666
    %v668 = vpop.f32.mrb[0].mxu0
    %v669 = vadd.f32 0.0, %v668
    %v670 = vpop.f32.mrb[0].mxu0
    %v671 = vadd.f32 0.0, %v670
    %v672 = vpop.f32.mrb[0].mxu0
    %v673 = vadd.f32 0.0, %v672
    %674 = vmatprep.mubr.bf16.mxu0 0
    %675 = vmatmul.mubr.bf16.gmra.mrb[0].mxu0 %v391
    %v676 = vpop.f32.mrb[0].mxu0
    %v677 = vadd.f32 0.0, %v676
    %v678 = vpop.f32.mrb[0].mxu0
    %v679 = vadd.f32 0.0, %v678
    %v680 = vpop.f32.mrb[0].mxu0
    %v681 = vadd.f32 0.0, %v680
    %v682 = vpop.f32.mrb[0].mxu0
    %v683 = vadd.f32 0.0, %v682
    %684 = vdwg.mxu0
    %v685 = vmax.f32 %v428, %v574
    %v686 = vmax.f32 %v430, %v576
    %v687 = vmax.f32 %v501, %v647
    %v688 = vmax.f32 %v503, %v649
    %v689 = vmax.f32 %v432, %v578
    %v690 = vmax.f32 %v434, %v580
    %v691 = vmax.f32 %v505, %v651
    %v692 = vmax.f32 %v507, %v653
    %v693 = vmax.f32 %v438, %v584
    %v694 = vmax.f32 %v440, %v586
    %v695 = vmax.f32 %v511, %v657
    %v696 = vmax.f32 %v513, %v659
    %v697 = vmax.f32 %v442, %v588
    %v698 = vmax.f32 %v444, %v590
    %v699 = vmax.f32 %v515, %v661
    %v700 = vmax.f32 %v517, %v663
    %v701 = vmax.f32 %v448, %v594
    %v702 = vmax.f32 %v450, %v596
    %v703 = vmax.f32 %v521, %v667
    %v704 = vmax.f32 %v523, %v669
    %v705 = vmax.f32 %v452, %v598
    %v706 = vmax.f32 %v454, %v600
    %v707 = vmax.f32 %v525, %v671
    %v708 = vmax.f32 %v527, %v673
    %v709 = vmax.f32 %v458, %v604
    %v710 = vmax.f32 %v460, %v606
    %v711 = vmax.f32 %v531, %v677
    %v712 = vmax.f32 %v533, %v679
    %v713 = vmax.f32 %v462, %v608
    %v714 = vmax.f32 %v464, %v610
    %v715 = vmax.f32 %v535, %v681
    %v716 = vmax.f32 %v537, %v683
    %s717 = scalar_lea.vmem %s0, 192
    %v718 = vld [vmem:[%s717] sm:$0xff]
    %v719 = vld [vmem:[%s717 + $0x8] sm:$0xff]
    %v720 = vld [vmem:[%s717 + $0x10] sm:$0xff]
    %v721 = vld [vmem:[%s717 + $0x18] sm:$0xff]
    %v722 = vld [vmem:[%s717 + $0x20] sm:$0xff]
    %v723 = vld [vmem:[%s717 + $0x28] sm:$0xff]
    %v724 = vld [vmem:[%s717 + $0x30] sm:$0xff]
    %v725 = vld [vmem:[%s717 + $0x38] sm:$0xff]
    %v726 = vpack.c.bf16 %v719, %v718
    %v727 = vpack.c.bf16 %v721, %v720
    %v728 = vpack.c.bf16 %v723, %v722
    %v729 = vpack.c.bf16 %v725, %v724
    %v731 = vsel %vm380, %v726, 0
    %v734 = vsel %vm380, %v727, 0
    %v737 = vsel %vm380, %v728, 0
    %v740 = vsel %vm380, %v729, 0
    %742 = vmatprep.subr.bf16.mxu0 %v285
    %743 = vmatpush1.bf16.msra.mxu0 %v284
    %744 = vmatprep.subr.bf16.mxu0 %v293
    %745 = vmatpush1.bf16.msra.mxu0 %v292
    %746 = vmatprep.subr.bf16.mxu0 %v301
    %747 = vmatpush1.bf16.msra.mxu0 %v300
    %748 = vmatprep.subr.bf16.mxu0 %v309
    %749 = vmatpush1.bf16.msra.mxu0 %v308
    %750 = vmatprep.subr.bf16.mxu0 %v317
    %751 = vmatpush1.bf16.msra.mxu0 %v316
    %752 = vmatprep.subr.bf16.mxu0 %v325
    %753 = vmatpush1.bf16.msra.mxu0 %v324
    %754 = vmatprep.subr.bf16.mxu0 0
    %755 = vmatpush1.bf16.msra.mxu0 0
    %756 = vmatprep.subr.bf16.mxu0 0
    %757 = vmatpush1.bf16.msra.mxu0 0
    %758 = vmatprep.subr.bf16.mxu0 0
    %759 = vmatpush1.bf16.msra.mxu0 0
    %760 = vmatprep.subr.bf16.mxu0 0
    %761 = vmatpush1.bf16.msra.mxu0 0
    %762 = vmatprep.subr.bf16.mxu0 0
    %763 = vmatpush1.bf16.msra.mxu0 0
    %764 = vmatprep.subr.bf16.mxu0 0
    %765 = vmatpush1.bf16.msra.mxu0 0
    %766 = vmatprep.subr.bf16.mxu0 0
    %767 = vmatpush1.bf16.msra.mxu0 0
    %768 = vmatprep.subr.bf16.mxu0 0
    %769 = vmatpush1.bf16.msra.mxu0 0
    %770 = vmatprep.subr.bf16.mxu0 0
    %771 = vmatpush1.bf16.msra.mxu0 0
    %772 = vmatprep.subr.bf16.mxu0 0
    %773 = vmatpush1.bf16.msra.mxu0 0
    %774 = vmatprep.mubr.bf16.mxu0 0
    %775 = vmatmul.mubr.bf16.gmra.mrb[0].mxu0 %v731
    %v776 = vpop.f32.mrb[0].mxu0
    %v777 = vadd.f32 0.0, %v776
    %v778 = vpop.f32.mrb[0].mxu0
    %v779 = vadd.f32 0.0, %v778
    %v780 = vpop.f32.mrb[0].mxu0
    %v781 = vadd.f32 0.0, %v780
    %v782 = vpop.f32.mrb[0].mxu0
    %v783 = vadd.f32 0.0, %v782
    %784 = vmatprep.mubr.bf16.mxu0 0
    %785 = vmatmul.mubr.bf16.gmra.mrb[0].mxu0 %v734
    %v786 = vpop.f32.mrb[0].mxu0
    %v787 = vadd.f32 0.0, %v786
    %v788 = vpop.f32.mrb[0].mxu0
    %v789 = vadd.f32 0.0, %v788
    %v790 = vpop.f32.mrb[0].mxu0
    %v791 = vadd.f32 0.0, %v790
    %v792 = vpop.f32.mrb[0].mxu0
    %v793 = vadd.f32 0.0, %v792
    %794 = vmatprep.mubr.bf16.mxu0 0
    %795 = vmatmul.mubr.bf16.gmra.mrb[0].mxu0 %v737
    %v796 = vpop.f32.mrb[0].mxu0
    %v797 = vadd.f32 0.0, %v796
    %v798 = vpop.f32.mrb[0].mxu0
    %v799 = vadd.f32 0.0, %v798
    %v800 = vpop.f32.mrb[0].mxu0
    %v801 = vadd.f32 0.0, %v800
    %v802 = vpop.f32.mrb[0].mxu0
    %v803 = vadd.f32 0.0, %v802
    %804 = vmatprep.mubr.bf16.mxu0 0
    %805 = vmatmul.mubr.bf16.gmra.mrb[0].mxu0 %v740
    %v806 = vpop.f32.mrb[0].mxu0
    %v807 = vadd.f32 0.0, %v806
    %v808 = vpop.f32.mrb[0].mxu0
    %v809 = vadd.f32 0.0, %v808
    %v810 = vpop.f32.mrb[0].mxu0
    %v811 = vadd.f32 0.0, %v810
    %v812 = vpop.f32.mrb[0].mxu0
    %v813 = vadd.f32 0.0, %v812
    %814 = vdwg.mxu0
    %815 = vmatprep.subr.bf16.mxu0 %v287
    %816 = vmatpush1.bf16.msra.mxu0 %v286
    %817 = vmatprep.subr.bf16.mxu0 %v295
    %818 = vmatpush1.bf16.msra.mxu0 %v294
    %819 = vmatprep.subr.bf16.mxu0 %v303
    %820 = vmatpush1.bf16.msra.mxu0 %v302
    %821 = vmatprep.subr.bf16.mxu0 %v311
    %822 = vmatpush1.bf16.msra.mxu0 %v310
    %823 = vmatprep.subr.bf16.mxu0 %v319
    %824 = vmatpush1.bf16.msra.mxu0 %v318
    %825 = vmatprep.subr.bf16.mxu0 %v327
    %826 = vmatpush1.bf16.msra.mxu0 %v326
    %827 = vmatprep.subr.bf16.mxu0 0
    %828 = vmatpush1.bf16.msra.mxu0 0
    %829 = vmatprep.subr.bf16.mxu0 0
    %830 = vmatpush1.bf16.msra.mxu0 0
    %831 = vmatprep.subr.bf16.mxu0 0
    %832 = vmatpush1.bf16.msra.mxu0 0
    %833 = vmatprep.subr.bf16.mxu0 0
    %834 = vmatpush1.bf16.msra.mxu0 0
    %835 = vmatprep.subr.bf16.mxu0 0
    %836 = vmatpush1.bf16.msra.mxu0 0
    %837 = vmatprep.subr.bf16.mxu0 0
    %838 = vmatpush1.bf16.msra.mxu0 0
    %839 = vmatprep.subr.bf16.mxu0 0
    %840 = vmatpush1.bf16.msra.mxu0 0
    %841 = vmatprep.subr.bf16.mxu0 0
    %842 = vmatpush1.bf16.msra.mxu0 0
    %843 = vmatprep.subr.bf16.mxu0 0
    %844 = vmatpush1.bf16.msra.mxu0 0
    %845 = vmatprep.subr.bf16.mxu0 0
    %846 = vmatpush1.bf16.msra.mxu0 0
    %847 = vmatprep.mubr.bf16.mxu0 0
    %848 = vmatmul.mubr.bf16.gmra.mrb[0].mxu0 %v731
    %v849 = vpop.f32.mrb[0].mxu0
    %v850 = vadd.f32 0.0, %v849
    %v851 = vpop.f32.mrb[0].mxu0
    %v852 = vadd.f32 0.0, %v851
    %v853 = vpop.f32.mrb[0].mxu0
    %v854 = vadd.f32 0.0, %v853
    %v855 = vpop.f32.mrb[0].mxu0
    %v856 = vadd.f32 0.0, %v855
    %857 = vmatprep.mubr.bf16.mxu0 0
    %858 = vmatmul.mubr.bf16.gmra.mrb[0].mxu0 %v734
    %v859 = vpop.f32.mrb[0].mxu0
    %v860 = vadd.f32 0.0, %v859
    %v861 = vpop.f32.mrb[0].mxu0
    %v862 = vadd.f32 0.0, %v861
    %v863 = vpop.f32.mrb[0].mxu0
    %v864 = vadd.f32 0.0, %v863
    %v865 = vpop.f32.mrb[0].mxu0
    %v866 = vadd.f32 0.0, %v865
    %867 = vmatprep.mubr.bf16.mxu0 0
    %868 = vmatmul.mubr.bf16.gmra.mrb[0].mxu0 %v737
    %v869 = vpop.f32.mrb[0].mxu0
    %v870 = vadd.f32 0.0, %v869
    %v871 = vpop.f32.mrb[0].mxu0
    %v872 = vadd.f32 0.0, %v871
    %v873 = vpop.f32.mrb[0].mxu0
    %v874 = vadd.f32 0.0, %v873
    %v875 = vpop.f32.mrb[0].mxu0
    %v876 = vadd.f32 0.0, %v875
    %877 = vmatprep.mubr.bf16.mxu0 0
    %878 = vmatmul.mubr.bf16.gmra.mrb[0].mxu0 %v740
    %v879 = vpop.f32.mrb[0].mxu0
    %v880 = vadd.f32 0.0, %v879
    %v881 = vpop.f32.mrb[0].mxu0
    %v882 = vadd.f32 0.0, %v881
    %v883 = vpop.f32.mrb[0].mxu0
    %v884 = vadd.f32 0.0, %v883
    %v885 = vpop.f32.mrb[0].mxu0
    %v886 = vadd.f32 0.0, %v885
    %887 = vdwg.mxu0
    %888 = vmatprep.subr.bf16.mxu0 %v289
    %889 = vmatpush1.bf16.msra.mxu0 %v288
    %890 = vmatprep.subr.bf16.mxu0 %v297
    %891 = vmatpush1.bf16.msra.mxu0 %v296
    %892 = vmatprep.subr.bf16.mxu0 %v305
    %893 = vmatpush1.bf16.msra.mxu0 %v304
    %894 = vmatprep.subr.bf16.mxu0 %v313
    %895 = vmatpush1.bf16.msra.mxu0 %v312
    %896 = vmatprep.subr.bf16.mxu0 %v321
    %897 = vmatpush1.bf16.msra.mxu0 %v320
    %898 = vmatprep.subr.bf16.mxu0 %v329
    %899 = vmatpush1.bf16.msra.mxu0 %v328
    %900 = vmatprep.subr.bf16.mxu0 0
    %901 = vmatpush1.bf16.msra.mxu0 0
    %902 = vmatprep.subr.bf16.mxu0 0
    %903 = vmatpush1.bf16.msra.mxu0 0
    %904 = vmatprep.subr.bf16.mxu0 0
    %905 = vmatpush1.bf16.msra.mxu0 0
    %906 = vmatprep.subr.bf16.mxu0 0
    %907 = vmatpush1.bf16.msra.mxu0 0
    %908 = vmatprep.subr.bf16.mxu0 0
    %909 = vmatpush1.bf16.msra.mxu0 0
    %910 = vmatprep.subr.bf16.mxu0 0
    %911 = vmatpush1.bf16.msra.mxu0 0
    %912 = vmatprep.subr.bf16.mxu0 0
    %913 = vmatpush1.bf16.msra.mxu0 0
    %914 = vmatprep.subr.bf16.mxu0 0
    %915 = vmatpush1.bf16.msra.mxu0 0
    %916 = vmatprep.subr.bf16.mxu0 0
    %917 = vmatpush1.bf16.msra.mxu0 0
    %918 = vmatprep.subr.bf16.mxu0 0
    %919 = vmatpush1.bf16.msra.mxu0 0
    %920 = vmatprep.mubr.bf16.mxu0 0
    %921 = vmatmul.mubr.bf16.gmra.mrb[0].mxu0 %v731
    %v922 = vpop.f32.mrb[0].mxu0
    %v923 = vadd.f32 0.0, %v922
    %v924 = vpop.f32.mrb[0].mxu0
    %v925 = vadd.f32 0.0, %v924
    %v926 = vpop.f32.mrb[0].mxu0
    %v927 = vadd.f32 0.0, %v926
    %v928 = vpop.f32.mrb[0].mxu0
    %v929 = vadd.f32 0.0, %v928
    %930 = vmatprep.mubr.bf16.mxu0 0
    %931 = vmatmul.mubr.bf16.gmra.mrb[0].mxu0 %v734
    %v932 = vpop.f32.mrb[0].mxu0
    %v933 = vadd.f32 0.0, %v932
    %v934 = vpop.f32.mrb[0].mxu0
    %v935 = vadd.f32 0.0, %v934
    %v936 = vpop.f32.mrb[0].mxu0
    %v937 = vadd.f32 0.0, %v936
    %v938 = vpop.f32.mrb[0].mxu0
    %v939 = vadd.f32 0.0, %v938
    %940 = vmatprep.mubr.bf16.mxu0 0
    %941 = vmatmul.mubr.bf16.gmra.mrb[0].mxu0 %v737
    %v942 = vpop.f32.mrb[0].mxu0
    %v943 = vadd.f32 0.0, %v942
    %v944 = vpop.f32.mrb[0].mxu0
    %v945 = vadd.f32 0.0, %v944
    %v946 = vpop.f32.mrb[0].mxu0
    %v947 = vadd.f32 0.0, %v946
    %v948 = vpop.f32.mrb[0].mxu0
    %v949 = vadd.f32 0.0, %v948
    %950 = vmatprep.mubr.bf16.mxu0 0
    %951 = vmatmul.mubr.bf16.gmra.mrb[0].mxu0 %v740
    %v952 = vpop.f32.mrb[0].mxu0
    %v953 = vadd.f32 0.0, %v952
    %v954 = vpop.f32.mrb[0].mxu0
    %v955 = vadd.f32 0.0, %v954
    %v956 = vpop.f32.mrb[0].mxu0
    %v957 = vadd.f32 0.0, %v956
    %v958 = vpop.f32.mrb[0].mxu0
    %v959 = vadd.f32 0.0, %v958
    %960 = vdwg.mxu0
    %961 = vmatprep.subr.bf16.mxu0 %v291
    %962 = vmatpush1.bf16.msra.mxu0 %v290
    %963 = vmatprep.subr.bf16.mxu0 %v299
    %964 = vmatpush1.bf16.msra.mxu0 %v298
    %965 = vmatprep.subr.bf16.mxu0 %v307
    %966 = vmatpush1.bf16.msra.mxu0 %v306
    %967 = vmatprep.subr.bf16.mxu0 %v315
    %968 = vmatpush1.bf16.msra.mxu0 %v314
    %969 = vmatprep.subr.bf16.mxu0 %v323
    %970 = vmatpush1.bf16.msra.mxu0 %v322
    %971 = vmatprep.subr.bf16.mxu0 %v331
    %972 = vmatpush1.bf16.msra.mxu0 %v330
    %973 = vmatprep.subr.bf16.mxu0 0
    %974 = vmatpush1.bf16.msra.mxu0 0
    %975 = vmatprep.subr.bf16.mxu0 0
    %976 = vmatpush1.bf16.msra.mxu0 0
    %977 = vmatprep.subr.bf16.mxu0 0
    %978 = vmatpush1.bf16.msra.mxu0 0
    %979 = vmatprep.subr.bf16.mxu0 0
    %980 = vmatpush1.bf16.msra.mxu0 0
    %981 = vmatprep.subr.bf16.mxu0 0
    %982 = vmatpush1.bf16.msra.mxu0 0
    %983 = vmatprep.subr.bf16.mxu0 0
    %984 = vmatpush1.bf16.msra.mxu0 0
    %985 = vmatprep.subr.bf16.mxu0 0
    %986 = vmatpush1.bf16.msra.mxu0 0
    %987 = vmatprep.subr.bf16.mxu0 0
    %988 = vmatpush1.bf16.msra.mxu0 0
    %989 = vmatprep.subr.bf16.mxu0 0
    %990 = vmatpush1.bf16.msra.mxu0 0
    %991 = vmatprep.subr.bf16.mxu0 0
    %992 = vmatpush1.bf16.msra.mxu0 0
    %993 = vmatprep.mubr.bf16.mxu0 0
    %994 = vmatmul.mubr.bf16.gmra.mrb[0].mxu0 %v731
    %v995 = vpop.f32.mrb[0].mxu0
    %v996 = vadd.f32 0.0, %v995
    %v997 = vpop.f32.mrb[0].mxu0
    %v998 = vadd.f32 0.0, %v997
    %v999 = vpop.f32.mrb[0].mxu0
    %v1000 = vadd.f32 0.0, %v999
    %v1001 = vpop.f32.mrb[0].mxu0
    %v1002 = vadd.f32 0.0, %v1001
    %1003 = vmatprep.mubr.bf16.mxu0 0
    %1004 = vmatmul.mubr.bf16.gmra.mrb[0].mxu0 %v734
    %v1005 = vpop.f32.mrb[0].mxu0
    %v1006 = vadd.f32 0.0, %v1005
    %v1007 = vpop.f32.mrb[0].mxu0
    %v1008 = vadd.f32 0.0, %v1007
    %v1009 = vpop.f32.mrb[0].mxu0
    %v1010 = vadd.f32 0.0, %v1009
    %v1011 = vpop.f32.mrb[0].mxu0
    %v1012 = vadd.f32 0.0, %v1011
    %1013 = vmatprep.mubr.bf16.mxu0 0
    %1014 = vmatmul.mubr.bf16.gmra.mrb[0].mxu0 %v737
    %v1015 = vpop.f32.mrb[0].mxu0
    %v1016 = vadd.f32 0.0, %v1015
    %v1017 = vpop.f32.mrb[0].mxu0
    %v1018 = vadd.f32 0.0, %v1017
    %v1019 = vpop.f32.mrb[0].mxu0
    %v1020 = vadd.f32 0.0, %v1019
    %v1021 = vpop.f32.mrb[0].mxu0
    %v1022 = vadd.f32 0.0, %v1021
    %1023 = vmatprep.mubr.bf16.mxu0 0
    %1024 = vmatmul.mubr.bf16.gmra.mrb[0].mxu0 %v740
    %v1025 = vpop.f32.mrb[0].mxu0
    %v1026 = vadd.f32 0.0, %v1025
    %v1027 = vpop.f32.mrb[0].mxu0
    %v1028 = vadd.f32 0.0, %v1027
    %v1029 = vpop.f32.mrb[0].mxu0
    %v1030 = vadd.f32 0.0, %v1029
    %v1031 = vpop.f32.mrb[0].mxu0
    %v1032 = vadd.f32 0.0, %v1031
    %1033 = vdwg.mxu0
    %v1034 = vmax.f32 %v777, %v923
    %v1035 = vmax.f32 %v779, %v925
    %v1036 = vmax.f32 %v850, %v996
    %v1037 = vmax.f32 %v852, %v998
    %v1038 = vmax.f32 %v781, %v927
    %v1039 = vmax.f32 %v783, %v929
    %v1040 = vmax.f32 %v854, %v1000
    %v1041 = vmax.f32 %v856, %v1002
    %v1042 = vmax.f32 %v787, %v933
    %v1043 = vmax.f32 %v789, %v935
    %v1044 = vmax.f32 %v860, %v1006
    %v1045 = vmax.f32 %v862, %v1008
    %v1046 = vmax.f32 %v791, %v937
    %v1047 = vmax.f32 %v793, %v939
    %v1048 = vmax.f32 %v864, %v1010
    %v1049 = vmax.f32 %v866, %v1012
    %v1050 = vmax.f32 %v797, %v943
    %v1051 = vmax.f32 %v799, %v945
    %v1052 = vmax.f32 %v870, %v1016
    %v1053 = vmax.f32 %v872, %v1018
    %v1054 = vmax.f32 %v801, %v947
    %v1055 = vmax.f32 %v803, %v949
    %v1056 = vmax.f32 %v874, %v1020
    %v1057 = vmax.f32 %v876, %v1022
    %v1058 = vmax.f32 %v807, %v953
    %v1059 = vmax.f32 %v809, %v955
    %v1060 = vmax.f32 %v880, %v1026
    %v1061 = vmax.f32 %v882, %v1028
    %v1062 = vmax.f32 %v811, %v957
    %v1063 = vmax.f32 %v813, %v959
    %v1064 = vmax.f32 %v884, %v1030
    %v1065 = vmax.f32 %v886, %v1032
    %v1066 = vmax.f32 %v685, %v1034
    %v1067 = vmax.f32 %v686, %v1035
    %v1068 = vmax.f32 %v687, %v1036
    %v1069 = vmax.f32 %v688, %v1037
    %v1070 = vmax.f32 %v689, %v1038
    %v1071 = vmax.f32 %v690, %v1039
    %v1072 = vmax.f32 %v691, %v1040
    %v1073 = vmax.f32 %v692, %v1041
    %v1074 = vmax.f32 %v693, %v1042
    %v1075 = vmax.f32 %v694, %v1043
    %v1076 = vmax.f32 %v695, %v1044
    %v1077 = vmax.f32 %v696, %v1045
    %v1078 = vmax.f32 %v697, %v1046
    %v1079 = vmax.f32 %v698, %v1047
    %v1080 = vmax.f32 %v699, %v1048
    %v1081 = vmax.f32 %v700, %v1049
    %v1082 = vmax.f32 %v701, %v1050
    %v1083 = vmax.f32 %v702, %v1051
    %v1084 = vmax.f32 %v703, %v1052
    %v1085 = vmax.f32 %v704, %v1053
    %v1086 = vmax.f32 %v705, %v1054
    %v1087 = vmax.f32 %v706, %v1055
    %v1088 = vmax.f32 %v707, %v1056
    %v1089 = vmax.f32 %v708, %v1057
    %v1090 = vmax.f32 %v709, %v1058
    %v1091 = vmax.f32 %v710, %v1059
    %v1092 = vmax.f32 %v711, %v1060
    %v1093 = vmax.f32 %v712, %v1061
    %v1094 = vmax.f32 %v713, %v1062
    %v1095 = vmax.f32 %v714, %v1063
    %v1096 = vmax.f32 %v715, %v1064
    %v1097 = vmax.f32 %v716, %v1065
    %v1099 = vlaneseq
    %v1100 = vshrl.u32 %v1099, 7
    %v1101 = vsub.s32 0, %v1100
    %v1102 = vrot.slane %v122, %v1101
    %v1103 = vlaneseq
    %v1104 = vshrl.u32 %v1103, 7
    %v1105 = vsub.s32 1, %v1104
    %v1106 = vrot.slane %v122, %v1105
    %v1107 = vlaneseq
    %v1108 = vshrl.u32 %v1107, 7
    %v1109 = vsub.s32 2, %v1108
    %v1110 = vrot.slane %v122, %v1109
    %v1111 = vlaneseq
    %v1112 = vshrl.u32 %v1111, 7
    %v1113 = vsub.s32 3, %v1112
    %v1114 = vrot.slane %v122, %v1113
    %v1119 = vadd.f32 %v1066, %v1102
    %v1120 = vadd.f32 %v1067, %v1106
    %v1121 = vadd.f32 %v1068, %v1110
    %v1122 = vadd.f32 %v1069, %v1114
    %v1123 = vadd.f32 %v1070, %v1102
    %v1124 = vadd.f32 %v1071, %v1106
    %v1125 = vadd.f32 %v1072, %v1110
    %v1126 = vadd.f32 %v1073, %v1114
    %v1127 = vadd.f32 %v1074, %v1102
    %v1128 = vadd.f32 %v1075, %v1106
    %v1129 = vadd.f32 %v1076, %v1110
    %v1130 = vadd.f32 %v1077, %v1114
    %v1131 = vadd.f32 %v1078, %v1102
    %v1132 = vadd.f32 %v1079, %v1106
    %v1133 = vadd.f32 %v1080, %v1110
    %v1134 = vadd.f32 %v1081, %v1114
    %v1135 = vadd.f32 %v1082, %v1102
    %v1136 = vadd.f32 %v1083, %v1106
    %v1137 = vadd.f32 %v1084, %v1110
    %v1138 = vadd.f32 %v1085, %v1114
    %v1139 = vadd.f32 %v1086, %v1102
    %v1140 = vadd.f32 %v1087, %v1106
    %v1141 = vadd.f32 %v1088, %v1110
    %v1142 = vadd.f32 %v1089, %v1114
    %v1143 = vadd.f32 %v1090, %v1102
    %v1144 = vadd.f32 %v1091, %v1106
    %v1145 = vadd.f32 %v1092, %v1110
    %v1146 = vadd.f32 %v1093, %v1114
    %v1147 = vadd.f32 %v1094, %v1102
    %v1148 = vadd.f32 %v1095, %v1106
    %v1149 = vadd.f32 %v1096, %v1110
    %v1150 = vadd.f32 %v1097, %v1114
    %v1151 = vmax.f32 %v1119, 0.0
    %v1152 = vmax.f32 %v1120, 0.0
    %v1153 = vmax.f32 %v1121, 0.0
    %v1154 = vmax.f32 %v1122, 0.0
    %v1155 = vmax.f32 %v1123, 0.0
    %v1156 = vmax.f32 %v1124, 0.0
    %v1157 = vmax.f32 %v1125, 0.0
    %v1158 = vmax.f32 %v1126, 0.0
    %v1159 = vmax.f32 %v1127, 0.0
    %v1160 = vmax.f32 %v1128, 0.0
    %v1161 = vmax.f32 %v1129, 0.0
    %v1162 = vmax.f32 %v1130, 0.0
    %v1163 = vmax.f32 %v1131, 0.0
    %v1164 = vmax.f32 %v1132, 0.0
    %v1165 = vmax.f32 %v1133, 0.0
    %v1166 = vmax.f32 %v1134, 0.0
    %v1167 = vmax.f32 %v1135, 0.0
    %v1168 = vmax.f32 %v1136, 0.0
    %v1169 = vmax.f32 %v1137, 0.0
    %v1170 = vmax.f32 %v1138, 0.0
    %v1171 = vmax.f32 %v1139, 0.0
    %v1172 = vmax.f32 %v1140, 0.0
    %v1173 = vmax.f32 %v1141, 0.0
    %v1174 = vmax.f32 %v1142, 0.0
    %v1175 = vmax.f32 %v1143, 0.0
    %v1176 = vmax.f32 %v1144, 0.0
    %v1177 = vmax.f32 %v1145, 0.0
    %v1178 = vmax.f32 %v1146, 0.0
    %v1179 = vmax.f32 %v1147, 0.0
    %v1180 = vmax.f32 %v1148, 0.0
    %v1181 = vmax.f32 %v1149, 0.0
    %v1182 = vmax.f32 %v1150, 0.0
    %1183 = vst [vmem:[#allocation2 + $0x20] sm:$0xff] %v1151
    %1184 = vst [vmem:[#allocation2 + $0x28] sm:$0xff] %v1152
    %1185 = vst [vmem:[#allocation2 + $0x30] sm:$0xff] %v1153
    %1186 = vst [vmem:[#allocation2 + $0x38] sm:$0xff] %v1154
    %1187 = vst [vmem:[#allocation2 + $0x40] sm:$0xff] %v1155
    %1188 = vst [vmem:[#allocation2 + $0x48] sm:$0xff] %v1156
    %1189 = vst [vmem:[#allocation2 + $0x50] sm:$0xff] %v1157
    %1190 = vst [vmem:[#allocation2 + $0x58] sm:$0xff] %v1158
    %1191 = vst [vmem:[#allocation2 + $0x60] sm:$0xff] %v1159
    %1192 = vst [vmem:[#allocation2 + $0x68] sm:$0xff] %v1160
    %1193 = vst [vmem:[#allocation2 + $0x70] sm:$0xff] %v1161
    %1194 = vst [vmem:[#allocation2 + $0x78] sm:$0xff] %v1162
    %1195 = vst [vmem:[#allocation2 + $0x80] sm:$0xff] %v1163
    %1196 = vst [vmem:[#allocation2 + $0x88] sm:$0xff] %v1164
    %1197 = vst [vmem:[#allocation2 + $0x90] sm:$0xff] %v1165
    %1198 = vst [vmem:[#allocation2 + $0x98] sm:$0xff] %v1166
    %1199 = vst [vmem:[#allocation2 + $0xa0] sm:$0xff] %v1167
    %1200 = vst [vmem:[#allocation2 + $0xa8] sm:$0xff] %v1168
    %1201 = vst [vmem:[#allocation2 + $0xb0] sm:$0xff] %v1169
    %1202 = vst [vmem:[#allocation2 + $0xb8] sm:$0xff] %v1170
    %1203 = vst [vmem:[#allocation2 + $0xc0] sm:$0xff] %v1171
    %1204 = vst [vmem:[#allocation2 + $0xc8] sm:$0xff] %v1172
    %1205 = vst [vmem:[#allocation2 + $0xd0] sm:$0xff] %v1173
    %1206 = vst [vmem:[#allocation2 + $0xd8] sm:$0xff] %v1174
    %1207 = vst [vmem:[#allocation2 + $0xe0] sm:$0xff] %v1175
    %1208 = vst [vmem:[#allocation2 + $0xe8] sm:$0xff] %v1176
    %1209 = vst [vmem:[#allocation2 + $0xf0] sm:$0xff] %v1177
    %1210 = vst [vmem:[#allocation2 + $0xf8] sm:$0xff] %v1178
    %1211 = vst [vmem:[#allocation2 + $0x100] sm:$0xff] %v1179
    %1212 = vst [vmem:[#allocation2 + $0x108] sm:$0xff] %v1180
    %1213 = vst [vmem:[#allocation2 + $0x110] sm:$0xff] %v1181
    %1214 = vst [vmem:[#allocation2 + $0x118] sm:$0xff] %v1182
    %v1215 = vld [vmem:[%s0] sm:$0xff]
    %v1216 = vld [vmem:[%s0 + $0x8] sm:$0xff]
    %v1217 = vld [vmem:[%s0 + $0x10] sm:$0xff]
    %v1218 = vld [vmem:[%s0 + $0x18] sm:$0xff]
    %v1219 = vld [vmem:[%s0 + $0x20] sm:$0xff]
    %v1220 = vld [vmem:[%s0 + $0x28] sm:$0xff]
    %v1221 = vld [vmem:[%s0 + $0x30] sm:$0xff]
    %v1222 = vld [vmem:[%s0 + $0x38] sm:$0xff]
    %v1223 = vpack.c.bf16 %v1216, %v1215
    %v1224 = vpack.c.bf16 %v1218, %v1217
    %v1225 = vpack.c.bf16 %v1220, %v1219
    %v1226 = vpack.c.bf16 %v1222, %v1221
    %v1228 = vsel %vm380, %v1223, 0
    %v1231 = vsel %vm380, %v1224, 0
    %v1234 = vsel %vm380, %v1225, 0
    %v1237 = vsel %vm380, %v1226, 0
    %1239 = vmatprep.subr.bf16.mxu0 %v285
    %1240 = vmatpush1.bf16.msra.mxu0 %v284
    %1241 = vmatprep.subr.bf16.mxu0 %v293
    %1242 = vmatpush1.bf16.msra.mxu0 %v292
    %1243 = vmatprep.subr.bf16.mxu0 %v301
    %1244 = vmatpush1.bf16.msra.mxu0 %v300
    %1245 = vmatprep.subr.bf16.mxu0 %v309
    %1246 = vmatpush1.bf16.msra.mxu0 %v308
    %1247 = vmatprep.subr.bf16.mxu0 %v317
    %1248 = vmatpush1.bf16.msra.mxu0 %v316
    %1249 = vmatprep.subr.bf16.mxu0 %v325
    %1250 = vmatpush1.bf16.msra.mxu0 %v324
    %1251 = vmatprep.subr.bf16.mxu0 0
    %1252 = vmatpush1.bf16.msra.mxu0 0
    %1253 = vmatprep.subr.bf16.mxu0 0
    %1254 = vmatpush1.bf16.msra.mxu0 0
    %1255 = vmatprep.subr.bf16.mxu0 0
    %1256 = vmatpush1.bf16.msra.mxu0 0
    %1257 = vmatprep.subr.bf16.mxu0 0
    %1258 = vmatpush1.bf16.msra.mxu0 0
    %1259 = vmatprep.subr.bf16.mxu0 0
    %1260 = vmatpush1.bf16.msra.mxu0 0
    %1261 = vmatprep.subr.bf16.mxu0 0
    %1262 = vmatpush1.bf16.msra.mxu0 0
    %1263 = vmatprep.subr.bf16.mxu0 0
    %1264 = vmatpush1.bf16.msra.mxu0 0
    %1265 = vmatprep.subr.bf16.mxu0 0
    %1266 = vmatpush1.bf16.msra.mxu0 0
    %1267 = vmatprep.subr.bf16.mxu0 0
    %1268 = vmatpush1.bf16.msra.mxu0 0
    %1269 = vmatprep.subr.bf16.mxu0 0
    %1270 = vmatpush1.bf16.msra.mxu0 0
    %1271 = vmatprep.mubr.bf16.mxu0 0
    %1272 = vmatmul.mubr.bf16.gmra.mrb[0].mxu0 %v1228
    %v1273 = vpop.f32.mrb[0].mxu0
    %v1274 = vadd.f32 0.0, %v1273
    %v1275 = vpop.f32.mrb[0].mxu0
    %v1276 = vadd.f32 0.0, %v1275
    %v1277 = vpop.f32.mrb[0].mxu0
    %v1278 = vadd.f32 0.0, %v1277
    %v1279 = vpop.f32.mrb[0].mxu0
    %v1280 = vadd.f32 0.0, %v1279
    %1281 = vmatprep.mubr.bf16.mxu0 0
    %1282 = vmatmul.mubr.bf16.gmra.mrb[0].mxu0 %v1231
    %v1283 = vpop.f32.mrb[0].mxu0
    %v1284 = vadd.f32 0.0, %v1283
    %v1285 = vpop.f32.mrb[0].mxu0
    %v1286 = vadd.f32 0.0, %v1285
    %v1287 = vpop.f32.mrb[0].mxu0
    %v1288 = vadd.f32 0.0, %v1287
    %v1289 = vpop.f32.mrb[0].mxu0
    %v1290 = vadd.f32 0.0, %v1289
    %1291 = vmatprep.mubr.bf16.mxu0 0
    %1292 = vmatmul.mubr.bf16.gmra.mrb[0].mxu0 %v1234
    %v1293 = vpop.f32.mrb[0].mxu0
    %v1294 = vadd.f32 0.0, %v1293
    %v1295 = vpop.f32.mrb[0].mxu0
    %v1296 = vadd.f32 0.0, %v1295
    %v1297 = vpop.f32.mrb[0].mxu0
    %v1298 = vadd.f32 0.0, %v1297
    %v1299 = vpop.f32.mrb[0].mxu0
    %v1300 = vadd.f32 0.0, %v1299
    %1301 = vmatprep.mubr.bf16.mxu0 0
    %1302 = vmatmul.mubr.bf16.gmra.mrb[0].mxu0 %v1237
    %v1303 = vpop.f32.mrb[0].mxu0
    %v1304 = vadd.f32 0.0, %v1303
    %v1305 = vpop.f32.mrb[0].mxu0
    %v1306 = vadd.f32 0.0, %v1305
    %v1307 = vpop.f32.mrb[0].mxu0
    %v1308 = vadd.f32 0.0, %v1307
    %v1309 = vpop.f32.mrb[0].mxu0
    %v1310 = vadd.f32 0.0, %v1309
    %1311 = vdwg.mxu0
    %1312 = vmatprep.subr.bf16.mxu0 %v287
    %1313 = vmatpush1.bf16.msra.mxu0 %v286
    %1314 = vmatprep.subr.bf16.mxu0 %v295
    %1315 = vmatpush1.bf16.msra.mxu0 %v294
    %1316 = vmatprep.subr.bf16.mxu0 %v303
    %1317 = vmatpush1.bf16.msra.mxu0 %v302
    %1318 = vmatprep.subr.bf16.mxu0 %v311
    %1319 = vmatpush1.bf16.msra.mxu0 %v310
    %1320 = vmatprep.subr.bf16.mxu0 %v319
    %1321 = vmatpush1.bf16.msra.mxu0 %v318
    %1322 = vmatprep.subr.bf16.mxu0 %v327
    %1323 = vmatpush1.bf16.msra.mxu0 %v326
    %1324 = vmatprep.subr.bf16.mxu0 0
    %1325 = vmatpush1.bf16.msra.mxu0 0
    %1326 = vmatprep.subr.bf16.mxu0 0
    %1327 = vmatpush1.bf16.msra.mxu0 0
    %1328 = vmatprep.subr.bf16.mxu0 0
    %1329 = vmatpush1.bf16.msra.mxu0 0
    %1330 = vmatprep.subr.bf16.mxu0 0
    %1331 = vmatpush1.bf16.msra.mxu0 0
    %1332 = vmatprep.subr.bf16.mxu0 0
    %1333 = vmatpush1.bf16.msra.mxu0 0
    %1334 = vmatprep.subr.bf16.mxu0 0
    %1335 = vmatpush1.bf16.msra.mxu0 0
    %1336 = vmatprep.subr.bf16.mxu0 0
    %1337 = vmatpush1.bf16.msra.mxu0 0
    %1338 = vmatprep.subr.bf16.mxu0 0
    %1339 = vmatpush1.bf16.msra.mxu0 0
    %1340 = vmatprep.subr.bf16.mxu0 0
    %1341 = vmatpush1.bf16.msra.mxu0 0
    %1342 = vmatprep.subr.bf16.mxu0 0
    %1343 = vmatpush1.bf16.msra.mxu0 0
    %1344 = vmatprep.mubr.bf16.mxu0 0
    %1345 = vmatmul.mubr.bf16.gmra.mrb[0].mxu0 %v1228
    %v1346 = vpop.f32.mrb[0].mxu0
    %v1347 = vadd.f32 0.0, %v1346
    %v1348 = vpop.f32.mrb[0].mxu0
    %v1349 = vadd.f32 0.0, %v1348
    %v1350 = vpop.f32.mrb[0].mxu0
    %v1351 = vadd.f32 0.0, %v1350
    %v1352 = vpop.f32.mrb[0].mxu0
    %v1353 = vadd.f32 0.0, %v1352
    %1354 = vmatprep.mubr.bf16.mxu0 0
    %1355 = vmatmul.mubr.bf16.gmra.mrb[0].mxu0 %v1231
    %v1356 = vpop.f32.mrb[0].mxu0
    %v1357 = vadd.f32 0.0, %v1356
    %v1358 = vpop.f32.mrb[0].mxu0
    %v1359 = vadd.f32 0.0, %v1358
    %v1360 = vpop.f32.mrb[0].mxu0
    %v1361 = vadd.f32 0.0, %v1360
    %v1362 = vpop.f32.mrb[0].mxu0
    %v1363 = vadd.f32 0.0, %v1362
    %1364 = vmatprep.mubr.bf16.mxu0 0
    %1365 = vmatmul.mubr.bf16.gmra.mrb[0].mxu0 %v1234
    %v1366 = vpop.f32.mrb[0].mxu0
    %v1367 = vadd.f32 0.0, %v1366
    %v1368 = vpop.f32.mrb[0].mxu0
    %v1369 = vadd.f32 0.0, %v1368
    %v1370 = vpop.f32.mrb[0].mxu0
    %v1371 = vadd.f32 0.0, %v1370
    %v1372 = vpop.f32.mrb[0].mxu0
    %v1373 = vadd.f32 0.0, %v1372
    %1374 = vmatprep.mubr.bf16.mxu0 0
    %1375 = vmatmul.mubr.bf16.gmra.mrb[0].mxu0 %v1237
    %v1376 = vpop.f32.mrb[0].mxu0
    %v1377 = vadd.f32 0.0, %v1376
    %v1378 = vpop.f32.mrb[0].mxu0
    %v1379 = vadd.f32 0.0, %v1378
    %v1380 = vpop.f32.mrb[0].mxu0
    %v1381 = vadd.f32 0.0, %v1380
    %v1382 = vpop.f32.mrb[0].mxu0
    %v1383 = vadd.f32 0.0, %v1382
    %1384 = vdwg.mxu0
    %1385 = vmatprep.subr.bf16.mxu0 %v289
    %1386 = vmatpush1.bf16.msra.mxu0 %v288
    %1387 = vmatprep.subr.bf16.mxu0 %v297
    %1388 = vmatpush1.bf16.msra.mxu0 %v296
    %1389 = vmatprep.subr.bf16.mxu0 %v305
    %1390 = vmatpush1.bf16.msra.mxu0 %v304
    %1391 = vmatprep.subr.bf16.mxu0 %v313
    %1392 = vmatpush1.bf16.msra.mxu0 %v312
    %1393 = vmatprep.subr.bf16.mxu0 %v321
    %1394 = vmatpush1.bf16.msra.mxu0 %v320
    %1395 = vmatprep.subr.bf16.mxu0 %v329
    %1396 = vmatpush1.bf16.msra.mxu0 %v328
    %1397 = vmatprep.subr.bf16.mxu0 0
    %1398 = vmatpush1.bf16.msra.mxu0 0
    %1399 = vmatprep.subr.bf16.mxu0 0
    %1400 = vmatpush1.bf16.msra.mxu0 0
    %1401 = vmatprep.subr.bf16.mxu0 0
    %1402 = vmatpush1.bf16.msra.mxu0 0
    %1403 = vmatprep.subr.bf16.mxu0 0
    %1404 = vmatpush1.bf16.msra.mxu0 0
    %1405 = vmatprep.subr.bf16.mxu0 0
    %1406 = vmatpush1.bf16.msra.mxu0 0
    %1407 = vmatprep.subr.bf16.mxu0 0
    %1408 = vmatpush1.bf16.msra.mxu0 0
    %1409 = vmatprep.subr.bf16.mxu0 0
    %1410 = vmatpush1.bf16.msra.mxu0 0
    %1411 = vmatprep.subr.bf16.mxu0 0
    %1412 = vmatpush1.bf16.msra.mxu0 0
    %1413 = vmatprep.subr.bf16.mxu0 0
    %1414 = vmatpush1.bf16.msra.mxu0 0
    %1415 = vmatprep.subr.bf16.mxu0 0
    %1416 = vmatpush1.bf16.msra.mxu0 0
    %1417 = vmatprep.mubr.bf16.mxu0 0
    %1418 = vmatmul.mubr.bf16.gmra.mrb[0].mxu0 %v1228
    %v1419 = vpop.f32.mrb[0].mxu0
    %v1420 = vadd.f32 0.0, %v1419
    %v1421 = vpop.f32.mrb[0].mxu0
    %v1422 = vadd.f32 0.0, %v1421
    %v1423 = vpop.f32.mrb[0].mxu0
    %v1424 = vadd.f32 0.0, %v1423
    %v1425 = vpop.f32.mrb[0].mxu0
    %v1426 = vadd.f32 0.0, %v1425
    %1427 = vmatprep.mubr.bf16.mxu0 0
    %1428 = vmatmul.mubr.bf16.gmra.mrb[0].mxu0 %v1231
    %v1429 = vpop.f32.mrb[0].mxu0
    %v1430 = vadd.f32 0.0, %v1429
    %v1431 = vpop.f32.mrb[0].mxu0
    %v1432 = vadd.f32 0.0, %v1431
    %v1433 = vpop.f32.mrb[0].mxu0
    %v1434 = vadd.f32 0.0, %v1433
    %v1435 = vpop.f32.mrb[0].mxu0
    %v1436 = vadd.f32 0.0, %v1435
    %1437 = vmatprep.mubr.bf16.mxu0 0
    %1438 = vmatmul.mubr.bf16.gmra.mrb[0].mxu0 %v1234
    %v1439 = vpop.f32.mrb[0].mxu0
    %v1440 = vadd.f32 0.0, %v1439
    %v1441 = vpop.f32.mrb[0].mxu0
    %v1442 = vadd.f32 0.0, %v1441
    %v1443 = vpop.f32.mrb[0].mxu0
    %v1444 = vadd.f32 0.0, %v1443
    %v1445 = vpop.f32.mrb[0].mxu0
    %v1446 = vadd.f32 0.0, %v1445
    %1447 = vmatprep.mubr.bf16.mxu0 0
    %1448 = vmatmul.mubr.bf16.gmra.mrb[0].mxu0 %v1237
    %v1449 = vpop.f32.mrb[0].mxu0
    %v1450 = vadd.f32 0.0, %v1449
    %v1451 = vpop.f32.mrb[0].mxu0
    %v1452 = vadd.f32 0.0, %v1451
    %v1453 = vpop.f32.mrb[0].mxu0
    %v1454 = vadd.f32 0.0, %v1453
    %v1455 = vpop.f32.mrb[0].mxu0
    %v1456 = vadd.f32 0.0, %v1455
    %1457 = vdwg.mxu0
    %1458 = vmatprep.subr.bf16.mxu0 %v291
    %1459 = vmatpush1.bf16.msra.mxu0 %v290
    %1460 = vmatprep.subr.bf16.mxu0 %v299
    %1461 = vmatpush1.bf16.msra.mxu0 %v298
    %1462 = vmatprep.subr.bf16.mxu0 %v307
    %1463 = vmatpush1.bf16.msra.mxu0 %v306
    %1464 = vmatprep.subr.bf16.mxu0 %v315
    %1465 = vmatpush1.bf16.msra.mxu0 %v314
    %1466 = vmatprep.subr.bf16.mxu0 %v323
    %1467 = vmatpush1.bf16.msra.mxu0 %v322
    %1468 = vmatprep.subr.bf16.mxu0 %v331
    %1469 = vmatpush1.bf16.msra.mxu0 %v330
    %1470 = vmatprep.subr.bf16.mxu0 0
    %1471 = vmatpush1.bf16.msra.mxu0 0
    %1472 = vmatprep.subr.bf16.mxu0 0
    %1473 = vmatpush1.bf16.msra.mxu0 0
    %1474 = vmatprep.subr.bf16.mxu0 0
    %1475 = vmatpush1.bf16.msra.mxu0 0
    %1476 = vmatprep.subr.bf16.mxu0 0
    %1477 = vmatpush1.bf16.msra.mxu0 0
    %1478 = vmatprep.subr.bf16.mxu0 0
    %1479 = vmatpush1.bf16.msra.mxu0 0
    %1480 = vmatprep.subr.bf16.mxu0 0
    %1481 = vmatpush1.bf16.msra.mxu0 0
    %1482 = vmatprep.subr.bf16.mxu0 0
    %1483 = vmatpush1.bf16.msra.mxu0 0
    %1484 = vmatprep.subr.bf16.mxu0 0
    %1485 = vmatpush1.bf16.msra.mxu0 0
    %1486 = vmatprep.subr.bf16.mxu0 0
    %1487 = vmatpush1.bf16.msra.mxu0 0
    %1488 = vmatprep.subr.bf16.mxu0 0
    %1489 = vmatpush1.bf16.msra.mxu0 0
    %1490 = vmatprep.mubr.bf16.mxu0 0
    %1491 = vmatmul.mubr.bf16.gmra.mrb[0].mxu0 %v1228
    %v1492 = vpop.f32.mrb[0].mxu0
    %v1493 = vadd.f32 0.0, %v1492
    %v1494 = vpop.f32.mrb[0].mxu0
    %v1495 = vadd.f32 0.0, %v1494
    %v1496 = vpop.f32.mrb[0].mxu0
    %v1497 = vadd.f32 0.0, %v1496
    %v1498 = vpop.f32.mrb[0].mxu0
    %v1499 = vadd.f32 0.0, %v1498
    %1500 = vmatprep.mubr.bf16.mxu0 0
    %1501 = vmatmul.mubr.bf16.gmra.mrb[0].mxu0 %v1231
    %v1502 = vpop.f32.mrb[0].mxu0
    %v1503 = vadd.f32 0.0, %v1502
    %v1504 = vpop.f32.mrb[0].mxu0
    %v1505 = vadd.f32 0.0, %v1504
    %v1506 = vpop.f32.mrb[0].mxu0
    %v1507 = vadd.f32 0.0, %v1506
    %v1508 = vpop.f32.mrb[0].mxu0
    %v1509 = vadd.f32 0.0, %v1508
    %1510 = vmatprep.mubr.bf16.mxu0 0
    %1511 = vmatmul.mubr.bf16.gmra.mrb[0].mxu0 %v1234
    %v1512 = vpop.f32.mrb[0].mxu0
    %v1513 = vadd.f32 0.0, %v1512
    %v1514 = vpop.f32.mrb[0].mxu0
    %v1515 = vadd.f32 0.0, %v1514
    %v1516 = vpop.f32.mrb[0].mxu0
    %v1517 = vadd.f32 0.0, %v1516
    %v1518 = vpop.f32.mrb[0].mxu0
    %v1519 = vadd.f32 0.0, %v1518
    %1520 = vmatprep.mubr.bf16.mxu0 0
    %1521 = vmatmul.mubr.bf16.gmra.mrb[0].mxu0 %v1237
    %v1522 = vpop.f32.mrb[0].mxu0
    %v1523 = vadd.f32 0.0, %v1522
    %v1524 = vpop.f32.mrb[0].mxu0
    %v1525 = vadd.f32 0.0, %v1524
    %v1526 = vpop.f32.mrb[0].mxu0
    %v1527 = vadd.f32 0.0, %v1526
    %v1528 = vpop.f32.mrb[0].mxu0
    %v1529 = vadd.f32 0.0, %v1528
    %1530 = vdwg.mxu0
    %v1531 = vmax.f32 %v1274, %v1420
    %v1532 = vmax.f32 %v1276, %v1422
    %v1533 = vmax.f32 %v1347, %v1493
    %v1534 = vmax.f32 %v1349, %v1495
    %v1535 = vmax.f32 %v1278, %v1424
    %v1536 = vmax.f32 %v1280, %v1426
    %v1537 = vmax.f32 %v1351, %v1497
    %v1538 = vmax.f32 %v1353, %v1499
    %v1539 = vmax.f32 %v1284, %v1430
    %v1540 = vmax.f32 %v1286, %v1432
    %v1541 = vmax.f32 %v1357, %v1503
    %v1542 = vmax.f32 %v1359, %v1505
    %v1543 = vmax.f32 %v1288, %v1434
    %v1544 = vmax.f32 %v1290, %v1436
    %v1545 = vmax.f32 %v1361, %v1507
    %v1546 = vmax.f32 %v1363, %v1509
    %v1547 = vmax.f32 %v1294, %v1440
    %v1548 = vmax.f32 %v1296, %v1442
    %v1549 = vmax.f32 %v1367, %v1513
    %v1550 = vmax.f32 %v1369, %v1515
    %v1551 = vmax.f32 %v1298, %v1444
    %v1552 = vmax.f32 %v1300, %v1446
    %v1553 = vmax.f32 %v1371, %v1517
    %v1554 = vmax.f32 %v1373, %v1519
    %v1555 = vmax.f32 %v1304, %v1450
    %v1556 = vmax.f32 %v1306, %v1452
    %v1557 = vmax.f32 %v1377, %v1523
    %v1558 = vmax.f32 %v1379, %v1525
    %v1559 = vmax.f32 %v1308, %v1454
    %v1560 = vmax.f32 %v1310, %v1456
    %v1561 = vmax.f32 %v1381, %v1527
    %v1562 = vmax.f32 %v1383, %v1529
    %s1563 = scalar_lea.vmem %s0, 64
    %v1564 = vld [vmem:[%s1563] sm:$0xff]
    %v1565 = vld [vmem:[%s1563 + $0x8] sm:$0xff]
    %v1566 = vld [vmem:[%s1563 + $0x10] sm:$0xff]
    %v1567 = vld [vmem:[%s1563 + $0x18] sm:$0xff]
    %v1568 = vld [vmem:[%s1563 + $0x20] sm:$0xff]
    %v1569 = vld [vmem:[%s1563 + $0x28] sm:$0xff]
    %v1570 = vld [vmem:[%s1563 + $0x30] sm:$0xff]
    %v1571 = vld [vmem:[%s1563 + $0x38] sm:$0xff]
    %v1572 = vpack.c.bf16 %v1565, %v1564
    %v1573 = vpack.c.bf16 %v1567, %v1566
    %v1574 = vpack.c.bf16 %v1569, %v1568
    %v1575 = vpack.c.bf16 %v1571, %v1570
    %v1577 = vsel %vm380, %v1572, 0
    %v1580 = vsel %vm380, %v1573, 0
    %v1583 = vsel %vm380, %v1574, 0
    %v1586 = vsel %vm380, %v1575, 0
    %1588 = vmatprep.subr.bf16.mxu0 %v285
    %1589 = vmatpush1.bf16.msra.mxu0 %v284
    %1590 = vmatprep.subr.bf16.mxu0 %v293
    %1591 = vmatpush1.bf16.msra.mxu0 %v292
    %1592 = vmatprep.subr.bf16.mxu0 %v301
    %1593 = vmatpush1.bf16.msra.mxu0 %v300
    %1594 = vmatprep.subr.bf16.mxu0 %v309
    %1595 = vmatpush1.bf16.msra.mxu0 %v308
    %1596 = vmatprep.subr.bf16.mxu0 %v317
    %1597 = vmatpush1.bf16.msra.mxu0 %v316
    %1598 = vmatprep.subr.bf16.mxu0 %v325
    %1599 = vmatpush1.bf16.msra.mxu0 %v324
    %1600 = vmatprep.subr.bf16.mxu0 0
    %1601 = vmatpush1.bf16.msra.mxu0 0
    %1602 = vmatprep.subr.bf16.mxu0 0
    %1603 = vmatpush1.bf16.msra.mxu0 0
    %1604 = vmatprep.subr.bf16.mxu0 0
    %1605 = vmatpush1.bf16.msra.mxu0 0
    %1606 = vmatprep.subr.bf16.mxu0 0
    %1607 = vmatpush1.bf16.msra.mxu0 0
    %1608 = vmatprep.subr.bf16.mxu0 0
    %1609 = vmatpush1.bf16.msra.mxu0 0
    %1610 = vmatprep.subr.bf16.mxu0 0
    %1611 = vmatpush1.bf16.msra.mxu0 0
    %1612 = vmatprep.subr.bf16.mxu0 0
    %1613 = vmatpush1.bf16.msra.mxu0 0
    %1614 = vmatprep.subr.bf16.mxu0 0
    %1615 = vmatpush1.bf16.msra.mxu0 0
    %1616 = vmatprep.subr.bf16.mxu0 0
    %1617 = vmatpush1.bf16.msra.mxu0 0
    %1618 = vmatprep.subr.bf16.mxu0 0
    %1619 = vmatpush1.bf16.msra.mxu0 0
    %1620 = vmatprep.mubr.bf16.mxu0 0
    %1621 = vmatmul.mubr.bf16.gmra.mrb[0].mxu0 %v1577
    %v1622 = vpop.f32.mrb[0].mxu0
    %v1623 = vadd.f32 0.0, %v1622
    %v1624 = vpop.f32.mrb[0].mxu0
    %v1625 = vadd.f32 0.0, %v1624
    %v1626 = vpop.f32.mrb[0].mxu0
    %v1627 = vadd.f32 0.0, %v1626
    %v1628 = vpop.f32.mrb[0].mxu0
    %v1629 = vadd.f32 0.0, %v1628
    %1630 = vmatprep.mubr.bf16.mxu0 0
    %1631 = vmatmul.mubr.bf16.gmra.mrb[0].mxu0 %v1580
    %v1632 = vpop.f32.mrb[0].mxu0
    %v1633 = vadd.f32 0.0, %v1632
    %v1634 = vpop.f32.mrb[0].mxu0
    %v1635 = vadd.f32 0.0, %v1634
    %v1636 = vpop.f32.mrb[0].mxu0
    %v1637 = vadd.f32 0.0, %v1636
    %v1638 = vpop.f32.mrb[0].mxu0
    %v1639 = vadd.f32 0.0, %v1638
    %1640 = vmatprep.mubr.bf16.mxu0 0
    %1641 = vmatmul.mubr.bf16.gmra.mrb[0].mxu0 %v1583
    %v1642 = vpop.f32.mrb[0].mxu0
    %v1643 = vadd.f32 0.0, %v1642
    %v1644 = vpop.f32.mrb[0].mxu0
    %v1645 = vadd.f32 0.0, %v1644
    %v1646 = vpop.f32.mrb[0].mxu0
    %v1647 = vadd.f32 0.0, %v1646
    %v1648 = vpop.f32.mrb[0].mxu0
    %v1649 = vadd.f32 0.0, %v1648
    %1650 = vmatprep.mubr.bf16.mxu0 0
    %1651 = vmatmul.mubr.bf16.gmra.mrb[0].mxu0 %v1586
    %v1652 = vpop.f32.mrb[0].mxu0
    %v1653 = vadd.f32 0.0, %v1652
    %v1654 = vpop.f32.mrb[0].mxu0
    %v1655 = vadd.f32 0.0, %v1654
    %v1656 = vpop.f32.mrb[0].mxu0
    %v1657 = vadd.f32 0.0, %v1656
    %v1658 = vpop.f32.mrb[0].mxu0
    %v1659 = vadd.f32 0.0, %v1658
    %1660 = vdwg.mxu0
    %1661 = vmatprep.subr.bf16.mxu0 %v287
    %1662 = vmatpush1.bf16.msra.mxu0 %v286
    %1663 = vmatprep.subr.bf16.mxu0 %v295
    %1664 = vmatpush1.bf16.msra.mxu0 %v294
    %1665 = vmatprep.subr.bf16.mxu0 %v303
    %1666 = vmatpush1.bf16.msra.mxu0 %v302
    %1667 = vmatprep.subr.bf16.mxu0 %v311
    %1668 = vmatpush1.bf16.msra.mxu0 %v310
    %1669 = vmatprep.subr.bf16.mxu0 %v319
    %1670 = vmatpush1.bf16.msra.mxu0 %v318
    %1671 = vmatprep.subr.bf16.mxu0 %v327
    %1672 = vmatpush1.bf16.msra.mxu0 %v326
    %1673 = vmatprep.subr.bf16.mxu0 0
    %1674 = vmatpush1.bf16.msra.mxu0 0
    %1675 = vmatprep.subr.bf16.mxu0 0
    %1676 = vmatpush1.bf16.msra.mxu0 0
    %1677 = vmatprep.subr.bf16.mxu0 0
    %1678 = vmatpush1.bf16.msra.mxu0 0
    %1679 = vmatprep.subr.bf16.mxu0 0
    %1680 = vmatpush1.bf16.msra.mxu0 0
    %1681 = vmatprep.subr.bf16.mxu0 0
    %1682 = vmatpush1.bf16.msra.mxu0 0
    %1683 = vmatprep.subr.bf16.mxu0 0
    %1684 = vmatpush1.bf16.msra.mxu0 0
    %1685 = vmatprep.subr.bf16.mxu0 0
    %1686 = vmatpush1.bf16.msra.mxu0 0
    %1687 = vmatprep.subr.bf16.mxu0 0
    %1688 = vmatpush1.bf16.msra.mxu0 0
    %1689 = vmatprep.subr.bf16.mxu0 0
    %1690 = vmatpush1.bf16.msra.mxu0 0
    %1691 = vmatprep.subr.bf16.mxu0 0
    %1692 = vmatpush1.bf16.msra.mxu0 0
    %1693 = vmatprep.mubr.bf16.mxu0 0
    %1694 = vmatmul.mubr.bf16.gmra.mrb[0].mxu0 %v1577
    %v1695 = vpop.f32.mrb[0].mxu0
    %v1696 = vadd.f32 0.0, %v1695
    %v1697 = vpop.f32.mrb[0].mxu0
    %v1698 = vadd.f32 0.0, %v1697
    %v1699 = vpop.f32.mrb[0].mxu0
    %v1700 = vadd.f32 0.0, %v1699
    %v1701 = vpop.f32.mrb[0].mxu0
    %v1702 = vadd.f32 0.0, %v1701
    %1703 = vmatprep.mubr.bf16.mxu0 0
    %1704 = vmatmul.mubr.bf16.gmra.mrb[0].mxu0 %v1580
    %v1705 = vpop.f32.mrb[0].mxu0
    %v1706 = vadd.f32 0.0, %v1705
    %v1707 = vpop.f32.mrb[0].mxu0
    %v1708 = vadd.f32 0.0, %v1707
    %v1709 = vpop.f32.mrb[0].mxu0
    %v1710 = vadd.f32 0.0, %v1709
    %v1711 = vpop.f32.mrb[0].mxu0
    %v1712 = vadd.f32 0.0, %v1711
    %1713 = vmatprep.mubr.bf16.mxu0 0
    %1714 = vmatmul.mubr.bf16.gmra.mrb[0].mxu0 %v1583
    %v1715 = vpop.f32.mrb[0].mxu0
    %v1716 = vadd.f32 0.0, %v1715
    %v1717 = vpop.f32.mrb[0].mxu0
    %v1718 = vadd.f32 0.0, %v1717
    %v1719 = vpop.f32.mrb[0].mxu0
    %v1720 = vadd.f32 0.0, %v1719
    %v1721 = vpop.f32.mrb[0].mxu0
    %v1722 = vadd.f32 0.0, %v1721
    %1723 = vmatprep.mubr.bf16.mxu0 0
    %1724 = vmatmul.mubr.bf16.gmra.mrb[0].mxu0 %v1586
    %v1725 = vpop.f32.mrb[0].mxu0
    %v1726 = vadd.f32 0.0, %v1725
    %v1727 = vpop.f32.mrb[0].mxu0
    %v1728 = vadd.f32 0.0, %v1727
    %v1729 = vpop.f32.mrb[0].mxu0
    %v1730 = vadd.f32 0.0, %v1729
    %v1731 = vpop.f32.mrb[0].mxu0
    %v1732 = vadd.f32 0.0, %v1731
    %1733 = vdwg.mxu0
    %1734 = vmatprep.subr.bf16.mxu0 %v289
    %1735 = vmatpush1.bf16.msra.mxu0 %v288
    %1736 = vmatprep.subr.bf16.mxu0 %v297
    %1737 = vmatpush1.bf16.msra.mxu0 %v296
    %1738 = vmatprep.subr.bf16.mxu0 %v305
    %1739 = vmatpush1.bf16.msra.mxu0 %v304
    %1740 = vmatprep.subr.bf16.mxu0 %v313
    %1741 = vmatpush1.bf16.msra.mxu0 %v312
    %1742 = vmatprep.subr.bf16.mxu0 %v321
    %1743 = vmatpush1.bf16.msra.mxu0 %v320
    %1744 = vmatprep.subr.bf16.mxu0 %v329
    %1745 = vmatpush1.bf16.msra.mxu0 %v328
    %1746 = vmatprep.subr.bf16.mxu0 0
    %1747 = vmatpush1.bf16.msra.mxu0 0
    %1748 = vmatprep.subr.bf16.mxu0 0
    %1749 = vmatpush1.bf16.msra.mxu0 0
    %1750 = vmatprep.subr.bf16.mxu0 0
    %1751 = vmatpush1.bf16.msra.mxu0 0
    %1752 = vmatprep.subr.bf16.mxu0 0
    %1753 = vmatpush1.bf16.msra.mxu0 0
    %1754 = vmatprep.subr.bf16.mxu0 0
    %1755 = vmatpush1.bf16.msra.mxu0 0
    %1756 = vmatprep.subr.bf16.mxu0 0
    %1757 = vmatpush1.bf16.msra.mxu0 0
    %1758 = vmatprep.subr.bf16.mxu0 0
    %1759 = vmatpush1.bf16.msra.mxu0 0
    %1760 = vmatprep.subr.bf16.mxu0 0
    %1761 = vmatpush1.bf16.msra.mxu0 0
    %1762 = vmatprep.subr.bf16.mxu0 0
    %1763 = vmatpush1.bf16.msra.mxu0 0
    %1764 = vmatprep.subr.bf16.mxu0 0
    %1765 = vmatpush1.bf16.msra.mxu0 0
    %1766 = vmatprep.mubr.bf16.mxu0 0
    %1767 = vmatmul.mubr.bf16.gmra.mrb[0].mxu0 %v1577
    %v1768 = vpop.f32.mrb[0].mxu0
    %v1769 = vadd.f32 0.0, %v1768
    %v1770 = vpop.f32.mrb[0].mxu0
    %v1771 = vadd.f32 0.0, %v1770
    %v1772 = vpop.f32.mrb[0].mxu0
    %v1773 = vadd.f32 0.0, %v1772
    %v1774 = vpop.f32.mrb[0].mxu0
    %v1775 = vadd.f32 0.0, %v1774
    %1776 = vmatprep.mubr.bf16.mxu0 0
    %1777 = vmatmul.mubr.bf16.gmra.mrb[0].mxu0 %v1580
    %v1778 = vpop.f32.mrb[0].mxu0
    %v1779 = vadd.f32 0.0, %v1778
    %v1780 = vpop.f32.mrb[0].mxu0
    %v1781 = vadd.f32 0.0, %v1780
    %v1782 = vpop.f32.mrb[0].mxu0
    %v1783 = vadd.f32 0.0, %v1782
    %v1784 = vpop.f32.mrb[0].mxu0
    %v1785 = vadd.f32 0.0, %v1784
    %1786 = vmatprep.mubr.bf16.mxu0 0
    %1787 = vmatmul.mubr.bf16.gmra.mrb[0].mxu0 %v1583
    %v1788 = vpop.f32.mrb[0].mxu0
    %v1789 = vadd.f32 0.0, %v1788
    %v1790 = vpop.f32.mrb[0].mxu0
    %v1791 = vadd.f32 0.0, %v1790
    %v1792 = vpop.f32.mrb[0].mxu0
    %v1793 = vadd.f32 0.0, %v1792
    %v1794 = vpop.f32.mrb[0].mxu0
    %v1795 = vadd.f32 0.0, %v1794
    %1796 = vmatprep.mubr.bf16.mxu0 0
    %1797 = vmatmul.mubr.bf16.gmra.mrb[0].mxu0 %v1586
    %v1798 = vpop.f32.mrb[0].mxu0
    %v1799 = vadd.f32 0.0, %v1798
    %v1800 = vpop.f32.mrb[0].mxu0
    %v1801 = vadd.f32 0.0, %v1800
    %v1802 = vpop.f32.mrb[0].mxu0
    %v1803 = vadd.f32 0.0, %v1802
    %v1804 = vpop.f32.mrb[0].mxu0
    %v1805 = vadd.f32 0.0, %v1804
    %1806 = vdwg.mxu0
    %1807 = vmatprep.subr.bf16.mxu0 %v291
    %1808 = vmatpush1.bf16.msra.mxu0 %v290
    %1809 = vmatprep.subr.bf16.mxu0 %v299
    %1810 = vmatpush1.bf16.msra.mxu0 %v298
    %1811 = vmatprep.subr.bf16.mxu0 %v307
    %1812 = vmatpush1.bf16.msra.mxu0 %v306
    %1813 = vmatprep.subr.bf16.mxu0 %v315
    %1814 = vmatpush1.bf16.msra.mxu0 %v314
    %1815 = vmatprep.subr.bf16.mxu0 %v323
    %1816 = vmatpush1.bf16.msra.mxu0 %v322
    %1817 = vmatprep.subr.bf16.mxu0 %v331
    %1818 = vmatpush1.bf16.msra.mxu0 %v330
    %1819 = vmatprep.subr.bf16.mxu0 0
    %1820 = vmatpush1.bf16.msra.mxu0 0
    %1821 = vmatprep.subr.bf16.mxu0 0
    %1822 = vmatpush1.bf16.msra.mxu0 0
    %1823 = vmatprep.subr.bf16.mxu0 0
    %1824 = vmatpush1.bf16.msra.mxu0 0
    %1825 = vmatprep.subr.bf16.mxu0 0
    %1826 = vmatpush1.bf16.msra.mxu0 0
    %1827 = vmatprep.subr.bf16.mxu0 0
    %1828 = vmatpush1.bf16.msra.mxu0 0
    %1829 = vmatprep.subr.bf16.mxu0 0
    %1830 = vmatpush1.bf16.msra.mxu0 0
    %1831 = vmatprep.subr.bf16.mxu0 0
    %1832 = vmatpush1.bf16.msra.mxu0 0
    %1833 = vmatprep.subr.bf16.mxu0 0
    %1834 = vmatpush1.bf16.msra.mxu0 0
    %1835 = vmatprep.subr.bf16.mxu0 0
    %1836 = vmatpush1.bf16.msra.mxu0 0
    %1837 = vmatprep.subr.bf16.mxu0 0
    %1838 = vmatpush1.bf16.msra.mxu0 0
    %1839 = vmatprep.mubr.bf16.mxu0 0
    %1840 = vmatmul.mubr.bf16.gmra.mrb[0].mxu0 %v1577
    %v1841 = vpop.f32.mrb[0].mxu0
    %v1842 = vadd.f32 0.0, %v1841
    %v1843 = vpop.f32.mrb[0].mxu0
    %v1844 = vadd.f32 0.0, %v1843
    %v1845 = vpop.f32.mrb[0].mxu0
    %v1846 = vadd.f32 0.0, %v1845
    %v1847 = vpop.f32.mrb[0].mxu0
    %v1848 = vadd.f32 0.0, %v1847
    %1849 = vmatprep.mubr.bf16.mxu0 0
    %1850 = vmatmul.mubr.bf16.gmra.mrb[0].mxu0 %v1580
    %v1851 = vpop.f32.mrb[0].mxu0
    %v1852 = vadd.f32 0.0, %v1851
    %v1853 = vpop.f32.mrb[0].mxu0
    %v1854 = vadd.f32 0.0, %v1853
    %v1855 = vpop.f32.mrb[0].mxu0
    %v1856 = vadd.f32 0.0, %v1855
    %v1857 = vpop.f32.mrb[0].mxu0
    %v1858 = vadd.f32 0.0, %v1857
    %1859 = vmatprep.mubr.bf16.mxu0 0
    %1860 = vmatmul.mubr.bf16.gmra.mrb[0].mxu0 %v1583
    %v1861 = vpop.f32.mrb[0].mxu0
    %v1862 = vadd.f32 0.0, %v1861
    %v1863 = vpop.f32.mrb[0].mxu0
    %v1864 = vadd.f32 0.0, %v1863
    %v1865 = vpop.f32.mrb[0].mxu0
    %v1866 = vadd.f32 0.0, %v1865
    %v1867 = vpop.f32.mrb[0].mxu0
    %v1868 = vadd.f32 0.0, %v1867
    %1869 = vmatprep.mubr.bf16.mxu0 0
    %1870 = vmatmul.mubr.bf16.gmra.mrb[0].mxu0 %v1586
    %v1871 = vpop.f32.mrb[0].mxu0
    %v1872 = vadd.f32 0.0, %v1871
    %v1873 = vpop.f32.mrb[0].mxu0
    %v1874 = vadd.f32 0.0, %v1873
    %v1875 = vpop.f32.mrb[0].mxu0
    %v1876 = vadd.f32 0.0, %v1875
    %v1877 = vpop.f32.mrb[0].mxu0
    %v1878 = vadd.f32 0.0, %v1877
    %1879 = vdwg.mxu0
    %v1880 = vmax.f32 %v1623, %v1769
    %v1881 = vmax.f32 %v1625, %v1771
    %v1882 = vmax.f32 %v1696, %v1842
    %v1883 = vmax.f32 %v1698, %v1844
    %v1884 = vmax.f32 %v1627, %v1773
    %v1885 = vmax.f32 %v1629, %v1775
    %v1886 = vmax.f32 %v1700, %v1846
    %v1887 = vmax.f32 %v1702, %v1848
    %v1888 = vmax.f32 %v1633, %v1779
    %v1889 = vmax.f32 %v1635, %v1781
    %v1890 = vmax.f32 %v1706, %v1852
    %v1891 = vmax.f32 %v1708, %v1854
    %v1892 = vmax.f32 %v1637, %v1783
    %v1893 = vmax.f32 %v1639, %v1785
    %v1894 = vmax.f32 %v1710, %v1856
    %v1895 = vmax.f32 %v1712, %v1858
    %v1896 = vmax.f32 %v1643, %v1789
    %v1897 = vmax.f32 %v1645, %v1791
    %v1898 = vmax.f32 %v1716, %v1862
    %v1899 = vmax.f32 %v1718, %v1864
    %v1900 = vmax.f32 %v1647, %v1793
    %v1901 = vmax.f32 %v1649, %v1795
    %v1902 = vmax.f32 %v1720, %v1866
    %v1903 = vmax.f32 %v1722, %v1868
    %v1904 = vmax.f32 %v1653, %v1799
    %v1905 = vmax.f32 %v1655, %v1801
    %v1906 = vmax.f32 %v1726, %v1872
    %v1907 = vmax.f32 %v1728, %v1874
    %v1908 = vmax.f32 %v1657, %v1803
    %v1909 = vmax.f32 %v1659, %v1805
    %v1910 = vmax.f32 %v1730, %v1876
    %v1911 = vmax.f32 %v1732, %v1878
    %v1912 = vmax.f32 %v1531, %v1880
    %v1913 = vmax.f32 %v1532, %v1881
    %v1914 = vmax.f32 %v1533, %v1882
    %v1915 = vmax.f32 %v1534, %v1883
    %v1916 = vmax.f32 %v1535, %v1884
    %v1917 = vmax.f32 %v1536, %v1885
    %v1918 = vmax.f32 %v1537, %v1886
    %v1919 = vmax.f32 %v1538, %v1887
    %v1920 = vmax.f32 %v1539, %v1888
    %v1921 = vmax.f32 %v1540, %v1889
    %v1922 = vmax.f32 %v1541, %v1890
    %v1923 = vmax.f32 %v1542, %v1891
    %v1924 = vmax.f32 %v1543, %v1892
    %v1925 = vmax.f32 %v1544, %v1893
    %v1926 = vmax.f32 %v1545, %v1894
    %v1927 = vmax.f32 %v1546, %v1895
    %v1928 = vmax.f32 %v1547, %v1896
    %v1929 = vmax.f32 %v1548, %v1897
    %v1930 = vmax.f32 %v1549, %v1898
    %v1931 = vmax.f32 %v1550, %v1899
    %v1932 = vmax.f32 %v1551, %v1900
    %v1933 = vmax.f32 %v1552, %v1901
    %v1934 = vmax.f32 %v1553, %v1902
    %v1935 = vmax.f32 %v1554, %v1903
    %v1936 = vmax.f32 %v1555, %v1904
    %v1937 = vmax.f32 %v1556, %v1905
    %v1938 = vmax.f32 %v1557, %v1906
    %v1939 = vmax.f32 %v1558, %v1907
    %v1940 = vmax.f32 %v1559, %v1908
    %v1941 = vmax.f32 %v1560, %v1909
    %v1942 = vmax.f32 %v1561, %v1910
    %v1943 = vmax.f32 %v1562, %v1911
    %v1944 = vadd.f32 %v1912, %v1102
    %v1945 = vadd.f32 %v1913, %v1106
    %v1946 = vadd.f32 %v1914, %v1110
    %v1947 = vadd.f32 %v1915, %v1114
    %v1948 = vadd.f32 %v1916, %v1102
    %v1949 = vadd.f32 %v1917, %v1106
    %v1950 = vadd.f32 %v1918, %v1110
    %v1951 = vadd.f32 %v1919, %v1114
    %v1952 = vadd.f32 %v1920, %v1102
    %v1953 = vadd.f32 %v1921, %v1106
    %v1954 = vadd.f32 %v1922, %v1110
    %v1955 = vadd.f32 %v1923, %v1114
    %v1956 = vadd.f32 %v1924, %v1102
    %v1957 = vadd.f32 %v1925, %v1106
    %v1958 = vadd.f32 %v1926, %v1110
    %v1959 = vadd.f32 %v1927, %v1114
    %v1960 = vadd.f32 %v1928, %v1102
    %v1961 = vadd.f32 %v1929, %v1106
    %v1962 = vadd.f32 %v1930, %v1110
    %v1963 = vadd.f32 %v1931, %v1114
    %v1964 = vadd.f32 %v1932, %v1102
    %v1965 = vadd.f32 %v1933, %v1106
    %v1966 = vadd.f32 %v1934, %v1110
    %v1967 = vadd.f32 %v1935, %v1114
    %v1968 = vadd.f32 %v1936, %v1102
    %v1969 = vadd.f32 %v1937, %v1106
    %v1970 = vadd.f32 %v1938, %v1110
    %v1971 = vadd.f32 %v1939, %v1114
    %v1972 = vadd.f32 %v1940, %v1102
    %v1973 = vadd.f32 %v1941, %v1106
    %v1974 = vadd.f32 %v1942, %v1110
    %v1975 = vadd.f32 %v1943, %v1114
    %v1976 = vmax.f32 %v1944, 0.0
    %v1977 = vmax.f32 %v1945, 0.0
    %v1978 = vmax.f32 %v1946, 0.0
    %v1979 = vmax.f32 %v1947, 0.0
    %v1980 = vmax.f32 %v1948, 0.0
    %v1981 = vmax.f32 %v1949, 0.0
    %v1982 = vmax.f32 %v1950, 0.0
    %v1983 = vmax.f32 %v1951, 0.0
    %v1984 = vmax.f32 %v1952, 0.0
    %v1985 = vmax.f32 %v1953, 0.0
    %v1986 = vmax.f32 %v1954, 0.0
    %v1987 = vmax.f32 %v1955, 0.0
    %v1988 = vmax.f32 %v1956, 0.0
    %v1989 = vmax.f32 %v1957, 0.0
    %v1990 = vmax.f32 %v1958, 0.0
    %v1991 = vmax.f32 %v1959, 0.0
    %v1992 = vmax.f32 %v1960, 0.0
    %v1993 = vmax.f32 %v1961, 0.0
    %v1994 = vmax.f32 %v1962, 0.0
    %v1995 = vmax.f32 %v1963, 0.0
    %v1996 = vmax.f32 %v1964, 0.0
    %v1997 = vmax.f32 %v1965, 0.0
    %v1998 = vmax.f32 %v1966, 0.0
    %v1999 = vmax.f32 %v1967, 0.0
    %v2000 = vmax.f32 %v1968, 0.0
    %v2001 = vmax.f32 %v1969, 0.0
    %v2002 = vmax.f32 %v1970, 0.0
    %v2003 = vmax.f32 %v1971, 0.0
    %v2004 = vmax.f32 %v1972, 0.0
    %v2005 = vmax.f32 %v1973, 0.0
    %v2006 = vmax.f32 %v1974, 0.0
    %v2007 = vmax.f32 %v1975, 0.0
    %s2008 = scalar_lea.vmem [#allocation2], 288
    %2009 = vst [vmem:[%s2008] sm:$0xff] %v1976
    %2010 = vst [vmem:[%s2008 + $0x8] sm:$0xff] %v1977
    %2011 = vst [vmem:[%s2008 + $0x10] sm:$0xff] %v1978
    %2012 = vst [vmem:[%s2008 + $0x18] sm:$0xff] %v1979
    %2013 = vst [vmem:[%s2008 + $0x20] sm:$0xff] %v1980
    %2014 = vst [vmem:[%s2008 + $0x28] sm:$0xff] %v1981
    %2015 = vst [vmem:[%s2008 + $0x30] sm:$0xff] %v1982
    %2016 = vst [vmem:[%s2008 + $0x38] sm:$0xff] %v1983
    %2017 = vst [vmem:[%s2008 + $0x40] sm:$0xff] %v1984
    %2018 = vst [vmem:[%s2008 + $0x48] sm:$0xff] %v1985
    %2019 = vst [vmem:[%s2008 + $0x50] sm:$0xff] %v1986
    %2020 = vst [vmem:[%s2008 + $0x58] sm:$0xff] %v1987
    %2021 = vst [vmem:[%s2008 + $0x60] sm:$0xff] %v1988
    %2022 = vst [vmem:[%s2008 + $0x68] sm:$0xff] %v1989
    %2023 = vst [vmem:[%s2008 + $0x70] sm:$0xff] %v1990
    %2024 = vst [vmem:[%s2008 + $0x78] sm:$0xff] %v1991
    %2025 = vst [vmem:[%s2008 + $0x80] sm:$0xff] %v1992
    %2026 = vst [vmem:[%s2008 + $0x88] sm:$0xff] %v1993
    %2027 = vst [vmem:[%s2008 + $0x90] sm:$0xff] %v1994
    %2028 = vst [vmem:[%s2008 + $0x98] sm:$0xff] %v1995
    %2029 = vst [vmem:[%s2008 + $0xa0] sm:$0xff] %v1996
    %2030 = vst [vmem:[%s2008 + $0xa8] sm:$0xff] %v1997
    %2031 = vst [vmem:[%s2008 + $0xb0] sm:$0xff] %v1998
    %2032 = vst [vmem:[%s2008 + $0xb8] sm:$0xff] %v1999
    %2033 = vst [vmem:[%s2008 + $0xc0] sm:$0xff] %v2000
    %2034 = vst [vmem:[%s2008 + $0xc8] sm:$0xff] %v2001
    %2035 = vst [vmem:[%s2008 + $0xd0] sm:$0xff] %v2002
    %2036 = vst [vmem:[%s2008 + $0xd8] sm:$0xff] %v2003
    %2037 = vst [vmem:[%s2008 + $0xe0] sm:$0xff] %v2004
    %2038 = vst [vmem:[%s2008 + $0xe8] sm:$0xff] %v2005
    %2039 = vst [vmem:[%s2008 + $0xf0] sm:$0xff] %v2006
    %2040 = vst [vmem:[%s2008 + $0xf8] sm:$0xff] %v2007
    %2041 = vst [vmem:[%s2008 + $0x100] sm:$0xff] 0.0
    %2042 = vst [vmem:[%s2008 + $0x108] sm:$0xff] 0.0
    %2043 = vst [vmem:[%s2008 + $0x110] sm:$0xff] 0.0
    %2044 = vst [vmem:[%s2008 + $0x118] sm:$0xff] 0.0
    %v2045 = vld [vmem:[%s3] sm:$0xff]
    %v2046 = vld [vmem:[%s3 + $0x8] sm:$0xff]
    %v2047 = vld [vmem:[%s3 + $0x10] sm:$0xff]
    %v2048 = vld [vmem:[%s3 + $0x18] sm:$0xff]
    %v2049 = vld [vmem:[%s3 + $0x20] sm:$0xff]
    %v2050 = vld [vmem:[%s3 + $0x28] sm:$0xff]
    %v2051 = vld [vmem:[%s3 + $0x30] sm:$0xff]
    %v2052 = vld [vmem:[%s3 + $0x38] sm:$0xff]
    %v2053 = vld [vmem:[%s3 + $0x40] sm:$0xff]
    %v2054 = vld [vmem:[%s3 + $0x48] sm:$0xff]
    %v2055 = vld [vmem:[%s3 + $0x50] sm:$0xff]
    %v2056 = vld [vmem:[%s3 + $0x58] sm:$0xff]
    %v2057 = vld [vmem:[%s3 + $0x60] sm:$0xff]
    %v2058 = vld [vmem:[%s3 + $0x68] sm:$0xff]
    %v2059 = vld [vmem:[%s3 + $0x70] sm:$0xff]
    %v2060 = vld [vmem:[%s3 + $0x78] sm:$0xff]
    %v2061 = vld [vmem:[%s3 + $0x80] sm:$0xff]
    %v2062 = vld [vmem:[%s3 + $0x88] sm:$0xff]
    %v2063 = vld [vmem:[%s3 + $0x90] sm:$0xff]
    %v2064 = vld [vmem:[%s3 + $0x98] sm:$0xff]
    %v2065 = vld [vmem:[%s3 + $0xa0] sm:$0xff]
    %v2066 = vld [vmem:[%s3 + $0xa8] sm:$0xff]
    %v2067 = vld [vmem:[%s3 + $0xb0] sm:$0xff]
    %v2068 = vld [vmem:[%s3 + $0xb8] sm:$0xff]
    %v2069 = vld [vmem:[%s3 + $0xc0] sm:$0xff]
    %v2070 = vld [vmem:[%s3 + $0xc8] sm:$0xff]
    %v2071 = vld [vmem:[%s3 + $0xd0] sm:$0xff]
    %v2072 = vld [vmem:[%s3 + $0xd8] sm:$0xff]
    %v2073 = vld [vmem:[%s3 + $0xe0] sm:$0xff]
    %v2074 = vld [vmem:[%s3 + $0xe8] sm:$0xff]
    %v2075 = vld [vmem:[%s3 + $0xf0] sm:$0xff]
    %v2076 = vld [vmem:[%s3 + $0xf8] sm:$0xff]
    %v2077 = vld [vmem:[%s3 + $0x100] sm:$0xff]
    %v2078 = vld [vmem:[%s3 + $0x108] sm:$0xff]
    %v2079 = vld [vmem:[%s3 + $0x110] sm:$0xff]
    %v2080 = vld [vmem:[%s3 + $0x118] sm:$0xff]
    %v2081 = vld [vmem:[%s3 + $0x120] sm:$0xff]
    %v2082 = vld [vmem:[%s3 + $0x128] sm:$0xff]
    %v2083 = vld [vmem:[%s3 + $0x130] sm:$0xff]
    %v2084 = vld [vmem:[%s3 + $0x138] sm:$0xff]
    %v2085 = vld [vmem:[%s3 + $0x140] sm:$0xff]
    %v2086 = vld [vmem:[%s3 + $0x148] sm:$0xff]
    %v2087 = vld [vmem:[%s3 + $0x150] sm:$0xff]
    %v2088 = vld [vmem:[%s3 + $0x158] sm:$0xff]
    %v2089 = vld [vmem:[%s3 + $0x160] sm:$0xff]
    %v2090 = vld [vmem:[%s3 + $0x168] sm:$0xff]
    %v2091 = vld [vmem:[%s3 + $0x170] sm:$0xff]
    %v2092 = vld [vmem:[%s3 + $0x178] sm:$0xff]
    %v2093 = vld [vmem:[%s3 + $0x180] sm:$0xff]
    %v2094 = vld [vmem:[%s3 + $0x188] sm:$0xff]
    %v2095 = vld [vmem:[%s3 + $0x190] sm:$0xff]
    %v2096 = vld [vmem:[%s3 + $0x198] sm:$0xff]
    %v2097 = vld [vmem:[%s3 + $0x1a0] sm:$0xff]
    %v2098 = vld [vmem:[%s3 + $0x1a8] sm:$0xff]
    %v2099 = vld [vmem:[%s3 + $0x1b0] sm:$0xff]
    %v2100 = vld [vmem:[%s3 + $0x1b8] sm:$0xff]
    %v2101 = vld [vmem:[%s3 + $0x1c0] sm:$0xff]
    %v2102 = vld [vmem:[%s3 + $0x1c8] sm:$0xff]
    %v2103 = vld [vmem:[%s3 + $0x1d0] sm:$0xff]
    %v2104 = vld [vmem:[%s3 + $0x1d8] sm:$0xff]
    %v2105 = vld [vmem:[%s3 + $0x1e0] sm:$0xff]
    %v2106 = vld [vmem:[%s3 + $0x1e8] sm:$0xff]
    %v2107 = vld [vmem:[%s3 + $0x1f0] sm:$0xff]
    %v2108 = vld [vmem:[%s3 + $0x1f8] sm:$0xff]
    %v2109 = vld [vmem:[%s3 + $0x200] sm:$0xff]
    %v2110 = vld [vmem:[%s3 + $0x208] sm:$0xff]
    %v2111 = vld [vmem:[%s3 + $0x210] sm:$0xff]
    %v2112 = vld [vmem:[%s3 + $0x218] sm:$0xff]
    %v2113 = vld [vmem:[%s3 + $0x220] sm:$0xff]
    %v2114 = vld [vmem:[%s3 + $0x228] sm:$0xff]
    %v2115 = vld [vmem:[%s3 + $0x230] sm:$0xff]
    %v2116 = vld [vmem:[%s3 + $0x238] sm:$0xff]
    %v2117 = vld [vmem:[%s3 + $0x240] sm:$0xff]
    %v2118 = vld [vmem:[%s3 + $0x248] sm:$0xff]
    %v2119 = vld [vmem:[%s3 + $0x250] sm:$0xff]
    %v2120 = vld [vmem:[%s3 + $0x258] sm:$0xff]
    %v2121 = vld [vmem:[%s3 + $0x260] sm:$0xff]
    %v2122 = vld [vmem:[%s3 + $0x268] sm:$0xff]
    %v2123 = vld [vmem:[%s3 + $0x270] sm:$0xff]
    %v2124 = vld [vmem:[%s3 + $0x278] sm:$0xff]
    %v2125 = vld [vmem:[%s3 + $0x280] sm:$0xff]
    %v2126 = vld [vmem:[%s3 + $0x288] sm:$0xff]
    %v2127 = vld [vmem:[%s3 + $0x290] sm:$0xff]
    %v2128 = vld [vmem:[%s3 + $0x298] sm:$0xff]
    %v2129 = vld [vmem:[%s3 + $0x2a0] sm:$0xff]
    %v2130 = vld [vmem:[%s3 + $0x2a8] sm:$0xff]
    %v2131 = vld [vmem:[%s3 + $0x2b0] sm:$0xff]
    %v2132 = vld [vmem:[%s3 + $0x2b8] sm:$0xff]
    %v2133 = vld [vmem:[%s3 + $0x2c0] sm:$0xff]
    %v2134 = vld [vmem:[%s3 + $0x2c8] sm:$0xff]
    %v2135 = vld [vmem:[%s3 + $0x2d0] sm:$0xff]
    %v2136 = vld [vmem:[%s3 + $0x2d8] sm:$0xff]
    %v2137 = vld [vmem:[%s3 + $0x2e0] sm:$0xff]
    %v2138 = vld [vmem:[%s3 + $0x2e8] sm:$0xff]
    %v2139 = vld [vmem:[%s3 + $0x2f0] sm:$0xff]
    %v2140 = vld [vmem:[%s3 + $0x2f8] sm:$0xff]
    %v2141 = vld [vmem:[%s3 + $0x300] sm:$0xff]
    %v2142 = vld [vmem:[%s3 + $0x308] sm:$0xff]
    %v2143 = vld [vmem:[%s3 + $0x310] sm:$0xff]
    %v2144 = vld [vmem:[%s3 + $0x318] sm:$0xff]
    %v2145 = vld [vmem:[%s3 + $0x320] sm:$0xff]
    %v2146 = vld [vmem:[%s3 + $0x328] sm:$0xff]
    %v2147 = vld [vmem:[%s3 + $0x330] sm:$0xff]
    %v2148 = vld [vmem:[%s3 + $0x338] sm:$0xff]
    %v2149 = vld [vmem:[%s3 + $0x340] sm:$0xff]
    %v2150 = vld [vmem:[%s3 + $0x348] sm:$0xff]
    %v2151 = vld [vmem:[%s3 + $0x350] sm:$0xff]
    %v2152 = vld [vmem:[%s3 + $0x358] sm:$0xff]
    %v2153 = vld [vmem:[%s3 + $0x360] sm:$0xff]
    %v2154 = vld [vmem:[%s3 + $0x368] sm:$0xff]
    %v2155 = vld [vmem:[%s3 + $0x370] sm:$0xff]
    %v2156 = vld [vmem:[%s3 + $0x378] sm:$0xff]
    %v2157 = vld [vmem:[%s3 + $0x380] sm:$0xff]
    %v2158 = vld [vmem:[%s3 + $0x388] sm:$0xff]
    %v2159 = vld [vmem:[%s3 + $0x390] sm:$0xff]
    %v2160 = vld [vmem:[%s3 + $0x398] sm:$0xff]
    %v2161 = vld [vmem:[%s3 + $0x3a0] sm:$0xff]
    %v2162 = vld [vmem:[%s3 + $0x3a8] sm:$0xff]
    %v2163 = vld [vmem:[%s3 + $0x3b0] sm:$0xff]
    %v2164 = vld [vmem:[%s3 + $0x3b8] sm:$0xff]
    %v2165 = vld [vmem:[%s3 + $0x3c0] sm:$0xff]
    %v2166 = vld [vmem:[%s3 + $0x3c8] sm:$0xff]
    %v2167 = vld [vmem:[%s3 + $0x3d0] sm:$0xff]
    %v2168 = vld [vmem:[%s3 + $0x3d8] sm:$0xff]
    %v2169 = vld [vmem:[%s3 + $0x3e0] sm:$0xff]
    %v2170 = vld [vmem:[%s3 + $0x3e8] sm:$0xff]
    %v2171 = vld [vmem:[%s3 + $0x3f0] sm:$0xff]
    %v2172 = vld [vmem:[%s3 + $0x3f8] sm:$0xff]
    %v2173 = vld [vmem:[%s3 + $0x400] sm:$0xff]
    %v2174 = vld [vmem:[%s3 + $0x408] sm:$0xff]
    %v2175 = vld [vmem:[%s3 + $0x410] sm:$0xff]
    %v2176 = vld [vmem:[%s3 + $0x418] sm:$0xff]
    %v2177 = vld [vmem:[%s3 + $0x420] sm:$0xff]
    %v2178 = vld [vmem:[%s3 + $0x428] sm:$0xff]
    %v2179 = vld [vmem:[%s3 + $0x430] sm:$0xff]
    %v2180 = vld [vmem:[%s3 + $0x438] sm:$0xff]
    %v2181 = vld [vmem:[%s3 + $0x440] sm:$0xff]
    %v2182 = vld [vmem:[%s3 + $0x448] sm:$0xff]
    %v2183 = vld [vmem:[%s3 + $0x450] sm:$0xff]
    %v2184 = vld [vmem:[%s3 + $0x458] sm:$0xff]
    %v2185 = vld [vmem:[%s3 + $0x460] sm:$0xff]
    %v2186 = vld [vmem:[%s3 + $0x468] sm:$0xff]
    %v2187 = vld [vmem:[%s3 + $0x470] sm:$0xff]
    %v2188 = vld [vmem:[%s3 + $0x478] sm:$0xff]
    %v2189 = vld [vmem:[%s3 + $0x480] sm:$0xff]
    %v2190 = vld [vmem:[%s3 + $0x488] sm:$0xff]
    %v2191 = vld [vmem:[%s3 + $0x490] sm:$0xff]
    %v2192 = vld [vmem:[%s3 + $0x498] sm:$0xff]
    %v2193 = vld [vmem:[%s3 + $0x4a0] sm:$0xff]
    %v2194 = vld [vmem:[%s3 + $0x4a8] sm:$0xff]
    %v2195 = vld [vmem:[%s3 + $0x4b0] sm:$0xff]
    %v2196 = vld [vmem:[%s3 + $0x4b8] sm:$0xff]
    %v2197 = vld [vmem:[%s3 + $0x4c0] sm:$0xff]
    %v2198 = vld [vmem:[%s3 + $0x4c8] sm:$0xff]
    %v2199 = vld [vmem:[%s3 + $0x4d0] sm:$0xff]
    %v2200 = vld [vmem:[%s3 + $0x4d8] sm:$0xff]
    %v2201 = vld [vmem:[%s3 + $0x4e0] sm:$0xff]
    %v2202 = vld [vmem:[%s3 + $0x4e8] sm:$0xff]
    %v2203 = vld [vmem:[%s3 + $0x4f0] sm:$0xff]
    %v2204 = vld [vmem:[%s3 + $0x4f8] sm:$0xff]
    %v2205 = vld [vmem:[%s3 + $0x500] sm:$0xff]
    %v2206 = vld [vmem:[%s3 + $0x508] sm:$0xff]
    %v2207 = vld [vmem:[%s3 + $0x510] sm:$0xff]
    %v2208 = vld [vmem:[%s3 + $0x518] sm:$0xff]
    %v2209 = vld [vmem:[%s3 + $0x520] sm:$0xff]
    %v2210 = vld [vmem:[%s3 + $0x528] sm:$0xff]
    %v2211 = vld [vmem:[%s3 + $0x530] sm:$0xff]
    %v2212 = vld [vmem:[%s3 + $0x538] sm:$0xff]
    %v2213 = vld [vmem:[%s3 + $0x540] sm:$0xff]
    %v2214 = vld [vmem:[%s3 + $0x548] sm:$0xff]
    %v2215 = vld [vmem:[%s3 + $0x550] sm:$0xff]
    %v2216 = vld [vmem:[%s3 + $0x558] sm:$0xff]
    %v2217 = vld [vmem:[%s3 + $0x560] sm:$0xff]
    %v2218 = vld [vmem:[%s3 + $0x568] sm:$0xff]
    %v2219 = vld [vmem:[%s3 + $0x570] sm:$0xff]
    %v2220 = vld [vmem:[%s3 + $0x578] sm:$0xff]
    %v2221 = vld [vmem:[%s3 + $0x580] sm:$0xff]
    %v2222 = vld [vmem:[%s3 + $0x588] sm:$0xff]
    %v2223 = vld [vmem:[%s3 + $0x590] sm:$0xff]
    %v2224 = vld [vmem:[%s3 + $0x598] sm:$0xff]
    %v2225 = vld [vmem:[%s3 + $0x5a0] sm:$0xff]
    %v2226 = vld [vmem:[%s3 + $0x5a8] sm:$0xff]
    %v2227 = vld [vmem:[%s3 + $0x5b0] sm:$0xff]
    %v2228 = vld [vmem:[%s3 + $0x5b8] sm:$0xff]
    %v2229 = vld [vmem:[%s3 + $0x5c0] sm:$0xff]
    %v2230 = vld [vmem:[%s3 + $0x5c8] sm:$0xff]
    %v2231 = vld [vmem:[%s3 + $0x5d0] sm:$0xff]
    %v2232 = vld [vmem:[%s3 + $0x5d8] sm:$0xff]
    %v2233 = vld [vmem:[%s3 + $0x5e0] sm:$0xff]
    %v2234 = vld [vmem:[%s3 + $0x5e8] sm:$0xff]
    %v2235 = vld [vmem:[%s3 + $0x5f0] sm:$0xff]
    %v2236 = vld [vmem:[%s3 + $0x5f8] sm:$0xff]
    %v2237 = vld [vmem:[%s3 + $0x600] sm:$0xff]
    %v2238 = vld [vmem:[%s3 + $0x608] sm:$0xff]
    %v2239 = vld [vmem:[%s3 + $0x610] sm:$0xff]
    %v2240 = vld [vmem:[%s3 + $0x618] sm:$0xff]
    %v2241 = vld [vmem:[%s3 + $0x620] sm:$0xff]
    %v2242 = vld [vmem:[%s3 + $0x628] sm:$0xff]
    %v2243 = vld [vmem:[%s3 + $0x630] sm:$0xff]
    %v2244 = vld [vmem:[%s3 + $0x638] sm:$0xff]
    %v2245 = vld [vmem:[%s3 + $0x640] sm:$0xff]
    %v2246 = vld [vmem:[%s3 + $0x648] sm:$0xff]
    %v2247 = vld [vmem:[%s3 + $0x650] sm:$0xff]
    %v2248 = vld [vmem:[%s3 + $0x658] sm:$0xff]
    %v2249 = vld [vmem:[%s3 + $0x660] sm:$0xff]
    %v2250 = vld [vmem:[%s3 + $0x668] sm:$0xff]
    %v2251 = vld [vmem:[%s3 + $0x670] sm:$0xff]
    %v2252 = vld [vmem:[%s3 + $0x678] sm:$0xff]
    %v2253 = vld [vmem:[%s3 + $0x680] sm:$0xff]
    %v2254 = vld [vmem:[%s3 + $0x688] sm:$0xff]
    %v2255 = vld [vmem:[%s3 + $0x690] sm:$0xff]
    %v2256 = vld [vmem:[%s3 + $0x698] sm:$0xff]
    %v2257 = vld [vmem:[%s3 + $0x6a0] sm:$0xff]
    %v2258 = vld [vmem:[%s3 + $0x6a8] sm:$0xff]
    %v2259 = vld [vmem:[%s3 + $0x6b0] sm:$0xff]
    %v2260 = vld [vmem:[%s3 + $0x6b8] sm:$0xff]
    %v2261 = vld [vmem:[%s3 + $0x6c0] sm:$0xff]
    %v2262 = vld [vmem:[%s3 + $0x6c8] sm:$0xff]
    %v2263 = vld [vmem:[%s3 + $0x6d0] sm:$0xff]
    %v2264 = vld [vmem:[%s3 + $0x6d8] sm:$0xff]
    %v2265 = vld [vmem:[%s3 + $0x6e0] sm:$0xff]
    %v2266 = vld [vmem:[%s3 + $0x6e8] sm:$0xff]
    %v2267 = vld [vmem:[%s3 + $0x6f0] sm:$0xff]
    %v2268 = vld [vmem:[%s3 + $0x6f8] sm:$0xff]
    %v2269 = vld [vmem:[%s3 + $0x700] sm:$0xff]
    %v2270 = vld [vmem:[%s3 + $0x708] sm:$0xff]
    %v2271 = vld [vmem:[%s3 + $0x710] sm:$0xff]
    %v2272 = vld [vmem:[%s3 + $0x718] sm:$0xff]
    %v2273 = vld [vmem:[%s3 + $0x720] sm:$0xff]
    %v2274 = vld [vmem:[%s3 + $0x728] sm:$0xff]
    %v2275 = vld [vmem:[%s3 + $0x730] sm:$0xff]
    %v2276 = vld [vmem:[%s3 + $0x738] sm:$0xff]
    %v2277 = vld [vmem:[%s3 + $0x740] sm:$0xff]
    %v2278 = vld [vmem:[%s3 + $0x748] sm:$0xff]
    %v2279 = vld [vmem:[%s3 + $0x750] sm:$0xff]
    %v2280 = vld [vmem:[%s3 + $0x758] sm:$0xff]
    %v2281 = vld [vmem:[%s3 + $0x760] sm:$0xff]
    %v2282 = vld [vmem:[%s3 + $0x768] sm:$0xff]
    %v2283 = vld [vmem:[%s3 + $0x770] sm:$0xff]
    %v2284 = vld [vmem:[%s3 + $0x778] sm:$0xff]
    %v2285 = vld [vmem:[%s3 + $0x780] sm:$0xff]
    %v2286 = vld [vmem:[%s3 + $0x788] sm:$0xff]
    %v2287 = vld [vmem:[%s3 + $0x790] sm:$0xff]
    %v2288 = vld [vmem:[%s3 + $0x798] sm:$0xff]
    %v2289 = vld [vmem:[%s3 + $0x7a0] sm:$0xff]
    %v2290 = vld [vmem:[%s3 + $0x7a8] sm:$0xff]
    %v2291 = vld [vmem:[%s3 + $0x7b0] sm:$0xff]
    %v2292 = vld [vmem:[%s3 + $0x7b8] sm:$0xff]
    %v2293 = vld [vmem:[%s3 + $0x7c0] sm:$0xff]
    %v2294 = vld [vmem:[%s3 + $0x7c8] sm:$0xff]
    %v2295 = vld [vmem:[%s3 + $0x7d0] sm:$0xff]
    %v2296 = vld [vmem:[%s3 + $0x7d8] sm:$0xff]
    %v2297 = vld [vmem:[%s3 + $0x7e0] sm:$0xff]
    %v2298 = vld [vmem:[%s3 + $0x7e8] sm:$0xff]
    %v2299 = vld [vmem:[%s3 + $0x7f0] sm:$0xff]
    %v2300 = vld [vmem:[%s3 + $0x7f8] sm:$0xff]
    %s2301 = scalar_lea.vmem %s3, 2048
    %v2302 = vld [vmem:[%s2301] sm:$0xff]
    %v2303 = vld [vmem:[%s2301 + $0x8] sm:$0xff]
    %v2304 = vld [vmem:[%s2301 + $0x10] sm:$0xff]
    %v2305 = vld [vmem:[%s2301 + $0x18] sm:$0xff]
    %v2306 = vld [vmem:[%s2301 + $0x20] sm:$0xff]
    %v2307 = vld [vmem:[%s2301 + $0x28] sm:$0xff]
    %v2308 = vld [vmem:[%s2301 + $0x30] sm:$0xff]
    %v2309 = vld [vmem:[%s2301 + $0x38] sm:$0xff]
    %v2310 = vld [vmem:[%s2301 + $0x40] sm:$0xff]
    %v2311 = vld [vmem:[%s2301 + $0x48] sm:$0xff]
    %v2312 = vld [vmem:[%s2301 + $0x50] sm:$0xff]
    %v2313 = vld [vmem:[%s2301 + $0x58] sm:$0xff]
    %v2314 = vld [vmem:[%s2301 + $0x60] sm:$0xff]
    %v2315 = vld [vmem:[%s2301 + $0x68] sm:$0xff]
    %v2316 = vld [vmem:[%s2301 + $0x70] sm:$0xff]
    %v2317 = vld [vmem:[%s2301 + $0x78] sm:$0xff]
    %v2318 = vld [vmem:[%s2301 + $0x80] sm:$0xff]
    %v2319 = vld [vmem:[%s2301 + $0x88] sm:$0xff]
    %v2320 = vld [vmem:[%s2301 + $0x90] sm:$0xff]
    %v2321 = vld [vmem:[%s2301 + $0x98] sm:$0xff]
    %v2322 = vld [vmem:[%s2301 + $0xa0] sm:$0xff]
    %v2323 = vld [vmem:[%s2301 + $0xa8] sm:$0xff]
    %v2324 = vld [vmem:[%s2301 + $0xb0] sm:$0xff]
    %v2325 = vld [vmem:[%s2301 + $0xb8] sm:$0xff]
    %v2326 = vld [vmem:[%s2301 + $0xc0] sm:$0xff]
    %v2327 = vld [vmem:[%s2301 + $0xc8] sm:$0xff]
    %v2328 = vld [vmem:[%s2301 + $0xd0] sm:$0xff]
    %v2329 = vld [vmem:[%s2301 + $0xd8] sm:$0xff]
    %v2330 = vld [vmem:[%s2301 + $0xe0] sm:$0xff]
    %v2331 = vld [vmem:[%s2301 + $0xe8] sm:$0xff]
    %v2332 = vld [vmem:[%s2301 + $0xf0] sm:$0xff]
    %v2333 = vld [vmem:[%s2301 + $0xf8] sm:$0xff]
    %v2334 = vld [vmem:[%s2301 + $0x100] sm:$0xff]
    %v2335 = vld [vmem:[%s2301 + $0x108] sm:$0xff]
    %v2336 = vld [vmem:[%s2301 + $0x110] sm:$0xff]
    %v2337 = vld [vmem:[%s2301 + $0x118] sm:$0xff]
    %v2338 = vld [vmem:[%s2301 + $0x120] sm:$0xff]
    %v2339 = vld [vmem:[%s2301 + $0x128] sm:$0xff]
    %v2340 = vld [vmem:[%s2301 + $0x130] sm:$0xff]
    %v2341 = vld [vmem:[%s2301 + $0x138] sm:$0xff]
    %v2342 = vld [vmem:[%s2301 + $0x140] sm:$0xff]
    %v2343 = vld [vmem:[%s2301 + $0x148] sm:$0xff]
    %v2344 = vld [vmem:[%s2301 + $0x150] sm:$0xff]
    %v2345 = vld [vmem:[%s2301 + $0x158] sm:$0xff]
    %v2346 = vld [vmem:[%s2301 + $0x160] sm:$0xff]
    %v2347 = vld [vmem:[%s2301 + $0x168] sm:$0xff]
    %v2348 = vld [vmem:[%s2301 + $0x170] sm:$0xff]
    %v2349 = vld [vmem:[%s2301 + $0x178] sm:$0xff]
    %v2350 = vld [vmem:[%s2301 + $0x180] sm:$0xff]
    %v2351 = vld [vmem:[%s2301 + $0x188] sm:$0xff]
    %v2352 = vld [vmem:[%s2301 + $0x190] sm:$0xff]
    %v2353 = vld [vmem:[%s2301 + $0x198] sm:$0xff]
    %v2354 = vld [vmem:[%s2301 + $0x1a0] sm:$0xff]
    %v2355 = vld [vmem:[%s2301 + $0x1a8] sm:$0xff]
    %v2356 = vld [vmem:[%s2301 + $0x1b0] sm:$0xff]
    %v2357 = vld [vmem:[%s2301 + $0x1b8] sm:$0xff]
    %v2358 = vld [vmem:[%s2301 + $0x1c0] sm:$0xff]
    %v2359 = vld [vmem:[%s2301 + $0x1c8] sm:$0xff]
    %v2360 = vld [vmem:[%s2301 + $0x1d0] sm:$0xff]
    %v2361 = vld [vmem:[%s2301 + $0x1d8] sm:$0xff]
    %v2362 = vld [vmem:[%s2301 + $0x1e0] sm:$0xff]
    %v2363 = vld [vmem:[%s2301 + $0x1e8] sm:$0xff]
    %v2364 = vld [vmem:[%s2301 + $0x1f0] sm:$0xff]
    %v2365 = vld [vmem:[%s2301 + $0x1f8] sm:$0xff]
    %v2366 = vld [vmem:[%s2301 + $0x200] sm:$0xff]
    %v2367 = vld [vmem:[%s2301 + $0x208] sm:$0xff]
    %v2368 = vld [vmem:[%s2301 + $0x210] sm:$0xff]
    %v2369 = vld [vmem:[%s2301 + $0x218] sm:$0xff]
    %v2370 = vld [vmem:[%s2301 + $0x220] sm:$0xff]
    %v2371 = vld [vmem:[%s2301 + $0x228] sm:$0xff]
    %v2372 = vld [vmem:[%s2301 + $0x230] sm:$0xff]
    %v2373 = vld [vmem:[%s2301 + $0x238] sm:$0xff]
    %v2374 = vld [vmem:[%s2301 + $0x240] sm:$0xff]
    %v2375 = vld [vmem:[%s2301 + $0x248] sm:$0xff]
    %v2376 = vld [vmem:[%s2301 + $0x250] sm:$0xff]
    %v2377 = vld [vmem:[%s2301 + $0x258] sm:$0xff]
    %v2378 = vld [vmem:[%s2301 + $0x260] sm:$0xff]
    %v2379 = vld [vmem:[%s2301 + $0x268] sm:$0xff]
    %v2380 = vld [vmem:[%s2301 + $0x270] sm:$0xff]
    %v2381 = vld [vmem:[%s2301 + $0x278] sm:$0xff]
    %v2382 = vld [vmem:[%s2301 + $0x280] sm:$0xff]
    %v2383 = vld [vmem:[%s2301 + $0x288] sm:$0xff]
    %v2384 = vld [vmem:[%s2301 + $0x290] sm:$0xff]
    %v2385 = vld [vmem:[%s2301 + $0x298] sm:$0xff]
    %v2386 = vld [vmem:[%s2301 + $0x2a0] sm:$0xff]
    %v2387 = vld [vmem:[%s2301 + $0x2a8] sm:$0xff]
    %v2388 = vld [vmem:[%s2301 + $0x2b0] sm:$0xff]
    %v2389 = vld [vmem:[%s2301 + $0x2b8] sm:$0xff]
    %v2390 = vld [vmem:[%s2301 + $0x2c0] sm:$0xff]
    %v2391 = vld [vmem:[%s2301 + $0x2c8] sm:$0xff]
    %v2392 = vld [vmem:[%s2301 + $0x2d0] sm:$0xff]
    %v2393 = vld [vmem:[%s2301 + $0x2d8] sm:$0xff]
    %v2394 = vld [vmem:[%s2301 + $0x2e0] sm:$0xff]
    %v2395 = vld [vmem:[%s2301 + $0x2e8] sm:$0xff]
    %v2396 = vld [vmem:[%s2301 + $0x2f0] sm:$0xff]
    %v2397 = vld [vmem:[%s2301 + $0x2f8] sm:$0xff]
    %v2398 = vld [vmem:[%s2301 + $0x300] sm:$0xff]
    %v2399 = vld [vmem:[%s2301 + $0x308] sm:$0xff]
    %v2400 = vld [vmem:[%s2301 + $0x310] sm:$0xff]
    %v2401 = vld [vmem:[%s2301 + $0x318] sm:$0xff]
    %v2402 = vld [vmem:[%s2301 + $0x320] sm:$0xff]
    %v2403 = vld [vmem:[%s2301 + $0x328] sm:$0xff]
    %v2404 = vld [vmem:[%s2301 + $0x330] sm:$0xff]
    %v2405 = vld [vmem:[%s2301 + $0x338] sm:$0xff]
    %v2406 = vld [vmem:[%s2301 + $0x340] sm:$0xff]
    %v2407 = vld [vmem:[%s2301 + $0x348] sm:$0xff]
    %v2408 = vld [vmem:[%s2301 + $0x350] sm:$0xff]
    %v2409 = vld [vmem:[%s2301 + $0x358] sm:$0xff]
    %v2410 = vld [vmem:[%s2301 + $0x360] sm:$0xff]
    %v2411 = vld [vmem:[%s2301 + $0x368] sm:$0xff]
    %v2412 = vld [vmem:[%s2301 + $0x370] sm:$0xff]
    %v2413 = vld [vmem:[%s2301 + $0x378] sm:$0xff]
    %v2414 = vld [vmem:[%s2301 + $0x380] sm:$0xff]
    %v2415 = vld [vmem:[%s2301 + $0x388] sm:$0xff]
    %v2416 = vld [vmem:[%s2301 + $0x390] sm:$0xff]
    %v2417 = vld [vmem:[%s2301 + $0x398] sm:$0xff]
    %v2418 = vld [vmem:[%s2301 + $0x3a0] sm:$0xff]
    %v2419 = vld [vmem:[%s2301 + $0x3a8] sm:$0xff]
    %v2420 = vld [vmem:[%s2301 + $0x3b0] sm:$0xff]
    %v2421 = vld [vmem:[%s2301 + $0x3b8] sm:$0xff]
    %v2422 = vld [vmem:[%s2301 + $0x3c0] sm:$0xff]
    %v2423 = vld [vmem:[%s2301 + $0x3c8] sm:$0xff]
    %v2424 = vld [vmem:[%s2301 + $0x3d0] sm:$0xff]
    %v2425 = vld [vmem:[%s2301 + $0x3d8] sm:$0xff]
    %v2426 = vld [vmem:[%s2301 + $0x3e0] sm:$0xff]
    %v2427 = vld [vmem:[%s2301 + $0x3e8] sm:$0xff]
    %v2428 = vld [vmem:[%s2301 + $0x3f0] sm:$0xff]
    %v2429 = vld [vmem:[%s2301 + $0x3f8] sm:$0xff]
    %v2430 = vld [vmem:[%s2301 + $0x400] sm:$0xff]
    %v2431 = vld [vmem:[%s2301 + $0x408] sm:$0xff]
    %v2432 = vld [vmem:[%s2301 + $0x410] sm:$0xff]
    %v2433 = vld [vmem:[%s2301 + $0x418] sm:$0xff]
    %v2434 = vld [vmem:[%s2301 + $0x420] sm:$0xff]
    %v2435 = vld [vmem:[%s2301 + $0x428] sm:$0xff]
    %v2436 = vld [vmem:[%s2301 + $0x430] sm:$0xff]
    %v2437 = vld [vmem:[%s2301 + $0x438] sm:$0xff]
    %v2438 = vld [vmem:[%s2301 + $0x440] sm:$0xff]
    %v2439 = vld [vmem:[%s2301 + $0x448] sm:$0xff]
    %v2440 = vld [vmem:[%s2301 + $0x450] sm:$0xff]
    %v2441 = vld [vmem:[%s2301 + $0x458] sm:$0xff]
    %v2442 = vld [vmem:[%s2301 + $0x460] sm:$0xff]
    %v2443 = vld [vmem:[%s2301 + $0x468] sm:$0xff]
    %v2444 = vld [vmem:[%s2301 + $0x470] sm:$0xff]
    %v2445 = vld [vmem:[%s2301 + $0x478] sm:$0xff]
    %v2446 = vld [vmem:[%s2301 + $0x480] sm:$0xff]
    %v2447 = vld [vmem:[%s2301 + $0x488] sm:$0xff]
    %v2448 = vld [vmem:[%s2301 + $0x490] sm:$0xff]
    %v2449 = vld [vmem:[%s2301 + $0x498] sm:$0xff]
    %v2450 = vld [vmem:[%s2301 + $0x4a0] sm:$0xff]
    %v2451 = vld [vmem:[%s2301 + $0x4a8] sm:$0xff]
    %v2452 = vld [vmem:[%s2301 + $0x4b0] sm:$0xff]
    %v2453 = vld [vmem:[%s2301 + $0x4b8] sm:$0xff]
    %v2454 = vld [vmem:[%s2301 + $0x4c0] sm:$0xff]
    %v2455 = vld [vmem:[%s2301 + $0x4c8] sm:$0xff]
    %v2456 = vld [vmem:[%s2301 + $0x4d0] sm:$0xff]
    %v2457 = vld [vmem:[%s2301 + $0x4d8] sm:$0xff]
    %v2458 = vld [vmem:[%s2301 + $0x4e0] sm:$0xff]
    %v2459 = vld [vmem:[%s2301 + $0x4e8] sm:$0xff]
    %v2460 = vld [vmem:[%s2301 + $0x4f0] sm:$0xff]
    %v2461 = vld [vmem:[%s2301 + $0x4f8] sm:$0xff]
    %v2462 = vld [vmem:[%s2301 + $0x500] sm:$0xff]
    %v2463 = vld [vmem:[%s2301 + $0x508] sm:$0xff]
    %v2464 = vld [vmem:[%s2301 + $0x510] sm:$0xff]
    %v2465 = vld [vmem:[%s2301 + $0x518] sm:$0xff]
    %v2466 = vld [vmem:[%s2301 + $0x520] sm:$0xff]
    %v2467 = vld [vmem:[%s2301 + $0x528] sm:$0xff]
    %v2468 = vld [vmem:[%s2301 + $0x530] sm:$0xff]
    %v2469 = vld [vmem:[%s2301 + $0x538] sm:$0xff]
    %v2470 = vld [vmem:[%s2301 + $0x540] sm:$0xff]
    %v2471 = vld [vmem:[%s2301 + $0x548] sm:$0xff]
    %v2472 = vld [vmem:[%s2301 + $0x550] sm:$0xff]
    %v2473 = vld [vmem:[%s2301 + $0x558] sm:$0xff]
    %v2474 = vld [vmem:[%s2301 + $0x560] sm:$0xff]
    %v2475 = vld [vmem:[%s2301 + $0x568] sm:$0xff]
    %v2476 = vld [vmem:[%s2301 + $0x570] sm:$0xff]
    %v2477 = vld [vmem:[%s2301 + $0x578] sm:$0xff]
    %v2478 = vld [vmem:[%s2301 + $0x580] sm:$0xff]
    %v2479 = vld [vmem:[%s2301 + $0x588] sm:$0xff]
    %v2480 = vld [vmem:[%s2301 + $0x590] sm:$0xff]
    %v2481 = vld [vmem:[%s2301 + $0x598] sm:$0xff]
    %v2482 = vld [vmem:[%s2301 + $0x5a0] sm:$0xff]
    %v2483 = vld [vmem:[%s2301 + $0x5a8] sm:$0xff]
    %v2484 = vld [vmem:[%s2301 + $0x5b0] sm:$0xff]
    %v2485 = vld [vmem:[%s2301 + $0x5b8] sm:$0xff]
    %v2486 = vld [vmem:[%s2301 + $0x5c0] sm:$0xff]
    %v2487 = vld [vmem:[%s2301 + $0x5c8] sm:$0xff]
    %v2488 = vld [vmem:[%s2301 + $0x5d0] sm:$0xff]
    %v2489 = vld [vmem:[%s2301 + $0x5d8] sm:$0xff]
    %v2490 = vld [vmem:[%s2301 + $0x5e0] sm:$0xff]
    %v2491 = vld [vmem:[%s2301 + $0x5e8] sm:$0xff]
    %v2492 = vld [vmem:[%s2301 + $0x5f0] sm:$0xff]
    %v2493 = vld [vmem:[%s2301 + $0x5f8] sm:$0xff]
    %v2494 = vld [vmem:[%s2301 + $0x600] sm:$0xff]
    %v2495 = vld [vmem:[%s2301 + $0x608] sm:$0xff]
    %v2496 = vld [vmem:[%s2301 + $0x610] sm:$0xff]
    %v2497 = vld [vmem:[%s2301 + $0x618] sm:$0xff]
    %v2498 = vld [vmem:[%s2301 + $0x620] sm:$0xff]
    %v2499 = vld [vmem:[%s2301 + $0x628] sm:$0xff]
    %v2500 = vld [vmem:[%s2301 + $0x630] sm:$0xff]
    %v2501 = vld [vmem:[%s2301 + $0x638] sm:$0xff]
    %v2502 = vld [vmem:[%s2301 + $0x640] sm:$0xff]
    %v2503 = vld [vmem:[%s2301 + $0x648] sm:$0xff]
    %v2504 = vld [vmem:[%s2301 + $0x650] sm:$0xff]
    %v2505 = vld [vmem:[%s2301 + $0x658] sm:$0xff]
    %v2506 = vld [vmem:[%s2301 + $0x660] sm:$0xff]
    %v2507 = vld [vmem:[%s2301 + $0x668] sm:$0xff]
    %v2508 = vld [vmem:[%s2301 + $0x670] sm:$0xff]
    %v2509 = vld [vmem:[%s2301 + $0x678] sm:$0xff]
    %v2510 = vld [vmem:[%s2301 + $0x680] sm:$0xff]
    %v2511 = vld [vmem:[%s2301 + $0x688] sm:$0xff]
    %v2512 = vld [vmem:[%s2301 + $0x690] sm:$0xff]
    %v2513 = vld [vmem:[%s2301 + $0x698] sm:$0xff]
    %v2514 = vld [vmem:[%s2301 + $0x6a0] sm:$0xff]
    %v2515 = vld [vmem:[%s2301 + $0x6a8] sm:$0xff]
    %v2516 = vld [vmem:[%s2301 + $0x6b0] sm:$0xff]
    %v2517 = vld [vmem:[%s2301 + $0x6b8] sm:$0xff]
    %v2518 = vld [vmem:[%s2301 + $0x6c0] sm:$0xff]
    %v2519 = vld [vmem:[%s2301 + $0x6c8] sm:$0xff]
    %v2520 = vld [vmem:[%s2301 + $0x6d0] sm:$0xff]
    %v2521 = vld [vmem:[%s2301 + $0x6d8] sm:$0xff]
    %v2522 = vld [vmem:[%s2301 + $0x6e0] sm:$0xff]
    %v2523 = vld [vmem:[%s2301 + $0x6e8] sm:$0xff]
    %v2524 = vld [vmem:[%s2301 + $0x6f0] sm:$0xff]
    %v2525 = vld [vmem:[%s2301 + $0x6f8] sm:$0xff]
    %v2526 = vld [vmem:[%s2301 + $0x700] sm:$0xff]
    %v2527 = vld [vmem:[%s2301 + $0x708] sm:$0xff]
    %v2528 = vld [vmem:[%s2301 + $0x710] sm:$0xff]
    %v2529 = vld [vmem:[%s2301 + $0x718] sm:$0xff]
    %v2530 = vld [vmem:[%s2301 + $0x720] sm:$0xff]
    %v2531 = vld [vmem:[%s2301 + $0x728] sm:$0xff]
    %v2532 = vld [vmem:[%s2301 + $0x730] sm:$0xff]
    %v2533 = vld [vmem:[%s2301 + $0x738] sm:$0xff]
    %v2534 = vld [vmem:[%s2301 + $0x740] sm:$0xff]
    %v2535 = vld [vmem:[%s2301 + $0x748] sm:$0xff]
    %v2536 = vld [vmem:[%s2301 + $0x750] sm:$0xff]
    %v2537 = vld [vmem:[%s2301 + $0x758] sm:$0xff]
    %v2538 = vld [vmem:[%s2301 + $0x760] sm:$0xff]
    %v2539 = vld [vmem:[%s2301 + $0x768] sm:$0xff]
    %v2540 = vld [vmem:[%s2301 + $0x770] sm:$0xff]
    %v2541 = vld [vmem:[%s2301 + $0x778] sm:$0xff]
    %v2542 = vld [vmem:[%s2301 + $0x780] sm:$0xff]
    %v2543 = vld [vmem:[%s2301 + $0x788] sm:$0xff]
    %v2544 = vld [vmem:[%s2301 + $0x790] sm:$0xff]
    %v2545 = vld [vmem:[%s2301 + $0x798] sm:$0xff]
    %v2546 = vld [vmem:[%s2301 + $0x7a0] sm:$0xff]
    %v2547 = vld [vmem:[%s2301 + $0x7a8] sm:$0xff]
    %v2548 = vld [vmem:[%s2301 + $0x7b0] sm:$0xff]
    %v2549 = vld [vmem:[%s2301 + $0x7b8] sm:$0xff]
    %v2550 = vld [vmem:[%s2301 + $0x7c0] sm:$0xff]
    %v2551 = vld [vmem:[%s2301 + $0x7c8] sm:$0xff]
    %v2552 = vld [vmem:[%s2301 + $0x7d0] sm:$0xff]
    %v2553 = vld [vmem:[%s2301 + $0x7d8] sm:$0xff]
    %v2554 = vld [vmem:[%s2301 + $0x7e0] sm:$0xff]
    %v2555 = vld [vmem:[%s2301 + $0x7e8] sm:$0xff]
    %v2556 = vld [vmem:[%s2301 + $0x7f0] sm:$0xff]
    %v2557 = vld [vmem:[%s2301 + $0x7f8] sm:$0xff]
    %s2558 = scalar_lea.vmem %s3, 4096
    %v2559 = vld [vmem:[%s2558] sm:$0xff]
    %v2560 = vld [vmem:[%s2558 + $0x8] sm:$0xff]
    %v2561 = vld [vmem:[%s2558 + $0x10] sm:$0xff]
    %v2562 = vld [vmem:[%s2558 + $0x18] sm:$0xff]
    %v2563 = vld [vmem:[%s2558 + $0x20] sm:$0xff]
    %v2564 = vld [vmem:[%s2558 + $0x28] sm:$0xff]
    %v2565 = vld [vmem:[%s2558 + $0x30] sm:$0xff]
    %v2566 = vld [vmem:[%s2558 + $0x38] sm:$0xff]
    %v2567 = vld [vmem:[%s2558 + $0x40] sm:$0xff]
    %v2568 = vld [vmem:[%s2558 + $0x48] sm:$0xff]
    %v2569 = vld [vmem:[%s2558 + $0x50] sm:$0xff]
    %v2570 = vld [vmem:[%s2558 + $0x58] sm:$0xff]
    %v2571 = vld [vmem:[%s2558 + $0x60] sm:$0xff]
    %v2572 = vld [vmem:[%s2558 + $0x68] sm:$0xff]
    %v2573 = vld [vmem:[%s2558 + $0x70] sm:$0xff]
    %v2574 = vld [vmem:[%s2558 + $0x78] sm:$0xff]
    %v2575 = vld [vmem:[%s2558 + $0x80] sm:$0xff]
    %v2576 = vld [vmem:[%s2558 + $0x88] sm:$0xff]
    %v2577 = vld [vmem:[%s2558 + $0x90] sm:$0xff]
    %v2578 = vld [vmem:[%s2558 + $0x98] sm:$0xff]
    %v2579 = vld [vmem:[%s2558 + $0xa0] sm:$0xff]
    %v2580 = vld [vmem:[%s2558 + $0xa8] sm:$0xff]
    %v2581 = vld [vmem:[%s2558 + $0xb0] sm:$0xff]
    %v2582 = vld [vmem:[%s2558 + $0xb8] sm:$0xff]
    %v2583 = vld [vmem:[%s2558 + $0xc0] sm:$0xff]
    %v2584 = vld [vmem:[%s2558 + $0xc8] sm:$0xff]
    %v2585 = vld [vmem:[%s2558 + $0xd0] sm:$0xff]
    %v2586 = vld [vmem:[%s2558 + $0xd8] sm:$0xff]
    %v2587 = vld [vmem:[%s2558 + $0xe0] sm:$0xff]
    %v2588 = vld [vmem:[%s2558 + $0xe8] sm:$0xff]
    %v2589 = vld [vmem:[%s2558 + $0xf0] sm:$0xff]
    %v2590 = vld [vmem:[%s2558 + $0xf8] sm:$0xff]
    %v2591 = vld [vmem:[%s2558 + $0x100] sm:$0xff]
    %v2592 = vld [vmem:[%s2558 + $0x108] sm:$0xff]
    %v2593 = vld [vmem:[%s2558 + $0x110] sm:$0xff]
    %v2594 = vld [vmem:[%s2558 + $0x118] sm:$0xff]
    %v2595 = vld [vmem:[%s2558 + $0x120] sm:$0xff]
    %v2596 = vld [vmem:[%s2558 + $0x128] sm:$0xff]
    %v2597 = vld [vmem:[%s2558 + $0x130] sm:$0xff]
    %v2598 = vld [vmem:[%s2558 + $0x138] sm:$0xff]
    %v2599 = vld [vmem:[%s2558 + $0x140] sm:$0xff]
    %v2600 = vld [vmem:[%s2558 + $0x148] sm:$0xff]
    %v2601 = vld [vmem:[%s2558 + $0x150] sm:$0xff]
    %v2602 = vld [vmem:[%s2558 + $0x158] sm:$0xff]
    %v2603 = vld [vmem:[%s2558 + $0x160] sm:$0xff]
    %v2604 = vld [vmem:[%s2558 + $0x168] sm:$0xff]
    %v2605 = vld [vmem:[%s2558 + $0x170] sm:$0xff]
    %v2606 = vld [vmem:[%s2558 + $0x178] sm:$0xff]
    %v2607 = vld [vmem:[%s2558 + $0x180] sm:$0xff]
    %v2608 = vld [vmem:[%s2558 + $0x188] sm:$0xff]
    %v2609 = vld [vmem:[%s2558 + $0x190] sm:$0xff]
    %v2610 = vld [vmem:[%s2558 + $0x198] sm:$0xff]
    %v2611 = vld [vmem:[%s2558 + $0x1a0] sm:$0xff]
    %v2612 = vld [vmem:[%s2558 + $0x1a8] sm:$0xff]
    %v2613 = vld [vmem:[%s2558 + $0x1b0] sm:$0xff]
    %v2614 = vld [vmem:[%s2558 + $0x1b8] sm:$0xff]
    %v2615 = vld [vmem:[%s2558 + $0x1c0] sm:$0xff]
    %v2616 = vld [vmem:[%s2558 + $0x1c8] sm:$0xff]
    %v2617 = vld [vmem:[%s2558 + $0x1d0] sm:$0xff]
    %v2618 = vld [vmem:[%s2558 + $0x1d8] sm:$0xff]
    %v2619 = vld [vmem:[%s2558 + $0x1e0] sm:$0xff]
    %v2620 = vld [vmem:[%s2558 + $0x1e8] sm:$0xff]
    %v2621 = vld [vmem:[%s2558 + $0x1f0] sm:$0xff]
    %v2622 = vld [vmem:[%s2558 + $0x1f8] sm:$0xff]
    %v2623 = vld [vmem:[%s2558 + $0x200] sm:$0xff]
    %v2624 = vld [vmem:[%s2558 + $0x208] sm:$0xff]
    %v2625 = vld [vmem:[%s2558 + $0x210] sm:$0xff]
    %v2626 = vld [vmem:[%s2558 + $0x218] sm:$0xff]
    %v2627 = vld [vmem:[%s2558 + $0x220] sm:$0xff]
    %v2628 = vld [vmem:[%s2558 + $0x228] sm:$0xff]
    %v2629 = vld [vmem:[%s2558 + $0x230] sm:$0xff]
    %v2630 = vld [vmem:[%s2558 + $0x238] sm:$0xff]
    %v2631 = vld [vmem:[%s2558 + $0x240] sm:$0xff]
    %v2632 = vld [vmem:[%s2558 + $0x248] sm:$0xff]
    %v2633 = vld [vmem:[%s2558 + $0x250] sm:$0xff]
    %v2634 = vld [vmem:[%s2558 + $0x258] sm:$0xff]
    %v2635 = vld [vmem:[%s2558 + $0x260] sm:$0xff]
    %v2636 = vld [vmem:[%s2558 + $0x268] sm:$0xff]
    %v2637 = vld [vmem:[%s2558 + $0x270] sm:$0xff]
    %v2638 = vld [vmem:[%s2558 + $0x278] sm:$0xff]
    %v2639 = vld [vmem:[%s2558 + $0x280] sm:$0xff]
    %v2640 = vld [vmem:[%s2558 + $0x288] sm:$0xff]
    %v2641 = vld [vmem:[%s2558 + $0x290] sm:$0xff]
    %v2642 = vld [vmem:[%s2558 + $0x298] sm:$0xff]
    %v2643 = vld [vmem:[%s2558 + $0x2a0] sm:$0xff]
    %v2644 = vld [vmem:[%s2558 + $0x2a8] sm:$0xff]
    %v2645 = vld [vmem:[%s2558 + $0x2b0] sm:$0xff]
    %v2646 = vld [vmem:[%s2558 + $0x2b8] sm:$0xff]
    %v2647 = vld [vmem:[%s2558 + $0x2c0] sm:$0xff]
    %v2648 = vld [vmem:[%s2558 + $0x2c8] sm:$0xff]
    %v2649 = vld [vmem:[%s2558 + $0x2d0] sm:$0xff]
    %v2650 = vld [vmem:[%s2558 + $0x2d8] sm:$0xff]
    %v2651 = vld [vmem:[%s2558 + $0x2e0] sm:$0xff]
    %v2652 = vld [vmem:[%s2558 + $0x2e8] sm:$0xff]
    %v2653 = vld [vmem:[%s2558 + $0x2f0] sm:$0xff]
    %v2654 = vld [vmem:[%s2558 + $0x2f8] sm:$0xff]
    %v2655 = vld [vmem:[%s2558 + $0x300] sm:$0xff]
    %v2656 = vld [vmem:[%s2558 + $0x308] sm:$0xff]
    %v2657 = vld [vmem:[%s2558 + $0x310] sm:$0xff]
    %v2658 = vld [vmem:[%s2558 + $0x318] sm:$0xff]
    %v2659 = vld [vmem:[%s2558 + $0x320] sm:$0xff]
    %v2660 = vld [vmem:[%s2558 + $0x328] sm:$0xff]
    %v2661 = vld [vmem:[%s2558 + $0x330] sm:$0xff]
    %v2662 = vld [vmem:[%s2558 + $0x338] sm:$0xff]
    %v2663 = vld [vmem:[%s2558 + $0x340] sm:$0xff]
    %v2664 = vld [vmem:[%s2558 + $0x348] sm:$0xff]
    %v2665 = vld [vmem:[%s2558 + $0x350] sm:$0xff]
    %v2666 = vld [vmem:[%s2558 + $0x358] sm:$0xff]
    %v2667 = vld [vmem:[%s2558 + $0x360] sm:$0xff]
    %v2668 = vld [vmem:[%s2558 + $0x368] sm:$0xff]
    %v2669 = vld [vmem:[%s2558 + $0x370] sm:$0xff]
    %v2670 = vld [vmem:[%s2558 + $0x378] sm:$0xff]
    %v2671 = vld [vmem:[%s2558 + $0x380] sm:$0xff]
    %v2672 = vld [vmem:[%s2558 + $0x388] sm:$0xff]
    %v2673 = vld [vmem:[%s2558 + $0x390] sm:$0xff]
    %v2674 = vld [vmem:[%s2558 + $0x398] sm:$0xff]
    %v2675 = vld [vmem:[%s2558 + $0x3a0] sm:$0xff]
    %v2676 = vld [vmem:[%s2558 + $0x3a8] sm:$0xff]
    %v2677 = vld [vmem:[%s2558 + $0x3b0] sm:$0xff]
    %v2678 = vld [vmem:[%s2558 + $0x3b8] sm:$0xff]
    %v2679 = vld [vmem:[%s2558 + $0x3c0] sm:$0xff]
    %v2680 = vld [vmem:[%s2558 + $0x3c8] sm:$0xff]
    %v2681 = vld [vmem:[%s2558 + $0x3d0] sm:$0xff]
    %v2682 = vld [vmem:[%s2558 + $0x3d8] sm:$0xff]
    %v2683 = vld [vmem:[%s2558 + $0x3e0] sm:$0xff]
    %v2684 = vld [vmem:[%s2558 + $0x3e8] sm:$0xff]
    %v2685 = vld [vmem:[%s2558 + $0x3f0] sm:$0xff]
    %v2686 = vld [vmem:[%s2558 + $0x3f8] sm:$0xff]
    %v2687 = vld [vmem:[%s2558 + $0x400] sm:$0xff]
    %v2688 = vld [vmem:[%s2558 + $0x408] sm:$0xff]
    %v2689 = vld [vmem:[%s2558 + $0x410] sm:$0xff]
    %v2690 = vld [vmem:[%s2558 + $0x418] sm:$0xff]
    %v2691 = vld [vmem:[%s2558 + $0x420] sm:$0xff]
    %v2692 = vld [vmem:[%s2558 + $0x428] sm:$0xff]
    %v2693 = vld [vmem:[%s2558 + $0x430] sm:$0xff]
    %v2694 = vld [vmem:[%s2558 + $0x438] sm:$0xff]
    %v2695 = vld [vmem:[%s2558 + $0x440] sm:$0xff]
    %v2696 = vld [vmem:[%s2558 + $0x448] sm:$0xff]
    %v2697 = vld [vmem:[%s2558 + $0x450] sm:$0xff]
    %v2698 = vld [vmem:[%s2558 + $0x458] sm:$0xff]
    %v2699 = vld [vmem:[%s2558 + $0x460] sm:$0xff]
    %v2700 = vld [vmem:[%s2558 + $0x468] sm:$0xff]
    %v2701 = vld [vmem:[%s2558 + $0x470] sm:$0xff]
    %v2702 = vld [vmem:[%s2558 + $0x478] sm:$0xff]
    %v2703 = vld [vmem:[%s2558 + $0x480] sm:$0xff]
    %v2704 = vld [vmem:[%s2558 + $0x488] sm:$0xff]
    %v2705 = vld [vmem:[%s2558 + $0x490] sm:$0xff]
    %v2706 = vld [vmem:[%s2558 + $0x498] sm:$0xff]
    %v2707 = vld [vmem:[%s2558 + $0x4a0] sm:$0xff]
    %v2708 = vld [vmem:[%s2558 + $0x4a8] sm:$0xff]
    %v2709 = vld [vmem:[%s2558 + $0x4b0] sm:$0xff]
    %v2710 = vld [vmem:[%s2558 + $0x4b8] sm:$0xff]
    %v2711 = vld [vmem:[%s2558 + $0x4c0] sm:$0xff]
    %v2712 = vld [vmem:[%s2558 + $0x4c8] sm:$0xff]
    %v2713 = vld [vmem:[%s2558 + $0x4d0] sm:$0xff]
    %v2714 = vld [vmem:[%s2558 + $0x4d8] sm:$0xff]
    %v2715 = vld [vmem:[%s2558 + $0x4e0] sm:$0xff]
    %v2716 = vld [vmem:[%s2558 + $0x4e8] sm:$0xff]
    %v2717 = vld [vmem:[%s2558 + $0x4f0] sm:$0xff]
    %v2718 = vld [vmem:[%s2558 + $0x4f8] sm:$0xff]
    %v2719 = vld [vmem:[%s2558 + $0x500] sm:$0xff]
    %v2720 = vld [vmem:[%s2558 + $0x508] sm:$0xff]
    %v2721 = vld [vmem:[%s2558 + $0x510] sm:$0xff]
    %v2722 = vld [vmem:[%s2558 + $0x518] sm:$0xff]
    %v2723 = vld [vmem:[%s2558 + $0x520] sm:$0xff]
    %v2724 = vld [vmem:[%s2558 + $0x528] sm:$0xff]
    %v2725 = vld [vmem:[%s2558 + $0x530] sm:$0xff]
    %v2726 = vld [vmem:[%s2558 + $0x538] sm:$0xff]
    %v2727 = vld [vmem:[%s2558 + $0x540] sm:$0xff]
    %v2728 = vld [vmem:[%s2558 + $0x548] sm:$0xff]
    %v2729 = vld [vmem:[%s2558 + $0x550] sm:$0xff]
    %v2730 = vld [vmem:[%s2558 + $0x558] sm:$0xff]
    %v2731 = vld [vmem:[%s2558 + $0x560] sm:$0xff]
    %v2732 = vld [vmem:[%s2558 + $0x568] sm:$0xff]
    %v2733 = vld [vmem:[%s2558 + $0x570] sm:$0xff]
    %v2734 = vld [vmem:[%s2558 + $0x578] sm:$0xff]
    %v2735 = vld [vmem:[%s2558 + $0x580] sm:$0xff]
    %v2736 = vld [vmem:[%s2558 + $0x588] sm:$0xff]
    %v2737 = vld [vmem:[%s2558 + $0x590] sm:$0xff]
    %v2738 = vld [vmem:[%s2558 + $0x598] sm:$0xff]
    %v2739 = vld [vmem:[%s2558 + $0x5a0] sm:$0xff]
    %v2740 = vld [vmem:[%s2558 + $0x5a8] sm:$0xff]
    %v2741 = vld [vmem:[%s2558 + $0x5b0] sm:$0xff]
    %v2742 = vld [vmem:[%s2558 + $0x5b8] sm:$0xff]
    %v2743 = vld [vmem:[%s2558 + $0x5c0] sm:$0xff]
    %v2744 = vld [vmem:[%s2558 + $0x5c8] sm:$0xff]
    %v2745 = vld [vmem:[%s2558 + $0x5d0] sm:$0xff]
    %v2746 = vld [vmem:[%s2558 + $0x5d8] sm:$0xff]
    %v2747 = vld [vmem:[%s2558 + $0x5e0] sm:$0xff]
    %v2748 = vld [vmem:[%s2558 + $0x5e8] sm:$0xff]
    %v2749 = vld [vmem:[%s2558 + $0x5f0] sm:$0xff]
    %v2750 = vld [vmem:[%s2558 + $0x5f8] sm:$0xff]
    %v2751 = vld [vmem:[%s2558 + $0x600] sm:$0xff]
    %v2752 = vld [vmem:[%s2558 + $0x608] sm:$0xff]
    %v2753 = vld [vmem:[%s2558 + $0x610] sm:$0xff]
    %v2754 = vld [vmem:[%s2558 + $0x618] sm:$0xff]
    %v2755 = vld [vmem:[%s2558 + $0x620] sm:$0xff]
    %v2756 = vld [vmem:[%s2558 + $0x628] sm:$0xff]
    %v2757 = vld [vmem:[%s2558 + $0x630] sm:$0xff]
    %v2758 = vld [vmem:[%s2558 + $0x638] sm:$0xff]
    %v2759 = vld [vmem:[%s2558 + $0x640] sm:$0xff]
    %v2760 = vld [vmem:[%s2558 + $0x648] sm:$0xff]
    %v2761 = vld [vmem:[%s2558 + $0x650] sm:$0xff]
    %v2762 = vld [vmem:[%s2558 + $0x658] sm:$0xff]
    %v2763 = vld [vmem:[%s2558 + $0x660] sm:$0xff]
    %v2764 = vld [vmem:[%s2558 + $0x668] sm:$0xff]
    %v2765 = vld [vmem:[%s2558 + $0x670] sm:$0xff]
    %v2766 = vld [vmem:[%s2558 + $0x678] sm:$0xff]
    %v2767 = vld [vmem:[%s2558 + $0x680] sm:$0xff]
    %v2768 = vld [vmem:[%s2558 + $0x688] sm:$0xff]
    %v2769 = vld [vmem:[%s2558 + $0x690] sm:$0xff]
    %v2770 = vld [vmem:[%s2558 + $0x698] sm:$0xff]
    %v2771 = vld [vmem:[%s2558 + $0x6a0] sm:$0xff]
    %v2772 = vld [vmem:[%s2558 + $0x6a8] sm:$0xff]
    %v2773 = vld [vmem:[%s2558 + $0x6b0] sm:$0xff]
    %v2774 = vld [vmem:[%s2558 + $0x6b8] sm:$0xff]
    %v2775 = vld [vmem:[%s2558 + $0x6c0] sm:$0xff]
    %v2776 = vld [vmem:[%s2558 + $0x6c8] sm:$0xff]
    %v2777 = vld [vmem:[%s2558 + $0x6d0] sm:$0xff]
    %v2778 = vld [vmem:[%s2558 + $0x6d8] sm:$0xff]
    %v2779 = vld [vmem:[%s2558 + $0x6e0] sm:$0xff]
    %v2780 = vld [vmem:[%s2558 + $0x6e8] sm:$0xff]
    %v2781 = vld [vmem:[%s2558 + $0x6f0] sm:$0xff]
    %v2782 = vld [vmem:[%s2558 + $0x6f8] sm:$0xff]
    %v2783 = vld [vmem:[%s2558 + $0x700] sm:$0xff]
    %v2784 = vld [vmem:[%s2558 + $0x708] sm:$0xff]
    %v2785 = vld [vmem:[%s2558 + $0x710] sm:$0xff]
    %v2786 = vld [vmem:[%s2558 + $0x718] sm:$0xff]
    %v2787 = vld [vmem:[%s2558 + $0x720] sm:$0xff]
    %v2788 = vld [vmem:[%s2558 + $0x728] sm:$0xff]
    %v2789 = vld [vmem:[%s2558 + $0x730] sm:$0xff]
    %v2790 = vld [vmem:[%s2558 + $0x738] sm:$0xff]
    %v2791 = vld [vmem:[%s2558 + $0x740] sm:$0xff]
    %v2792 = vld [vmem:[%s2558 + $0x748] sm:$0xff]
    %v2793 = vld [vmem:[%s2558 + $0x750] sm:$0xff]
    %v2794 = vld [vmem:[%s2558 + $0x758] sm:$0xff]
    %v2795 = vld [vmem:[%s2558 + $0x760] sm:$0xff]
    %v2796 = vld [vmem:[%s2558 + $0x768] sm:$0xff]
    %v2797 = vld [vmem:[%s2558 + $0x770] sm:$0xff]
    %v2798 = vld [vmem:[%s2558 + $0x778] sm:$0xff]
    %v2799 = vld [vmem:[%s2558 + $0x780] sm:$0xff]
    %v2800 = vld [vmem:[%s2558 + $0x788] sm:$0xff]
    %v2801 = vld [vmem:[%s2558 + $0x790] sm:$0xff]
    %v2802 = vld [vmem:[%s2558 + $0x798] sm:$0xff]
    %v2803 = vld [vmem:[%s2558 + $0x7a0] sm:$0xff]
    %v2804 = vld [vmem:[%s2558 + $0x7a8] sm:$0xff]
    %v2805 = vld [vmem:[%s2558 + $0x7b0] sm:$0xff]
    %v2806 = vld [vmem:[%s2558 + $0x7b8] sm:$0xff]
    %v2807 = vld [vmem:[%s2558 + $0x7c0] sm:$0xff]
    %v2808 = vld [vmem:[%s2558 + $0x7c8] sm:$0xff]
    %v2809 = vld [vmem:[%s2558 + $0x7d0] sm:$0xff]
    %v2810 = vld [vmem:[%s2558 + $0x7d8] sm:$0xff]
    %v2811 = vld [vmem:[%s2558 + $0x7e0] sm:$0xff]
    %v2812 = vld [vmem:[%s2558 + $0x7e8] sm:$0xff]
    %v2813 = vld [vmem:[%s2558 + $0x7f0] sm:$0xff]
    %v2814 = vld [vmem:[%s2558 + $0x7f8] sm:$0xff]
    %v2815 = vld [vmem:[#allocation2] sm:$0xff]
    %v2816 = vld [vmem:[#allocation2 + $0x8] sm:$0xff]
    %v2817 = vld [vmem:[#allocation2 + $0x10] sm:$0xff]
    %v2818 = vld [vmem:[#allocation2 + $0x18] sm:$0xff]
    %v2819 = vld [vmem:[#allocation2 + $0x20] sm:$0xff]
    %v2820 = vld [vmem:[#allocation2 + $0x28] sm:$0xff]
    %v2821 = vld [vmem:[#allocation2 + $0x30] sm:$0xff]
    %v2822 = vld [vmem:[#allocation2 + $0x38] sm:$0xff]
    %v2823 = vld [vmem:[#allocation2 + $0x40] sm:$0xff]
    %v2824 = vld [vmem:[#allocation2 + $0x48] sm:$0xff]
    %v2825 = vld [vmem:[#allocation2 + $0x50] sm:$0xff]
    %v2826 = vld [vmem:[#allocation2 + $0x58] sm:$0xff]
    %v2827 = vld [vmem:[#allocation2 + $0x60] sm:$0xff]
    %v2828 = vld [vmem:[#allocation2 + $0x68] sm:$0xff]
    %v2829 = vld [vmem:[#allocation2 + $0x70] sm:$0xff]
    %v2830 = vld [vmem:[#allocation2 + $0x78] sm:$0xff]
    %v2831 = vld [vmem:[#allocation2 + $0x80] sm:$0xff]
    %v2832 = vld [vmem:[#allocation2 + $0x88] sm:$0xff]
    %v2833 = vld [vmem:[#allocation2 + $0x90] sm:$0xff]
    %v2834 = vld [vmem:[#allocation2 + $0x98] sm:$0xff]
    %v2835 = vld [vmem:[#allocation2 + $0xa0] sm:$0xff]
    %v2836 = vld [vmem:[#allocation2 + $0xa8] sm:$0xff]
    %v2837 = vld [vmem:[#allocation2 + $0xb0] sm:$0xff]
    %v2838 = vld [vmem:[#allocation2 + $0xb8] sm:$0xff]
    %v2839 = vld [vmem:[#allocation2 + $0xc0] sm:$0xff]
    %v2840 = vld [vmem:[#allocation2 + $0xc8] sm:$0xff]
    %v2841 = vld [vmem:[#allocation2 + $0xd0] sm:$0xff]
    %v2842 = vld [vmem:[#allocation2 + $0xd8] sm:$0xff]
    %v2843 = vld [vmem:[#allocation2 + $0xe0] sm:$0xff]
    %v2844 = vld [vmem:[#allocation2 + $0xe8] sm:$0xff]
    %v2845 = vld [vmem:[#allocation2 + $0xf0] sm:$0xff]
    %v2846 = vld [vmem:[#allocation2 + $0xf8] sm:$0xff]
    %v2847 = vpack.c.bf16 %v2819, %v2815
    %v2848 = vpack.c.bf16 %v2820, %v2816
    %v2849 = vpack.c.bf16 %v2821, %v2817
    %v2850 = vpack.c.bf16 %v2822, %v2818
    %v2851 = vpack.c.bf16 %v2827, %v2823
    %v2852 = vpack.c.bf16 %v2828, %v2824
    %v2853 = vpack.c.bf16 %v2829, %v2825
    %v2854 = vpack.c.bf16 %v2830, %v2826
    %v2855 = vpack.c.bf16 %v2835, %v2831
    %v2856 = vpack.c.bf16 %v2836, %v2832
    %v2857 = vpack.c.bf16 %v2837, %v2833
    %v2858 = vpack.c.bf16 %v2838, %v2834
    %v2859 = vpack.c.bf16 %v2843, %v2839
    %v2860 = vpack.c.bf16 %v2844, %v2840
    %v2861 = vpack.c.bf16 %v2845, %v2841
    %v2862 = vpack.c.bf16 %v2846, %v2842
    %v2863 = vld [vmem:[%s2008] sm:$0xff]
    %v2864 = vld [vmem:[%s2008 + $0x8] sm:$0xff]
    %v2865 = vld [vmem:[%s2008 + $0x10] sm:$0xff]
    %v2866 = vld [vmem:[%s2008 + $0x18] sm:$0xff]
    %v2867 = vld [vmem:[%s2008 + $0x20] sm:$0xff]
    %v2868 = vld [vmem:[%s2008 + $0x28] sm:$0xff]
    %v2869 = vld [vmem:[%s2008 + $0x30] sm:$0xff]
    %v2870 = vld [vmem:[%s2008 + $0x38] sm:$0xff]
    %v2871 = vld [vmem:[%s2008 + $0x40] sm:$0xff]
    %v2872 = vld [vmem:[%s2008 + $0x48] sm:$0xff]
    %v2873 = vld [vmem:[%s2008 + $0x50] sm:$0xff]
    %v2874 = vld [vmem:[%s2008 + $0x58] sm:$0xff]
    %v2875 = vld [vmem:[%s2008 + $0x60] sm:$0xff]
    %v2876 = vld [vmem:[%s2008 + $0x68] sm:$0xff]
    %v2877 = vld [vmem:[%s2008 + $0x70] sm:$0xff]
    %v2878 = vld [vmem:[%s2008 + $0x78] sm:$0xff]
    %v2879 = vld [vmem:[%s2008 + $0x80] sm:$0xff]
    %v2880 = vld [vmem:[%s2008 + $0x88] sm:$0xff]
    %v2881 = vld [vmem:[%s2008 + $0x90] sm:$0xff]
    %v2882 = vld [vmem:[%s2008 + $0x98] sm:$0xff]
    %v2883 = vld [vmem:[%s2008 + $0xa0] sm:$0xff]
    %v2884 = vld [vmem:[%s2008 + $0xa8] sm:$0xff]
    %v2885 = vld [vmem:[%s2008 + $0xb0] sm:$0xff]
    %v2886 = vld [vmem:[%s2008 + $0xb8] sm:$0xff]
    %v2887 = vld [vmem:[%s2008 + $0xc0] sm:$0xff]
    %v2888 = vld [vmem:[%s2008 + $0xc8] sm:$0xff]
    %v2889 = vld [vmem:[%s2008 + $0xd0] sm:$0xff]
    %v2890 = vld [vmem:[%s2008 + $0xd8] sm:$0xff]
    %v2891 = vld [vmem:[%s2008 + $0xe0] sm:$0xff]
    %v2892 = vld [vmem:[%s2008 + $0xe8] sm:$0xff]
    %v2893 = vld [vmem:[%s2008 + $0xf0] sm:$0xff]
    %v2894 = vld [vmem:[%s2008 + $0xf8] sm:$0xff]
    %v2895 = vpack.c.bf16 %v2867, %v2863
    %v2896 = vpack.c.bf16 %v2868, %v2864
    %v2897 = vpack.c.bf16 %v2869, %v2865
    %v2898 = vpack.c.bf16 %v2870, %v2866
    %v2899 = vpack.c.bf16 %v2875, %v2871
    %v2900 = vpack.c.bf16 %v2876, %v2872
    %v2901 = vpack.c.bf16 %v2877, %v2873
    %v2902 = vpack.c.bf16 %v2878, %v2874
    %v2903 = vpack.c.bf16 %v2883, %v2879
    %v2904 = vpack.c.bf16 %v2884, %v2880
    %v2905 = vpack.c.bf16 %v2885, %v2881
    %v2906 = vpack.c.bf16 %v2886, %v2882
    %v2907 = vpack.c.bf16 %v2891, %v2887
    %v2908 = vpack.c.bf16 %v2892, %v2888
    %v2909 = vpack.c.bf16 %v2893, %v2889
    %v2910 = vpack.c.bf16 %v2894, %v2890
    %v2911 = vld [vmem:[#allocation2 + $0x100] sm:$0xff]
    %v2912 = vld [vmem:[#allocation2 + $0x108] sm:$0xff]
    %v2913 = vld [vmem:[#allocation2 + $0x110] sm:$0xff]
    %v2914 = vld [vmem:[#allocation2 + $0x118] sm:$0xff]
    %v2915 = vpack.c.bf16 %v2823, %v2819
    %v2916 = vpack.c.bf16 %v2824, %v2820
    %v2917 = vpack.c.bf16 %v2825, %v2821
    %v2918 = vpack.c.bf16 %v2826, %v2822
    %v2919 = vpack.c.bf16 %v2831, %v2827
    %v2920 = vpack.c.bf16 %v2832, %v2828
    %v2921 = vpack.c.bf16 %v2833, %v2829
    %v2922 = vpack.c.bf16 %v2834, %v2830
    %v2923 = vpack.c.bf16 %v2839, %v2835
    %v2924 = vpack.c.bf16 %v2840, %v2836
    %v2925 = vpack.c.bf16 %v2841, %v2837
    %v2926 = vpack.c.bf16 %v2842, %v2838
    %v2927 = vpack.c.bf16 %v2911, %v2843
    %v2928 = vpack.c.bf16 %v2912, %v2844
    %v2929 = vpack.c.bf16 %v2913, %v2845
    %v2930 = vpack.c.bf16 %v2914, %v2846
    %v2931 = vld [vmem:[%s2008 + $0x100] sm:$0xff]
    %v2932 = vld [vmem:[%s2008 + $0x108] sm:$0xff]
    %v2933 = vld [vmem:[%s2008 + $0x110] sm:$0xff]
    %v2934 = vld [vmem:[%s2008 + $0x118] sm:$0xff]
    %v2935 = vpack.c.bf16 %v2871, %v2867
    %v2936 = vpack.c.bf16 %v2872, %v2868
    %v2937 = vpack.c.bf16 %v2873, %v2869
    %v2938 = vpack.c.bf16 %v2874, %v2870
    %v2939 = vpack.c.bf16 %v2879, %v2875
    %v2940 = vpack.c.bf16 %v2880, %v2876
    %v2941 = vpack.c.bf16 %v2881, %v2877
    %v2942 = vpack.c.bf16 %v2882, %v2878
    %v2943 = vpack.c.bf16 %v2887, %v2883
    %v2944 = vpack.c.bf16 %v2888, %v2884
    %v2945 = vpack.c.bf16 %v2889, %v2885
    %v2946 = vpack.c.bf16 %v2890, %v2886
    %v2947 = vpack.c.bf16 %v2931, %v2891
    %v2948 = vpack.c.bf16 %v2932, %v2892
    %v2949 = vpack.c.bf16 %v2933, %v2893
    %v2950 = vpack.c.bf16 %v2934, %v2894
    %v2951 = vld [vmem:[%s4] sm:$0xf]
    %v3208 = vunpack.c.l.b16 %v2302
    %v3209 = vunpack.c.h.b16 %v2302
    %v3210 = vunpack.c.l.b16 %v2303
    %v3211 = vunpack.c.h.b16 %v2303
    %v3212 = vunpack.c.l.b16 %v2304
    %v3213 = vunpack.c.h.b16 %v2304
    %v3214 = vunpack.c.l.b16 %v2305
    %v3215 = vunpack.c.h.b16 %v2305
    %v3216 = vunpack.c.l.b16 %v2306
    %v3217 = vunpack.c.h.b16 %v2306
    %v3218 = vunpack.c.l.b16 %v2307
    %v3219 = vunpack.c.h.b16 %v2307
    %v3220 = vunpack.c.l.b16 %v2308
    %v3221 = vunpack.c.h.b16 %v2308
    %v3222 = vunpack.c.l.b16 %v2309
    %v3223 = vunpack.c.h.b16 %v2309
    %v3224 = vunpack.c.l.b16 %v2310
    %v3225 = vunpack.c.h.b16 %v2310
    %v3226 = vunpack.c.l.b16 %v2311
    %v3227 = vunpack.c.h.b16 %v2311
    %v3228 = vunpack.c.l.b16 %v2312
    %v3229 = vunpack.c.h.b16 %v2312
    %v3230 = vunpack.c.l.b16 %v2313
    %v3231 = vunpack.c.h.b16 %v2313
    %v3232 = vunpack.c.l.b16 %v2314
    %v3233 = vunpack.c.h.b16 %v2314
    %v3234 = vunpack.c.l.b16 %v2315
    %v3235 = vunpack.c.h.b16 %v2315
    %v3236 = vunpack.c.l.b16 %v2316
    %v3237 = vunpack.c.h.b16 %v2316
    %v3238 = vunpack.c.l.b16 %v2317
    %v3239 = vunpack.c.h.b16 %v2317
    %v3240 = vunpack.c.l.b16 %v2318
    %v3241 = vunpack.c.h.b16 %v2318
    %v3242 = vunpack.c.l.b16 %v2319
    %v3243 = vunpack.c.h.b16 %v2319
    %v3244 = vunpack.c.l.b16 %v2320
    %v3245 = vunpack.c.h.b16 %v2320
    %v3246 = vunpack.c.l.b16 %v2321
    %v3247 = vunpack.c.h.b16 %v2321
    %v3248 = vunpack.c.l.b16 %v2322
    %v3249 = vunpack.c.h.b16 %v2322
    %v3250 = vunpack.c.l.b16 %v2323
    %v3251 = vunpack.c.h.b16 %v2323
    %v3252 = vunpack.c.l.b16 %v2324
    %v3253 = vunpack.c.h.b16 %v2324
    %v3254 = vunpack.c.l.b16 %v2325
    %v3255 = vunpack.c.h.b16 %v2325
    %v3256 = vunpack.c.l.b16 %v2326
    %v3257 = vunpack.c.h.b16 %v2326
    %v3258 = vunpack.c.l.b16 %v2327
    %v3259 = vunpack.c.h.b16 %v2327
    %v3260 = vunpack.c.l.b16 %v2328
    %v3261 = vunpack.c.h.b16 %v2328
    %v3262 = vunpack.c.l.b16 %v2329
    %v3263 = vunpack.c.h.b16 %v2329
    %v3264 = vunpack.c.l.b16 %v2330
    %v3265 = vunpack.c.h.b16 %v2330
    %v3266 = vunpack.c.l.b16 %v2331
    %v3267 = vunpack.c.h.b16 %v2331
    %v3268 = vunpack.c.l.b16 %v2332
    %v3269 = vunpack.c.h.b16 %v2332
    %v3270 = vunpack.c.l.b16 %v2333
    %v3271 = vunpack.c.h.b16 %v2333
    %v3272 = vunpack.c.l.b16 %v2334
    %v3273 = vunpack.c.h.b16 %v2334
    %v3274 = vunpack.c.l.b16 %v2335
    %v3275 = vunpack.c.h.b16 %v2335
    %v3276 = vunpack.c.l.b16 %v2336
    %v3277 = vunpack.c.h.b16 %v2336
    %v3278 = vunpack.c.l.b16 %v2337
    %v3279 = vunpack.c.h.b16 %v2337
    %v3280 = vunpack.c.l.b16 %v2338
    %v3281 = vunpack.c.h.b16 %v2338
    %v3282 = vunpack.c.l.b16 %v2339
    %v3283 = vunpack.c.h.b16 %v2339
    %v3284 = vunpack.c.l.b16 %v2340
    %v3285 = vunpack.c.h.b16 %v2340
    %v3286 = vunpack.c.l.b16 %v2341
    %v3287 = vunpack.c.h.b16 %v2341
    %v3288 = vunpack.c.l.b16 %v2342
    %v3289 = vunpack.c.h.b16 %v2342
    %v3290 = vunpack.c.l.b16 %v2343
    %v3291 = vunpack.c.h.b16 %v2343
    %v3292 = vunpack.c.l.b16 %v2344
    %v3293 = vunpack.c.h.b16 %v2344
    %v3294 = vunpack.c.l.b16 %v2345
    %v3295 = vunpack.c.h.b16 %v2345
    %v3296 = vunpack.c.l.b16 %v2346
    %v3297 = vunpack.c.h.b16 %v2346
    %v3298 = vunpack.c.l.b16 %v2347
    %v3299 = vunpack.c.h.b16 %v2347
    %v3300 = vunpack.c.l.b16 %v2348
    %v3301 = vunpack.c.h.b16 %v2348
    %v3302 = vunpack.c.l.b16 %v2349
    %v3303 = vunpack.c.h.b16 %v2349
    %v3304 = vunpack.c.l.b16 %v2350
    %v3305 = vunpack.c.h.b16 %v2350
    %v3306 = vunpack.c.l.b16 %v2351
    %v3307 = vunpack.c.h.b16 %v2351
    %v3308 = vunpack.c.l.b16 %v2352
    %v3309 = vunpack.c.h.b16 %v2352
    %v3310 = vunpack.c.l.b16 %v2353
    %v3311 = vunpack.c.h.b16 %v2353
    %v3312 = vunpack.c.l.b16 %v2354
    %v3313 = vunpack.c.h.b16 %v2354
    %v3314 = vunpack.c.l.b16 %v2355
    %v3315 = vunpack.c.h.b16 %v2355
    %v3316 = vunpack.c.l.b16 %v2356
    %v3317 = vunpack.c.h.b16 %v2356
    %v3318 = vunpack.c.l.b16 %v2357
    %v3319 = vunpack.c.h.b16 %v2357
    %v3320 = vunpack.c.l.b16 %v2358
    %v3321 = vunpack.c.h.b16 %v2358
    %v3322 = vunpack.c.l.b16 %v2359
    %v3323 = vunpack.c.h.b16 %v2359
    %v3324 = vunpack.c.l.b16 %v2360
    %v3325 = vunpack.c.h.b16 %v2360
    %v3326 = vunpack.c.l.b16 %v2361
    %v3327 = vunpack.c.h.b16 %v2361
    %v3328 = vunpack.c.l.b16 %v2362
    %v3329 = vunpack.c.h.b16 %v2362
    %v3330 = vunpack.c.l.b16 %v2363
    %v3331 = vunpack.c.h.b16 %v2363
    %v3332 = vunpack.c.l.b16 %v2364
    %v3333 = vunpack.c.h.b16 %v2364
    %v3334 = vunpack.c.l.b16 %v2365
    %v3335 = vunpack.c.h.b16 %v2365
    %v3336 = vunpack.c.l.b16 %v2366
    %v3337 = vunpack.c.h.b16 %v2366
    %v3338 = vunpack.c.l.b16 %v2367
    %v3339 = vunpack.c.h.b16 %v2367
    %v3340 = vunpack.c.l.b16 %v2368
    %v3341 = vunpack.c.h.b16 %v2368
    %v3342 = vunpack.c.l.b16 %v2369
    %v3343 = vunpack.c.h.b16 %v2369
    %v3344 = vunpack.c.l.b16 %v2370
    %v3345 = vunpack.c.h.b16 %v2370
    %v3346 = vunpack.c.l.b16 %v2371
    %v3347 = vunpack.c.h.b16 %v2371
    %v3348 = vunpack.c.l.b16 %v2372
    %v3349 = vunpack.c.h.b16 %v2372
    %v3350 = vunpack.c.l.b16 %v2373
    %v3351 = vunpack.c.h.b16 %v2373
    %v3352 = vunpack.c.l.b16 %v2374
    %v3353 = vunpack.c.h.b16 %v2374
    %v3354 = vunpack.c.l.b16 %v2375
    %v3355 = vunpack.c.h.b16 %v2375
    %v3356 = vunpack.c.l.b16 %v2376
    %v3357 = vunpack.c.h.b16 %v2376
    %v3358 = vunpack.c.l.b16 %v2377
    %v3359 = vunpack.c.h.b16 %v2377
    %v3360 = vunpack.c.l.b16 %v2378
    %v3361 = vunpack.c.h.b16 %v2378
    %v3362 = vunpack.c.l.b16 %v2379
    %v3363 = vunpack.c.h.b16 %v2379
    %v3364 = vunpack.c.l.b16 %v2380
    %v3365 = vunpack.c.h.b16 %v2380
    %v3366 = vunpack.c.l.b16 %v2381
    %v3367 = vunpack.c.h.b16 %v2381
    %v3368 = vunpack.c.l.b16 %v2382
    %v3369 = vunpack.c.h.b16 %v2382
    %v3370 = vunpack.c.l.b16 %v2383
    %v3371 = vunpack.c.h.b16 %v2383
    %v3372 = vunpack.c.l.b16 %v2384
    %v3373 = vunpack.c.h.b16 %v2384
    %v3374 = vunpack.c.l.b16 %v2385
    %v3375 = vunpack.c.h.b16 %v2385
    %v3376 = vunpack.c.l.b16 %v2386
    %v3377 = vunpack.c.h.b16 %v2386
    %v3378 = vunpack.c.l.b16 %v2387
    %v3379 = vunpack.c.h.b16 %v2387
    %v3380 = vunpack.c.l.b16 %v2388
    %v3381 = vunpack.c.h.b16 %v2388
    %v3382 = vunpack.c.l.b16 %v2389
    %v3383 = vunpack.c.h.b16 %v2389
    %v3384 = vunpack.c.l.b16 %v2390
    %v3385 = vunpack.c.h.b16 %v2390
    %v3386 = vunpack.c.l.b16 %v2391
    %v3387 = vunpack.c.h.b16 %v2391
    %v3388 = vunpack.c.l.b16 %v2392
    %v3389 = vunpack.c.h.b16 %v2392
    %v3390 = vunpack.c.l.b16 %v2393
    %v3391 = vunpack.c.h.b16 %v2393
    %v3392 = vunpack.c.l.b16 %v2394
    %v3393 = vunpack.c.h.b16 %v2394
    %v3394 = vunpack.c.l.b16 %v2395
    %v3395 = vunpack.c.h.b16 %v2395
    %v3396 = vunpack.c.l.b16 %v2396
    %v3397 = vunpack.c.h.b16 %v2396
    %v3398 = vunpack.c.l.b16 %v2397
    %v3399 = vunpack.c.h.b16 %v2397
    %v3400 = vunpack.c.l.b16 %v2398
    %v3401 = vunpack.c.h.b16 %v2398
    %v3402 = vunpack.c.l.b16 %v2399
    %v3403 = vunpack.c.h.b16 %v2399
    %v3404 = vunpack.c.l.b16 %v2400
    %v3405 = vunpack.c.h.b16 %v2400
    %v3406 = vunpack.c.l.b16 %v2401
    %v3407 = vunpack.c.h.b16 %v2401
    %v3408 = vunpack.c.l.b16 %v2402
    %v3409 = vunpack.c.h.b16 %v2402
    %v3410 = vunpack.c.l.b16 %v2403
    %v3411 = vunpack.c.h.b16 %v2403
    %v3412 = vunpack.c.l.b16 %v2404
    %v3413 = vunpack.c.h.b16 %v2404
    %v3414 = vunpack.c.l.b16 %v2405
    %v3415 = vunpack.c.h.b16 %v2405
    %v3416 = vunpack.c.l.b16 %v2406
    %v3417 = vunpack.c.h.b16 %v2406
    %v3418 = vunpack.c.l.b16 %v2407
    %v3419 = vunpack.c.h.b16 %v2407
    %v3420 = vunpack.c.l.b16 %v2408
    %v3421 = vunpack.c.h.b16 %v2408
    %v3422 = vunpack.c.l.b16 %v2409
    %v3423 = vunpack.c.h.b16 %v2409
    %v3424 = vunpack.c.l.b16 %v2410
    %v3425 = vunpack.c.h.b16 %v2410
    %v3426 = vunpack.c.l.b16 %v2411
    %v3427 = vunpack.c.h.b16 %v2411
    %v3428 = vunpack.c.l.b16 %v2412
    %v3429 = vunpack.c.h.b16 %v2412
    %v3430 = vunpack.c.l.b16 %v2413
    %v3431 = vunpack.c.h.b16 %v2413
    %v3432 = vunpack.c.l.b16 %v2414
    %v3433 = vunpack.c.h.b16 %v2414
    %v3434 = vunpack.c.l.b16 %v2415
    %v3435 = vunpack.c.h.b16 %v2415
    %v3436 = vunpack.c.l.b16 %v2416
    %v3437 = vunpack.c.h.b16 %v2416
    %v3438 = vunpack.c.l.b16 %v2417
    %v3439 = vunpack.c.h.b16 %v2417
    %v3440 = vunpack.c.l.b16 %v2418
    %v3441 = vunpack.c.h.b16 %v2418
    %v3442 = vunpack.c.l.b16 %v2419
    %v3443 = vunpack.c.h.b16 %v2419
    %v3444 = vunpack.c.l.b16 %v2420
    %v3445 = vunpack.c.h.b16 %v2420
    %v3446 = vunpack.c.l.b16 %v2421
    %v3447 = vunpack.c.h.b16 %v2421
    %v3448 = vunpack.c.l.b16 %v2422
    %v3449 = vunpack.c.h.b16 %v2422
    %v3450 = vunpack.c.l.b16 %v2423
    %v3451 = vunpack.c.h.b16 %v2423
    %v3452 = vunpack.c.l.b16 %v2424
    %v3453 = vunpack.c.h.b16 %v2424
    %v3454 = vunpack.c.l.b16 %v2425
    %v3455 = vunpack.c.h.b16 %v2425
    %v3456 = vunpack.c.l.b16 %v2426
    %v3457 = vunpack.c.h.b16 %v2426
    %v3458 = vunpack.c.l.b16 %v2427
    %v3459 = vunpack.c.h.b16 %v2427
    %v3460 = vunpack.c.l.b16 %v2428
    %v3461 = vunpack.c.h.b16 %v2428
    %v3462 = vunpack.c.l.b16 %v2429
    %v3463 = vunpack.c.h.b16 %v2429
    %v3464 = vunpack.c.l.b16 %v2430
    %v3465 = vunpack.c.h.b16 %v2430
    %v3466 = vunpack.c.l.b16 %v2431
    %v3467 = vunpack.c.h.b16 %v2431
    %v3468 = vunpack.c.l.b16 %v2432
    %v3469 = vunpack.c.h.b16 %v2432
    %v3470 = vunpack.c.l.b16 %v2433
    %v3471 = vunpack.c.h.b16 %v2433
    %v3472 = vunpack.c.l.b16 %v2434
    %v3473 = vunpack.c.h.b16 %v2434
    %v3474 = vunpack.c.l.b16 %v2435
    %v3475 = vunpack.c.h.b16 %v2435
    %v3476 = vunpack.c.l.b16 %v2436
    %v3477 = vunpack.c.h.b16 %v2436
    %v3478 = vunpack.c.l.b16 %v2437
    %v3479 = vunpack.c.h.b16 %v2437
    %v3480 = vunpack.c.l.b16 %v2438
    %v3481 = vunpack.c.h.b16 %v2438
    %v3482 = vunpack.c.l.b16 %v2439
    %v3483 = vunpack.c.h.b16 %v2439
    %v3484 = vunpack.c.l.b16 %v2440
    %v3485 = vunpack.c.h.b16 %v2440
    %v3486 = vunpack.c.l.b16 %v2441
    %v3487 = vunpack.c.h.b16 %v2441
    %v3488 = vunpack.c.l.b16 %v2442
    %v3489 = vunpack.c.h.b16 %v2442
    %v3490 = vunpack.c.l.b16 %v2443
    %v3491 = vunpack.c.h.b16 %v2443
    %v3492 = vunpack.c.l.b16 %v2444
    %v3493 = vunpack.c.h.b16 %v2444
    %v3494 = vunpack.c.l.b16 %v2445
    %v3495 = vunpack.c.h.b16 %v2445
    %v3496 = vunpack.c.l.b16 %v2446
    %v3497 = vunpack.c.h.b16 %v2446
    %v3498 = vunpack.c.l.b16 %v2447
    %v3499 = vunpack.c.h.b16 %v2447
    %v3500 = vunpack.c.l.b16 %v2448
    %v3501 = vunpack.c.h.b16 %v2448
    %v3502 = vunpack.c.l.b16 %v2449
    %v3503 = vunpack.c.h.b16 %v2449
    %v3504 = vunpack.c.l.b16 %v2450
    %v3505 = vunpack.c.h.b16 %v2450
    %v3506 = vunpack.c.l.b16 %v2451
    %v3507 = vunpack.c.h.b16 %v2451
    %v3508 = vunpack.c.l.b16 %v2452
    %v3509 = vunpack.c.h.b16 %v2452
    %v3510 = vunpack.c.l.b16 %v2453
    %v3511 = vunpack.c.h.b16 %v2453
    %v3512 = vunpack.c.l.b16 %v2454
    %v3513 = vunpack.c.h.b16 %v2454
    %v3514 = vunpack.c.l.b16 %v2455
    %v3515 = vunpack.c.h.b16 %v2455
    %v3516 = vunpack.c.l.b16 %v2456
    %v3517 = vunpack.c.h.b16 %v2456
    %v3518 = vunpack.c.l.b16 %v2457
    %v3519 = vunpack.c.h.b16 %v2457
    %v3520 = vunpack.c.l.b16 %v2458
    %v3521 = vunpack.c.h.b16 %v2458
    %v3522 = vunpack.c.l.b16 %v2459
    %v3523 = vunpack.c.h.b16 %v2459
    %v3524 = vunpack.c.l.b16 %v2460
    %v3525 = vunpack.c.h.b16 %v2460
    %v3526 = vunpack.c.l.b16 %v2461
    %v3527 = vunpack.c.h.b16 %v2461
    %v3528 = vunpack.c.l.b16 %v2462
    %v3529 = vunpack.c.h.b16 %v2462
    %v3530 = vunpack.c.l.b16 %v2463
    %v3531 = vunpack.c.h.b16 %v2463
    %v3532 = vunpack.c.l.b16 %v2464
    %v3533 = vunpack.c.h.b16 %v2464
    %v3534 = vunpack.c.l.b16 %v2465
    %v3535 = vunpack.c.h.b16 %v2465
    %v3536 = vunpack.c.l.b16 %v2466
    %v3537 = vunpack.c.h.b16 %v2466
    %v3538 = vunpack.c.l.b16 %v2467
    %v3539 = vunpack.c.h.b16 %v2467
    %v3540 = vunpack.c.l.b16 %v2468
    %v3541 = vunpack.c.h.b16 %v2468
    %v3542 = vunpack.c.l.b16 %v2469
    %v3543 = vunpack.c.h.b16 %v2469
    %v3544 = vunpack.c.l.b16 %v2470
    %v3545 = vunpack.c.h.b16 %v2470
    %v3546 = vunpack.c.l.b16 %v2471
    %v3547 = vunpack.c.h.b16 %v2471
    %v3548 = vunpack.c.l.b16 %v2472
    %v3549 = vunpack.c.h.b16 %v2472
    %v3550 = vunpack.c.l.b16 %v2473
    %v3551 = vunpack.c.h.b16 %v2473
    %v3552 = vunpack.c.l.b16 %v2474
    %v3553 = vunpack.c.h.b16 %v2474
    %v3554 = vunpack.c.l.b16 %v2475
    %v3555 = vunpack.c.h.b16 %v2475
    %v3556 = vunpack.c.l.b16 %v2476
    %v3557 = vunpack.c.h.b16 %v2476
    %v3558 = vunpack.c.l.b16 %v2477
    %v3559 = vunpack.c.h.b16 %v2477
    %v3560 = vunpack.c.l.b16 %v2478
    %v3561 = vunpack.c.h.b16 %v2478
    %v3562 = vunpack.c.l.b16 %v2479
    %v3563 = vunpack.c.h.b16 %v2479
    %v3564 = vunpack.c.l.b16 %v2480
    %v3565 = vunpack.c.h.b16 %v2480
    %v3566 = vunpack.c.l.b16 %v2481
    %v3567 = vunpack.c.h.b16 %v2481
    %v3568 = vunpack.c.l.b16 %v2482
    %v3569 = vunpack.c.h.b16 %v2482
    %v3570 = vunpack.c.l.b16 %v2483
    %v3571 = vunpack.c.h.b16 %v2483
    %v3572 = vunpack.c.l.b16 %v2484
    %v3573 = vunpack.c.h.b16 %v2484
    %v3574 = vunpack.c.l.b16 %v2485
    %v3575 = vunpack.c.h.b16 %v2485
    %v3576 = vunpack.c.l.b16 %v2486
    %v3577 = vunpack.c.h.b16 %v2486
    %v3578 = vunpack.c.l.b16 %v2487
    %v3579 = vunpack.c.h.b16 %v2487
    %v3580 = vunpack.c.l.b16 %v2488
    %v3581 = vunpack.c.h.b16 %v2488
    %v3582 = vunpack.c.l.b16 %v2489
    %v3583 = vunpack.c.h.b16 %v2489
    %v3584 = vunpack.c.l.b16 %v2490
    %v3585 = vunpack.c.h.b16 %v2490
    %v3586 = vunpack.c.l.b16 %v2491
    %v3587 = vunpack.c.h.b16 %v2491
    %v3588 = vunpack.c.l.b16 %v2492
    %v3589 = vunpack.c.h.b16 %v2492
    %v3590 = vunpack.c.l.b16 %v2493
    %v3591 = vunpack.c.h.b16 %v2493
    %v3592 = vunpack.c.l.b16 %v2494
    %v3593 = vunpack.c.h.b16 %v2494
    %v3594 = vunpack.c.l.b16 %v2495
    %v3595 = vunpack.c.h.b16 %v2495
    %v3596 = vunpack.c.l.b16 %v2496
    %v3597 = vunpack.c.h.b16 %v2496
    %v3598 = vunpack.c.l.b16 %v2497
    %v3599 = vunpack.c.h.b16 %v2497
    %v3600 = vunpack.c.l.b16 %v2498
    %v3601 = vunpack.c.h.b16 %v2498
    %v3602 = vunpack.c.l.b16 %v2499
    %v3603 = vunpack.c.h.b16 %v2499
    %v3604 = vunpack.c.l.b16 %v2500
    %v3605 = vunpack.c.h.b16 %v2500
    %v3606 = vunpack.c.l.b16 %v2501
    %v3607 = vunpack.c.h.b16 %v2501
    %v3608 = vunpack.c.l.b16 %v2502
    %v3609 = vunpack.c.h.b16 %v2502
    %v3610 = vunpack.c.l.b16 %v2503
    %v3611 = vunpack.c.h.b16 %v2503
    %v3612 = vunpack.c.l.b16 %v2504
    %v3613 = vunpack.c.h.b16 %v2504
    %v3614 = vunpack.c.l.b16 %v2505
    %v3615 = vunpack.c.h.b16 %v2505
    %v3616 = vunpack.c.l.b16 %v2506
    %v3617 = vunpack.c.h.b16 %v2506
    %v3618 = vunpack.c.l.b16 %v2507
    %v3619 = vunpack.c.h.b16 %v2507
    %v3620 = vunpack.c.l.b16 %v2508
    %v3621 = vunpack.c.h.b16 %v2508
    %v3622 = vunpack.c.l.b16 %v2509
    %v3623 = vunpack.c.h.b16 %v2509
    %v3624 = vunpack.c.l.b16 %v2510
    %v3625 = vunpack.c.h.b16 %v2510
    %v3626 = vunpack.c.l.b16 %v2511
    %v3627 = vunpack.c.h.b16 %v2511
    %v3628 = vunpack.c.l.b16 %v2512
    %v3629 = vunpack.c.h.b16 %v2512
    %v3630 = vunpack.c.l.b16 %v2513
    %v3631 = vunpack.c.h.b16 %v2513
    %v3632 = vunpack.c.l.b16 %v2514
    %v3633 = vunpack.c.h.b16 %v2514
    %v3634 = vunpack.c.l.b16 %v2515
    %v3635 = vunpack.c.h.b16 %v2515
    %v3636 = vunpack.c.l.b16 %v2516
    %v3637 = vunpack.c.h.b16 %v2516
    %v3638 = vunpack.c.l.b16 %v2517
    %v3639 = vunpack.c.h.b16 %v2517
    %v3640 = vunpack.c.l.b16 %v2518
    %v3641 = vunpack.c.h.b16 %v2518
    %v3642 = vunpack.c.l.b16 %v2519
    %v3643 = vunpack.c.h.b16 %v2519
    %v3644 = vunpack.c.l.b16 %v2520
    %v3645 = vunpack.c.h.b16 %v2520
    %v3646 = vunpack.c.l.b16 %v2521
    %v3647 = vunpack.c.h.b16 %v2521
    %v3648 = vunpack.c.l.b16 %v2522
    %v3649 = vunpack.c.h.b16 %v2522
    %v3650 = vunpack.c.l.b16 %v2523
    %v3651 = vunpack.c.h.b16 %v2523
    %v3652 = vunpack.c.l.b16 %v2524
    %v3653 = vunpack.c.h.b16 %v2524
    %v3654 = vunpack.c.l.b16 %v2525
    %v3655 = vunpack.c.h.b16 %v2525
    %v3656 = vunpack.c.l.b16 %v2526
    %v3657 = vunpack.c.h.b16 %v2526
    %v3658 = vunpack.c.l.b16 %v2527
    %v3659 = vunpack.c.h.b16 %v2527
    %v3660 = vunpack.c.l.b16 %v2528
    %v3661 = vunpack.c.h.b16 %v2528
    %v3662 = vunpack.c.l.b16 %v2529
    %v3663 = vunpack.c.h.b16 %v2529
    %v3664 = vunpack.c.l.b16 %v2530
    %v3665 = vunpack.c.h.b16 %v2530
    %v3666 = vunpack.c.l.b16 %v2531
    %v3667 = vunpack.c.h.b16 %v2531
    %v3668 = vunpack.c.l.b16 %v2532
    %v3669 = vunpack.c.h.b16 %v2532
    %v3670 = vunpack.c.l.b16 %v2533
    %v3671 = vunpack.c.h.b16 %v2533
    %v3672 = vunpack.c.l.b16 %v2534
    %v3673 = vunpack.c.h.b16 %v2534
    %v3674 = vunpack.c.l.b16 %v2535
    %v3675 = vunpack.c.h.b16 %v2535
    %v3676 = vunpack.c.l.b16 %v2536
    %v3677 = vunpack.c.h.b16 %v2536
    %v3678 = vunpack.c.l.b16 %v2537
    %v3679 = vunpack.c.h.b16 %v2537
    %v3680 = vunpack.c.l.b16 %v2538
    %v3681 = vunpack.c.h.b16 %v2538
    %v3682 = vunpack.c.l.b16 %v2539
    %v3683 = vunpack.c.h.b16 %v2539
    %v3684 = vunpack.c.l.b16 %v2540
    %v3685 = vunpack.c.h.b16 %v2540
    %v3686 = vunpack.c.l.b16 %v2541
    %v3687 = vunpack.c.h.b16 %v2541
    %v3688 = vunpack.c.l.b16 %v2542
    %v3689 = vunpack.c.h.b16 %v2542
    %v3690 = vunpack.c.l.b16 %v2543
    %v3691 = vunpack.c.h.b16 %v2543
    %v3692 = vunpack.c.l.b16 %v2544
    %v3693 = vunpack.c.h.b16 %v2544
    %v3694 = vunpack.c.l.b16 %v2545
    %v3695 = vunpack.c.h.b16 %v2545
    %v3696 = vunpack.c.l.b16 %v2546
    %v3697 = vunpack.c.h.b16 %v2546
    %v3698 = vunpack.c.l.b16 %v2547
    %v3699 = vunpack.c.h.b16 %v2547
    %v3700 = vunpack.c.l.b16 %v2548
    %v3701 = vunpack.c.h.b16 %v2548
    %v3702 = vunpack.c.l.b16 %v2549
    %v3703 = vunpack.c.h.b16 %v2549
    %v3704 = vunpack.c.l.b16 %v2550
    %v3705 = vunpack.c.h.b16 %v2550
    %v3706 = vunpack.c.l.b16 %v2551
    %v3707 = vunpack.c.h.b16 %v2551
    %v3708 = vunpack.c.l.b16 %v2552
    %v3709 = vunpack.c.h.b16 %v2552
    %v3710 = vunpack.c.l.b16 %v2553
    %v3711 = vunpack.c.h.b16 %v2553
    %v3712 = vunpack.c.l.b16 %v2554
    %v3713 = vunpack.c.h.b16 %v2554
    %v3714 = vunpack.c.l.b16 %v2555
    %v3715 = vunpack.c.h.b16 %v2555
    %v3716 = vunpack.c.l.b16 %v2556
    %v3717 = vunpack.c.h.b16 %v2556
    %v3718 = vunpack.c.l.b16 %v2557
    %v3719 = vunpack.c.h.b16 %v2557
    %v3720 = vpack.c.b16 %v3216, %v3208
    %v3721 = vpack.c.b16 %v3217, %v3209
    %v3722 = vpack.c.b16 %v3218, %v3210
    %v3723 = vpack.c.b16 %v3219, %v3211
    %v3724 = vpack.c.b16 %v3220, %v3212
    %v3725 = vpack.c.b16 %v3221, %v3213
    %v3726 = vpack.c.b16 %v3222, %v3214
    %v3727 = vpack.c.b16 %v3223, %v3215
    %v3728 = vpack.c.b16 %v3232, %v3224
    %v3729 = vpack.c.b16 %v3233, %v3225
    %v3730 = vpack.c.b16 %v3234, %v3226
    %v3731 = vpack.c.b16 %v3235, %v3227
    %v3732 = vpack.c.b16 %v3236, %v3228
    %v3733 = vpack.c.b16 %v3237, %v3229
    %v3734 = vpack.c.b16 %v3238, %v3230
    %v3735 = vpack.c.b16 %v3239, %v3231
    %v3736 = vpack.c.b16 %v3248, %v3240
    %v3737 = vpack.c.b16 %v3249, %v3241
    %v3738 = vpack.c.b16 %v3250, %v3242
    %v3739 = vpack.c.b16 %v3251, %v3243
    %v3740 = vpack.c.b16 %v3252, %v3244
    %v3741 = vpack.c.b16 %v3253, %v3245
    %v3742 = vpack.c.b16 %v3254, %v3246
    %v3743 = vpack.c.b16 %v3255, %v3247
    %v3744 = vpack.c.b16 %v3264, %v3256
    %v3745 = vpack.c.b16 %v3265, %v3257
    %v3746 = vpack.c.b16 %v3266, %v3258
    %v3747 = vpack.c.b16 %v3267, %v3259
    %v3748 = vpack.c.b16 %v3268, %v3260
    %v3749 = vpack.c.b16 %v3269, %v3261
    %v3750 = vpack.c.b16 %v3270, %v3262
    %v3751 = vpack.c.b16 %v3271, %v3263
    %v3752 = vpack.c.b16 %v3280, %v3272
    %v3753 = vpack.c.b16 %v3281, %v3273
    %v3754 = vpack.c.b16 %v3282, %v3274
    %v3755 = vpack.c.b16 %v3283, %v3275
    %v3756 = vpack.c.b16 %v3284, %v3276
    %v3757 = vpack.c.b16 %v3285, %v3277
    %v3758 = vpack.c.b16 %v3286, %v3278
    %v3759 = vpack.c.b16 %v3287, %v3279
    %v3760 = vpack.c.b16 %v3296, %v3288
    %v3761 = vpack.c.b16 %v3297, %v3289
    %v3762 = vpack.c.b16 %v3298, %v3290
    %v3763 = vpack.c.b16 %v3299, %v3291
    %v3764 = vpack.c.b16 %v3300, %v3292
    %v3765 = vpack.c.b16 %v3301, %v3293
    %v3766 = vpack.c.b16 %v3302, %v3294
    %v3767 = vpack.c.b16 %v3303, %v3295
    %v3768 = vpack.c.b16 %v3312, %v3304
    %v3769 = vpack.c.b16 %v3313, %v3305
    %v3770 = vpack.c.b16 %v3314, %v3306
    %v3771 = vpack.c.b16 %v3315, %v3307
    %v3772 = vpack.c.b16 %v3316, %v3308
    %v3773 = vpack.c.b16 %v3317, %v3309
    %v3774 = vpack.c.b16 %v3318, %v3310
    %v3775 = vpack.c.b16 %v3319, %v3311
    %v3776 = vpack.c.b16 %v3328, %v3320
    %v3777 = vpack.c.b16 %v3329, %v3321
    %v3778 = vpack.c.b16 %v3330, %v3322
    %v3779 = vpack.c.b16 %v3331, %v3323
    %v3780 = vpack.c.b16 %v3332, %v3324
    %v3781 = vpack.c.b16 %v3333, %v3325
    %v3782 = vpack.c.b16 %v3334, %v3326
    %v3783 = vpack.c.b16 %v3335, %v3327
    %v3784 = vpack.c.b16 %v3344, %v3336
    %v3785 = vpack.c.b16 %v3345, %v3337
    %v3786 = vpack.c.b16 %v3346, %v3338
    %v3787 = vpack.c.b16 %v3347, %v3339
    %v3788 = vpack.c.b16 %v3348, %v3340
    %v3789 = vpack.c.b16 %v3349, %v3341
    %v3790 = vpack.c.b16 %v3350, %v3342
    %v3791 = vpack.c.b16 %v3351, %v3343
    %v3792 = vpack.c.b16 %v3360, %v3352
    %v3793 = vpack.c.b16 %v3361, %v3353
    %v3794 = vpack.c.b16 %v3362, %v3354
    %v3795 = vpack.c.b16 %v3363, %v3355
    %v3796 = vpack.c.b16 %v3364, %v3356
    %v3797 = vpack.c.b16 %v3365, %v3357
    %v3798 = vpack.c.b16 %v3366, %v3358
    %v3799 = vpack.c.b16 %v3367, %v3359
    %v3800 = vpack.c.b16 %v3376, %v3368
    %v3801 = vpack.c.b16 %v3377, %v3369
    %v3802 = vpack.c.b16 %v3378, %v3370
    %v3803 = vpack.c.b16 %v3379, %v3371
    %v3804 = vpack.c.b16 %v3380, %v3372
    %v3805 = vpack.c.b16 %v3381, %v3373
    %v3806 = vpack.c.b16 %v3382, %v3374
    %v3807 = vpack.c.b16 %v3383, %v3375
    %v3808 = vpack.c.b16 %v3392, %v3384
    %v3809 = vpack.c.b16 %v3393, %v3385
    %v3810 = vpack.c.b16 %v3394, %v3386
    %v3811 = vpack.c.b16 %v3395, %v3387
    %v3812 = vpack.c.b16 %v3396, %v3388
    %v3813 = vpack.c.b16 %v3397, %v3389
    %v3814 = vpack.c.b16 %v3398, %v3390
    %v3815 = vpack.c.b16 %v3399, %v3391
    %v3816 = vpack.c.b16 %v3408, %v3400
    %v3817 = vpack.c.b16 %v3409, %v3401
    %v3818 = vpack.c.b16 %v3410, %v3402
    %v3819 = vpack.c.b16 %v3411, %v3403
    %v3820 = vpack.c.b16 %v3412, %v3404
    %v3821 = vpack.c.b16 %v3413, %v3405
    %v3822 = vpack.c.b16 %v3414, %v3406
    %v3823 = vpack.c.b16 %v3415, %v3407
    %v3824 = vpack.c.b16 %v3424, %v3416
    %v3825 = vpack.c.b16 %v3425, %v3417
    %v3826 = vpack.c.b16 %v3426, %v3418
    %v3827 = vpack.c.b16 %v3427, %v3419
    %v3828 = vpack.c.b16 %v3428, %v3420
    %v3829 = vpack.c.b16 %v3429, %v3421
    %v3830 = vpack.c.b16 %v3430, %v3422
    %v3831 = vpack.c.b16 %v3431, %v3423
    %v3832 = vpack.c.b16 %v3440, %v3432
    %v3833 = vpack.c.b16 %v3441, %v3433
    %v3834 = vpack.c.b16 %v3442, %v3434
    %v3835 = vpack.c.b16 %v3443, %v3435
    %v3836 = vpack.c.b16 %v3444, %v3436
    %v3837 = vpack.c.b16 %v3445, %v3437
    %v3838 = vpack.c.b16 %v3446, %v3438
    %v3839 = vpack.c.b16 %v3447, %v3439
    %v3840 = vpack.c.b16 %v3456, %v3448
    %v3841 = vpack.c.b16 %v3457, %v3449
    %v3842 = vpack.c.b16 %v3458, %v3450
    %v3843 = vpack.c.b16 %v3459, %v3451
    %v3844 = vpack.c.b16 %v3460, %v3452
    %v3845 = vpack.c.b16 %v3461, %v3453
    %v3846 = vpack.c.b16 %v3462, %v3454
    %v3847 = vpack.c.b16 %v3463, %v3455
    %v3848 = vpack.c.b16 %v3472, %v3464
    %v3849 = vpack.c.b16 %v3473, %v3465
    %v3850 = vpack.c.b16 %v3474, %v3466
    %v3851 = vpack.c.b16 %v3475, %v3467
    %v3852 = vpack.c.b16 %v3476, %v3468
    %v3853 = vpack.c.b16 %v3477, %v3469
    %v3854 = vpack.c.b16 %v3478, %v3470
    %v3855 = vpack.c.b16 %v3479, %v3471
    %v3856 = vpack.c.b16 %v3488, %v3480
    %v3857 = vpack.c.b16 %v3489, %v3481
    %v3858 = vpack.c.b16 %v3490, %v3482
    %v3859 = vpack.c.b16 %v3491, %v3483
    %v3860 = vpack.c.b16 %v3492, %v3484
    %v3861 = vpack.c.b16 %v3493, %v3485
    %v3862 = vpack.c.b16 %v3494, %v3486
    %v3863 = vpack.c.b16 %v3495, %v3487
    %v3864 = vpack.c.b16 %v3504, %v3496
    %v3865 = vpack.c.b16 %v3505, %v3497
    %v3866 = vpack.c.b16 %v3506, %v3498
    %v3867 = vpack.c.b16 %v3507, %v3499
    %v3868 = vpack.c.b16 %v3508, %v3500
    %v3869 = vpack.c.b16 %v3509, %v3501
    %v3870 = vpack.c.b16 %v3510, %v3502
    %v3871 = vpack.c.b16 %v3511, %v3503
    %v3872 = vpack.c.b16 %v3520, %v3512
    %v3873 = vpack.c.b16 %v3521, %v3513
    %v3874 = vpack.c.b16 %v3522, %v3514
    %v3875 = vpack.c.b16 %v3523, %v3515
    %v3876 = vpack.c.b16 %v3524, %v3516
    %v3877 = vpack.c.b16 %v3525, %v3517
    %v3878 = vpack.c.b16 %v3526, %v3518
    %v3879 = vpack.c.b16 %v3527, %v3519
    %v3880 = vpack.c.b16 %v3536, %v3528
    %v3881 = vpack.c.b16 %v3537, %v3529
    %v3882 = vpack.c.b16 %v3538, %v3530
    %v3883 = vpack.c.b16 %v3539, %v3531
    %v3884 = vpack.c.b16 %v3540, %v3532
    %v3885 = vpack.c.b16 %v3541, %v3533
    %v3886 = vpack.c.b16 %v3542, %v3534
    %v3887 = vpack.c.b16 %v3543, %v3535
    %v3888 = vpack.c.b16 %v3552, %v3544
    %v3889 = vpack.c.b16 %v3553, %v3545
    %v3890 = vpack.c.b16 %v3554, %v3546
    %v3891 = vpack.c.b16 %v3555, %v3547
    %v3892 = vpack.c.b16 %v3556, %v3548
    %v3893 = vpack.c.b16 %v3557, %v3549
    %v3894 = vpack.c.b16 %v3558, %v3550
    %v3895 = vpack.c.b16 %v3559, %v3551
    %v3896 = vpack.c.b16 %v3568, %v3560
    %v3897 = vpack.c.b16 %v3569, %v3561
    %v3898 = vpack.c.b16 %v3570, %v3562
    %v3899 = vpack.c.b16 %v3571, %v3563
    %v3900 = vpack.c.b16 %v3572, %v3564
    %v3901 = vpack.c.b16 %v3573, %v3565
    %v3902 = vpack.c.b16 %v3574, %v3566
    %v3903 = vpack.c.b16 %v3575, %v3567
    %v3904 = vpack.c.b16 %v3584, %v3576
    %v3905 = vpack.c.b16 %v3585, %v3577
    %v3906 = vpack.c.b16 %v3586, %v3578
    %v3907 = vpack.c.b16 %v3587, %v3579
    %v3908 = vpack.c.b16 %v3588, %v3580
    %v3909 = vpack.c.b16 %v3589, %v3581
    %v3910 = vpack.c.b16 %v3590, %v3582
    %v3911 = vpack.c.b16 %v3591, %v3583
    %v3912 = vpack.c.b16 %v3600, %v3592
    %v3913 = vpack.c.b16 %v3601, %v3593
    %v3914 = vpack.c.b16 %v3602, %v3594
    %v3915 = vpack.c.b16 %v3603, %v3595
    %v3916 = vpack.c.b16 %v3604, %v3596
    %v3917 = vpack.c.b16 %v3605, %v3597
    %v3918 = vpack.c.b16 %v3606, %v3598
    %v3919 = vpack.c.b16 %v3607, %v3599
    %v3920 = vpack.c.b16 %v3616, %v3608
    %v3921 = vpack.c.b16 %v3617, %v3609
    %v3922 = vpack.c.b16 %v3618, %v3610
    %v3923 = vpack.c.b16 %v3619, %v3611
    %v3924 = vpack.c.b16 %v3620, %v3612
    %v3925 = vpack.c.b16 %v3621, %v3613
    %v3926 = vpack.c.b16 %v3622, %v3614
    %v3927 = vpack.c.b16 %v3623, %v3615
    %v3928 = vpack.c.b16 %v3632, %v3624
    %v3929 = vpack.c.b16 %v3633, %v3625
    %v3930 = vpack.c.b16 %v3634, %v3626
    %v3931 = vpack.c.b16 %v3635, %v3627
    %v3932 = vpack.c.b16 %v3636, %v3628
    %v3933 = vpack.c.b16 %v3637, %v3629
    %v3934 = vpack.c.b16 %v3638, %v3630
    %v3935 = vpack.c.b16 %v3639, %v3631
    %v3936 = vpack.c.b16 %v3648, %v3640
    %v3937 = vpack.c.b16 %v3649, %v3641
    %v3938 = vpack.c.b16 %v3650, %v3642
    %v3939 = vpack.c.b16 %v3651, %v3643
    %v3940 = vpack.c.b16 %v3652, %v3644
    %v3941 = vpack.c.b16 %v3653, %v3645
    %v3942 = vpack.c.b16 %v3654, %v3646
    %v3943 = vpack.c.b16 %v3655, %v3647
    %v3944 = vpack.c.b16 %v3664, %v3656
    %v3945 = vpack.c.b16 %v3665, %v3657
    %v3946 = vpack.c.b16 %v3666, %v3658
    %v3947 = vpack.c.b16 %v3667, %v3659
    %v3948 = vpack.c.b16 %v3668, %v3660
    %v3949 = vpack.c.b16 %v3669, %v3661
    %v3950 = vpack.c.b16 %v3670, %v3662
    %v3951 = vpack.c.b16 %v3671, %v3663
    %v3952 = vpack.c.b16 %v3680, %v3672
    %v3953 = vpack.c.b16 %v3681, %v3673
    %v3954 = vpack.c.b16 %v3682, %v3674
    %v3955 = vpack.c.b16 %v3683, %v3675
    %v3956 = vpack.c.b16 %v3684, %v3676
    %v3957 = vpack.c.b16 %v3685, %v3677
    %v3958 = vpack.c.b16 %v3686, %v3678
    %v3959 = vpack.c.b16 %v3687, %v3679
    %v3960 = vpack.c.b16 %v3696, %v3688
    %v3961 = vpack.c.b16 %v3697, %v3689
    %v3962 = vpack.c.b16 %v3698, %v3690
    %v3963 = vpack.c.b16 %v3699, %v3691
    %v3964 = vpack.c.b16 %v3700, %v3692
    %v3965 = vpack.c.b16 %v3701, %v3693
    %v3966 = vpack.c.b16 %v3702, %v3694
    %v3967 = vpack.c.b16 %v3703, %v3695
    %v3968 = vpack.c.b16 %v3712, %v3704
    %v3969 = vpack.c.b16 %v3713, %v3705
    %v3970 = vpack.c.b16 %v3714, %v3706
    %v3971 = vpack.c.b16 %v3715, %v3707
    %v3972 = vpack.c.b16 %v3716, %v3708
    %v3973 = vpack.c.b16 %v3717, %v3709
    %v3974 = vpack.c.b16 %v3718, %v3710
    %v3975 = vpack.c.b16 %v3719, %v3711
    %4232 = vmatprep.subr.bf16.mxu0 %v3721
    %4233 = vmatpush1.bf16.msra.mxu0 %v3720
    %4234 = vmatprep.subr.bf16.mxu0 %v3729
    %4235 = vmatpush1.bf16.msra.mxu0 %v3728
    %4236 = vmatprep.subr.bf16.mxu0 %v3737
    %4237 = vmatpush1.bf16.msra.mxu0 %v3736
    %4238 = vmatprep.subr.bf16.mxu0 %v3745
    %4239 = vmatpush1.bf16.msra.mxu0 %v3744
    %4240 = vmatprep.subr.bf16.mxu0 %v3753
    %4241 = vmatpush1.bf16.msra.mxu0 %v3752
    %4242 = vmatprep.subr.bf16.mxu0 %v3761
    %4243 = vmatpush1.bf16.msra.mxu0 %v3760
    %4244 = vmatprep.subr.bf16.mxu0 %v3769
    %4245 = vmatpush1.bf16.msra.mxu0 %v3768
    %4246 = vmatprep.subr.bf16.mxu0 %v3777
    %4247 = vmatpush1.bf16.msra.mxu0 %v3776
    %4248 = vmatprep.subr.bf16.mxu0 %v3785
    %4249 = vmatpush1.bf16.msra.mxu0 %v3784
    %4250 = vmatprep.subr.bf16.mxu0 %v3793
    %4251 = vmatpush1.bf16.msra.mxu0 %v3792
    %4252 = vmatprep.subr.bf16.mxu0 %v3801
    %4253 = vmatpush1.bf16.msra.mxu0 %v3800
    %4254 = vmatprep.subr.bf16.mxu0 %v3809
    %4255 = vmatpush1.bf16.msra.mxu0 %v3808
    %4256 = vmatprep.subr.bf16.mxu0 %v3817
    %4257 = vmatpush1.bf16.msra.mxu0 %v3816
    %4258 = vmatprep.subr.bf16.mxu0 %v3825
    %4259 = vmatpush1.bf16.msra.mxu0 %v3824
    %4260 = vmatprep.subr.bf16.mxu0 %v3833
    %4261 = vmatpush1.bf16.msra.mxu0 %v3832
    %4262 = vmatprep.subr.bf16.mxu0 %v3841
    %4263 = vmatpush1.bf16.msra.mxu0 %v3840
    %4264 = vmatprep.mubr.bf16.mxu0 %v2896
    %4265 = vmatmul.mubr.bf16.gmra.mrb[0].mxu0 %v2895
    %v4266 = vpop.f32.mrb[0].mxu0
    %v4267 = vadd.f32 0.0, %v4266
    %v4268 = vpop.f32.mrb[0].mxu0
    %v4269 = vadd.f32 0.0, %v4268
    %v4270 = vpop.f32.mrb[0].mxu0
    %v4271 = vadd.f32 0.0, %v4270
    %v4272 = vpop.f32.mrb[0].mxu0
    %v4273 = vadd.f32 0.0, %v4272
    %4274 = vmatprep.mubr.bf16.mxu0 %v2900
    %4275 = vmatmul.mubr.bf16.gmra.mrb[0].mxu0 %v2899
    %v4276 = vpop.f32.mrb[0].mxu0
    %v4277 = vadd.f32 0.0, %v4276
    %v4278 = vpop.f32.mrb[0].mxu0
    %v4279 = vadd.f32 0.0, %v4278
    %v4280 = vpop.f32.mrb[0].mxu0
    %v4281 = vadd.f32 0.0, %v4280
    %v4282 = vpop.f32.mrb[0].mxu0
    %v4283 = vadd.f32 0.0, %v4282
    %4284 = vmatprep.mubr.bf16.mxu0 %v2904
    %4285 = vmatmul.mubr.bf16.gmra.mrb[0].mxu0 %v2903
    %v4286 = vpop.f32.mrb[0].mxu0
    %v4287 = vadd.f32 0.0, %v4286
    %v4288 = vpop.f32.mrb[0].mxu0
    %v4289 = vadd.f32 0.0, %v4288
    %v4290 = vpop.f32.mrb[0].mxu0
    %v4291 = vadd.f32 0.0, %v4290
    %v4292 = vpop.f32.mrb[0].mxu0
    %v4293 = vadd.f32 0.0, %v4292
    %4294 = vmatprep.mubr.bf16.mxu0 %v2908
    %4295 = vmatmul.mubr.bf16.gmra.mrb[0].mxu0 %v2907
    %v4296 = vpop.f32.mrb[0].mxu0
    %v4297 = vadd.f32 0.0, %v4296
    %v4298 = vpop.f32.mrb[0].mxu0
    %v4299 = vadd.f32 0.0, %v4298
    %v4300 = vpop.f32.mrb[0].mxu0
    %v4301 = vadd.f32 0.0, %v4300
    %v4302 = vpop.f32.mrb[0].mxu0
    %v4303 = vadd.f32 0.0, %v4302
    %4304 = vdwg.mxu0
    %4305 = vmatprep.subr.bf16.mxu0 %v3849
    %4306 = vmatpush1.bf16.msra.mxu0 %v3848
    %4307 = vmatprep.subr.bf16.mxu0 %v3857
    %4308 = vmatpush1.bf16.msra.mxu0 %v3856
    %4309 = vmatprep.subr.bf16.mxu0 %v3865
    %4310 = vmatpush1.bf16.msra.mxu0 %v3864
    %4311 = vmatprep.subr.bf16.mxu0 %v3873
    %4312 = vmatpush1.bf16.msra.mxu0 %v3872
    %4313 = vmatprep.subr.bf16.mxu0 %v3881
    %4314 = vmatpush1.bf16.msra.mxu0 %v3880
    %4315 = vmatprep.subr.bf16.mxu0 %v3889
    %4316 = vmatpush1.bf16.msra.mxu0 %v3888
    %4317 = vmatprep.subr.bf16.mxu0 %v3897
    %4318 = vmatpush1.bf16.msra.mxu0 %v3896
    %4319 = vmatprep.subr.bf16.mxu0 %v3905
    %4320 = vmatpush1.bf16.msra.mxu0 %v3904
    %4321 = vmatprep.subr.bf16.mxu0 %v3913
    %4322 = vmatpush1.bf16.msra.mxu0 %v3912
    %4323 = vmatprep.subr.bf16.mxu0 %v3921
    %4324 = vmatpush1.bf16.msra.mxu0 %v3920
    %4325 = vmatprep.subr.bf16.mxu0 %v3929
    %4326 = vmatpush1.bf16.msra.mxu0 %v3928
    %4327 = vmatprep.subr.bf16.mxu0 %v3937
    %4328 = vmatpush1.bf16.msra.mxu0 %v3936
    %4329 = vmatprep.subr.bf16.mxu0 %v3945
    %4330 = vmatpush1.bf16.msra.mxu0 %v3944
    %4331 = vmatprep.subr.bf16.mxu0 %v3953
    %4332 = vmatpush1.bf16.msra.mxu0 %v3952
    %4333 = vmatprep.subr.bf16.mxu0 %v3961
    %4334 = vmatpush1.bf16.msra.mxu0 %v3960
    %4335 = vmatprep.subr.bf16.mxu0 %v3969
    %4336 = vmatpush1.bf16.msra.mxu0 %v3968
    %4337 = vmatprep.mubr.bf16.mxu0 %v2898
    %4338 = vmatmul.mubr.bf16.gmra.mrb[0].mxu0 %v2897
    %v4339 = vpop.f32.mrb[0].mxu0
    %v4340 = vadd.f32 %v4267, %v4339
    %v4341 = vpop.f32.mrb[0].mxu0
    %v4342 = vadd.f32 %v4269, %v4341
    %v4343 = vpop.f32.mrb[0].mxu0
    %v4344 = vadd.f32 %v4271, %v4343
    %v4345 = vpop.f32.mrb[0].mxu0
    %v4346 = vadd.f32 %v4273, %v4345
    %4347 = vmatprep.mubr.bf16.mxu0 %v2902
    %4348 = vmatmul.mubr.bf16.gmra.mrb[0].mxu0 %v2901
    %v4349 = vpop.f32.mrb[0].mxu0
    %v4350 = vadd.f32 %v4277, %v4349
    %v4351 = vpop.f32.mrb[0].mxu0
    %v4352 = vadd.f32 %v4279, %v4351
    %v4353 = vpop.f32.mrb[0].mxu0
    %v4354 = vadd.f32 %v4281, %v4353
    %v4355 = vpop.f32.mrb[0].mxu0
    %v4356 = vadd.f32 %v4283, %v4355
    %4357 = vmatprep.mubr.bf16.mxu0 %v2906
    %4358 = vmatmul.mubr.bf16.gmra.mrb[0].mxu0 %v2905
    %v4359 = vpop.f32.mrb[0].mxu0
    %v4360 = vadd.f32 %v4287, %v4359
    %v4361 = vpop.f32.mrb[0].mxu0
    %v4362 = vadd.f32 %v4289, %v4361
    %v4363 = vpop.f32.mrb[0].mxu0
    %v4364 = vadd.f32 %v4291, %v4363
    %v4365 = vpop.f32.mrb[0].mxu0
    %v4366 = vadd.f32 %v4293, %v4365
    %4367 = vmatprep.mubr.bf16.mxu0 %v2910
    %4368 = vmatmul.mubr.bf16.gmra.mrb[0].mxu0 %v2909
    %v4369 = vpop.f32.mrb[0].mxu0
    %v4370 = vadd.f32 %v4297, %v4369
    %v4371 = vpop.f32.mrb[0].mxu0
    %v4372 = vadd.f32 %v4299, %v4371
    %v4373 = vpop.f32.mrb[0].mxu0
    %v4374 = vadd.f32 %v4301, %v4373
    %v4375 = vpop.f32.mrb[0].mxu0
    %v4376 = vadd.f32 %v4303, %v4375
    %4377 = vdwg.mxu0
    %4378 = vmatprep.subr.bf16.mxu0 %v3723
    %4379 = vmatpush1.bf16.msra.mxu0 %v3722
    %4380 = vmatprep.subr.bf16.mxu0 %v3731
    %4381 = vmatpush1.bf16.msra.mxu0 %v3730
    %4382 = vmatprep.subr.bf16.mxu0 %v3739
    %4383 = vmatpush1.bf16.msra.mxu0 %v3738
    %4384 = vmatprep.subr.bf16.mxu0 %v3747
    %4385 = vmatpush1.bf16.msra.mxu0 %v3746
    %4386 = vmatprep.subr.bf16.mxu0 %v3755
    %4387 = vmatpush1.bf16.msra.mxu0 %v3754
    %4388 = vmatprep.subr.bf16.mxu0 %v3763
    %4389 = vmatpush1.bf16.msra.mxu0 %v3762
    %4390 = vmatprep.subr.bf16.mxu0 %v3771
    %4391 = vmatpush1.bf16.msra.mxu0 %v3770
    %4392 = vmatprep.subr.bf16.mxu0 %v3779
    %4393 = vmatpush1.bf16.msra.mxu0 %v3778
    %4394 = vmatprep.subr.bf16.mxu0 %v3787
    %4395 = vmatpush1.bf16.msra.mxu0 %v3786
    %4396 = vmatprep.subr.bf16.mxu0 %v3795
    %4397 = vmatpush1.bf16.msra.mxu0 %v3794
    %4398 = vmatprep.subr.bf16.mxu0 %v3803
    %4399 = vmatpush1.bf16.msra.mxu0 %v3802
    %4400 = vmatprep.subr.bf16.mxu0 %v3811
    %4401 = vmatpush1.bf16.msra.mxu0 %v3810
    %4402 = vmatprep.subr.bf16.mxu0 %v3819
    %4403 = vmatpush1.bf16.msra.mxu0 %v3818
    %4404 = vmatprep.subr.bf16.mxu0 %v3827
    %4405 = vmatpush1.bf16.msra.mxu0 %v3826
    %4406 = vmatprep.subr.bf16.mxu0 %v3835
    %4407 = vmatpush1.bf16.msra.mxu0 %v3834
    %4408 = vmatprep.subr.bf16.mxu0 %v3843
    %4409 = vmatpush1.bf16.msra.mxu0 %v3842
    %4410 = vmatprep.mubr.bf16.mxu0 %v2896
    %4411 = vmatmul.mubr.bf16.gmra.mrb[0].mxu0 %v2895
    %v4412 = vpop.f32.mrb[0].mxu0
    %v4413 = vadd.f32 0.0, %v4412
    %v4414 = vpop.f32.mrb[0].mxu0
    %v4415 = vadd.f32 0.0, %v4414
    %v4416 = vpop.f32.mrb[0].mxu0
    %v4417 = vadd.f32 0.0, %v4416
    %v4418 = vpop.f32.mrb[0].mxu0
    %v4419 = vadd.f32 0.0, %v4418
    %4420 = vmatprep.mubr.bf16.mxu0 %v2900
    %4421 = vmatmul.mubr.bf16.gmra.mrb[0].mxu0 %v2899
    %v4422 = vpop.f32.mrb[0].mxu0
    %v4423 = vadd.f32 0.0, %v4422
    %v4424 = vpop.f32.mrb[0].mxu0
    %v4425 = vadd.f32 0.0, %v4424
    %v4426 = vpop.f32.mrb[0].mxu0
    %v4427 = vadd.f32 0.0, %v4426
    %v4428 = vpop.f32.mrb[0].mxu0
    %v4429 = vadd.f32 0.0, %v4428
    %4430 = vmatprep.mubr.bf16.mxu0 %v2904
    %4431 = vmatmul.mubr.bf16.gmra.mrb[0].mxu0 %v2903
    %v4432 = vpop.f32.mrb[0].mxu0
    %v4433 = vadd.f32 0.0, %v4432
    %v4434 = vpop.f32.mrb[0].mxu0
    %v4435 = vadd.f32 0.0, %v4434
    %v4436 = vpop.f32.mrb[0].mxu0
    %v4437 = vadd.f32 0.0, %v4436
    %v4438 = vpop.f32.mrb[0].mxu0
    %v4439 = vadd.f32 0.0, %v4438
    %4440 = vmatprep.mubr.bf16.mxu0 %v2908
    %4441 = vmatmul.mubr.bf16.gmra.mrb[0].mxu0 %v2907
    %v4442 = vpop.f32.mrb[0].mxu0
    %v4443 = vadd.f32 0.0, %v4442
    %v4444 = vpop.f32.mrb[0].mxu0
    %v4445 = vadd.f32 0.0, %v4444
    %v4446 = vpop.f32.mrb[0].mxu0
    %v4447 = vadd.f32 0.0, %v4446
    %v4448 = vpop.f32.mrb[0].mxu0
    %v4449 = vadd.f32 0.0, %v4448
    %4450 = vdwg.mxu0
    %4451 = vmatprep.subr.bf16.mxu0 %v3851
    %4452 = vmatpush1.bf16.msra.mxu0 %v3850
    %4453 = vmatprep.subr.bf16.mxu0 %v3859
    %4454 = vmatpush1.bf16.msra.mxu0 %v3858
    %4455 = vmatprep.subr.bf16.mxu0 %v3867
    %4456 = vmatpush1.bf16.msra.mxu0 %v3866
    %4457 = vmatprep.subr.bf16.mxu0 %v3875
    %4458 = vmatpush1.bf16.msra.mxu0 %v3874
    %4459 = vmatprep.subr.bf16.mxu0 %v3883
    %4460 = vmatpush1.bf16.msra.mxu0 %v3882
    %4461 = vmatprep.subr.bf16.mxu0 %v3891
    %4462 = vmatpush1.bf16.msra.mxu0 %v3890
    %4463 = vmatprep.subr.bf16.mxu0 %v3899
    %4464 = vmatpush1.bf16.msra.mxu0 %v3898
    %4465 = vmatprep.subr.bf16.mxu0 %v3907
    %4466 = vmatpush1.bf16.msra.mxu0 %v3906
    %4467 = vmatprep.subr.bf16.mxu0 %v3915
    %4468 = vmatpush1.bf16.msra.mxu0 %v3914
    %4469 = vmatprep.subr.bf16.mxu0 %v3923
    %4470 = vmatpush1.bf16.msra.mxu0 %v3922
    %4471 = vmatprep.subr.bf16.mxu0 %v3931
    %4472 = vmatpush1.bf16.msra.mxu0 %v3930
    %4473 = vmatprep.subr.bf16.mxu0 %v3939
    %4474 = vmatpush1.bf16.msra.mxu0 %v3938
    %4475 = vmatprep.subr.bf16.mxu0 %v3947
    %4476 = vmatpush1.bf16.msra.mxu0 %v3946
    %4477 = vmatprep.subr.bf16.mxu0 %v3955
    %4478 = vmatpush1.bf16.msra.mxu0 %v3954
    %4479 = vmatprep.subr.bf16.mxu0 %v3963
    %4480 = vmatpush1.bf16.msra.mxu0 %v3962
    %4481 = vmatprep.subr.bf16.mxu0 %v3971
    %4482 = vmatpush1.bf16.msra.mxu0 %v3970
    %4483 = vmatprep.mubr.bf16.mxu0 %v2898
    %4484 = vmatmul.mubr.bf16.gmra.mrb[0].mxu0 %v2897
    %v4485 = vpop.f32.mrb[0].mxu0
    %v4486 = vadd.f32 %v4413, %v4485
    %v4487 = vpop.f32.mrb[0].mxu0
    %v4488 = vadd.f32 %v4415, %v4487
    %v4489 = vpop.f32.mrb[0].mxu0
    %v4490 = vadd.f32 %v4417, %v4489
    %v4491 = vpop.f32.mrb[0].mxu0
    %v4492 = vadd.f32 %v4419, %v4491
    %4493 = vmatprep.mubr.bf16.mxu0 %v2902
    %4494 = vmatmul.mubr.bf16.gmra.mrb[0].mxu0 %v2901
    %v4495 = vpop.f32.mrb[0].mxu0
    %v4496 = vadd.f32 %v4423, %v4495
    %v4497 = vpop.f32.mrb[0].mxu0
    %v4498 = vadd.f32 %v4425, %v4497
    %v4499 = vpop.f32.mrb[0].mxu0
    %v4500 = vadd.f32 %v4427, %v4499
    %v4501 = vpop.f32.mrb[0].mxu0
    %v4502 = vadd.f32 %v4429, %v4501
    %4503 = vmatprep.mubr.bf16.mxu0 %v2906
    %4504 = vmatmul.mubr.bf16.gmra.mrb[0].mxu0 %v2905
    %v4505 = vpop.f32.mrb[0].mxu0
    %v4506 = vadd.f32 %v4433, %v4505
    %v4507 = vpop.f32.mrb[0].mxu0
    %v4508 = vadd.f32 %v4435, %v4507
    %v4509 = vpop.f32.mrb[0].mxu0
    %v4510 = vadd.f32 %v4437, %v4509
    %v4511 = vpop.f32.mrb[0].mxu0
    %v4512 = vadd.f32 %v4439, %v4511
    %4513 = vmatprep.mubr.bf16.mxu0 %v2910
    %4514 = vmatmul.mubr.bf16.gmra.mrb[0].mxu0 %v2909
    %v4515 = vpop.f32.mrb[0].mxu0
    %v4516 = vadd.f32 %v4443, %v4515
    %v4517 = vpop.f32.mrb[0].mxu0
    %v4518 = vadd.f32 %v4445, %v4517
    %v4519 = vpop.f32.mrb[0].mxu0
    %v4520 = vadd.f32 %v4447, %v4519
    %v4521 = vpop.f32.mrb[0].mxu0
    %v4522 = vadd.f32 %v4449, %v4521
    %4523 = vdwg.mxu0
    %4524 = vmatprep.subr.bf16.mxu0 %v3725
    %4525 = vmatpush1.bf16.msra.mxu0 %v3724
    %4526 = vmatprep.subr.bf16.mxu0 %v3733
    %4527 = vmatpush1.bf16.msra.mxu0 %v3732
    %4528 = vmatprep.subr.bf16.mxu0 %v3741
    %4529 = vmatpush1.bf16.msra.mxu0 %v3740
    %4530 = vmatprep.subr.bf16.mxu0 %v3749
    %4531 = vmatpush1.bf16.msra.mxu0 %v3748
    %4532 = vmatprep.subr.bf16.mxu0 %v3757
    %4533 = vmatpush1.bf16.msra.mxu0 %v3756
    %4534 = vmatprep.subr.bf16.mxu0 %v3765
    %4535 = vmatpush1.bf16.msra.mxu0 %v3764
    %4536 = vmatprep.subr.bf16.mxu0 %v3773
    %4537 = vmatpush1.bf16.msra.mxu0 %v3772
    %4538 = vmatprep.subr.bf16.mxu0 %v3781
    %4539 = vmatpush1.bf16.msra.mxu0 %v3780
    %4540 = vmatprep.subr.bf16.mxu0 %v3789
    %4541 = vmatpush1.bf16.msra.mxu0 %v3788
    %4542 = vmatprep.subr.bf16.mxu0 %v3797
    %4543 = vmatpush1.bf16.msra.mxu0 %v3796
    %4544 = vmatprep.subr.bf16.mxu0 %v3805
    %4545 = vmatpush1.bf16.msra.mxu0 %v3804
    %4546 = vmatprep.subr.bf16.mxu0 %v3813
    %4547 = vmatpush1.bf16.msra.mxu0 %v3812
    %4548 = vmatprep.subr.bf16.mxu0 %v3821
    %4549 = vmatpush1.bf16.msra.mxu0 %v3820
    %4550 = vmatprep.subr.bf16.mxu0 %v3829
    %4551 = vmatpush1.bf16.msra.mxu0 %v3828
    %4552 = vmatprep.subr.bf16.mxu0 %v3837
    %4553 = vmatpush1.bf16.msra.mxu0 %v3836
    %4554 = vmatprep.subr.bf16.mxu0 %v3845
    %4555 = vmatpush1.bf16.msra.mxu0 %v3844
    %4556 = vmatprep.mubr.bf16.mxu0 %v2896
    %4557 = vmatmul.mubr.bf16.gmra.mrb[0].mxu0 %v2895
    %v4558 = vpop.f32.mrb[0].mxu0
    %v4559 = vadd.f32 0.0, %v4558
    %v4560 = vpop.f32.mrb[0].mxu0
    %v4561 = vadd.f32 0.0, %v4560
    %v4562 = vpop.f32.mrb[0].mxu0
    %v4563 = vadd.f32 0.0, %v4562
    %v4564 = vpop.f32.mrb[0].mxu0
    %v4565 = vadd.f32 0.0, %v4564
    %4566 = vmatprep.mubr.bf16.mxu0 %v2900
    %4567 = vmatmul.mubr.bf16.gmra.mrb[0].mxu0 %v2899
    %v4568 = vpop.f32.mrb[0].mxu0
    %v4569 = vadd.f32 0.0, %v4568
    %v4570 = vpop.f32.mrb[0].mxu0
    %v4571 = vadd.f32 0.0, %v4570
    %v4572 = vpop.f32.mrb[0].mxu0
    %v4573 = vadd.f32 0.0, %v4572
    %v4574 = vpop.f32.mrb[0].mxu0
    %v4575 = vadd.f32 0.0, %v4574
    %4576 = vmatprep.mubr.bf16.mxu0 %v2904
    %4577 = vmatmul.mubr.bf16.gmra.mrb[0].mxu0 %v2903
    %v4578 = vpop.f32.mrb[0].mxu0
    %v4579 = vadd.f32 0.0, %v4578
    %v4580 = vpop.f32.mrb[0].mxu0
    %v4581 = vadd.f32 0.0, %v4580
    %v4582 = vpop.f32.mrb[0].mxu0
    %v4583 = vadd.f32 0.0, %v4582
    %v4584 = vpop.f32.mrb[0].mxu0
    %v4585 = vadd.f32 0.0, %v4584
    %4586 = vmatprep.mubr.bf16.mxu0 %v2908
    %4587 = vmatmul.mubr.bf16.gmra.mrb[0].mxu0 %v2907
    %v4588 = vpop.f32.mrb[0].mxu0
    %v4589 = vadd.f32 0.0, %v4588
    %v4590 = vpop.f32.mrb[0].mxu0
    %v4591 = vadd.f32 0.0, %v4590
    %v4592 = vpop.f32.mrb[0].mxu0
    %v4593 = vadd.f32 0.0, %v4592
    %v4594 = vpop.f32.mrb[0].mxu0
    %v4595 = vadd.f32 0.0, %v4594
    %4596 = vdwg.mxu0
    %4597 = vmatprep.subr.bf16.mxu0 %v3853
    %4598 = vmatpush1.bf16.msra.mxu0 %v3852
    %4599 = vmatprep.subr.bf16.mxu0 %v3861
    %4600 = vmatpush1.bf16.msra.mxu0 %v3860
    %4601 = vmatprep.subr.bf16.mxu0 %v3869
    %4602 = vmatpush1.bf16.msra.mxu0 %v3868
    %4603 = vmatprep.subr.bf16.mxu0 %v3877
    %4604 = vmatpush1.bf16.msra.mxu0 %v3876
    %4605 = vmatprep.subr.bf16.mxu0 %v3885
    %4606 = vmatpush1.bf16.msra.mxu0 %v3884
    %4607 = vmatprep.subr.bf16.mxu0 %v3893
    %4608 = vmatpush1.bf16.msra.mxu0 %v3892
    %4609 = vmatprep.subr.bf16.mxu0 %v3901
    %4610 = vmatpush1.bf16.msra.mxu0 %v3900
    %4611 = vmatprep.subr.bf16.mxu0 %v3909
    %4612 = vmatpush1.bf16.msra.mxu0 %v3908
    %4613 = vmatprep.subr.bf16.mxu0 %v3917
    %4614 = vmatpush1.bf16.msra.mxu0 %v3916
    %4615 = vmatprep.subr.bf16.mxu0 %v3925
    %4616 = vmatpush1.bf16.msra.mxu0 %v3924
    %4617 = vmatprep.subr.bf16.mxu0 %v3933
    %4618 = vmatpush1.bf16.msra.mxu0 %v3932
    %4619 = vmatprep.subr.bf16.mxu0 %v3941
    %4620 = vmatpush1.bf16.msra.mxu0 %v3940
    %4621 = vmatprep.subr.bf16.mxu0 %v3949
    %4622 = vmatpush1.bf16.msra.mxu0 %v3948
    %4623 = vmatprep.subr.bf16.mxu0 %v3957
    %4624 = vmatpush1.bf16.msra.mxu0 %v3956
    %4625 = vmatprep.subr.bf16.mxu0 %v3965
    %4626 = vmatpush1.bf16.msra.mxu0 %v3964
    %4627 = vmatprep.subr.bf16.mxu0 %v3973
    %4628 = vmatpush1.bf16.msra.mxu0 %v3972
    %4629 = vmatprep.mubr.bf16.mxu0 %v2898
    %4630 = vmatmul.mubr.bf16.gmra.mrb[0].mxu0 %v2897
    %v4631 = vpop.f32.mrb[0].mxu0
    %v4632 = vadd.f32 %v4559, %v4631
    %v4633 = vpop.f32.mrb[0].mxu0
    %v4634 = vadd.f32 %v4561, %v4633
    %v4635 = vpop.f32.mrb[0].mxu0
    %v4636 = vadd.f32 %v4563, %v4635
    %v4637 = vpop.f32.mrb[0].mxu0
    %v4638 = vadd.f32 %v4565, %v4637
    %4639 = vmatprep.mubr.bf16.mxu0 %v2902
    %4640 = vmatmul.mubr.bf16.gmra.mrb[0].mxu0 %v2901
    %v4641 = vpop.f32.mrb[0].mxu0
    %v4642 = vadd.f32 %v4569, %v4641
    %v4643 = vpop.f32.mrb[0].mxu0
    %v4644 = vadd.f32 %v4571, %v4643
    %v4645 = vpop.f32.mrb[0].mxu0
    %v4646 = vadd.f32 %v4573, %v4645
    %v4647 = vpop.f32.mrb[0].mxu0
    %v4648 = vadd.f32 %v4575, %v4647
    %4649 = vmatprep.mubr.bf16.mxu0 %v2906
    %4650 = vmatmul.mubr.bf16.gmra.mrb[0].mxu0 %v2905
    %v4651 = vpop.f32.mrb[0].mxu0
    %v4652 = vadd.f32 %v4579, %v4651
    %v4653 = vpop.f32.mrb[0].mxu0
    %v4654 = vadd.f32 %v4581, %v4653
    %v4655 = vpop.f32.mrb[0].mxu0
    %v4656 = vadd.f32 %v4583, %v4655
    %v4657 = vpop.f32.mrb[0].mxu0
    %v4658 = vadd.f32 %v4585, %v4657
    %4659 = vmatprep.mubr.bf16.mxu0 %v2910
    %4660 = vmatmul.mubr.bf16.gmra.mrb[0].mxu0 %v2909
    %v4661 = vpop.f32.mrb[0].mxu0
    %v4662 = vadd.f32 %v4589, %v4661
    %v4663 = vpop.f32.mrb[0].mxu0
    %v4664 = vadd.f32 %v4591, %v4663
    %v4665 = vpop.f32.mrb[0].mxu0
    %v4666 = vadd.f32 %v4593, %v4665
    %v4667 = vpop.f32.mrb[0].mxu0
    %v4668 = vadd.f32 %v4595, %v4667
    %4669 = vdwg.mxu0
    %4670 = vmatprep.subr.bf16.mxu0 %v3727
    %4671 = vmatpush1.bf16.msra.mxu0 %v3726
    %4672 = vmatprep.subr.bf16.mxu0 %v3735
    %4673 = vmatpush1.bf16.msra.mxu0 %v3734
    %4674 = vmatprep.subr.bf16.mxu0 %v3743
    %4675 = vmatpush1.bf16.msra.mxu0 %v3742
    %4676 = vmatprep.subr.bf16.mxu0 %v3751
    %4677 = vmatpush1.bf16.msra.mxu0 %v3750
    %4678 = vmatprep.subr.bf16.mxu0 %v3759
    %4679 = vmatpush1.bf16.msra.mxu0 %v3758
    %4680 = vmatprep.subr.bf16.mxu0 %v3767
    %4681 = vmatpush1.bf16.msra.mxu0 %v3766
    %4682 = vmatprep.subr.bf16.mxu0 %v3775
    %4683 = vmatpush1.bf16.msra.mxu0 %v3774
    %4684 = vmatprep.subr.bf16.mxu0 %v3783
    %4685 = vmatpush1.bf16.msra.mxu0 %v3782
    %4686 = vmatprep.subr.bf16.mxu0 %v3791
    %4687 = vmatpush1.bf16.msra.mxu0 %v3790
    %4688 = vmatprep.subr.bf16.mxu0 %v3799
    %4689 = vmatpush1.bf16.msra.mxu0 %v3798
    %4690 = vmatprep.subr.bf16.mxu0 %v3807
    %4691 = vmatpush1.bf16.msra.mxu0 %v3806
    %4692 = vmatprep.subr.bf16.mxu0 %v3815
    %4693 = vmatpush1.bf16.msra.mxu0 %v3814
    %4694 = vmatprep.subr.bf16.mxu0 %v3823
    %4695 = vmatpush1.bf16.msra.mxu0 %v3822
    %4696 = vmatprep.subr.bf16.mxu0 %v3831
    %4697 = vmatpush1.bf16.msra.mxu0 %v3830
    %4698 = vmatprep.subr.bf16.mxu0 %v3839
    %4699 = vmatpush1.bf16.msra.mxu0 %v3838
    %4700 = vmatprep.subr.bf16.mxu0 %v3847
    %4701 = vmatpush1.bf16.msra.mxu0 %v3846
    %4702 = vmatprep.mubr.bf16.mxu0 %v2896
    %4703 = vmatmul.mubr.bf16.gmra.mrb[0].mxu0 %v2895
    %v4704 = vpop.f32.mrb[0].mxu0
    %v4705 = vadd.f32 0.0, %v4704
    %v4706 = vpop.f32.mrb[0].mxu0
    %v4707 = vadd.f32 0.0, %v4706
    %v4708 = vpop.f32.mrb[0].mxu0
    %v4709 = vadd.f32 0.0, %v4708
    %v4710 = vpop.f32.mrb[0].mxu0
    %v4711 = vadd.f32 0.0, %v4710
    %4712 = vmatprep.mubr.bf16.mxu0 %v2900
    %4713 = vmatmul.mubr.bf16.gmra.mrb[0].mxu0 %v2899
    %v4714 = vpop.f32.mrb[0].mxu0
    %v4715 = vadd.f32 0.0, %v4714
    %v4716 = vpop.f32.mrb[0].mxu0
    %v4717 = vadd.f32 0.0, %v4716
    %v4718 = vpop.f32.mrb[0].mxu0
    %v4719 = vadd.f32 0.0, %v4718
    %v4720 = vpop.f32.mrb[0].mxu0
    %v4721 = vadd.f32 0.0, %v4720
    %4722 = vmatprep.mubr.bf16.mxu0 %v2904
    %4723 = vmatmul.mubr.bf16.gmra.mrb[0].mxu0 %v2903
    %v4724 = vpop.f32.mrb[0].mxu0
    %v4725 = vadd.f32 0.0, %v4724
    %v4726 = vpop.f32.mrb[0].mxu0
    %v4727 = vadd.f32 0.0, %v4726
    %v4728 = vpop.f32.mrb[0].mxu0
    %v4729 = vadd.f32 0.0, %v4728
    %v4730 = vpop.f32.mrb[0].mxu0
    %v4731 = vadd.f32 0.0, %v4730
    %4732 = vmatprep.mubr.bf16.mxu0 %v2908
    %4733 = vmatmul.mubr.bf16.gmra.mrb[0].mxu0 %v2907
    %v4734 = vpop.f32.mrb[0].mxu0
    %v4735 = vadd.f32 0.0, %v4734
    %v4736 = vpop.f32.mrb[0].mxu0
    %v4737 = vadd.f32 0.0, %v4736
    %v4738 = vpop.f32.mrb[0].mxu0
    %v4739 = vadd.f32 0.0, %v4738
    %v4740 = vpop.f32.mrb[0].mxu0
    %v4741 = vadd.f32 0.0, %v4740
    %4742 = vdwg.mxu0
    %4743 = vmatprep.subr.bf16.mxu0 %v3855
    %4744 = vmatpush1.bf16.msra.mxu0 %v3854
    %4745 = vmatprep.subr.bf16.mxu0 %v3863
    %4746 = vmatpush1.bf16.msra.mxu0 %v3862
    %4747 = vmatprep.subr.bf16.mxu0 %v3871
    %4748 = vmatpush1.bf16.msra.mxu0 %v3870
    %4749 = vmatprep.subr.bf16.mxu0 %v3879
    %4750 = vmatpush1.bf16.msra.mxu0 %v3878
    %4751 = vmatprep.subr.bf16.mxu0 %v3887
    %4752 = vmatpush1.bf16.msra.mxu0 %v3886
    %4753 = vmatprep.subr.bf16.mxu0 %v3895
    %4754 = vmatpush1.bf16.msra.mxu0 %v3894
    %4755 = vmatprep.subr.bf16.mxu0 %v3903
    %4756 = vmatpush1.bf16.msra.mxu0 %v3902
    %4757 = vmatprep.subr.bf16.mxu0 %v3911
    %4758 = vmatpush1.bf16.msra.mxu0 %v3910
    %4759 = vmatprep.subr.bf16.mxu0 %v3919
    %4760 = vmatpush1.bf16.msra.mxu0 %v3918
    %4761 = vmatprep.subr.bf16.mxu0 %v3927
    %4762 = vmatpush1.bf16.msra.mxu0 %v3926
    %4763 = vmatprep.subr.bf16.mxu0 %v3935
    %4764 = vmatpush1.bf16.msra.mxu0 %v3934
    %4765 = vmatprep.subr.bf16.mxu0 %v3943
    %4766 = vmatpush1.bf16.msra.mxu0 %v3942
    %4767 = vmatprep.subr.bf16.mxu0 %v3951
    %4768 = vmatpush1.bf16.msra.mxu0 %v3950
    %4769 = vmatprep.subr.bf16.mxu0 %v3959
    %4770 = vmatpush1.bf16.msra.mxu0 %v3958
    %4771 = vmatprep.subr.bf16.mxu0 %v3967
    %4772 = vmatpush1.bf16.msra.mxu0 %v3966
    %4773 = vmatprep.subr.bf16.mxu0 %v3975
    %4774 = vmatpush1.bf16.msra.mxu0 %v3974
    %4775 = vmatprep.mubr.bf16.mxu0 %v2898
    %4776 = vmatmul.mubr.bf16.gmra.mrb[0].mxu0 %v2897
    %v4777 = vpop.f32.mrb[0].mxu0
    %v4778 = vadd.f32 %v4705, %v4777
    %v4779 = vpop.f32.mrb[0].mxu0
    %v4780 = vadd.f32 %v4707, %v4779
    %v4781 = vpop.f32.mrb[0].mxu0
    %v4782 = vadd.f32 %v4709, %v4781
    %v4783 = vpop.f32.mrb[0].mxu0
    %v4784 = vadd.f32 %v4711, %v4783
    %4785 = vmatprep.mubr.bf16.mxu0 %v2902
    %4786 = vmatmul.mubr.bf16.gmra.mrb[0].mxu0 %v2901
    %v4787 = vpop.f32.mrb[0].mxu0
    %v4788 = vadd.f32 %v4715, %v4787
    %v4789 = vpop.f32.mrb[0].mxu0
    %v4790 = vadd.f32 %v4717, %v4789
    %v4791 = vpop.f32.mrb[0].mxu0
    %v4792 = vadd.f32 %v4719, %v4791
    %v4793 = vpop.f32.mrb[0].mxu0
    %v4794 = vadd.f32 %v4721, %v4793
    %4795 = vmatprep.mubr.bf16.mxu0 %v2906
    %4796 = vmatmul.mubr.bf16.gmra.mrb[0].mxu0 %v2905
    %v4797 = vpop.f32.mrb[0].mxu0
    %v4798 = vadd.f32 %v4725, %v4797
    %v4799 = vpop.f32.mrb[0].mxu0
    %v4800 = vadd.f32 %v4727, %v4799
    %v4801 = vpop.f32.mrb[0].mxu0
    %v4802 = vadd.f32 %v4729, %v4801
    %v4803 = vpop.f32.mrb[0].mxu0
    %v4804 = vadd.f32 %v4731, %v4803
    %4805 = vmatprep.mubr.bf16.mxu0 %v2910
    %4806 = vmatmul.mubr.bf16.gmra.mrb[0].mxu0 %v2909
    %v4807 = vpop.f32.mrb[0].mxu0
    %v4808 = vadd.f32 %v4735, %v4807
    %v4809 = vpop.f32.mrb[0].mxu0
    %v4810 = vadd.f32 %v4737, %v4809
    %v4811 = vpop.f32.mrb[0].mxu0
    %v4812 = vadd.f32 %v4739, %v4811
    %v4813 = vpop.f32.mrb[0].mxu0
    %v4814 = vadd.f32 %v4741, %v4813
    %4815 = vdwg.mxu0
    %v5072 = vunpack.c.l.b16 %v2045
    %v5073 = vunpack.c.h.b16 %v2045
    %v5074 = vunpack.c.l.b16 %v2046
    %v5075 = vunpack.c.h.b16 %v2046
    %v5076 = vunpack.c.l.b16 %v2047
    %v5077 = vunpack.c.h.b16 %v2047
    %v5078 = vunpack.c.l.b16 %v2048
    %v5079 = vunpack.c.h.b16 %v2048
    %v5080 = vunpack.c.l.b16 %v2049
    %v5081 = vunpack.c.h.b16 %v2049
    %v5082 = vunpack.c.l.b16 %v2050
    %v5083 = vunpack.c.h.b16 %v2050
    %v5084 = vunpack.c.l.b16 %v2051
    %v5085 = vunpack.c.h.b16 %v2051
    %v5086 = vunpack.c.l.b16 %v2052
    %v5087 = vunpack.c.h.b16 %v2052
    %v5088 = vunpack.c.l.b16 %v2053
    %v5089 = vunpack.c.h.b16 %v2053
    %v5090 = vunpack.c.l.b16 %v2054
    %v5091 = vunpack.c.h.b16 %v2054
    %v5092 = vunpack.c.l.b16 %v2055
    %v5093 = vunpack.c.h.b16 %v2055
    %v5094 = vunpack.c.l.b16 %v2056
    %v5095 = vunpack.c.h.b16 %v2056
    %v5096 = vunpack.c.l.b16 %v2057
    %v5097 = vunpack.c.h.b16 %v2057
    %v5098 = vunpack.c.l.b16 %v2058
    %v5099 = vunpack.c.h.b16 %v2058
    %v5100 = vunpack.c.l.b16 %v2059
    %v5101 = vunpack.c.h.b16 %v2059
    %v5102 = vunpack.c.l.b16 %v2060
    %v5103 = vunpack.c.h.b16 %v2060
    %v5104 = vunpack.c.l.b16 %v2061
    %v5105 = vunpack.c.h.b16 %v2061
    %v5106 = vunpack.c.l.b16 %v2062
    %v5107 = vunpack.c.h.b16 %v2062
    %v5108 = vunpack.c.l.b16 %v2063
    %v5109 = vunpack.c.h.b16 %v2063
    %v5110 = vunpack.c.l.b16 %v2064
    %v5111 = vunpack.c.h.b16 %v2064
    %v5112 = vunpack.c.l.b16 %v2065
    %v5113 = vunpack.c.h.b16 %v2065
    %v5114 = vunpack.c.l.b16 %v2066
    %v5115 = vunpack.c.h.b16 %v2066
    %v5116 = vunpack.c.l.b16 %v2067
    %v5117 = vunpack.c.h.b16 %v2067
    %v5118 = vunpack.c.l.b16 %v2068
    %v5119 = vunpack.c.h.b16 %v2068
    %v5120 = vunpack.c.l.b16 %v2069
    %v5121 = vunpack.c.h.b16 %v2069
    %v5122 = vunpack.c.l.b16 %v2070
    %v5123 = vunpack.c.h.b16 %v2070
    %v5124 = vunpack.c.l.b16 %v2071
    %v5125 = vunpack.c.h.b16 %v2071
    %v5126 = vunpack.c.l.b16 %v2072
    %v5127 = vunpack.c.h.b16 %v2072
    %v5128 = vunpack.c.l.b16 %v2073
    %v5129 = vunpack.c.h.b16 %v2073
    %v5130 = vunpack.c.l.b16 %v2074
    %v5131 = vunpack.c.h.b16 %v2074
    %v5132 = vunpack.c.l.b16 %v2075
    %v5133 = vunpack.c.h.b16 %v2075
    %v5134 = vunpack.c.l.b16 %v2076
    %v5135 = vunpack.c.h.b16 %v2076
    %v5136 = vunpack.c.l.b16 %v2077
    %v5137 = vunpack.c.h.b16 %v2077
    %v5138 = vunpack.c.l.b16 %v2078
    %v5139 = vunpack.c.h.b16 %v2078
    %v5140 = vunpack.c.l.b16 %v2079
    %v5141 = vunpack.c.h.b16 %v2079
    %v5142 = vunpack.c.l.b16 %v2080
    %v5143 = vunpack.c.h.b16 %v2080
    %v5144 = vunpack.c.l.b16 %v2081
    %v5145 = vunpack.c.h.b16 %v2081
    %v5146 = vunpack.c.l.b16 %v2082
    %v5147 = vunpack.c.h.b16 %v2082
    %v5148 = vunpack.c.l.b16 %v2083
    %v5149 = vunpack.c.h.b16 %v2083
    %v5150 = vunpack.c.l.b16 %v2084
    %v5151 = vunpack.c.h.b16 %v2084
    %v5152 = vunpack.c.l.b16 %v2085
    %v5153 = vunpack.c.h.b16 %v2085
    %v5154 = vunpack.c.l.b16 %v2086
    %v5155 = vunpack.c.h.b16 %v2086
    %v5156 = vunpack.c.l.b16 %v2087
    %v5157 = vunpack.c.h.b16 %v2087
    %v5158 = vunpack.c.l.b16 %v2088
    %v5159 = vunpack.c.h.b16 %v2088
    %v5160 = vunpack.c.l.b16 %v2089
    %v5161 = vunpack.c.h.b16 %v2089
    %v5162 = vunpack.c.l.b16 %v2090
    %v5163 = vunpack.c.h.b16 %v2090
    %v5164 = vunpack.c.l.b16 %v2091
    %v5165 = vunpack.c.h.b16 %v2091
    %v5166 = vunpack.c.l.b16 %v2092
    %v5167 = vunpack.c.h.b16 %v2092
    %v5168 = vunpack.c.l.b16 %v2093
    %v5169 = vunpack.c.h.b16 %v2093
    %v5170 = vunpack.c.l.b16 %v2094
    %v5171 = vunpack.c.h.b16 %v2094
    %v5172 = vunpack.c.l.b16 %v2095
    %v5173 = vunpack.c.h.b16 %v2095
    %v5174 = vunpack.c.l.b16 %v2096
    %v5175 = vunpack.c.h.b16 %v2096
    %v5176 = vunpack.c.l.b16 %v2097
    %v5177 = vunpack.c.h.b16 %v2097
    %v5178 = vunpack.c.l.b16 %v2098
    %v5179 = vunpack.c.h.b16 %v2098
    %v5180 = vunpack.c.l.b16 %v2099
    %v5181 = vunpack.c.h.b16 %v2099
    %v5182 = vunpack.c.l.b16 %v2100
    %v5183 = vunpack.c.h.b16 %v2100
    %v5184 = vunpack.c.l.b16 %v2101
    %v5185 = vunpack.c.h.b16 %v2101
    %v5186 = vunpack.c.l.b16 %v2102
    %v5187 = vunpack.c.h.b16 %v2102
    %v5188 = vunpack.c.l.b16 %v2103
    %v5189 = vunpack.c.h.b16 %v2103
    %v5190 = vunpack.c.l.b16 %v2104
    %v5191 = vunpack.c.h.b16 %v2104
    %v5192 = vunpack.c.l.b16 %v2105
    %v5193 = vunpack.c.h.b16 %v2105
    %v5194 = vunpack.c.l.b16 %v2106
    %v5195 = vunpack.c.h.b16 %v2106
    %v5196 = vunpack.c.l.b16 %v2107
    %v5197 = vunpack.c.h.b16 %v2107
    %v5198 = vunpack.c.l.b16 %v2108
    %v5199 = vunpack.c.h.b16 %v2108
    %v5200 = vunpack.c.l.b16 %v2109
    %v5201 = vunpack.c.h.b16 %v2109
    %v5202 = vunpack.c.l.b16 %v2110
    %v5203 = vunpack.c.h.b16 %v2110
    %v5204 = vunpack.c.l.b16 %v2111
    %v5205 = vunpack.c.h.b16 %v2111
    %v5206 = vunpack.c.l.b16 %v2112
    %v5207 = vunpack.c.h.b16 %v2112
    %v5208 = vunpack.c.l.b16 %v2113
    %v5209 = vunpack.c.h.b16 %v2113
    %v5210 = vunpack.c.l.b16 %v2114
    %v5211 = vunpack.c.h.b16 %v2114
    %v5212 = vunpack.c.l.b16 %v2115
    %v5213 = vunpack.c.h.b16 %v2115
    %v5214 = vunpack.c.l.b16 %v2116
    %v5215 = vunpack.c.h.b16 %v2116
    %v5216 = vunpack.c.l.b16 %v2117
    %v5217 = vunpack.c.h.b16 %v2117
    %v5218 = vunpack.c.l.b16 %v2118
    %v5219 = vunpack.c.h.b16 %v2118
    %v5220 = vunpack.c.l.b16 %v2119
    %v5221 = vunpack.c.h.b16 %v2119
    %v5222 = vunpack.c.l.b16 %v2120
    %v5223 = vunpack.c.h.b16 %v2120
    %v5224 = vunpack.c.l.b16 %v2121
    %v5225 = vunpack.c.h.b16 %v2121
    %v5226 = vunpack.c.l.b16 %v2122
    %v5227 = vunpack.c.h.b16 %v2122
    %v5228 = vunpack.c.l.b16 %v2123
    %v5229 = vunpack.c.h.b16 %v2123
    %v5230 = vunpack.c.l.b16 %v2124
    %v5231 = vunpack.c.h.b16 %v2124
    %v5232 = vunpack.c.l.b16 %v2125
    %v5233 = vunpack.c.h.b16 %v2125
    %v5234 = vunpack.c.l.b16 %v2126
    %v5235 = vunpack.c.h.b16 %v2126
    %v5236 = vunpack.c.l.b16 %v2127
    %v5237 = vunpack.c.h.b16 %v2127
    %v5238 = vunpack.c.l.b16 %v2128
    %v5239 = vunpack.c.h.b16 %v2128
    %v5240 = vunpack.c.l.b16 %v2129
    %v5241 = vunpack.c.h.b16 %v2129
    %v5242 = vunpack.c.l.b16 %v2130
    %v5243 = vunpack.c.h.b16 %v2130
    %v5244 = vunpack.c.l.b16 %v2131
    %v5245 = vunpack.c.h.b16 %v2131
    %v5246 = vunpack.c.l.b16 %v2132
    %v5247 = vunpack.c.h.b16 %v2132
    %v5248 = vunpack.c.l.b16 %v2133
    %v5249 = vunpack.c.h.b16 %v2133
    %v5250 = vunpack.c.l.b16 %v2134
    %v5251 = vunpack.c.h.b16 %v2134
    %v5252 = vunpack.c.l.b16 %v2135
    %v5253 = vunpack.c.h.b16 %v2135
    %v5254 = vunpack.c.l.b16 %v2136
    %v5255 = vunpack.c.h.b16 %v2136
    %v5256 = vunpack.c.l.b16 %v2137
    %v5257 = vunpack.c.h.b16 %v2137
    %v5258 = vunpack.c.l.b16 %v2138
    %v5259 = vunpack.c.h.b16 %v2138
    %v5260 = vunpack.c.l.b16 %v2139
    %v5261 = vunpack.c.h.b16 %v2139
    %v5262 = vunpack.c.l.b16 %v2140
    %v5263 = vunpack.c.h.b16 %v2140
    %v5264 = vunpack.c.l.b16 %v2141
    %v5265 = vunpack.c.h.b16 %v2141
    %v5266 = vunpack.c.l.b16 %v2142
    %v5267 = vunpack.c.h.b16 %v2142
    %v5268 = vunpack.c.l.b16 %v2143
    %v5269 = vunpack.c.h.b16 %v2143
    %v5270 = vunpack.c.l.b16 %v2144
    %v5271 = vunpack.c.h.b16 %v2144
    %v5272 = vunpack.c.l.b16 %v2145
    %v5273 = vunpack.c.h.b16 %v2145
    %v5274 = vunpack.c.l.b16 %v2146
    %v5275 = vunpack.c.h.b16 %v2146
    %v5276 = vunpack.c.l.b16 %v2147
    %v5277 = vunpack.c.h.b16 %v2147
    %v5278 = vunpack.c.l.b16 %v2148
    %v5279 = vunpack.c.h.b16 %v2148
    %v5280 = vunpack.c.l.b16 %v2149
    %v5281 = vunpack.c.h.b16 %v2149
    %v5282 = vunpack.c.l.b16 %v2150
    %v5283 = vunpack.c.h.b16 %v2150
    %v5284 = vunpack.c.l.b16 %v2151
    %v5285 = vunpack.c.h.b16 %v2151
    %v5286 = vunpack.c.l.b16 %v2152
    %v5287 = vunpack.c.h.b16 %v2152
    %v5288 = vunpack.c.l.b16 %v2153
    %v5289 = vunpack.c.h.b16 %v2153
    %v5290 = vunpack.c.l.b16 %v2154
    %v5291 = vunpack.c.h.b16 %v2154
    %v5292 = vunpack.c.l.b16 %v2155
    %v5293 = vunpack.c.h.b16 %v2155
    %v5294 = vunpack.c.l.b16 %v2156
    %v5295 = vunpack.c.h.b16 %v2156
    %v5296 = vunpack.c.l.b16 %v2157
    %v5297 = vunpack.c.h.b16 %v2157
    %v5298 = vunpack.c.l.b16 %v2158
    %v5299 = vunpack.c.h.b16 %v2158
    %v5300 = vunpack.c.l.b16 %v2159
    %v5301 = vunpack.c.h.b16 %v2159
    %v5302 = vunpack.c.l.b16 %v2160
    %v5303 = vunpack.c.h.b16 %v2160
    %v5304 = vunpack.c.l.b16 %v2161
    %v5305 = vunpack.c.h.b16 %v2161
    %v5306 = vunpack.c.l.b16 %v2162
    %v5307 = vunpack.c.h.b16 %v2162
    %v5308 = vunpack.c.l.b16 %v2163
    %v5309 = vunpack.c.h.b16 %v2163
    %v5310 = vunpack.c.l.b16 %v2164
    %v5311 = vunpack.c.h.b16 %v2164
    %v5312 = vunpack.c.l.b16 %v2165
    %v5313 = vunpack.c.h.b16 %v2165
    %v5314 = vunpack.c.l.b16 %v2166
    %v5315 = vunpack.c.h.b16 %v2166
    %v5316 = vunpack.c.l.b16 %v2167
    %v5317 = vunpack.c.h.b16 %v2167
    %v5318 = vunpack.c.l.b16 %v2168
    %v5319 = vunpack.c.h.b16 %v2168
    %v5320 = vunpack.c.l.b16 %v2169
    %v5321 = vunpack.c.h.b16 %v2169
    %v5322 = vunpack.c.l.b16 %v2170
    %v5323 = vunpack.c.h.b16 %v2170
    %v5324 = vunpack.c.l.b16 %v2171
    %v5325 = vunpack.c.h.b16 %v2171
    %v5326 = vunpack.c.l.b16 %v2172
    %v5327 = vunpack.c.h.b16 %v2172
    %v5328 = vunpack.c.l.b16 %v2173
    %v5329 = vunpack.c.h.b16 %v2173
    %v5330 = vunpack.c.l.b16 %v2174
    %v5331 = vunpack.c.h.b16 %v2174
    %v5332 = vunpack.c.l.b16 %v2175
    %v5333 = vunpack.c.h.b16 %v2175
    %v5334 = vunpack.c.l.b16 %v2176
    %v5335 = vunpack.c.h.b16 %v2176
    %v5336 = vunpack.c.l.b16 %v2177
    %v5337 = vunpack.c.h.b16 %v2177
    %v5338 = vunpack.c.l.b16 %v2178
    %v5339 = vunpack.c.h.b16 %v2178
    %v5340 = vunpack.c.l.b16 %v2179
    %v5341 = vunpack.c.h.b16 %v2179
    %v5342 = vunpack.c.l.b16 %v2180
    %v5343 = vunpack.c.h.b16 %v2180
    %v5344 = vunpack.c.l.b16 %v2181
    %v5345 = vunpack.c.h.b16 %v2181
    %v5346 = vunpack.c.l.b16 %v2182
    %v5347 = vunpack.c.h.b16 %v2182
    %v5348 = vunpack.c.l.b16 %v2183
    %v5349 = vunpack.c.h.b16 %v2183
    %v5350 = vunpack.c.l.b16 %v2184
    %v5351 = vunpack.c.h.b16 %v2184
    %v5352 = vunpack.c.l.b16 %v2185
    %v5353 = vunpack.c.h.b16 %v2185
    %v5354 = vunpack.c.l.b16 %v2186
    %v5355 = vunpack.c.h.b16 %v2186
    %v5356 = vunpack.c.l.b16 %v2187
    %v5357 = vunpack.c.h.b16 %v2187
    %v5358 = vunpack.c.l.b16 %v2188
    %v5359 = vunpack.c.h.b16 %v2188
    %v5360 = vunpack.c.l.b16 %v2189
    %v5361 = vunpack.c.h.b16 %v2189
    %v5362 = vunpack.c.l.b16 %v2190
    %v5363 = vunpack.c.h.b16 %v2190
    %v5364 = vunpack.c.l.b16 %v2191
    %v5365 = vunpack.c.h.b16 %v2191
    %v5366 = vunpack.c.l.b16 %v2192
    %v5367 = vunpack.c.h.b16 %v2192
    %v5368 = vunpack.c.l.b16 %v2193
    %v5369 = vunpack.c.h.b16 %v2193
    %v5370 = vunpack.c.l.b16 %v2194
    %v5371 = vunpack.c.h.b16 %v2194
    %v5372 = vunpack.c.l.b16 %v2195
    %v5373 = vunpack.c.h.b16 %v2195
    %v5374 = vunpack.c.l.b16 %v2196
    %v5375 = vunpack.c.h.b16 %v2196
    %v5376 = vunpack.c.l.b16 %v2197
    %v5377 = vunpack.c.h.b16 %v2197
    %v5378 = vunpack.c.l.b16 %v2198
    %v5379 = vunpack.c.h.b16 %v2198
    %v5380 = vunpack.c.l.b16 %v2199
    %v5381 = vunpack.c.h.b16 %v2199
    %v5382 = vunpack.c.l.b16 %v2200
    %v5383 = vunpack.c.h.b16 %v2200
    %v5384 = vunpack.c.l.b16 %v2201
    %v5385 = vunpack.c.h.b16 %v2201
    %v5386 = vunpack.c.l.b16 %v2202
    %v5387 = vunpack.c.h.b16 %v2202
    %v5388 = vunpack.c.l.b16 %v2203
    %v5389 = vunpack.c.h.b16 %v2203
    %v5390 = vunpack.c.l.b16 %v2204
    %v5391 = vunpack.c.h.b16 %v2204
    %v5392 = vunpack.c.l.b16 %v2205
    %v5393 = vunpack.c.h.b16 %v2205
    %v5394 = vunpack.c.l.b16 %v2206
    %v5395 = vunpack.c.h.b16 %v2206
    %v5396 = vunpack.c.l.b16 %v2207
    %v5397 = vunpack.c.h.b16 %v2207
    %v5398 = vunpack.c.l.b16 %v2208
    %v5399 = vunpack.c.h.b16 %v2208
    %v5400 = vunpack.c.l.b16 %v2209
    %v5401 = vunpack.c.h.b16 %v2209
    %v5402 = vunpack.c.l.b16 %v2210
    %v5403 = vunpack.c.h.b16 %v2210
    %v5404 = vunpack.c.l.b16 %v2211
    %v5405 = vunpack.c.h.b16 %v2211
    %v5406 = vunpack.c.l.b16 %v2212
    %v5407 = vunpack.c.h.b16 %v2212
    %v5408 = vunpack.c.l.b16 %v2213
    %v5409 = vunpack.c.h.b16 %v2213
    %v5410 = vunpack.c.l.b16 %v2214
    %v5411 = vunpack.c.h.b16 %v2214
    %v5412 = vunpack.c.l.b16 %v2215
    %v5413 = vunpack.c.h.b16 %v2215
    %v5414 = vunpack.c.l.b16 %v2216
    %v5415 = vunpack.c.h.b16 %v2216
    %v5416 = vunpack.c.l.b16 %v2217
    %v5417 = vunpack.c.h.b16 %v2217
    %v5418 = vunpack.c.l.b16 %v2218
    %v5419 = vunpack.c.h.b16 %v2218
    %v5420 = vunpack.c.l.b16 %v2219
    %v5421 = vunpack.c.h.b16 %v2219
    %v5422 = vunpack.c.l.b16 %v2220
    %v5423 = vunpack.c.h.b16 %v2220
    %v5424 = vunpack.c.l.b16 %v2221
    %v5425 = vunpack.c.h.b16 %v2221
    %v5426 = vunpack.c.l.b16 %v2222
    %v5427 = vunpack.c.h.b16 %v2222
    %v5428 = vunpack.c.l.b16 %v2223
    %v5429 = vunpack.c.h.b16 %v2223
    %v5430 = vunpack.c.l.b16 %v2224
    %v5431 = vunpack.c.h.b16 %v2224
    %v5432 = vunpack.c.l.b16 %v2225
    %v5433 = vunpack.c.h.b16 %v2225
    %v5434 = vunpack.c.l.b16 %v2226
    %v5435 = vunpack.c.h.b16 %v2226
    %v5436 = vunpack.c.l.b16 %v2227
    %v5437 = vunpack.c.h.b16 %v2227
    %v5438 = vunpack.c.l.b16 %v2228
    %v5439 = vunpack.c.h.b16 %v2228
    %v5440 = vunpack.c.l.b16 %v2229
    %v5441 = vunpack.c.h.b16 %v2229
    %v5442 = vunpack.c.l.b16 %v2230
    %v5443 = vunpack.c.h.b16 %v2230
    %v5444 = vunpack.c.l.b16 %v2231
    %v5445 = vunpack.c.h.b16 %v2231
    %v5446 = vunpack.c.l.b16 %v2232
    %v5447 = vunpack.c.h.b16 %v2232
    %v5448 = vunpack.c.l.b16 %v2233
    %v5449 = vunpack.c.h.b16 %v2233
    %v5450 = vunpack.c.l.b16 %v2234
    %v5451 = vunpack.c.h.b16 %v2234
    %v5452 = vunpack.c.l.b16 %v2235
    %v5453 = vunpack.c.h.b16 %v2235
    %v5454 = vunpack.c.l.b16 %v2236
    %v5455 = vunpack.c.h.b16 %v2236
    %v5456 = vunpack.c.l.b16 %v2237
    %v5457 = vunpack.c.h.b16 %v2237
    %v5458 = vunpack.c.l.b16 %v2238
    %v5459 = vunpack.c.h.b16 %v2238
    %v5460 = vunpack.c.l.b16 %v2239
    %v5461 = vunpack.c.h.b16 %v2239
    %v5462 = vunpack.c.l.b16 %v2240
    %v5463 = vunpack.c.h.b16 %v2240
    %v5464 = vunpack.c.l.b16 %v2241
    %v5465 = vunpack.c.h.b16 %v2241
    %v5466 = vunpack.c.l.b16 %v2242
    %v5467 = vunpack.c.h.b16 %v2242
    %v5468 = vunpack.c.l.b16 %v2243
    %v5469 = vunpack.c.h.b16 %v2243
    %v5470 = vunpack.c.l.b16 %v2244
    %v5471 = vunpack.c.h.b16 %v2244
    %v5472 = vunpack.c.l.b16 %v2245
    %v5473 = vunpack.c.h.b16 %v2245
    %v5474 = vunpack.c.l.b16 %v2246
    %v5475 = vunpack.c.h.b16 %v2246
    %v5476 = vunpack.c.l.b16 %v2247
    %v5477 = vunpack.c.h.b16 %v2247
    %v5478 = vunpack.c.l.b16 %v2248
    %v5479 = vunpack.c.h.b16 %v2248
    %v5480 = vunpack.c.l.b16 %v2249
    %v5481 = vunpack.c.h.b16 %v2249
    %v5482 = vunpack.c.l.b16 %v2250
    %v5483 = vunpack.c.h.b16 %v2250
    %v5484 = vunpack.c.l.b16 %v2251
    %v5485 = vunpack.c.h.b16 %v2251
    %v5486 = vunpack.c.l.b16 %v2252
    %v5487 = vunpack.c.h.b16 %v2252
    %v5488 = vunpack.c.l.b16 %v2253
    %v5489 = vunpack.c.h.b16 %v2253
    %v5490 = vunpack.c.l.b16 %v2254
    %v5491 = vunpack.c.h.b16 %v2254
    %v5492 = vunpack.c.l.b16 %v2255
    %v5493 = vunpack.c.h.b16 %v2255
    %v5494 = vunpack.c.l.b16 %v2256
    %v5495 = vunpack.c.h.b16 %v2256
    %v5496 = vunpack.c.l.b16 %v2257
    %v5497 = vunpack.c.h.b16 %v2257
    %v5498 = vunpack.c.l.b16 %v2258
    %v5499 = vunpack.c.h.b16 %v2258
    %v5500 = vunpack.c.l.b16 %v2259
    %v5501 = vunpack.c.h.b16 %v2259
    %v5502 = vunpack.c.l.b16 %v2260
    %v5503 = vunpack.c.h.b16 %v2260
    %v5504 = vunpack.c.l.b16 %v2261
    %v5505 = vunpack.c.h.b16 %v2261
    %v5506 = vunpack.c.l.b16 %v2262
    %v5507 = vunpack.c.h.b16 %v2262
    %v5508 = vunpack.c.l.b16 %v2263
    %v5509 = vunpack.c.h.b16 %v2263
    %v5510 = vunpack.c.l.b16 %v2264
    %v5511 = vunpack.c.h.b16 %v2264
    %v5512 = vunpack.c.l.b16 %v2265
    %v5513 = vunpack.c.h.b16 %v2265
    %v5514 = vunpack.c.l.b16 %v2266
    %v5515 = vunpack.c.h.b16 %v2266
    %v5516 = vunpack.c.l.b16 %v2267
    %v5517 = vunpack.c.h.b16 %v2267
    %v5518 = vunpack.c.l.b16 %v2268
    %v5519 = vunpack.c.h.b16 %v2268
    %v5520 = vunpack.c.l.b16 %v2269
    %v5521 = vunpack.c.h.b16 %v2269
    %v5522 = vunpack.c.l.b16 %v2270
    %v5523 = vunpack.c.h.b16 %v2270
    %v5524 = vunpack.c.l.b16 %v2271
    %v5525 = vunpack.c.h.b16 %v2271
    %v5526 = vunpack.c.l.b16 %v2272
    %v5527 = vunpack.c.h.b16 %v2272
    %v5528 = vunpack.c.l.b16 %v2273
    %v5529 = vunpack.c.h.b16 %v2273
    %v5530 = vunpack.c.l.b16 %v2274
    %v5531 = vunpack.c.h.b16 %v2274
    %v5532 = vunpack.c.l.b16 %v2275
    %v5533 = vunpack.c.h.b16 %v2275
    %v5534 = vunpack.c.l.b16 %v2276
    %v5535 = vunpack.c.h.b16 %v2276
    %v5536 = vunpack.c.l.b16 %v2277
    %v5537 = vunpack.c.h.b16 %v2277
    %v5538 = vunpack.c.l.b16 %v2278
    %v5539 = vunpack.c.h.b16 %v2278
    %v5540 = vunpack.c.l.b16 %v2279
    %v5541 = vunpack.c.h.b16 %v2279
    %v5542 = vunpack.c.l.b16 %v2280
    %v5543 = vunpack.c.h.b16 %v2280
    %v5544 = vunpack.c.l.b16 %v2281
    %v5545 = vunpack.c.h.b16 %v2281
    %v5546 = vunpack.c.l.b16 %v2282
    %v5547 = vunpack.c.h.b16 %v2282
    %v5548 = vunpack.c.l.b16 %v2283
    %v5549 = vunpack.c.h.b16 %v2283
    %v5550 = vunpack.c.l.b16 %v2284
    %v5551 = vunpack.c.h.b16 %v2284
    %v5552 = vunpack.c.l.b16 %v2285
    %v5553 = vunpack.c.h.b16 %v2285
    %v5554 = vunpack.c.l.b16 %v2286
    %v5555 = vunpack.c.h.b16 %v2286
    %v5556 = vunpack.c.l.b16 %v2287
    %v5557 = vunpack.c.h.b16 %v2287
    %v5558 = vunpack.c.l.b16 %v2288
    %v5559 = vunpack.c.h.b16 %v2288
    %v5560 = vunpack.c.l.b16 %v2289
    %v5561 = vunpack.c.h.b16 %v2289
    %v5562 = vunpack.c.l.b16 %v2290
    %v5563 = vunpack.c.h.b16 %v2290
    %v5564 = vunpack.c.l.b16 %v2291
    %v5565 = vunpack.c.h.b16 %v2291
    %v5566 = vunpack.c.l.b16 %v2292
    %v5567 = vunpack.c.h.b16 %v2292
    %v5568 = vunpack.c.l.b16 %v2293
    %v5569 = vunpack.c.h.b16 %v2293
    %v5570 = vunpack.c.l.b16 %v2294
    %v5571 = vunpack.c.h.b16 %v2294
    %v5572 = vunpack.c.l.b16 %v2295
    %v5573 = vunpack.c.h.b16 %v2295
    %v5574 = vunpack.c.l.b16 %v2296
    %v5575 = vunpack.c.h.b16 %v2296
    %v5576 = vunpack.c.l.b16 %v2297
    %v5577 = vunpack.c.h.b16 %v2297
    %v5578 = vunpack.c.l.b16 %v2298
    %v5579 = vunpack.c.h.b16 %v2298
    %v5580 = vunpack.c.l.b16 %v2299
    %v5581 = vunpack.c.h.b16 %v2299
    %v5582 = vunpack.c.l.b16 %v2300
    %v5583 = vunpack.c.h.b16 %v2300
    %v5584 = vpack.c.b16 %v5080, %v5072
    %v5585 = vpack.c.b16 %v5081, %v5073
    %v5586 = vpack.c.b16 %v5082, %v5074
    %v5587 = vpack.c.b16 %v5083, %v5075
    %v5588 = vpack.c.b16 %v5084, %v5076
    %v5589 = vpack.c.b16 %v5085, %v5077
    %v5590 = vpack.c.b16 %v5086, %v5078
    %v5591 = vpack.c.b16 %v5087, %v5079
    %v5592 = vpack.c.b16 %v5096, %v5088
    %v5593 = vpack.c.b16 %v5097, %v5089
    %v5594 = vpack.c.b16 %v5098, %v5090
    %v5595 = vpack.c.b16 %v5099, %v5091
    %v5596 = vpack.c.b16 %v5100, %v5092
    %v5597 = vpack.c.b16 %v5101, %v5093
    %v5598 = vpack.c.b16 %v5102, %v5094
    %v5599 = vpack.c.b16 %v5103, %v5095
    %v5600 = vpack.c.b16 %v5112, %v5104
    %v5601 = vpack.c.b16 %v5113, %v5105
    %v5602 = vpack.c.b16 %v5114, %v5106
    %v5603 = vpack.c.b16 %v5115, %v5107
    %v5604 = vpack.c.b16 %v5116, %v5108
    %v5605 = vpack.c.b16 %v5117, %v5109
    %v5606 = vpack.c.b16 %v5118, %v5110
    %v5607 = vpack.c.b16 %v5119, %v5111
    %v5608 = vpack.c.b16 %v5128, %v5120
    %v5609 = vpack.c.b16 %v5129, %v5121
    %v5610 = vpack.c.b16 %v5130, %v5122
    %v5611 = vpack.c.b16 %v5131, %v5123
    %v5612 = vpack.c.b16 %v5132, %v5124
    %v5613 = vpack.c.b16 %v5133, %v5125
    %v5614 = vpack.c.b16 %v5134, %v5126
    %v5615 = vpack.c.b16 %v5135, %v5127
    %v5616 = vpack.c.b16 %v5144, %v5136
    %v5617 = vpack.c.b16 %v5145, %v5137
    %v5618 = vpack.c.b16 %v5146, %v5138
    %v5619 = vpack.c.b16 %v5147, %v5139
    %v5620 = vpack.c.b16 %v5148, %v5140
    %v5621 = vpack.c.b16 %v5149, %v5141
    %v5622 = vpack.c.b16 %v5150, %v5142
    %v5623 = vpack.c.b16 %v5151, %v5143
    %v5624 = vpack.c.b16 %v5160, %v5152
    %v5625 = vpack.c.b16 %v5161, %v5153
    %v5626 = vpack.c.b16 %v5162, %v5154
    %v5627 = vpack.c.b16 %v5163, %v5155
    %v5628 = vpack.c.b16 %v5164, %v5156
    %v5629 = vpack.c.b16 %v5165, %v5157
    %v5630 = vpack.c.b16 %v5166, %v5158
    %v5631 = vpack.c.b16 %v5167, %v5159
    %v5632 = vpack.c.b16 %v5176, %v5168
    %v5633 = vpack.c.b16 %v5177, %v5169
    %v5634 = vpack.c.b16 %v5178, %v5170
    %v5635 = vpack.c.b16 %v5179, %v5171
    %v5636 = vpack.c.b16 %v5180, %v5172
    %v5637 = vpack.c.b16 %v5181, %v5173
    %v5638 = vpack.c.b16 %v5182, %v5174
    %v5639 = vpack.c.b16 %v5183, %v5175
    %v5640 = vpack.c.b16 %v5192, %v5184
    %v5641 = vpack.c.b16 %v5193, %v5185
    %v5642 = vpack.c.b16 %v5194, %v5186
    %v5643 = vpack.c.b16 %v5195, %v5187
    %v5644 = vpack.c.b16 %v5196, %v5188
    %v5645 = vpack.c.b16 %v5197, %v5189
    %v5646 = vpack.c.b16 %v5198, %v5190
    %v5647 = vpack.c.b16 %v5199, %v5191
    %v5648 = vpack.c.b16 %v5208, %v5200
    %v5649 = vpack.c.b16 %v5209, %v5201
    %v5650 = vpack.c.b16 %v5210, %v5202
    %v5651 = vpack.c.b16 %v5211, %v5203
    %v5652 = vpack.c.b16 %v5212, %v5204
    %v5653 = vpack.c.b16 %v5213, %v5205
    %v5654 = vpack.c.b16 %v5214, %v5206
    %v5655 = vpack.c.b16 %v5215, %v5207
    %v5656 = vpack.c.b16 %v5224, %v5216
    %v5657 = vpack.c.b16 %v5225, %v5217
    %v5658 = vpack.c.b16 %v5226, %v5218
    %v5659 = vpack.c.b16 %v5227, %v5219
    %v5660 = vpack.c.b16 %v5228, %v5220
    %v5661 = vpack.c.b16 %v5229, %v5221
    %v5662 = vpack.c.b16 %v5230, %v5222
    %v5663 = vpack.c.b16 %v5231, %v5223
    %v5664 = vpack.c.b16 %v5240, %v5232
    %v5665 = vpack.c.b16 %v5241, %v5233
    %v5666 = vpack.c.b16 %v5242, %v5234
    %v5667 = vpack.c.b16 %v5243, %v5235
    %v5668 = vpack.c.b16 %v5244, %v5236
    %v5669 = vpack.c.b16 %v5245, %v5237
    %v5670 = vpack.c.b16 %v5246, %v5238
    %v5671 = vpack.c.b16 %v5247, %v5239
    %v5672 = vpack.c.b16 %v5256, %v5248
    %v5673 = vpack.c.b16 %v5257, %v5249
    %v5674 = vpack.c.b16 %v5258, %v5250
    %v5675 = vpack.c.b16 %v5259, %v5251
    %v5676 = vpack.c.b16 %v5260, %v5252
    %v5677 = vpack.c.b16 %v5261, %v5253
    %v5678 = vpack.c.b16 %v5262, %v5254
    %v5679 = vpack.c.b16 %v5263, %v5255
    %v5680 = vpack.c.b16 %v5272, %v5264
    %v5681 = vpack.c.b16 %v5273, %v5265
    %v5682 = vpack.c.b16 %v5274, %v5266
    %v5683 = vpack.c.b16 %v5275, %v5267
    %v5684 = vpack.c.b16 %v5276, %v5268
    %v5685 = vpack.c.b16 %v5277, %v5269
    %v5686 = vpack.c.b16 %v5278, %v5270
    %v5687 = vpack.c.b16 %v5279, %v5271
    %v5688 = vpack.c.b16 %v5288, %v5280
    %v5689 = vpack.c.b16 %v5289, %v5281
    %v5690 = vpack.c.b16 %v5290, %v5282
    %v5691 = vpack.c.b16 %v5291, %v5283
    %v5692 = vpack.c.b16 %v5292, %v5284
    %v5693 = vpack.c.b16 %v5293, %v5285
    %v5694 = vpack.c.b16 %v5294, %v5286
    %v5695 = vpack.c.b16 %v5295, %v5287
    %v5696 = vpack.c.b16 %v5304, %v5296
    %v5697 = vpack.c.b16 %v5305, %v5297
    %v5698 = vpack.c.b16 %v5306, %v5298
    %v5699 = vpack.c.b16 %v5307, %v5299
    %v5700 = vpack.c.b16 %v5308, %v5300
    %v5701 = vpack.c.b16 %v5309, %v5301
    %v5702 = vpack.c.b16 %v5310, %v5302
    %v5703 = vpack.c.b16 %v5311, %v5303
    %v5704 = vpack.c.b16 %v5320, %v5312
    %v5705 = vpack.c.b16 %v5321, %v5313
    %v5706 = vpack.c.b16 %v5322, %v5314
    %v5707 = vpack.c.b16 %v5323, %v5315
    %v5708 = vpack.c.b16 %v5324, %v5316
    %v5709 = vpack.c.b16 %v5325, %v5317
    %v5710 = vpack.c.b16 %v5326, %v5318
    %v5711 = vpack.c.b16 %v5327, %v5319
    %v5712 = vpack.c.b16 %v5336, %v5328
    %v5713 = vpack.c.b16 %v5337, %v5329
    %v5714 = vpack.c.b16 %v5338, %v5330
    %v5715 = vpack.c.b16 %v5339, %v5331
    %v5716 = vpack.c.b16 %v5340, %v5332
    %v5717 = vpack.c.b16 %v5341, %v5333
    %v5718 = vpack.c.b16 %v5342, %v5334
    %v5719 = vpack.c.b16 %v5343, %v5335
    %v5720 = vpack.c.b16 %v5352, %v5344
    %v5721 = vpack.c.b16 %v5353, %v5345
    %v5722 = vpack.c.b16 %v5354, %v5346
    %v5723 = vpack.c.b16 %v5355, %v5347
    %v5724 = vpack.c.b16 %v5356, %v5348
    %v5725 = vpack.c.b16 %v5357, %v5349
    %v5726 = vpack.c.b16 %v5358, %v5350
    %v5727 = vpack.c.b16 %v5359, %v5351
    %v5728 = vpack.c.b16 %v5368, %v5360
    %v5729 = vpack.c.b16 %v5369, %v5361
    %v5730 = vpack.c.b16 %v5370, %v5362
    %v5731 = vpack.c.b16 %v5371, %v5363
    %v5732 = vpack.c.b16 %v5372, %v5364
    %v5733 = vpack.c.b16 %v5373, %v5365
    %v5734 = vpack.c.b16 %v5374, %v5366
    %v5735 = vpack.c.b16 %v5375, %v5367
    %v5736 = vpack.c.b16 %v5384, %v5376
    %v5737 = vpack.c.b16 %v5385, %v5377
    %v5738 = vpack.c.b16 %v5386, %v5378
    %v5739 = vpack.c.b16 %v5387, %v5379
    %v5740 = vpack.c.b16 %v5388, %v5380
    %v5741 = vpack.c.b16 %v5389, %v5381
    %v5742 = vpack.c.b16 %v5390, %v5382
    %v5743 = vpack.c.b16 %v5391, %v5383
    %v5744 = vpack.c.b16 %v5400, %v5392
    %v5745 = vpack.c.b16 %v5401, %v5393
    %v5746 = vpack.c.b16 %v5402, %v5394
    %v5747 = vpack.c.b16 %v5403, %v5395
    %v5748 = vpack.c.b16 %v5404, %v5396
    %v5749 = vpack.c.b16 %v5405, %v5397
    %v5750 = vpack.c.b16 %v5406, %v5398
    %v5751 = vpack.c.b16 %v5407, %v5399
    %v5752 = vpack.c.b16 %v5416, %v5408
    %v5753 = vpack.c.b16 %v5417, %v5409
    %v5754 = vpack.c.b16 %v5418, %v5410
    %v5755 = vpack.c.b16 %v5419, %v5411
    %v5756 = vpack.c.b16 %v5420, %v5412
    %v5757 = vpack.c.b16 %v5421, %v5413
    %v5758 = vpack.c.b16 %v5422, %v5414
    %v5759 = vpack.c.b16 %v5423, %v5415
    %v5760 = vpack.c.b16 %v5432, %v5424
    %v5761 = vpack.c.b16 %v5433, %v5425
    %v5762 = vpack.c.b16 %v5434, %v5426
    %v5763 = vpack.c.b16 %v5435, %v5427
    %v5764 = vpack.c.b16 %v5436, %v5428
    %v5765 = vpack.c.b16 %v5437, %v5429
    %v5766 = vpack.c.b16 %v5438, %v5430
    %v5767 = vpack.c.b16 %v5439, %v5431
    %v5768 = vpack.c.b16 %v5448, %v5440
    %v5769 = vpack.c.b16 %v5449, %v5441
    %v5770 = vpack.c.b16 %v5450, %v5442
    %v5771 = vpack.c.b16 %v5451, %v5443
    %v5772 = vpack.c.b16 %v5452, %v5444
    %v5773 = vpack.c.b16 %v5453, %v5445
    %v5774 = vpack.c.b16 %v5454, %v5446
    %v5775 = vpack.c.b16 %v5455, %v5447
    %v5776 = vpack.c.b16 %v5464, %v5456
    %v5777 = vpack.c.b16 %v5465, %v5457
    %v5778 = vpack.c.b16 %v5466, %v5458
    %v5779 = vpack.c.b16 %v5467, %v5459
    %v5780 = vpack.c.b16 %v5468, %v5460
    %v5781 = vpack.c.b16 %v5469, %v5461
    %v5782 = vpack.c.b16 %v5470, %v5462
    %v5783 = vpack.c.b16 %v5471, %v5463
    %v5784 = vpack.c.b16 %v5480, %v5472
    %v5785 = vpack.c.b16 %v5481, %v5473
    %v5786 = vpack.c.b16 %v5482, %v5474
    %v5787 = vpack.c.b16 %v5483, %v5475
    %v5788 = vpack.c.b16 %v5484, %v5476
    %v5789 = vpack.c.b16 %v5485, %v5477
    %v5790 = vpack.c.b16 %v5486, %v5478
    %v5791 = vpack.c.b16 %v5487, %v5479
    %v5792 = vpack.c.b16 %v5496, %v5488
    %v5793 = vpack.c.b16 %v5497, %v5489
    %v5794 = vpack.c.b16 %v5498, %v5490
    %v5795 = vpack.c.b16 %v5499, %v5491
    %v5796 = vpack.c.b16 %v5500, %v5492
    %v5797 = vpack.c.b16 %v5501, %v5493
    %v5798 = vpack.c.b16 %v5502, %v5494
    %v5799 = vpack.c.b16 %v5503, %v5495
    %v5800 = vpack.c.b16 %v5512, %v5504
    %v5801 = vpack.c.b16 %v5513, %v5505
    %v5802 = vpack.c.b16 %v5514, %v5506
    %v5803 = vpack.c.b16 %v5515, %v5507
    %v5804 = vpack.c.b16 %v5516, %v5508
    %v5805 = vpack.c.b16 %v5517, %v5509
    %v5806 = vpack.c.b16 %v5518, %v5510
    %v5807 = vpack.c.b16 %v5519, %v5511
    %v5808 = vpack.c.b16 %v5528, %v5520
    %v5809 = vpack.c.b16 %v5529, %v5521
    %v5810 = vpack.c.b16 %v5530, %v5522
    %v5811 = vpack.c.b16 %v5531, %v5523
    %v5812 = vpack.c.b16 %v5532, %v5524
    %v5813 = vpack.c.b16 %v5533, %v5525
    %v5814 = vpack.c.b16 %v5534, %v5526
    %v5815 = vpack.c.b16 %v5535, %v5527
    %v5816 = vpack.c.b16 %v5544, %v5536
    %v5817 = vpack.c.b16 %v5545, %v5537
    %v5818 = vpack.c.b16 %v5546, %v5538
    %v5819 = vpack.c.b16 %v5547, %v5539
    %v5820 = vpack.c.b16 %v5548, %v5540
    %v5821 = vpack.c.b16 %v5549, %v5541
    %v5822 = vpack.c.b16 %v5550, %v5542
    %v5823 = vpack.c.b16 %v5551, %v5543
    %v5824 = vpack.c.b16 %v5560, %v5552
    %v5825 = vpack.c.b16 %v5561, %v5553
    %v5826 = vpack.c.b16 %v5562, %v5554
    %v5827 = vpack.c.b16 %v5563, %v5555
    %v5828 = vpack.c.b16 %v5564, %v5556
    %v5829 = vpack.c.b16 %v5565, %v5557
    %v5830 = vpack.c.b16 %v5566, %v5558
    %v5831 = vpack.c.b16 %v5567, %v5559
    %v5832 = vpack.c.b16 %v5576, %v5568
    %v5833 = vpack.c.b16 %v5577, %v5569
    %v5834 = vpack.c.b16 %v5578, %v5570
    %v5835 = vpack.c.b16 %v5579, %v5571
    %v5836 = vpack.c.b16 %v5580, %v5572
    %v5837 = vpack.c.b16 %v5581, %v5573
    %v5838 = vpack.c.b16 %v5582, %v5574
    %v5839 = vpack.c.b16 %v5583, %v5575
    %6096 = vmatprep.subr.bf16.mxu0 %v5585
    %6097 = vmatpush1.bf16.msra.mxu0 %v5584
    %6098 = vmatprep.subr.bf16.mxu0 %v5593
    %6099 = vmatpush1.bf16.msra.mxu0 %v5592
    %6100 = vmatprep.subr.bf16.mxu0 %v5601
    %6101 = vmatpush1.bf16.msra.mxu0 %v5600
    %6102 = vmatprep.subr.bf16.mxu0 %v5609
    %6103 = vmatpush1.bf16.msra.mxu0 %v5608
    %6104 = vmatprep.subr.bf16.mxu0 %v5617
    %6105 = vmatpush1.bf16.msra.mxu0 %v5616
    %6106 = vmatprep.subr.bf16.mxu0 %v5625
    %6107 = vmatpush1.bf16.msra.mxu0 %v5624
    %6108 = vmatprep.subr.bf16.mxu0 %v5633
    %6109 = vmatpush1.bf16.msra.mxu0 %v5632
    %6110 = vmatprep.subr.bf16.mxu0 %v5641
    %6111 = vmatpush1.bf16.msra.mxu0 %v5640
    %6112 = vmatprep.subr.bf16.mxu0 %v5649
    %6113 = vmatpush1.bf16.msra.mxu0 %v5648
    %6114 = vmatprep.subr.bf16.mxu0 %v5657
    %6115 = vmatpush1.bf16.msra.mxu0 %v5656
    %6116 = vmatprep.subr.bf16.mxu0 %v5665
    %6117 = vmatpush1.bf16.msra.mxu0 %v5664
    %6118 = vmatprep.subr.bf16.mxu0 %v5673
    %6119 = vmatpush1.bf16.msra.mxu0 %v5672
    %6120 = vmatprep.subr.bf16.mxu0 %v5681
    %6121 = vmatpush1.bf16.msra.mxu0 %v5680
    %6122 = vmatprep.subr.bf16.mxu0 %v5689
    %6123 = vmatpush1.bf16.msra.mxu0 %v5688
    %6124 = vmatprep.subr.bf16.mxu0 %v5697
    %6125 = vmatpush1.bf16.msra.mxu0 %v5696
    %6126 = vmatprep.subr.bf16.mxu0 %v5705
    %6127 = vmatpush1.bf16.msra.mxu0 %v5704
    %6128 = vmatprep.mubr.bf16.mxu0 %v2848
    %6129 = vmatmul.mubr.bf16.gmra.mrb[0].mxu0 %v2847
    %v6130 = vpop.f32.mrb[0].mxu0
    %v6131 = vadd.f32 %v4340, %v6130
    %v6132 = vpop.f32.mrb[0].mxu0
    %v6133 = vadd.f32 %v4342, %v6132
    %v6134 = vpop.f32.mrb[0].mxu0
    %v6135 = vadd.f32 %v4344, %v6134
    %v6136 = vpop.f32.mrb[0].mxu0
    %v6137 = vadd.f32 %v4346, %v6136
    %6138 = vmatprep.mubr.bf16.mxu0 %v2852
    %6139 = vmatmul.mubr.bf16.gmra.mrb[0].mxu0 %v2851
    %v6140 = vpop.f32.mrb[0].mxu0
    %v6141 = vadd.f32 %v4350, %v6140
    %v6142 = vpop.f32.mrb[0].mxu0
    %v6143 = vadd.f32 %v4352, %v6142
    %v6144 = vpop.f32.mrb[0].mxu0
    %v6145 = vadd.f32 %v4354, %v6144
    %v6146 = vpop.f32.mrb[0].mxu0
    %v6147 = vadd.f32 %v4356, %v6146
    %6148 = vmatprep.mubr.bf16.mxu0 %v2856
    %6149 = vmatmul.mubr.bf16.gmra.mrb[0].mxu0 %v2855
    %v6150 = vpop.f32.mrb[0].mxu0
    %v6151 = vadd.f32 %v4360, %v6150
    %v6152 = vpop.f32.mrb[0].mxu0
    %v6153 = vadd.f32 %v4362, %v6152
    %v6154 = vpop.f32.mrb[0].mxu0
    %v6155 = vadd.f32 %v4364, %v6154
    %v6156 = vpop.f32.mrb[0].mxu0
    %v6157 = vadd.f32 %v4366, %v6156
    %6158 = vmatprep.mubr.bf16.mxu0 %v2860
    %6159 = vmatmul.mubr.bf16.gmra.mrb[0].mxu0 %v2859
    %v6160 = vpop.f32.mrb[0].mxu0
    %v6161 = vadd.f32 %v4370, %v6160
    %v6162 = vpop.f32.mrb[0].mxu0
    %v6163 = vadd.f32 %v4372, %v6162
    %v6164 = vpop.f32.mrb[0].mxu0
    %v6165 = vadd.f32 %v4374, %v6164
    %v6166 = vpop.f32.mrb[0].mxu0
    %v6167 = vadd.f32 %v4376, %v6166
    %6168 = vdwg.mxu0
    %6169 = vmatprep.subr.bf16.mxu0 %v5713
    %6170 = vmatpush1.bf16.msra.mxu0 %v5712
    %6171 = vmatprep.subr.bf16.mxu0 %v5721
    %6172 = vmatpush1.bf16.msra.mxu0 %v5720
    %6173 = vmatprep.subr.bf16.mxu0 %v5729
    %6174 = vmatpush1.bf16.msra.mxu0 %v5728
    %6175 = vmatprep.subr.bf16.mxu0 %v5737
    %6176 = vmatpush1.bf16.msra.mxu0 %v5736
    %6177 = vmatprep.subr.bf16.mxu0 %v5745
    %6178 = vmatpush1.bf16.msra.mxu0 %v5744
    %6179 = vmatprep.subr.bf16.mxu0 %v5753
    %6180 = vmatpush1.bf16.msra.mxu0 %v5752
    %6181 = vmatprep.subr.bf16.mxu0 %v5761
    %6182 = vmatpush1.bf16.msra.mxu0 %v5760
    %6183 = vmatprep.subr.bf16.mxu0 %v5769
    %6184 = vmatpush1.bf16.msra.mxu0 %v5768
    %6185 = vmatprep.subr.bf16.mxu0 %v5777
    %6186 = vmatpush1.bf16.msra.mxu0 %v5776
    %6187 = vmatprep.subr.bf16.mxu0 %v5785
    %6188 = vmatpush1.bf16.msra.mxu0 %v5784
    %6189 = vmatprep.subr.bf16.mxu0 %v5793
    %6190 = vmatpush1.bf16.msra.mxu0 %v5792
    %6191 = vmatprep.subr.bf16.mxu0 %v5801
    %6192 = vmatpush1.bf16.msra.mxu0 %v5800
    %6193 = vmatprep.subr.bf16.mxu0 %v5809
    %6194 = vmatpush1.bf16.msra.mxu0 %v5808
    %6195 = vmatprep.subr.bf16.mxu0 %v5817
    %6196 = vmatpush1.bf16.msra.mxu0 %v5816
    %6197 = vmatprep.subr.bf16.mxu0 %v5825
    %6198 = vmatpush1.bf16.msra.mxu0 %v5824
    %6199 = vmatprep.subr.bf16.mxu0 %v5833
    %6200 = vmatpush1.bf16.msra.mxu0 %v5832
    %6201 = vmatprep.mubr.bf16.mxu0 %v2850
    %6202 = vmatmul.mubr.bf16.gmra.mrb[0].mxu0 %v2849
    %v6203 = vpop.f32.mrb[0].mxu0
    %v6204 = vadd.f32 %v6131, %v6203
    %v6205 = vpop.f32.mrb[0].mxu0
    %v6206 = vadd.f32 %v6133, %v6205
    %v6207 = vpop.f32.mrb[0].mxu0
    %v6208 = vadd.f32 %v6135, %v6207
    %v6209 = vpop.f32.mrb[0].mxu0
    %v6210 = vadd.f32 %v6137, %v6209
    %6211 = vmatprep.mubr.bf16.mxu0 %v2854
    %6212 = vmatmul.mubr.bf16.gmra.mrb[0].mxu0 %v2853
    %v6213 = vpop.f32.mrb[0].mxu0
    %v6214 = vadd.f32 %v6141, %v6213
    %v6215 = vpop.f32.mrb[0].mxu0
    %v6216 = vadd.f32 %v6143, %v6215
    %v6217 = vpop.f32.mrb[0].mxu0
    %v6218 = vadd.f32 %v6145, %v6217
    %v6219 = vpop.f32.mrb[0].mxu0
    %v6220 = vadd.f32 %v6147, %v6219
    %6221 = vmatprep.mubr.bf16.mxu0 %v2858
    %6222 = vmatmul.mubr.bf16.gmra.mrb[0].mxu0 %v2857
    %v6223 = vpop.f32.mrb[0].mxu0
    %v6224 = vadd.f32 %v6151, %v6223
    %v6225 = vpop.f32.mrb[0].mxu0
    %v6226 = vadd.f32 %v6153, %v6225
    %v6227 = vpop.f32.mrb[0].mxu0
    %v6228 = vadd.f32 %v6155, %v6227
    %v6229 = vpop.f32.mrb[0].mxu0
    %v6230 = vadd.f32 %v6157, %v6229
    %6231 = vmatprep.mubr.bf16.mxu0 %v2862
    %6232 = vmatmul.mubr.bf16.gmra.mrb[0].mxu0 %v2861
    %v6233 = vpop.f32.mrb[0].mxu0
    %v6234 = vadd.f32 %v6161, %v6233
    %v6235 = vpop.f32.mrb[0].mxu0
    %v6236 = vadd.f32 %v6163, %v6235
    %v6237 = vpop.f32.mrb[0].mxu0
    %v6238 = vadd.f32 %v6165, %v6237
    %v6239 = vpop.f32.mrb[0].mxu0
    %v6240 = vadd.f32 %v6167, %v6239
    %6241 = vdwg.mxu0
    %6242 = vmatprep.subr.bf16.mxu0 %v5587
    %6243 = vmatpush1.bf16.msra.mxu0 %v5586
    %6244 = vmatprep.subr.bf16.mxu0 %v5595
    %6245 = vmatpush1.bf16.msra.mxu0 %v5594
    %6246 = vmatprep.subr.bf16.mxu0 %v5603
    %6247 = vmatpush1.bf16.msra.mxu0 %v5602
    %6248 = vmatprep.subr.bf16.mxu0 %v5611
    %6249 = vmatpush1.bf16.msra.mxu0 %v5610
    %6250 = vmatprep.subr.bf16.mxu0 %v5619
    %6251 = vmatpush1.bf16.msra.mxu0 %v5618
    %6252 = vmatprep.subr.bf16.mxu0 %v5627
    %6253 = vmatpush1.bf16.msra.mxu0 %v5626
    %6254 = vmatprep.subr.bf16.mxu0 %v5635
    %6255 = vmatpush1.bf16.msra.mxu0 %v5634
    %6256 = vmatprep.subr.bf16.mxu0 %v5643
    %6257 = vmatpush1.bf16.msra.mxu0 %v5642
    %6258 = vmatprep.subr.bf16.mxu0 %v5651
    %6259 = vmatpush1.bf16.msra.mxu0 %v5650
    %6260 = vmatprep.subr.bf16.mxu0 %v5659
    %6261 = vmatpush1.bf16.msra.mxu0 %v5658
    %6262 = vmatprep.subr.bf16.mxu0 %v5667
    %6263 = vmatpush1.bf16.msra.mxu0 %v5666
    %6264 = vmatprep.subr.bf16.mxu0 %v5675
    %6265 = vmatpush1.bf16.msra.mxu0 %v5674
    %6266 = vmatprep.subr.bf16.mxu0 %v5683
    %6267 = vmatpush1.bf16.msra.mxu0 %v5682
    %6268 = vmatprep.subr.bf16.mxu0 %v5691
    %6269 = vmatpush1.bf16.msra.mxu0 %v5690
    %6270 = vmatprep.subr.bf16.mxu0 %v5699
    %6271 = vmatpush1.bf16.msra.mxu0 %v5698
    %6272 = vmatprep.subr.bf16.mxu0 %v5707
    %6273 = vmatpush1.bf16.msra.mxu0 %v5706
    %6274 = vmatprep.mubr.bf16.mxu0 %v2848
    %6275 = vmatmul.mubr.bf16.gmra.mrb[0].mxu0 %v2847
    %v6276 = vpop.f32.mrb[0].mxu0
    %v6277 = vadd.f32 %v4486, %v6276
    %v6278 = vpop.f32.mrb[0].mxu0
    %v6279 = vadd.f32 %v4488, %v6278
    %v6280 = vpop.f32.mrb[0].mxu0
    %v6281 = vadd.f32 %v4490, %v6280
    %v6282 = vpop.f32.mrb[0].mxu0
    %v6283 = vadd.f32 %v4492, %v6282
    %6284 = vmatprep.mubr.bf16.mxu0 %v2852
    %6285 = vmatmul.mubr.bf16.gmra.mrb[0].mxu0 %v2851
    %v6286 = vpop.f32.mrb[0].mxu0
    %v6287 = vadd.f32 %v4496, %v6286
    %v6288 = vpop.f32.mrb[0].mxu0
    %v6289 = vadd.f32 %v4498, %v6288
    %v6290 = vpop.f32.mrb[0].mxu0
    %v6291 = vadd.f32 %v4500, %v6290
    %v6292 = vpop.f32.mrb[0].mxu0
    %v6293 = vadd.f32 %v4502, %v6292
    %6294 = vmatprep.mubr.bf16.mxu0 %v2856
    %6295 = vmatmul.mubr.bf16.gmra.mrb[0].mxu0 %v2855
    %v6296 = vpop.f32.mrb[0].mxu0
    %v6297 = vadd.f32 %v4506, %v6296
    %v6298 = vpop.f32.mrb[0].mxu0
    %v6299 = vadd.f32 %v4508, %v6298
    %v6300 = vpop.f32.mrb[0].mxu0
    %v6301 = vadd.f32 %v4510, %v6300
    %v6302 = vpop.f32.mrb[0].mxu0
    %v6303 = vadd.f32 %v4512, %v6302
    %6304 = vmatprep.mubr.bf16.mxu0 %v2860
    %6305 = vmatmul.mubr.bf16.gmra.mrb[0].mxu0 %v2859
    %v6306 = vpop.f32.mrb[0].mxu0
    %v6307 = vadd.f32 %v4516, %v6306
    %v6308 = vpop.f32.mrb[0].mxu0
    %v6309 = vadd.f32 %v4518, %v6308
    %v6310 = vpop.f32.mrb[0].mxu0
    %v6311 = vadd.f32 %v4520, %v6310
    %v6312 = vpop.f32.mrb[0].mxu0
    %v6313 = vadd.f32 %v4522, %v6312
    %6314 = vdwg.mxu0
    %6315 = vmatprep.subr.bf16.mxu0 %v5715
    %6316 = vmatpush1.bf16.msra.mxu0 %v5714
    %6317 = vmatprep.subr.bf16.mxu0 %v5723
    %6318 = vmatpush1.bf16.msra.mxu0 %v5722
    %6319 = vmatprep.subr.bf16.mxu0 %v5731
    %6320 = vmatpush1.bf16.msra.mxu0 %v5730
    %6321 = vmatprep.subr.bf16.mxu0 %v5739
    %6322 = vmatpush1.bf16.msra.mxu0 %v5738
    %6323 = vmatprep.subr.bf16.mxu0 %v5747
    %6324 = vmatpush1.bf16.msra.mxu0 %v5746
    %6325 = vmatprep.subr.bf16.mxu0 %v5755
    %6326 = vmatpush1.bf16.msra.mxu0 %v5754
    %6327 = vmatprep.subr.bf16.mxu0 %v5763
    %6328 = vmatpush1.bf16.msra.mxu0 %v5762
    %6329 = vmatprep.subr.bf16.mxu0 %v5771
    %6330 = vmatpush1.bf16.msra.mxu0 %v5770
    %6331 = vmatprep.subr.bf16.mxu0 %v5779
    %6332 = vmatpush1.bf16.msra.mxu0 %v5778
    %6333 = vmatprep.subr.bf16.mxu0 %v5787
    %6334 = vmatpush1.bf16.msra.mxu0 %v5786
    %6335 = vmatprep.subr.bf16.mxu0 %v5795
    %6336 = vmatpush1.bf16.msra.mxu0 %v5794
    %6337 = vmatprep.subr.bf16.mxu0 %v5803
    %6338 = vmatpush1.bf16.msra.mxu0 %v5802
    %6339 = vmatprep.subr.bf16.mxu0 %v5811
    %6340 = vmatpush1.bf16.msra.mxu0 %v5810
    %6341 = vmatprep.subr.bf16.mxu0 %v5819
    %6342 = vmatpush1.bf16.msra.mxu0 %v5818
    %6343 = vmatprep.subr.bf16.mxu0 %v5827
    %6344 = vmatpush1.bf16.msra.mxu0 %v5826
    %6345 = vmatprep.subr.bf16.mxu0 %v5835
    %6346 = vmatpush1.bf16.msra.mxu0 %v5834
    %6347 = vmatprep.mubr.bf16.mxu0 %v2850
    %6348 = vmatmul.mubr.bf16.gmra.mrb[0].mxu0 %v2849
    %v6349 = vpop.f32.mrb[0].mxu0
    %v6350 = vadd.f32 %v6277, %v6349
    %v6351 = vpop.f32.mrb[0].mxu0
    %v6352 = vadd.f32 %v6279, %v6351
    %v6353 = vpop.f32.mrb[0].mxu0
    %v6354 = vadd.f32 %v6281, %v6353
    %v6355 = vpop.f32.mrb[0].mxu0
    %v6356 = vadd.f32 %v6283, %v6355
    %6357 = vmatprep.mubr.bf16.mxu0 %v2854
    %6358 = vmatmul.mubr.bf16.gmra.mrb[0].mxu0 %v2853
    %v6359 = vpop.f32.mrb[0].mxu0
    %v6360 = vadd.f32 %v6287, %v6359
    %v6361 = vpop.f32.mrb[0].mxu0
    %v6362 = vadd.f32 %v6289, %v6361
    %v6363 = vpop.f32.mrb[0].mxu0
    %v6364 = vadd.f32 %v6291, %v6363
    %v6365 = vpop.f32.mrb[0].mxu0
    %v6366 = vadd.f32 %v6293, %v6365
    %6367 = vmatprep.mubr.bf16.mxu0 %v2858
    %6368 = vmatmul.mubr.bf16.gmra.mrb[0].mxu0 %v2857
    %v6369 = vpop.f32.mrb[0].mxu0
    %v6370 = vadd.f32 %v6297, %v6369
    %v6371 = vpop.f32.mrb[0].mxu0
    %v6372 = vadd.f32 %v6299, %v6371
    %v6373 = vpop.f32.mrb[0].mxu0
    %v6374 = vadd.f32 %v6301, %v6373
    %v6375 = vpop.f32.mrb[0].mxu0
    %v6376 = vadd.f32 %v6303, %v6375
    %6377 = vmatprep.mubr.bf16.mxu0 %v2862
    %6378 = vmatmul.mubr.bf16.gmra.mrb[0].mxu0 %v2861
    %v6379 = vpop.f32.mrb[0].mxu0
    %v6380 = vadd.f32 %v6307, %v6379
    %v6381 = vpop.f32.mrb[0].mxu0
    %v6382 = vadd.f32 %v6309, %v6381
    %v6383 = vpop.f32.mrb[0].mxu0
    %v6384 = vadd.f32 %v6311, %v6383
    %v6385 = vpop.f32.mrb[0].mxu0
    %v6386 = vadd.f32 %v6313, %v6385
    %6387 = vdwg.mxu0
    %6388 = vmatprep.subr.bf16.mxu0 %v5589
    %6389 = vmatpush1.bf16.msra.mxu0 %v5588
    %6390 = vmatprep.subr.bf16.mxu0 %v5597
    %6391 = vmatpush1.bf16.msra.mxu0 %v5596
    %6392 = vmatprep.subr.bf16.mxu0 %v5605
    %6393 = vmatpush1.bf16.msra.mxu0 %v5604
    %6394 = vmatprep.subr.bf16.mxu0 %v5613
    %6395 = vmatpush1.bf16.msra.mxu0 %v5612
    %6396 = vmatprep.subr.bf16.mxu0 %v5621
    %6397 = vmatpush1.bf16.msra.mxu0 %v5620
    %6398 = vmatprep.subr.bf16.mxu0 %v5629
    %6399 = vmatpush1.bf16.msra.mxu0 %v5628
    %6400 = vmatprep.subr.bf16.mxu0 %v5637
    %6401 = vmatpush1.bf16.msra.mxu0 %v5636
    %6402 = vmatprep.subr.bf16.mxu0 %v5645
    %6403 = vmatpush1.bf16.msra.mxu0 %v5644
    %6404 = vmatprep.subr.bf16.mxu0 %v5653
    %6405 = vmatpush1.bf16.msra.mxu0 %v5652
    %6406 = vmatprep.subr.bf16.mxu0 %v5661
    %6407 = vmatpush1.bf16.msra.mxu0 %v5660
    %6408 = vmatprep.subr.bf16.mxu0 %v5669
    %6409 = vmatpush1.bf16.msra.mxu0 %v5668
    %6410 = vmatprep.subr.bf16.mxu0 %v5677
    %6411 = vmatpush1.bf16.msra.mxu0 %v5676
    %6412 = vmatprep.subr.bf16.mxu0 %v5685
    %6413 = vmatpush1.bf16.msra.mxu0 %v5684
    %6414 = vmatprep.subr.bf16.mxu0 %v5693
    %6415 = vmatpush1.bf16.msra.mxu0 %v5692
    %6416 = vmatprep.subr.bf16.mxu0 %v5701
    %6417 = vmatpush1.bf16.msra.mxu0 %v5700
    %6418 = vmatprep.subr.bf16.mxu0 %v5709
    %6419 = vmatpush1.bf16.msra.mxu0 %v5708
    %6420 = vmatprep.mubr.bf16.mxu0 %v2848
    %6421 = vmatmul.mubr.bf16.gmra.mrb[0].mxu0 %v2847
    %v6422 = vpop.f32.mrb[0].mxu0
    %v6423 = vadd.f32 %v4632, %v6422
    %v6424 = vpop.f32.mrb[0].mxu0
    %v6425 = vadd.f32 %v4634, %v6424
    %v6426 = vpop.f32.mrb[0].mxu0
    %v6427 = vadd.f32 %v4636, %v6426
    %v6428 = vpop.f32.mrb[0].mxu0
    %v6429 = vadd.f32 %v4638, %v6428
    %6430 = vmatprep.mubr.bf16.mxu0 %v2852
    %6431 = vmatmul.mubr.bf16.gmra.mrb[0].mxu0 %v2851
    %v6432 = vpop.f32.mrb[0].mxu0
    %v6433 = vadd.f32 %v4642, %v6432
    %v6434 = vpop.f32.mrb[0].mxu0
    %v6435 = vadd.f32 %v4644, %v6434
    %v6436 = vpop.f32.mrb[0].mxu0
    %v6437 = vadd.f32 %v4646, %v6436
    %v6438 = vpop.f32.mrb[0].mxu0
    %v6439 = vadd.f32 %v4648, %v6438
    %6440 = vmatprep.mubr.bf16.mxu0 %v2856
    %6441 = vmatmul.mubr.bf16.gmra.mrb[0].mxu0 %v2855
    %v6442 = vpop.f32.mrb[0].mxu0
    %v6443 = vadd.f32 %v4652, %v6442
    %v6444 = vpop.f32.mrb[0].mxu0
    %v6445 = vadd.f32 %v4654, %v6444
    %v6446 = vpop.f32.mrb[0].mxu0
    %v6447 = vadd.f32 %v4656, %v6446
    %v6448 = vpop.f32.mrb[0].mxu0
    %v6449 = vadd.f32 %v4658, %v6448
    %6450 = vmatprep.mubr.bf16.mxu0 %v2860
    %6451 = vmatmul.mubr.bf16.gmra.mrb[0].mxu0 %v2859
    %v6452 = vpop.f32.mrb[0].mxu0
    %v6453 = vadd.f32 %v4662, %v6452
    %v6454 = vpop.f32.mrb[0].mxu0
    %v6455 = vadd.f32 %v4664, %v6454
    %v6456 = vpop.f32.mrb[0].mxu0
    %v6457 = vadd.f32 %v4666, %v6456
    %v6458 = vpop.f32.mrb[0].mxu0
    %v6459 = vadd.f32 %v4668, %v6458
    %6460 = vdwg.mxu0
    %6461 = vmatprep.subr.bf16.mxu0 %v5717
    %6462 = vmatpush1.bf16.msra.mxu0 %v5716
    %6463 = vmatprep.subr.bf16.mxu0 %v5725
    %6464 = vmatpush1.bf16.msra.mxu0 %v5724
    %6465 = vmatprep.subr.bf16.mxu0 %v5733
    %6466 = vmatpush1.bf16.msra.mxu0 %v5732
    %6467 = vmatprep.subr.bf16.mxu0 %v5741
    %6468 = vmatpush1.bf16.msra.mxu0 %v5740
    %6469 = vmatprep.subr.bf16.mxu0 %v5749
    %6470 = vmatpush1.bf16.msra.mxu0 %v5748
    %6471 = vmatprep.subr.bf16.mxu0 %v5757
    %6472 = vmatpush1.bf16.msra.mxu0 %v5756
    %6473 = vmatprep.subr.bf16.mxu0 %v5765
    %6474 = vmatpush1.bf16.msra.mxu0 %v5764
    %6475 = vmatprep.subr.bf16.mxu0 %v5773
    %6476 = vmatpush1.bf16.msra.mxu0 %v5772
    %6477 = vmatprep.subr.bf16.mxu0 %v5781
    %6478 = vmatpush1.bf16.msra.mxu0 %v5780
    %6479 = vmatprep.subr.bf16.mxu0 %v5789
    %6480 = vmatpush1.bf16.msra.mxu0 %v5788
    %6481 = vmatprep.subr.bf16.mxu0 %v5797
    %6482 = vmatpush1.bf16.msra.mxu0 %v5796
    %6483 = vmatprep.subr.bf16.mxu0 %v5805
    %6484 = vmatpush1.bf16.msra.mxu0 %v5804
    %6485 = vmatprep.subr.bf16.mxu0 %v5813
    %6486 = vmatpush1.bf16.msra.mxu0 %v5812
    %6487 = vmatprep.subr.bf16.mxu0 %v5821
    %6488 = vmatpush1.bf16.msra.mxu0 %v5820
    %6489 = vmatprep.subr.bf16.mxu0 %v5829
    %6490 = vmatpush1.bf16.msra.mxu0 %v5828
    %6491 = vmatprep.subr.bf16.mxu0 %v5837
    %6492 = vmatpush1.bf16.msra.mxu0 %v5836
    %6493 = vmatprep.mubr.bf16.mxu0 %v2850
    %6494 = vmatmul.mubr.bf16.gmra.mrb[0].mxu0 %v2849
    %v6495 = vpop.f32.mrb[0].mxu0
    %v6496 = vadd.f32 %v6423, %v6495
    %v6497 = vpop.f32.mrb[0].mxu0
    %v6498 = vadd.f32 %v6425, %v6497
    %v6499 = vpop.f32.mrb[0].mxu0
    %v6500 = vadd.f32 %v6427, %v6499
    %v6501 = vpop.f32.mrb[0].mxu0
    %v6502 = vadd.f32 %v6429, %v6501
    %6503 = vmatprep.mubr.bf16.mxu0 %v2854
    %6504 = vmatmul.mubr.bf16.gmra.mrb[0].mxu0 %v2853
    %v6505 = vpop.f32.mrb[0].mxu0
    %v6506 = vadd.f32 %v6433, %v6505
    %v6507 = vpop.f32.mrb[0].mxu0
    %v6508 = vadd.f32 %v6435, %v6507
    %v6509 = vpop.f32.mrb[0].mxu0
    %v6510 = vadd.f32 %v6437, %v6509
    %v6511 = vpop.f32.mrb[0].mxu0
    %v6512 = vadd.f32 %v6439, %v6511
    %6513 = vmatprep.mubr.bf16.mxu0 %v2858
    %6514 = vmatmul.mubr.bf16.gmra.mrb[0].mxu0 %v2857
    %v6515 = vpop.f32.mrb[0].mxu0
    %v6516 = vadd.f32 %v6443, %v6515
    %v6517 = vpop.f32.mrb[0].mxu0
    %v6518 = vadd.f32 %v6445, %v6517
    %v6519 = vpop.f32.mrb[0].mxu0
    %v6520 = vadd.f32 %v6447, %v6519
    %v6521 = vpop.f32.mrb[0].mxu0
    %v6522 = vadd.f32 %v6449, %v6521
    %6523 = vmatprep.mubr.bf16.mxu0 %v2862
    %6524 = vmatmul.mubr.bf16.gmra.mrb[0].mxu0 %v2861
    %v6525 = vpop.f32.mrb[0].mxu0
    %v6526 = vadd.f32 %v6453, %v6525
    %v6527 = vpop.f32.mrb[0].mxu0
    %v6528 = vadd.f32 %v6455, %v6527
    %v6529 = vpop.f32.mrb[0].mxu0
    %v6530 = vadd.f32 %v6457, %v6529
    %v6531 = vpop.f32.mrb[0].mxu0
    %v6532 = vadd.f32 %v6459, %v6531
    %6533 = vdwg.mxu0
    %6534 = vmatprep.subr.bf16.mxu0 %v5591
    %6535 = vmatpush1.bf16.msra.mxu0 %v5590
    %6536 = vmatprep.subr.bf16.mxu0 %v5599
    %6537 = vmatpush1.bf16.msra.mxu0 %v5598
    %6538 = vmatprep.subr.bf16.mxu0 %v5607
    %6539 = vmatpush1.bf16.msra.mxu0 %v5606
    %6540 = vmatprep.subr.bf16.mxu0 %v5615
    %6541 = vmatpush1.bf16.msra.mxu0 %v5614
    %6542 = vmatprep.subr.bf16.mxu0 %v5623
    %6543 = vmatpush1.bf16.msra.mxu0 %v5622
    %6544 = vmatprep.subr.bf16.mxu0 %v5631
    %6545 = vmatpush1.bf16.msra.mxu0 %v5630
    %6546 = vmatprep.subr.bf16.mxu0 %v5639
    %6547 = vmatpush1.bf16.msra.mxu0 %v5638
    %6548 = vmatprep.subr.bf16.mxu0 %v5647
    %6549 = vmatpush1.bf16.msra.mxu0 %v5646
    %6550 = vmatprep.subr.bf16.mxu0 %v5655
    %6551 = vmatpush1.bf16.msra.mxu0 %v5654
    %6552 = vmatprep.subr.bf16.mxu0 %v5663
    %6553 = vmatpush1.bf16.msra.mxu0 %v5662
    %6554 = vmatprep.subr.bf16.mxu0 %v5671
    %6555 = vmatpush1.bf16.msra.mxu0 %v5670
    %6556 = vmatprep.subr.bf16.mxu0 %v5679
    %6557 = vmatpush1.bf16.msra.mxu0 %v5678
    %6558 = vmatprep.subr.bf16.mxu0 %v5687
    %6559 = vmatpush1.bf16.msra.mxu0 %v5686
    %6560 = vmatprep.subr.bf16.mxu0 %v5695
    %6561 = vmatpush1.bf16.msra.mxu0 %v5694
    %6562 = vmatprep.subr.bf16.mxu0 %v5703
    %6563 = vmatpush1.bf16.msra.mxu0 %v5702
    %6564 = vmatprep.subr.bf16.mxu0 %v5711
    %6565 = vmatpush1.bf16.msra.mxu0 %v5710
    %6566 = vmatprep.mubr.bf16.mxu0 %v2848
    %6567 = vmatmul.mubr.bf16.gmra.mrb[0].mxu0 %v2847
    %v6568 = vpop.f32.mrb[0].mxu0
    %v6569 = vadd.f32 %v4778, %v6568
    %v6570 = vpop.f32.mrb[0].mxu0
    %v6571 = vadd.f32 %v4780, %v6570
    %v6572 = vpop.f32.mrb[0].mxu0
    %v6573 = vadd.f32 %v4782, %v6572
    %v6574 = vpop.f32.mrb[0].mxu0
    %v6575 = vadd.f32 %v4784, %v6574
    %6576 = vmatprep.mubr.bf16.mxu0 %v2852
    %6577 = vmatmul.mubr.bf16.gmra.mrb[0].mxu0 %v2851
    %v6578 = vpop.f32.mrb[0].mxu0
    %v6579 = vadd.f32 %v4788, %v6578
    %v6580 = vpop.f32.mrb[0].mxu0
    %v6581 = vadd.f32 %v4790, %v6580
    %v6582 = vpop.f32.mrb[0].mxu0
    %v6583 = vadd.f32 %v4792, %v6582
    %v6584 = vpop.f32.mrb[0].mxu0
    %v6585 = vadd.f32 %v4794, %v6584
    %6586 = vmatprep.mubr.bf16.mxu0 %v2856
    %6587 = vmatmul.mubr.bf16.gmra.mrb[0].mxu0 %v2855
    %v6588 = vpop.f32.mrb[0].mxu0
    %v6589 = vadd.f32 %v4798, %v6588
    %v6590 = vpop.f32.mrb[0].mxu0
    %v6591 = vadd.f32 %v4800, %v6590
    %v6592 = vpop.f32.mrb[0].mxu0
    %v6593 = vadd.f32 %v4802, %v6592
    %v6594 = vpop.f32.mrb[0].mxu0
    %v6595 = vadd.f32 %v4804, %v6594
    %6596 = vmatprep.mubr.bf16.mxu0 %v2860
    %6597 = vmatmul.mubr.bf16.gmra.mrb[0].mxu0 %v2859
    %v6598 = vpop.f32.mrb[0].mxu0
    %v6599 = vadd.f32 %v4808, %v6598
    %v6600 = vpop.f32.mrb[0].mxu0
    %v6601 = vadd.f32 %v4810, %v6600
    %v6602 = vpop.f32.mrb[0].mxu0
    %v6603 = vadd.f32 %v4812, %v6602
    %v6604 = vpop.f32.mrb[0].mxu0
    %v6605 = vadd.f32 %v4814, %v6604
    %6606 = vdwg.mxu0
    %6607 = vmatprep.subr.bf16.mxu0 %v5719
    %6608 = vmatpush1.bf16.msra.mxu0 %v5718
    %6609 = vmatprep.subr.bf16.mxu0 %v5727
    %6610 = vmatpush1.bf16.msra.mxu0 %v5726
    %6611 = vmatprep.subr.bf16.mxu0 %v5735
    %6612 = vmatpush1.bf16.msra.mxu0 %v5734
    %6613 = vmatprep.subr.bf16.mxu0 %v5743
    %6614 = vmatpush1.bf16.msra.mxu0 %v5742
    %6615 = vmatprep.subr.bf16.mxu0 %v5751
    %6616 = vmatpush1.bf16.msra.mxu0 %v5750
    %6617 = vmatprep.subr.bf16.mxu0 %v5759
    %6618 = vmatpush1.bf16.msra.mxu0 %v5758
    %6619 = vmatprep.subr.bf16.mxu0 %v5767
    %6620 = vmatpush1.bf16.msra.mxu0 %v5766
    %6621 = vmatprep.subr.bf16.mxu0 %v5775
    %6622 = vmatpush1.bf16.msra.mxu0 %v5774
    %6623 = vmatprep.subr.bf16.mxu0 %v5783
    %6624 = vmatpush1.bf16.msra.mxu0 %v5782
    %6625 = vmatprep.subr.bf16.mxu0 %v5791
    %6626 = vmatpush1.bf16.msra.mxu0 %v5790
    %6627 = vmatprep.subr.bf16.mxu0 %v5799
    %6628 = vmatpush1.bf16.msra.mxu0 %v5798
    %6629 = vmatprep.subr.bf16.mxu0 %v5807
    %6630 = vmatpush1.bf16.msra.mxu0 %v5806
    %6631 = vmatprep.subr.bf16.mxu0 %v5815
    %6632 = vmatpush1.bf16.msra.mxu0 %v5814
    %6633 = vmatprep.subr.bf16.mxu0 %v5823
    %6634 = vmatpush1.bf16.msra.mxu0 %v5822
    %6635 = vmatprep.subr.bf16.mxu0 %v5831
    %6636 = vmatpush1.bf16.msra.mxu0 %v5830
    %6637 = vmatprep.subr.bf16.mxu0 %v5839
    %6638 = vmatpush1.bf16.msra.mxu0 %v5838
    %6639 = vmatprep.mubr.bf16.mxu0 %v2850
    %6640 = vmatmul.mubr.bf16.gmra.mrb[0].mxu0 %v2849
    %v6641 = vpop.f32.mrb[0].mxu0
    %v6642 = vadd.f32 %v6569, %v6641
    %v6643 = vpop.f32.mrb[0].mxu0
    %v6644 = vadd.f32 %v6571, %v6643
    %v6645 = vpop.f32.mrb[0].mxu0
    %v6646 = vadd.f32 %v6573, %v6645
    %v6647 = vpop.f32.mrb[0].mxu0
    %v6648 = vadd.f32 %v6575, %v6647
    %6649 = vmatprep.mubr.bf16.mxu0 %v2854
    %6650 = vmatmul.mubr.bf16.gmra.mrb[0].mxu0 %v2853
    %v6651 = vpop.f32.mrb[0].mxu0
    %v6652 = vadd.f32 %v6579, %v6651
    %v6653 = vpop.f32.mrb[0].mxu0
    %v6654 = vadd.f32 %v6581, %v6653
    %v6655 = vpop.f32.mrb[0].mxu0
    %v6656 = vadd.f32 %v6583, %v6655
    %v6657 = vpop.f32.mrb[0].mxu0
    %v6658 = vadd.f32 %v6585, %v6657
    %6659 = vmatprep.mubr.bf16.mxu0 %v2858
    %6660 = vmatmul.mubr.bf16.gmra.mrb[0].mxu0 %v2857
    %v6661 = vpop.f32.mrb[0].mxu0
    %v6662 = vadd.f32 %v6589, %v6661
    %v6663 = vpop.f32.mrb[0].mxu0
    %v6664 = vadd.f32 %v6591, %v6663
    %v6665 = vpop.f32.mrb[0].mxu0
    %v6666 = vadd.f32 %v6593, %v6665
    %v6667 = vpop.f32.mrb[0].mxu0
    %v6668 = vadd.f32 %v6595, %v6667
    %6669 = vmatprep.mubr.bf16.mxu0 %v2862
    %6670 = vmatmul.mubr.bf16.gmra.mrb[0].mxu0 %v2861
    %v6671 = vpop.f32.mrb[0].mxu0
    %v6672 = vadd.f32 %v6599, %v6671
    %v6673 = vpop.f32.mrb[0].mxu0
    %v6674 = vadd.f32 %v6601, %v6673
    %v6675 = vpop.f32.mrb[0].mxu0
    %v6676 = vadd.f32 %v6603, %v6675
    %v6677 = vpop.f32.mrb[0].mxu0
    %v6678 = vadd.f32 %v6605, %v6677
    %6679 = vdwg.mxu0
    %v6936 = vunpack.c.l.b16 %v2559
    %v6937 = vunpack.c.h.b16 %v2559
    %v6938 = vunpack.c.l.b16 %v2560
    %v6939 = vunpack.c.h.b16 %v2560
    %v6940 = vunpack.c.l.b16 %v2561
    %v6941 = vunpack.c.h.b16 %v2561
    %v6942 = vunpack.c.l.b16 %v2562
    %v6943 = vunpack.c.h.b16 %v2562
    %v6944 = vunpack.c.l.b16 %v2563
    %v6945 = vunpack.c.h.b16 %v2563
    %v6946 = vunpack.c.l.b16 %v2564
    %v6947 = vunpack.c.h.b16 %v2564
    %v6948 = vunpack.c.l.b16 %v2565
    %v6949 = vunpack.c.h.b16 %v2565
    %v6950 = vunpack.c.l.b16 %v2566
    %v6951 = vunpack.c.h.b16 %v2566
    %v6952 = vunpack.c.l.b16 %v2567
    %v6953 = vunpack.c.h.b16 %v2567
    %v6954 = vunpack.c.l.b16 %v2568
    %v6955 = vunpack.c.h.b16 %v2568
    %v6956 = vunpack.c.l.b16 %v2569
    %v6957 = vunpack.c.h.b16 %v2569
    %v6958 = vunpack.c.l.b16 %v2570
    %v6959 = vunpack.c.h.b16 %v2570
    %v6960 = vunpack.c.l.b16 %v2571
    %v6961 = vunpack.c.h.b16 %v2571
    %v6962 = vunpack.c.l.b16 %v2572
    %v6963 = vunpack.c.h.b16 %v2572
    %v6964 = vunpack.c.l.b16 %v2573
    %v6965 = vunpack.c.h.b16 %v2573
    %v6966 = vunpack.c.l.b16 %v2574
    %v6967 = vunpack.c.h.b16 %v2574
    %v6968 = vunpack.c.l.b16 %v2575
    %v6969 = vunpack.c.h.b16 %v2575
    %v6970 = vunpack.c.l.b16 %v2576
    %v6971 = vunpack.c.h.b16 %v2576
    %v6972 = vunpack.c.l.b16 %v2577
    %v6973 = vunpack.c.h.b16 %v2577
    %v6974 = vunpack.c.l.b16 %v2578
    %v6975 = vunpack.c.h.b16 %v2578
    %v6976 = vunpack.c.l.b16 %v2579
    %v6977 = vunpack.c.h.b16 %v2579
    %v6978 = vunpack.c.l.b16 %v2580
    %v6979 = vunpack.c.h.b16 %v2580
    %v6980 = vunpack.c.l.b16 %v2581
    %v6981 = vunpack.c.h.b16 %v2581
    %v6982 = vunpack.c.l.b16 %v2582
    %v6983 = vunpack.c.h.b16 %v2582
    %v6984 = vunpack.c.l.b16 %v2583
    %v6985 = vunpack.c.h.b16 %v2583
    %v6986 = vunpack.c.l.b16 %v2584
    %v6987 = vunpack.c.h.b16 %v2584
    %v6988 = vunpack.c.l.b16 %v2585
    %v6989 = vunpack.c.h.b16 %v2585
    %v6990 = vunpack.c.l.b16 %v2586
    %v6991 = vunpack.c.h.b16 %v2586
    %v6992 = vunpack.c.l.b16 %v2587
    %v6993 = vunpack.c.h.b16 %v2587
    %v6994 = vunpack.c.l.b16 %v2588
    %v6995 = vunpack.c.h.b16 %v2588
    %v6996 = vunpack.c.l.b16 %v2589
    %v6997 = vunpack.c.h.b16 %v2589
    %v6998 = vunpack.c.l.b16 %v2590
    %v6999 = vunpack.c.h.b16 %v2590
    %v7000 = vunpack.c.l.b16 %v2591
    %v7001 = vunpack.c.h.b16 %v2591
    %v7002 = vunpack.c.l.b16 %v2592
    %v7003 = vunpack.c.h.b16 %v2592
    %v7004 = vunpack.c.l.b16 %v2593
    %v7005 = vunpack.c.h.b16 %v2593
    %v7006 = vunpack.c.l.b16 %v2594
    %v7007 = vunpack.c.h.b16 %v2594
    %v7008 = vunpack.c.l.b16 %v2595
    %v7009 = vunpack.c.h.b16 %v2595
    %v7010 = vunpack.c.l.b16 %v2596
    %v7011 = vunpack.c.h.b16 %v2596
    %v7012 = vunpack.c.l.b16 %v2597
    %v7013 = vunpack.c.h.b16 %v2597
    %v7014 = vunpack.c.l.b16 %v2598
    %v7015 = vunpack.c.h.b16 %v2598
    %v7016 = vunpack.c.l.b16 %v2599
    %v7017 = vunpack.c.h.b16 %v2599
    %v7018 = vunpack.c.l.b16 %v2600
    %v7019 = vunpack.c.h.b16 %v2600
    %v7020 = vunpack.c.l.b16 %v2601
    %v7021 = vunpack.c.h.b16 %v2601
    %v7022 = vunpack.c.l.b16 %v2602
    %v7023 = vunpack.c.h.b16 %v2602
    %v7024 = vunpack.c.l.b16 %v2603
    %v7025 = vunpack.c.h.b16 %v2603
    %v7026 = vunpack.c.l.b16 %v2604
    %v7027 = vunpack.c.h.b16 %v2604
    %v7028 = vunpack.c.l.b16 %v2605
    %v7029 = vunpack.c.h.b16 %v2605
    %v7030 = vunpack.c.l.b16 %v2606
    %v7031 = vunpack.c.h.b16 %v2606
    %v7032 = vunpack.c.l.b16 %v2607
    %v7033 = vunpack.c.h.b16 %v2607
    %v7034 = vunpack.c.l.b16 %v2608
    %v7035 = vunpack.c.h.b16 %v2608
    %v7036 = vunpack.c.l.b16 %v2609
    %v7037 = vunpack.c.h.b16 %v2609
    %v7038 = vunpack.c.l.b16 %v2610
    %v7039 = vunpack.c.h.b16 %v2610
    %v7040 = vunpack.c.l.b16 %v2611
    %v7041 = vunpack.c.h.b16 %v2611
    %v7042 = vunpack.c.l.b16 %v2612
    %v7043 = vunpack.c.h.b16 %v2612
    %v7044 = vunpack.c.l.b16 %v2613
    %v7045 = vunpack.c.h.b16 %v2613
    %v7046 = vunpack.c.l.b16 %v2614
    %v7047 = vunpack.c.h.b16 %v2614
    %v7048 = vunpack.c.l.b16 %v2615
    %v7049 = vunpack.c.h.b16 %v2615
    %v7050 = vunpack.c.l.b16 %v2616
    %v7051 = vunpack.c.h.b16 %v2616
    %v7052 = vunpack.c.l.b16 %v2617
    %v7053 = vunpack.c.h.b16 %v2617
    %v7054 = vunpack.c.l.b16 %v2618
    %v7055 = vunpack.c.h.b16 %v2618
    %v7056 = vunpack.c.l.b16 %v2619
    %v7057 = vunpack.c.h.b16 %v2619
    %v7058 = vunpack.c.l.b16 %v2620
    %v7059 = vunpack.c.h.b16 %v2620
    %v7060 = vunpack.c.l.b16 %v2621
    %v7061 = vunpack.c.h.b16 %v2621
    %v7062 = vunpack.c.l.b16 %v2622
    %v7063 = vunpack.c.h.b16 %v2622
    %v7064 = vunpack.c.l.b16 %v2623
    %v7065 = vunpack.c.h.b16 %v2623
    %v7066 = vunpack.c.l.b16 %v2624
    %v7067 = vunpack.c.h.b16 %v2624
    %v7068 = vunpack.c.l.b16 %v2625
    %v7069 = vunpack.c.h.b16 %v2625
    %v7070 = vunpack.c.l.b16 %v2626
    %v7071 = vunpack.c.h.b16 %v2626
    %v7072 = vunpack.c.l.b16 %v2627
    %v7073 = vunpack.c.h.b16 %v2627
    %v7074 = vunpack.c.l.b16 %v2628
    %v7075 = vunpack.c.h.b16 %v2628
    %v7076 = vunpack.c.l.b16 %v2629
    %v7077 = vunpack.c.h.b16 %v2629
    %v7078 = vunpack.c.l.b16 %v2630
    %v7079 = vunpack.c.h.b16 %v2630
    %v7080 = vunpack.c.l.b16 %v2631
    %v7081 = vunpack.c.h.b16 %v2631
    %v7082 = vunpack.c.l.b16 %v2632
    %v7083 = vunpack.c.h.b16 %v2632
    %v7084 = vunpack.c.l.b16 %v2633
    %v7085 = vunpack.c.h.b16 %v2633
    %v7086 = vunpack.c.l.b16 %v2634
    %v7087 = vunpack.c.h.b16 %v2634
    %v7088 = vunpack.c.l.b16 %v2635
    %v7089 = vunpack.c.h.b16 %v2635
    %v7090 = vunpack.c.l.b16 %v2636
    %v7091 = vunpack.c.h.b16 %v2636
    %v7092 = vunpack.c.l.b16 %v2637
    %v7093 = vunpack.c.h.b16 %v2637
    %v7094 = vunpack.c.l.b16 %v2638
    %v7095 = vunpack.c.h.b16 %v2638
    %v7096 = vunpack.c.l.b16 %v2639
    %v7097 = vunpack.c.h.b16 %v2639
    %v7098 = vunpack.c.l.b16 %v2640
    %v7099 = vunpack.c.h.b16 %v2640
    %v7100 = vunpack.c.l.b16 %v2641
    %v7101 = vunpack.c.h.b16 %v2641
    %v7102 = vunpack.c.l.b16 %v2642
    %v7103 = vunpack.c.h.b16 %v2642
    %v7104 = vunpack.c.l.b16 %v2643
    %v7105 = vunpack.c.h.b16 %v2643
    %v7106 = vunpack.c.l.b16 %v2644
    %v7107 = vunpack.c.h.b16 %v2644
    %v7108 = vunpack.c.l.b16 %v2645
    %v7109 = vunpack.c.h.b16 %v2645
    %v7110 = vunpack.c.l.b16 %v2646
    %v7111 = vunpack.c.h.b16 %v2646
    %v7112 = vunpack.c.l.b16 %v2647
    %v7113 = vunpack.c.h.b16 %v2647
    %v7114 = vunpack.c.l.b16 %v2648
    %v7115 = vunpack.c.h.b16 %v2648
    %v7116 = vunpack.c.l.b16 %v2649
    %v7117 = vunpack.c.h.b16 %v2649
    %v7118 = vunpack.c.l.b16 %v2650
    %v7119 = vunpack.c.h.b16 %v2650
    %v7120 = vunpack.c.l.b16 %v2651
    %v7121 = vunpack.c.h.b16 %v2651
    %v7122 = vunpack.c.l.b16 %v2652
    %v7123 = vunpack.c.h.b16 %v2652
    %v7124 = vunpack.c.l.b16 %v2653
    %v7125 = vunpack.c.h.b16 %v2653
    %v7126 = vunpack.c.l.b16 %v2654
    %v7127 = vunpack.c.h.b16 %v2654
    %v7128 = vunpack.c.l.b16 %v2655
    %v7129 = vunpack.c.h.b16 %v2655
    %v7130 = vunpack.c.l.b16 %v2656
    %v7131 = vunpack.c.h.b16 %v2656
    %v7132 = vunpack.c.l.b16 %v2657
    %v7133 = vunpack.c.h.b16 %v2657
    %v7134 = vunpack.c.l.b16 %v2658
    %v7135 = vunpack.c.h.b16 %v2658
    %v7136 = vunpack.c.l.b16 %v2659
    %v7137 = vunpack.c.h.b16 %v2659
    %v7138 = vunpack.c.l.b16 %v2660
    %v7139 = vunpack.c.h.b16 %v2660
    %v7140 = vunpack.c.l.b16 %v2661
    %v7141 = vunpack.c.h.b16 %v2661
    %v7142 = vunpack.c.l.b16 %v2662
    %v7143 = vunpack.c.h.b16 %v2662
    %v7144 = vunpack.c.l.b16 %v2663
    %v7145 = vunpack.c.h.b16 %v2663
    %v7146 = vunpack.c.l.b16 %v2664
    %v7147 = vunpack.c.h.b16 %v2664
    %v7148 = vunpack.c.l.b16 %v2665
    %v7149 = vunpack.c.h.b16 %v2665
    %v7150 = vunpack.c.l.b16 %v2666
    %v7151 = vunpack.c.h.b16 %v2666
    %v7152 = vunpack.c.l.b16 %v2667
    %v7153 = vunpack.c.h.b16 %v2667
    %v7154 = vunpack.c.l.b16 %v2668
    %v7155 = vunpack.c.h.b16 %v2668
    %v7156 = vunpack.c.l.b16 %v2669
    %v7157 = vunpack.c.h.b16 %v2669
    %v7158 = vunpack.c.l.b16 %v2670
    %v7159 = vunpack.c.h.b16 %v2670
    %v7160 = vunpack.c.l.b16 %v2671
    %v7161 = vunpack.c.h.b16 %v2671
    %v7162 = vunpack.c.l.b16 %v2672
    %v7163 = vunpack.c.h.b16 %v2672
    %v7164 = vunpack.c.l.b16 %v2673
    %v7165 = vunpack.c.h.b16 %v2673
    %v7166 = vunpack.c.l.b16 %v2674
    %v7167 = vunpack.c.h.b16 %v2674
    %v7168 = vunpack.c.l.b16 %v2675
    %v7169 = vunpack.c.h.b16 %v2675
    %v7170 = vunpack.c.l.b16 %v2676
    %v7171 = vunpack.c.h.b16 %v2676
    %v7172 = vunpack.c.l.b16 %v2677
    %v7173 = vunpack.c.h.b16 %v2677
    %v7174 = vunpack.c.l.b16 %v2678
    %v7175 = vunpack.c.h.b16 %v2678
    %v7176 = vunpack.c.l.b16 %v2679
    %v7177 = vunpack.c.h.b16 %v2679
    %v7178 = vunpack.c.l.b16 %v2680
    %v7179 = vunpack.c.h.b16 %v2680
    %v7180 = vunpack.c.l.b16 %v2681
    %v7181 = vunpack.c.h.b16 %v2681
    %v7182 = vunpack.c.l.b16 %v2682
    %v7183 = vunpack.c.h.b16 %v2682
    %v7184 = vunpack.c.l.b16 %v2683
    %v7185 = vunpack.c.h.b16 %v2683
    %v7186 = vunpack.c.l.b16 %v2684
    %v7187 = vunpack.c.h.b16 %v2684
    %v7188 = vunpack.c.l.b16 %v2685
    %v7189 = vunpack.c.h.b16 %v2685
    %v7190 = vunpack.c.l.b16 %v2686
    %v7191 = vunpack.c.h.b16 %v2686
    %v7192 = vunpack.c.l.b16 %v2687
    %v7193 = vunpack.c.h.b16 %v2687
    %v7194 = vunpack.c.l.b16 %v2688
    %v7195 = vunpack.c.h.b16 %v2688
    %v7196 = vunpack.c.l.b16 %v2689
    %v7197 = vunpack.c.h.b16 %v2689
    %v7198 = vunpack.c.l.b16 %v2690
    %v7199 = vunpack.c.h.b16 %v2690
    %v7200 = vunpack.c.l.b16 %v2691
    %v7201 = vunpack.c.h.b16 %v2691
    %v7202 = vunpack.c.l.b16 %v2692
    %v7203 = vunpack.c.h.b16 %v2692
    %v7204 = vunpack.c.l.b16 %v2693
    %v7205 = vunpack.c.h.b16 %v2693
    %v7206 = vunpack.c.l.b16 %v2694
    %v7207 = vunpack.c.h.b16 %v2694
    %v7208 = vunpack.c.l.b16 %v2695
    %v7209 = vunpack.c.h.b16 %v2695
    %v7210 = vunpack.c.l.b16 %v2696
    %v7211 = vunpack.c.h.b16 %v2696
    %v7212 = vunpack.c.l.b16 %v2697
    %v7213 = vunpack.c.h.b16 %v2697
    %v7214 = vunpack.c.l.b16 %v2698
    %v7215 = vunpack.c.h.b16 %v2698
    %v7216 = vunpack.c.l.b16 %v2699
    %v7217 = vunpack.c.h.b16 %v2699
    %v7218 = vunpack.c.l.b16 %v2700
    %v7219 = vunpack.c.h.b16 %v2700
    %v7220 = vunpack.c.l.b16 %v2701
    %v7221 = vunpack.c.h.b16 %v2701
    %v7222 = vunpack.c.l.b16 %v2702
    %v7223 = vunpack.c.h.b16 %v2702
    %v7224 = vunpack.c.l.b16 %v2703
    %v7225 = vunpack.c.h.b16 %v2703
    %v7226 = vunpack.c.l.b16 %v2704
    %v7227 = vunpack.c.h.b16 %v2704
    %v7228 = vunpack.c.l.b16 %v2705
    %v7229 = vunpack.c.h.b16 %v2705
    %v7230 = vunpack.c.l.b16 %v2706
    %v7231 = vunpack.c.h.b16 %v2706
    %v7232 = vunpack.c.l.b16 %v2707
    %v7233 = vunpack.c.h.b16 %v2707
    %v7234 = vunpack.c.l.b16 %v2708
    %v7235 = vunpack.c.h.b16 %v2708
    %v7236 = vunpack.c.l.b16 %v2709
    %v7237 = vunpack.c.h.b16 %v2709
    %v7238 = vunpack.c.l.b16 %v2710
    %v7239 = vunpack.c.h.b16 %v2710
    %v7240 = vunpack.c.l.b16 %v2711
    %v7241 = vunpack.c.h.b16 %v2711
    %v7242 = vunpack.c.l.b16 %v2712
    %v7243 = vunpack.c.h.b16 %v2712
    %v7244 = vunpack.c.l.b16 %v2713
    %v7245 = vunpack.c.h.b16 %v2713
    %v7246 = vunpack.c.l.b16 %v2714
    %v7247 = vunpack.c.h.b16 %v2714
    %v7248 = vunpack.c.l.b16 %v2715
    %v7249 = vunpack.c.h.b16 %v2715
    %v7250 = vunpack.c.l.b16 %v2716
    %v7251 = vunpack.c.h.b16 %v2716
    %v7252 = vunpack.c.l.b16 %v2717
    %v7253 = vunpack.c.h.b16 %v2717
    %v7254 = vunpack.c.l.b16 %v2718
    %v7255 = vunpack.c.h.b16 %v2718
    %v7256 = vunpack.c.l.b16 %v2719
    %v7257 = vunpack.c.h.b16 %v2719
    %v7258 = vunpack.c.l.b16 %v2720
    %v7259 = vunpack.c.h.b16 %v2720
    %v7260 = vunpack.c.l.b16 %v2721
    %v7261 = vunpack.c.h.b16 %v2721
    %v7262 = vunpack.c.l.b16 %v2722
    %v7263 = vunpack.c.h.b16 %v2722
    %v7264 = vunpack.c.l.b16 %v2723
    %v7265 = vunpack.c.h.b16 %v2723
    %v7266 = vunpack.c.l.b16 %v2724
    %v7267 = vunpack.c.h.b16 %v2724
    %v7268 = vunpack.c.l.b16 %v2725
    %v7269 = vunpack.c.h.b16 %v2725
    %v7270 = vunpack.c.l.b16 %v2726
    %v7271 = vunpack.c.h.b16 %v2726
    %v7272 = vunpack.c.l.b16 %v2727
    %v7273 = vunpack.c.h.b16 %v2727
    %v7274 = vunpack.c.l.b16 %v2728
    %v7275 = vunpack.c.h.b16 %v2728
    %v7276 = vunpack.c.l.b16 %v2729
    %v7277 = vunpack.c.h.b16 %v2729
    %v7278 = vunpack.c.l.b16 %v2730
    %v7279 = vunpack.c.h.b16 %v2730
    %v7280 = vunpack.c.l.b16 %v2731
    %v7281 = vunpack.c.h.b16 %v2731
    %v7282 = vunpack.c.l.b16 %v2732
    %v7283 = vunpack.c.h.b16 %v2732
    %v7284 = vunpack.c.l.b16 %v2733
    %v7285 = vunpack.c.h.b16 %v2733
    %v7286 = vunpack.c.l.b16 %v2734
    %v7287 = vunpack.c.h.b16 %v2734
    %v7288 = vunpack.c.l.b16 %v2735
    %v7289 = vunpack.c.h.b16 %v2735
    %v7290 = vunpack.c.l.b16 %v2736
    %v7291 = vunpack.c.h.b16 %v2736
    %v7292 = vunpack.c.l.b16 %v2737
    %v7293 = vunpack.c.h.b16 %v2737
    %v7294 = vunpack.c.l.b16 %v2738
    %v7295 = vunpack.c.h.b16 %v2738
    %v7296 = vunpack.c.l.b16 %v2739
    %v7297 = vunpack.c.h.b16 %v2739
    %v7298 = vunpack.c.l.b16 %v2740
    %v7299 = vunpack.c.h.b16 %v2740
    %v7300 = vunpack.c.l.b16 %v2741
    %v7301 = vunpack.c.h.b16 %v2741
    %v7302 = vunpack.c.l.b16 %v2742
    %v7303 = vunpack.c.h.b16 %v2742
    %v7304 = vunpack.c.l.b16 %v2743
    %v7305 = vunpack.c.h.b16 %v2743
    %v7306 = vunpack.c.l.b16 %v2744
    %v7307 = vunpack.c.h.b16 %v2744
    %v7308 = vunpack.c.l.b16 %v2745
    %v7309 = vunpack.c.h.b16 %v2745
    %v7310 = vunpack.c.l.b16 %v2746
    %v7311 = vunpack.c.h.b16 %v2746
    %v7312 = vunpack.c.l.b16 %v2747
    %v7313 = vunpack.c.h.b16 %v2747
    %v7314 = vunpack.c.l.b16 %v2748
    %v7315 = vunpack.c.h.b16 %v2748
    %v7316 = vunpack.c.l.b16 %v2749
    %v7317 = vunpack.c.h.b16 %v2749
    %v7318 = vunpack.c.l.b16 %v2750
    %v7319 = vunpack.c.h.b16 %v2750
    %v7320 = vunpack.c.l.b16 %v2751
    %v7321 = vunpack.c.h.b16 %v2751
    %v7322 = vunpack.c.l.b16 %v2752
    %v7323 = vunpack.c.h.b16 %v2752
    %v7324 = vunpack.c.l.b16 %v2753
    %v7325 = vunpack.c.h.b16 %v2753
    %v7326 = vunpack.c.l.b16 %v2754
    %v7327 = vunpack.c.h.b16 %v2754
    %v7328 = vunpack.c.l.b16 %v2755
    %v7329 = vunpack.c.h.b16 %v2755
    %v7330 = vunpack.c.l.b16 %v2756
    %v7331 = vunpack.c.h.b16 %v2756
    %v7332 = vunpack.c.l.b16 %v2757
    %v7333 = vunpack.c.h.b16 %v2757
    %v7334 = vunpack.c.l.b16 %v2758
    %v7335 = vunpack.c.h.b16 %v2758
    %v7336 = vunpack.c.l.b16 %v2759
    %v7337 = vunpack.c.h.b16 %v2759
    %v7338 = vunpack.c.l.b16 %v2760
    %v7339 = vunpack.c.h.b16 %v2760
    %v7340 = vunpack.c.l.b16 %v2761
    %v7341 = vunpack.c.h.b16 %v2761
    %v7342 = vunpack.c.l.b16 %v2762
    %v7343 = vunpack.c.h.b16 %v2762
    %v7344 = vunpack.c.l.b16 %v2763
    %v7345 = vunpack.c.h.b16 %v2763
    %v7346 = vunpack.c.l.b16 %v2764
    %v7347 = vunpack.c.h.b16 %v2764
    %v7348 = vunpack.c.l.b16 %v2765
    %v7349 = vunpack.c.h.b16 %v2765
    %v7350 = vunpack.c.l.b16 %v2766
    %v7351 = vunpack.c.h.b16 %v2766
    %v7352 = vunpack.c.l.b16 %v2767
    %v7353 = vunpack.c.h.b16 %v2767
    %v7354 = vunpack.c.l.b16 %v2768
    %v7355 = vunpack.c.h.b16 %v2768
    %v7356 = vunpack.c.l.b16 %v2769
    %v7357 = vunpack.c.h.b16 %v2769
    %v7358 = vunpack.c.l.b16 %v2770
    %v7359 = vunpack.c.h.b16 %v2770
    %v7360 = vunpack.c.l.b16 %v2771
    %v7361 = vunpack.c.h.b16 %v2771
    %v7362 = vunpack.c.l.b16 %v2772
    %v7363 = vunpack.c.h.b16 %v2772
    %v7364 = vunpack.c.l.b16 %v2773
    %v7365 = vunpack.c.h.b16 %v2773
    %v7366 = vunpack.c.l.b16 %v2774
    %v7367 = vunpack.c.h.b16 %v2774
    %v7368 = vunpack.c.l.b16 %v2775
    %v7369 = vunpack.c.h.b16 %v2775
    %v7370 = vunpack.c.l.b16 %v2776
    %v7371 = vunpack.c.h.b16 %v2776
    %v7372 = vunpack.c.l.b16 %v2777
    %v7373 = vunpack.c.h.b16 %v2777
    %v7374 = vunpack.c.l.b16 %v2778
    %v7375 = vunpack.c.h.b16 %v2778
    %v7376 = vunpack.c.l.b16 %v2779
    %v7377 = vunpack.c.h.b16 %v2779
    %v7378 = vunpack.c.l.b16 %v2780
    %v7379 = vunpack.c.h.b16 %v2780
    %v7380 = vunpack.c.l.b16 %v2781
    %v7381 = vunpack.c.h.b16 %v2781
    %v7382 = vunpack.c.l.b16 %v2782
    %v7383 = vunpack.c.h.b16 %v2782
    %v7384 = vunpack.c.l.b16 %v2783
    %v7385 = vunpack.c.h.b16 %v2783
    %v7386 = vunpack.c.l.b16 %v2784
    %v7387 = vunpack.c.h.b16 %v2784
    %v7388 = vunpack.c.l.b16 %v2785
    %v7389 = vunpack.c.h.b16 %v2785
    %v7390 = vunpack.c.l.b16 %v2786
    %v7391 = vunpack.c.h.b16 %v2786
    %v7392 = vunpack.c.l.b16 %v2787
    %v7393 = vunpack.c.h.b16 %v2787
    %v7394 = vunpack.c.l.b16 %v2788
    %v7395 = vunpack.c.h.b16 %v2788
    %v7396 = vunpack.c.l.b16 %v2789
    %v7397 = vunpack.c.h.b16 %v2789
    %v7398 = vunpack.c.l.b16 %v2790
    %v7399 = vunpack.c.h.b16 %v2790
    %v7400 = vunpack.c.l.b16 %v2791
    %v7401 = vunpack.c.h.b16 %v2791
    %v7402 = vunpack.c.l.b16 %v2792
    %v7403 = vunpack.c.h.b16 %v2792
    %v7404 = vunpack.c.l.b16 %v2793
    %v7405 = vunpack.c.h.b16 %v2793
    %v7406 = vunpack.c.l.b16 %v2794
    %v7407 = vunpack.c.h.b16 %v2794
    %v7408 = vunpack.c.l.b16 %v2795
    %v7409 = vunpack.c.h.b16 %v2795
    %v7410 = vunpack.c.l.b16 %v2796
    %v7411 = vunpack.c.h.b16 %v2796
    %v7412 = vunpack.c.l.b16 %v2797
    %v7413 = vunpack.c.h.b16 %v2797
    %v7414 = vunpack.c.l.b16 %v2798
    %v7415 = vunpack.c.h.b16 %v2798
    %v7416 = vunpack.c.l.b16 %v2799
    %v7417 = vunpack.c.h.b16 %v2799
    %v7418 = vunpack.c.l.b16 %v2800
    %v7419 = vunpack.c.h.b16 %v2800
    %v7420 = vunpack.c.l.b16 %v2801
    %v7421 = vunpack.c.h.b16 %v2801
    %v7422 = vunpack.c.l.b16 %v2802
    %v7423 = vunpack.c.h.b16 %v2802
    %v7424 = vunpack.c.l.b16 %v2803
    %v7425 = vunpack.c.h.b16 %v2803
    %v7426 = vunpack.c.l.b16 %v2804
    %v7427 = vunpack.c.h.b16 %v2804
    %v7428 = vunpack.c.l.b16 %v2805
    %v7429 = vunpack.c.h.b16 %v2805
    %v7430 = vunpack.c.l.b16 %v2806
    %v7431 = vunpack.c.h.b16 %v2806
    %v7432 = vunpack.c.l.b16 %v2807
    %v7433 = vunpack.c.h.b16 %v2807
    %v7434 = vunpack.c.l.b16 %v2808
    %v7435 = vunpack.c.h.b16 %v2808
    %v7436 = vunpack.c.l.b16 %v2809
    %v7437 = vunpack.c.h.b16 %v2809
    %v7438 = vunpack.c.l.b16 %v2810
    %v7439 = vunpack.c.h.b16 %v2810
    %v7440 = vunpack.c.l.b16 %v2811
    %v7441 = vunpack.c.h.b16 %v2811
    %v7442 = vunpack.c.l.b16 %v2812
    %v7443 = vunpack.c.h.b16 %v2812
    %v7444 = vunpack.c.l.b16 %v2813
    %v7445 = vunpack.c.h.b16 %v2813
    %v7446 = vunpack.c.l.b16 %v2814
    %v7447 = vunpack.c.h.b16 %v2814
    %v7448 = vpack.c.b16 %v6944, %v6936
    %v7449 = vpack.c.b16 %v6945, %v6937
    %v7450 = vpack.c.b16 %v6946, %v6938
    %v7451 = vpack.c.b16 %v6947, %v6939
    %v7452 = vpack.c.b16 %v6948, %v6940
    %v7453 = vpack.c.b16 %v6949, %v6941
    %v7454 = vpack.c.b16 %v6950, %v6942
    %v7455 = vpack.c.b16 %v6951, %v6943
    %v7456 = vpack.c.b16 %v6960, %v6952
    %v7457 = vpack.c.b16 %v6961, %v6953
    %v7458 = vpack.c.b16 %v6962, %v6954
    %v7459 = vpack.c.b16 %v6963, %v6955
    %v7460 = vpack.c.b16 %v6964, %v6956
    %v7461 = vpack.c.b16 %v6965, %v6957
    %v7462 = vpack.c.b16 %v6966, %v6958
    %v7463 = vpack.c.b16 %v6967, %v6959
    %v7464 = vpack.c.b16 %v6976, %v6968
    %v7465 = vpack.c.b16 %v6977, %v6969
    %v7466 = vpack.c.b16 %v6978, %v6970
    %v7467 = vpack.c.b16 %v6979, %v6971
    %v7468 = vpack.c.b16 %v6980, %v6972
    %v7469 = vpack.c.b16 %v6981, %v6973
    %v7470 = vpack.c.b16 %v6982, %v6974
    %v7471 = vpack.c.b16 %v6983, %v6975
    %v7472 = vpack.c.b16 %v6992, %v6984
    %v7473 = vpack.c.b16 %v6993, %v6985
    %v7474 = vpack.c.b16 %v6994, %v6986
    %v7475 = vpack.c.b16 %v6995, %v6987
    %v7476 = vpack.c.b16 %v6996, %v6988
    %v7477 = vpack.c.b16 %v6997, %v6989
    %v7478 = vpack.c.b16 %v6998, %v6990
    %v7479 = vpack.c.b16 %v6999, %v6991
    %v7480 = vpack.c.b16 %v7008, %v7000
    %v7481 = vpack.c.b16 %v7009, %v7001
    %v7482 = vpack.c.b16 %v7010, %v7002
    %v7483 = vpack.c.b16 %v7011, %v7003
    %v7484 = vpack.c.b16 %v7012, %v7004
    %v7485 = vpack.c.b16 %v7013, %v7005
    %v7486 = vpack.c.b16 %v7014, %v7006
    %v7487 = vpack.c.b16 %v7015, %v7007
    %v7488 = vpack.c.b16 %v7024, %v7016
    %v7489 = vpack.c.b16 %v7025, %v7017
    %v7490 = vpack.c.b16 %v7026, %v7018
    %v7491 = vpack.c.b16 %v7027, %v7019
    %v7492 = vpack.c.b16 %v7028, %v7020
    %v7493 = vpack.c.b16 %v7029, %v7021
    %v7494 = vpack.c.b16 %v7030, %v7022
    %v7495 = vpack.c.b16 %v7031, %v7023
    %v7496 = vpack.c.b16 %v7040, %v7032
    %v7497 = vpack.c.b16 %v7041, %v7033
    %v7498 = vpack.c.b16 %v7042, %v7034
    %v7499 = vpack.c.b16 %v7043, %v7035
    %v7500 = vpack.c.b16 %v7044, %v7036
    %v7501 = vpack.c.b16 %v7045, %v7037
    %v7502 = vpack.c.b16 %v7046, %v7038
    %v7503 = vpack.c.b16 %v7047, %v7039
    %v7504 = vpack.c.b16 %v7056, %v7048
    %v7505 = vpack.c.b16 %v7057, %v7049
    %v7506 = vpack.c.b16 %v7058, %v7050
    %v7507 = vpack.c.b16 %v7059, %v7051
    %v7508 = vpack.c.b16 %v7060, %v7052
    %v7509 = vpack.c.b16 %v7061, %v7053
    %v7510 = vpack.c.b16 %v7062, %v7054
    %v7511 = vpack.c.b16 %v7063, %v7055
    %v7512 = vpack.c.b16 %v7072, %v7064
    %v7513 = vpack.c.b16 %v7073, %v7065
    %v7514 = vpack.c.b16 %v7074, %v7066
    %v7515 = vpack.c.b16 %v7075, %v7067
    %v7516 = vpack.c.b16 %v7076, %v7068
    %v7517 = vpack.c.b16 %v7077, %v7069
    %v7518 = vpack.c.b16 %v7078, %v7070
    %v7519 = vpack.c.b16 %v7079, %v7071
    %v7520 = vpack.c.b16 %v7088, %v7080
    %v7521 = vpack.c.b16 %v7089, %v7081
    %v7522 = vpack.c.b16 %v7090, %v7082
    %v7523 = vpack.c.b16 %v7091, %v7083
    %v7524 = vpack.c.b16 %v7092, %v7084
    %v7525 = vpack.c.b16 %v7093, %v7085
    %v7526 = vpack.c.b16 %v7094, %v7086
    %v7527 = vpack.c.b16 %v7095, %v7087
    %v7528 = vpack.c.b16 %v7104, %v7096
    %v7529 = vpack.c.b16 %v7105, %v7097
    %v7530 = vpack.c.b16 %v7106, %v7098
    %v7531 = vpack.c.b16 %v7107, %v7099
    %v7532 = vpack.c.b16 %v7108, %v7100
    %v7533 = vpack.c.b16 %v7109, %v7101
    %v7534 = vpack.c.b16 %v7110, %v7102
    %v7535 = vpack.c.b16 %v7111, %v7103
    %v7536 = vpack.c.b16 %v7120, %v7112
    %v7537 = vpack.c.b16 %v7121, %v7113
    %v7538 = vpack.c.b16 %v7122, %v7114
    %v7539 = vpack.c.b16 %v7123, %v7115
    %v7540 = vpack.c.b16 %v7124, %v7116
    %v7541 = vpack.c.b16 %v7125, %v7117
    %v7542 = vpack.c.b16 %v7126, %v7118
    %v7543 = vpack.c.b16 %v7127, %v7119
    %v7544 = vpack.c.b16 %v7136, %v7128
    %v7545 = vpack.c.b16 %v7137, %v7129
    %v7546 = vpack.c.b16 %v7138, %v7130
    %v7547 = vpack.c.b16 %v7139, %v7131
    %v7548 = vpack.c.b16 %v7140, %v7132
    %v7549 = vpack.c.b16 %v7141, %v7133
    %v7550 = vpack.c.b16 %v7142, %v7134
    %v7551 = vpack.c.b16 %v7143, %v7135
    %v7552 = vpack.c.b16 %v7152, %v7144
    %v7553 = vpack.c.b16 %v7153, %v7145
    %v7554 = vpack.c.b16 %v7154, %v7146
    %v7555 = vpack.c.b16 %v7155, %v7147
    %v7556 = vpack.c.b16 %v7156, %v7148
    %v7557 = vpack.c.b16 %v7157, %v7149
    %v7558 = vpack.c.b16 %v7158, %v7150
    %v7559 = vpack.c.b16 %v7159, %v7151
    %v7560 = vpack.c.b16 %v7168, %v7160
    %v7561 = vpack.c.b16 %v7169, %v7161
    %v7562 = vpack.c.b16 %v7170, %v7162
    %v7563 = vpack.c.b16 %v7171, %v7163
    %v7564 = vpack.c.b16 %v7172, %v7164
    %v7565 = vpack.c.b16 %v7173, %v7165
    %v7566 = vpack.c.b16 %v7174, %v7166
    %v7567 = vpack.c.b16 %v7175, %v7167
    %v7568 = vpack.c.b16 %v7184, %v7176
    %v7569 = vpack.c.b16 %v7185, %v7177
    %v7570 = vpack.c.b16 %v7186, %v7178
    %v7571 = vpack.c.b16 %v7187, %v7179
    %v7572 = vpack.c.b16 %v7188, %v7180
    %v7573 = vpack.c.b16 %v7189, %v7181
    %v7574 = vpack.c.b16 %v7190, %v7182
    %v7575 = vpack.c.b16 %v7191, %v7183
    %v7576 = vpack.c.b16 %v7200, %v7192
    %v7577 = vpack.c.b16 %v7201, %v7193
    %v7578 = vpack.c.b16 %v7202, %v7194
    %v7579 = vpack.c.b16 %v7203, %v7195
    %v7580 = vpack.c.b16 %v7204, %v7196
    %v7581 = vpack.c.b16 %v7205, %v7197
    %v7582 = vpack.c.b16 %v7206, %v7198
    %v7583 = vpack.c.b16 %v7207, %v7199
    %v7584 = vpack.c.b16 %v7216, %v7208
    %v7585 = vpack.c.b16 %v7217, %v7209
    %v7586 = vpack.c.b16 %v7218, %v7210
    %v7587 = vpack.c.b16 %v7219, %v7211
    %v7588 = vpack.c.b16 %v7220, %v7212
    %v7589 = vpack.c.b16 %v7221, %v7213
    %v7590 = vpack.c.b16 %v7222, %v7214
    %v7591 = vpack.c.b16 %v7223, %v7215
    %v7592 = vpack.c.b16 %v7232, %v7224
    %v7593 = vpack.c.b16 %v7233, %v7225
    %v7594 = vpack.c.b16 %v7234, %v7226
    %v7595 = vpack.c.b16 %v7235, %v7227
    %v7596 = vpack.c.b16 %v7236, %v7228
    %v7597 = vpack.c.b16 %v7237, %v7229
    %v7598 = vpack.c.b16 %v7238, %v7230
    %v7599 = vpack.c.b16 %v7239, %v7231
    %v7600 = vpack.c.b16 %v7248, %v7240
    %v7601 = vpack.c.b16 %v7249, %v7241
    %v7602 = vpack.c.b16 %v7250, %v7242
    %v7603 = vpack.c.b16 %v7251, %v7243
    %v7604 = vpack.c.b16 %v7252, %v7244
    %v7605 = vpack.c.b16 %v7253, %v7245
    %v7606 = vpack.c.b16 %v7254, %v7246
    %v7607 = vpack.c.b16 %v7255, %v7247
    %v7608 = vpack.c.b16 %v7264, %v7256
    %v7609 = vpack.c.b16 %v7265, %v7257
    %v7610 = vpack.c.b16 %v7266, %v7258
    %v7611 = vpack.c.b16 %v7267, %v7259
    %v7612 = vpack.c.b16 %v7268, %v7260
    %v7613 = vpack.c.b16 %v7269, %v7261
    %v7614 = vpack.c.b16 %v7270, %v7262
    %v7615 = vpack.c.b16 %v7271, %v7263
    %v7616 = vpack.c.b16 %v7280, %v7272
    %v7617 = vpack.c.b16 %v7281, %v7273
    %v7618 = vpack.c.b16 %v7282, %v7274
    %v7619 = vpack.c.b16 %v7283, %v7275
    %v7620 = vpack.c.b16 %v7284, %v7276
    %v7621 = vpack.c.b16 %v7285, %v7277
    %v7622 = vpack.c.b16 %v7286, %v7278
    %v7623 = vpack.c.b16 %v7287, %v7279
    %v7624 = vpack.c.b16 %v7296, %v7288
    %v7625 = vpack.c.b16 %v7297, %v7289
    %v7626 = vpack.c.b16 %v7298, %v7290
    %v7627 = vpack.c.b16 %v7299, %v7291
    %v7628 = vpack.c.b16 %v7300, %v7292
    %v7629 = vpack.c.b16 %v7301, %v7293
    %v7630 = vpack.c.b16 %v7302, %v7294
    %v7631 = vpack.c.b16 %v7303, %v7295
    %v7632 = vpack.c.b16 %v7312, %v7304
    %v7633 = vpack.c.b16 %v7313, %v7305
    %v7634 = vpack.c.b16 %v7314, %v7306
    %v7635 = vpack.c.b16 %v7315, %v7307
    %v7636 = vpack.c.b16 %v7316, %v7308
    %v7637 = vpack.c.b16 %v7317, %v7309
    %v7638 = vpack.c.b16 %v7318, %v7310
    %v7639 = vpack.c.b16 %v7319, %v7311
    %v7640 = vpack.c.b16 %v7328, %v7320
    %v7641 = vpack.c.b16 %v7329, %v7321
    %v7642 = vpack.c.b16 %v7330, %v7322
    %v7643 = vpack.c.b16 %v7331, %v7323
    %v7644 = vpack.c.b16 %v7332, %v7324
    %v7645 = vpack.c.b16 %v7333, %v7325
    %v7646 = vpack.c.b16 %v7334, %v7326
    %v7647 = vpack.c.b16 %v7335, %v7327
    %v7648 = vpack.c.b16 %v7344, %v7336
    %v7649 = vpack.c.b16 %v7345, %v7337
    %v7650 = vpack.c.b16 %v7346, %v7338
    %v7651 = vpack.c.b16 %v7347, %v7339
    %v7652 = vpack.c.b16 %v7348, %v7340
    %v7653 = vpack.c.b16 %v7349, %v7341
    %v7654 = vpack.c.b16 %v7350, %v7342
    %v7655 = vpack.c.b16 %v7351, %v7343
    %v7656 = vpack.c.b16 %v7360, %v7352
    %v7657 = vpack.c.b16 %v7361, %v7353
    %v7658 = vpack.c.b16 %v7362, %v7354
    %v7659 = vpack.c.b16 %v7363, %v7355
    %v7660 = vpack.c.b16 %v7364, %v7356
    %v7661 = vpack.c.b16 %v7365, %v7357
    %v7662 = vpack.c.b16 %v7366, %v7358
    %v7663 = vpack.c.b16 %v7367, %v7359
    %v7664 = vpack.c.b16 %v7376, %v7368
    %v7665 = vpack.c.b16 %v7377, %v7369
    %v7666 = vpack.c.b16 %v7378, %v7370
    %v7667 = vpack.c.b16 %v7379, %v7371
    %v7668 = vpack.c.b16 %v7380, %v7372
    %v7669 = vpack.c.b16 %v7381, %v7373
    %v7670 = vpack.c.b16 %v7382, %v7374
    %v7671 = vpack.c.b16 %v7383, %v7375
    %v7672 = vpack.c.b16 %v7392, %v7384
    %v7673 = vpack.c.b16 %v7393, %v7385
    %v7674 = vpack.c.b16 %v7394, %v7386
    %v7675 = vpack.c.b16 %v7395, %v7387
    %v7676 = vpack.c.b16 %v7396, %v7388
    %v7677 = vpack.c.b16 %v7397, %v7389
    %v7678 = vpack.c.b16 %v7398, %v7390
    %v7679 = vpack.c.b16 %v7399, %v7391
    %v7680 = vpack.c.b16 %v7408, %v7400
    %v7681 = vpack.c.b16 %v7409, %v7401
    %v7682 = vpack.c.b16 %v7410, %v7402
    %v7683 = vpack.c.b16 %v7411, %v7403
    %v7684 = vpack.c.b16 %v7412, %v7404
    %v7685 = vpack.c.b16 %v7413, %v7405
    %v7686 = vpack.c.b16 %v7414, %v7406
    %v7687 = vpack.c.b16 %v7415, %v7407
    %v7688 = vpack.c.b16 %v7424, %v7416
    %v7689 = vpack.c.b16 %v7425, %v7417
    %v7690 = vpack.c.b16 %v7426, %v7418
    %v7691 = vpack.c.b16 %v7427, %v7419
    %v7692 = vpack.c.b16 %v7428, %v7420
    %v7693 = vpack.c.b16 %v7429, %v7421
    %v7694 = vpack.c.b16 %v7430, %v7422
    %v7695 = vpack.c.b16 %v7431, %v7423
    %v7696 = vpack.c.b16 %v7440, %v7432
    %v7697 = vpack.c.b16 %v7441, %v7433
    %v7698 = vpack.c.b16 %v7442, %v7434
    %v7699 = vpack.c.b16 %v7443, %v7435
    %v7700 = vpack.c.b16 %v7444, %v7436
    %v7701 = vpack.c.b16 %v7445, %v7437
    %v7702 = vpack.c.b16 %v7446, %v7438
    %v7703 = vpack.c.b16 %v7447, %v7439
    %7960 = vmatprep.subr.bf16.mxu0 %v7449
    %7961 = vmatpush1.bf16.msra.mxu0 %v7448
    %7962 = vmatprep.subr.bf16.mxu0 %v7457
    %7963 = vmatpush1.bf16.msra.mxu0 %v7456
    %7964 = vmatprep.subr.bf16.mxu0 %v7465
    %7965 = vmatpush1.bf16.msra.mxu0 %v7464
    %7966 = vmatprep.subr.bf16.mxu0 %v7473
    %7967 = vmatpush1.bf16.msra.mxu0 %v7472
    %7968 = vmatprep.subr.bf16.mxu0 %v7481
    %7969 = vmatpush1.bf16.msra.mxu0 %v7480
    %7970 = vmatprep.subr.bf16.mxu0 %v7489
    %7971 = vmatpush1.bf16.msra.mxu0 %v7488
    %7972 = vmatprep.subr.bf16.mxu0 %v7497
    %7973 = vmatpush1.bf16.msra.mxu0 %v7496
    %7974 = vmatprep.subr.bf16.mxu0 %v7505
    %7975 = vmatpush1.bf16.msra.mxu0 %v7504
    %7976 = vmatprep.subr.bf16.mxu0 %v7513
    %7977 = vmatpush1.bf16.msra.mxu0 %v7512
    %7978 = vmatprep.subr.bf16.mxu0 %v7521
    %7979 = vmatpush1.bf16.msra.mxu0 %v7520
    %7980 = vmatprep.subr.bf16.mxu0 %v7529
    %7981 = vmatpush1.bf16.msra.mxu0 %v7528
    %7982 = vmatprep.subr.bf16.mxu0 %v7537
    %7983 = vmatpush1.bf16.msra.mxu0 %v7536
    %7984 = vmatprep.subr.bf16.mxu0 %v7545
    %7985 = vmatpush1.bf16.msra.mxu0 %v7544
    %7986 = vmatprep.subr.bf16.mxu0 %v7553
    %7987 = vmatpush1.bf16.msra.mxu0 %v7552
    %7988 = vmatprep.subr.bf16.mxu0 %v7561
    %7989 = vmatpush1.bf16.msra.mxu0 %v7560
    %7990 = vmatprep.subr.bf16.mxu0 %v7569
    %7991 = vmatpush1.bf16.msra.mxu0 %v7568
    %7992 = vmatprep.mubr.bf16.mxu0 %v2916
    %7993 = vmatmul.mubr.bf16.gmra.mrb[0].mxu0 %v2915
    %v7994 = vpop.f32.mrb[0].mxu0
    %v7995 = vadd.f32 0.0, %v7994
    %v7996 = vpop.f32.mrb[0].mxu0
    %v7997 = vadd.f32 0.0, %v7996
    %v7998 = vpop.f32.mrb[0].mxu0
    %v7999 = vadd.f32 0.0, %v7998
    %v8000 = vpop.f32.mrb[0].mxu0
    %v8001 = vadd.f32 0.0, %v8000
    %8002 = vmatprep.mubr.bf16.mxu0 %v2920
    %8003 = vmatmul.mubr.bf16.gmra.mrb[0].mxu0 %v2919
    %v8004 = vpop.f32.mrb[0].mxu0
    %v8005 = vadd.f32 0.0, %v8004
    %v8006 = vpop.f32.mrb[0].mxu0
    %v8007 = vadd.f32 0.0, %v8006
    %v8008 = vpop.f32.mrb[0].mxu0
    %v8009 = vadd.f32 0.0, %v8008
    %v8010 = vpop.f32.mrb[0].mxu0
    %v8011 = vadd.f32 0.0, %v8010
    %8012 = vmatprep.mubr.bf16.mxu0 %v2924
    %8013 = vmatmul.mubr.bf16.gmra.mrb[0].mxu0 %v2923
    %v8014 = vpop.f32.mrb[0].mxu0
    %v8015 = vadd.f32 0.0, %v8014
    %v8016 = vpop.f32.mrb[0].mxu0
    %v8017 = vadd.f32 0.0, %v8016
    %v8018 = vpop.f32.mrb[0].mxu0
    %v8019 = vadd.f32 0.0, %v8018
    %v8020 = vpop.f32.mrb[0].mxu0
    %v8021 = vadd.f32 0.0, %v8020
    %8022 = vmatprep.mubr.bf16.mxu0 %v2928
    %8023 = vmatmul.mubr.bf16.gmra.mrb[0].mxu0 %v2927
    %v8024 = vpop.f32.mrb[0].mxu0
    %v8025 = vadd.f32 0.0, %v8024
    %v8026 = vpop.f32.mrb[0].mxu0
    %v8027 = vadd.f32 0.0, %v8026
    %v8028 = vpop.f32.mrb[0].mxu0
    %v8029 = vadd.f32 0.0, %v8028
    %v8030 = vpop.f32.mrb[0].mxu0
    %v8031 = vadd.f32 0.0, %v8030
    %8032 = vdwg.mxu0
    %8033 = vmatprep.subr.bf16.mxu0 %v7577
    %8034 = vmatpush1.bf16.msra.mxu0 %v7576
    %8035 = vmatprep.subr.bf16.mxu0 %v7585
    %8036 = vmatpush1.bf16.msra.mxu0 %v7584
    %8037 = vmatprep.subr.bf16.mxu0 %v7593
    %8038 = vmatpush1.bf16.msra.mxu0 %v7592
    %8039 = vmatprep.subr.bf16.mxu0 %v7601
    %8040 = vmatpush1.bf16.msra.mxu0 %v7600
    %8041 = vmatprep.subr.bf16.mxu0 %v7609
    %8042 = vmatpush1.bf16.msra.mxu0 %v7608
    %8043 = vmatprep.subr.bf16.mxu0 %v7617
    %8044 = vmatpush1.bf16.msra.mxu0 %v7616
    %8045 = vmatprep.subr.bf16.mxu0 %v7625
    %8046 = vmatpush1.bf16.msra.mxu0 %v7624
    %8047 = vmatprep.subr.bf16.mxu0 %v7633
    %8048 = vmatpush1.bf16.msra.mxu0 %v7632
    %8049 = vmatprep.subr.bf16.mxu0 %v7641
    %8050 = vmatpush1.bf16.msra.mxu0 %v7640
    %8051 = vmatprep.subr.bf16.mxu0 %v7649
    %8052 = vmatpush1.bf16.msra.mxu0 %v7648
    %8053 = vmatprep.subr.bf16.mxu0 %v7657
    %8054 = vmatpush1.bf16.msra.mxu0 %v7656
    %8055 = vmatprep.subr.bf16.mxu0 %v7665
    %8056 = vmatpush1.bf16.msra.mxu0 %v7664
    %8057 = vmatprep.subr.bf16.mxu0 %v7673
    %8058 = vmatpush1.bf16.msra.mxu0 %v7672
    %8059 = vmatprep.subr.bf16.mxu0 %v7681
    %8060 = vmatpush1.bf16.msra.mxu0 %v7680
    %8061 = vmatprep.subr.bf16.mxu0 %v7689
    %8062 = vmatpush1.bf16.msra.mxu0 %v7688
    %8063 = vmatprep.subr.bf16.mxu0 %v7697
    %8064 = vmatpush1.bf16.msra.mxu0 %v7696
    %8065 = vmatprep.mubr.bf16.mxu0 %v2918
    %8066 = vmatmul.mubr.bf16.gmra.mrb[0].mxu0 %v2917
    %v8067 = vpop.f32.mrb[0].mxu0
    %v8068 = vadd.f32 %v7995, %v8067
    %v8069 = vpop.f32.mrb[0].mxu0
    %v8070 = vadd.f32 %v7997, %v8069
    %v8071 = vpop.f32.mrb[0].mxu0
    %v8072 = vadd.f32 %v7999, %v8071
    %v8073 = vpop.f32.mrb[0].mxu0
    %v8074 = vadd.f32 %v8001, %v8073
    %8075 = vmatprep.mubr.bf16.mxu0 %v2922
    %8076 = vmatmul.mubr.bf16.gmra.mrb[0].mxu0 %v2921
    %v8077 = vpop.f32.mrb[0].mxu0
    %v8078 = vadd.f32 %v8005, %v8077
    %v8079 = vpop.f32.mrb[0].mxu0
    %v8080 = vadd.f32 %v8007, %v8079
    %v8081 = vpop.f32.mrb[0].mxu0
    %v8082 = vadd.f32 %v8009, %v8081
    %v8083 = vpop.f32.mrb[0].mxu0
    %v8084 = vadd.f32 %v8011, %v8083
    %8085 = vmatprep.mubr.bf16.mxu0 %v2926
    %8086 = vmatmul.mubr.bf16.gmra.mrb[0].mxu0 %v2925
    %v8087 = vpop.f32.mrb[0].mxu0
    %v8088 = vadd.f32 %v8015, %v8087
    %v8089 = vpop.f32.mrb[0].mxu0
    %v8090 = vadd.f32 %v8017, %v8089
    %v8091 = vpop.f32.mrb[0].mxu0
    %v8092 = vadd.f32 %v8019, %v8091
    %v8093 = vpop.f32.mrb[0].mxu0
    %v8094 = vadd.f32 %v8021, %v8093
    %8095 = vmatprep.mubr.bf16.mxu0 %v2930
    %8096 = vmatmul.mubr.bf16.gmra.mrb[0].mxu0 %v2929
    %v8097 = vpop.f32.mrb[0].mxu0
    %v8098 = vadd.f32 %v8025, %v8097
    %v8099 = vpop.f32.mrb[0].mxu0
    %v8100 = vadd.f32 %v8027, %v8099
    %v8101 = vpop.f32.mrb[0].mxu0
    %v8102 = vadd.f32 %v8029, %v8101
    %v8103 = vpop.f32.mrb[0].mxu0
    %v8104 = vadd.f32 %v8031, %v8103
    %8105 = vdwg.mxu0
    %8106 = vmatprep.subr.bf16.mxu0 %v7451
    %8107 = vmatpush1.bf16.msra.mxu0 %v7450
    %8108 = vmatprep.subr.bf16.mxu0 %v7459
    %8109 = vmatpush1.bf16.msra.mxu0 %v7458
    %8110 = vmatprep.subr.bf16.mxu0 %v7467
    %8111 = vmatpush1.bf16.msra.mxu0 %v7466
    %8112 = vmatprep.subr.bf16.mxu0 %v7475
    %8113 = vmatpush1.bf16.msra.mxu0 %v7474
    %8114 = vmatprep.subr.bf16.mxu0 %v7483
    %8115 = vmatpush1.bf16.msra.mxu0 %v7482
    %8116 = vmatprep.subr.bf16.mxu0 %v7491
    %8117 = vmatpush1.bf16.msra.mxu0 %v7490
    %8118 = vmatprep.subr.bf16.mxu0 %v7499
    %8119 = vmatpush1.bf16.msra.mxu0 %v7498
    %8120 = vmatprep.subr.bf16.mxu0 %v7507
    %8121 = vmatpush1.bf16.msra.mxu0 %v7506
    %8122 = vmatprep.subr.bf16.mxu0 %v7515
    %8123 = vmatpush1.bf16.msra.mxu0 %v7514
    %8124 = vmatprep.subr.bf16.mxu0 %v7523
    %8125 = vmatpush1.bf16.msra.mxu0 %v7522
    %8126 = vmatprep.subr.bf16.mxu0 %v7531
    %8127 = vmatpush1.bf16.msra.mxu0 %v7530
    %8128 = vmatprep.subr.bf16.mxu0 %v7539
    %8129 = vmatpush1.bf16.msra.mxu0 %v7538
    %8130 = vmatprep.subr.bf16.mxu0 %v7547
    %8131 = vmatpush1.bf16.msra.mxu0 %v7546
    %8132 = vmatprep.subr.bf16.mxu0 %v7555
    %8133 = vmatpush1.bf16.msra.mxu0 %v7554
    %8134 = vmatprep.subr.bf16.mxu0 %v7563
    %8135 = vmatpush1.bf16.msra.mxu0 %v7562
    %8136 = vmatprep.subr.bf16.mxu0 %v7571
    %8137 = vmatpush1.bf16.msra.mxu0 %v7570
    %8138 = vmatprep.mubr.bf16.mxu0 %v2916
    %8139 = vmatmul.mubr.bf16.gmra.mrb[0].mxu0 %v2915
    %v8140 = vpop.f32.mrb[0].mxu0
    %v8141 = vadd.f32 0.0, %v8140
    %v8142 = vpop.f32.mrb[0].mxu0
    %v8143 = vadd.f32 0.0, %v8142
    %v8144 = vpop.f32.mrb[0].mxu0
    %v8145 = vadd.f32 0.0, %v8144
    %v8146 = vpop.f32.mrb[0].mxu0
    %v8147 = vadd.f32 0.0, %v8146
    %8148 = vmatprep.mubr.bf16.mxu0 %v2920
    %8149 = vmatmul.mubr.bf16.gmra.mrb[0].mxu0 %v2919
    %v8150 = vpop.f32.mrb[0].mxu0
    %v8151 = vadd.f32 0.0, %v8150
    %v8152 = vpop.f32.mrb[0].mxu0
    %v8153 = vadd.f32 0.0, %v8152
    %v8154 = vpop.f32.mrb[0].mxu0
    %v8155 = vadd.f32 0.0, %v8154
    %v8156 = vpop.f32.mrb[0].mxu0
    %v8157 = vadd.f32 0.0, %v8156
    %8158 = vmatprep.mubr.bf16.mxu0 %v2924
    %8159 = vmatmul.mubr.bf16.gmra.mrb[0].mxu0 %v2923
    %v8160 = vpop.f32.mrb[0].mxu0
    %v8161 = vadd.f32 0.0, %v8160
    %v8162 = vpop.f32.mrb[0].mxu0
    %v8163 = vadd.f32 0.0, %v8162
    %v8164 = vpop.f32.mrb[0].mxu0
    %v8165 = vadd.f32 0.0, %v8164
    %v8166 = vpop.f32.mrb[0].mxu0
    %v8167 = vadd.f32 0.0, %v8166
    %8168 = vmatprep.mubr.bf16.mxu0 %v2928
    %8169 = vmatmul.mubr.bf16.gmra.mrb[0].mxu0 %v2927
    %v8170 = vpop.f32.mrb[0].mxu0
    %v8171 = vadd.f32 0.0, %v8170
    %v8172 = vpop.f32.mrb[0].mxu0
    %v8173 = vadd.f32 0.0, %v8172
    %v8174 = vpop.f32.mrb[0].mxu0
    %v8175 = vadd.f32 0.0, %v8174
    %v8176 = vpop.f32.mrb[0].mxu0
    %v8177 = vadd.f32 0.0, %v8176
    %8178 = vdwg.mxu0
    %8179 = vmatprep.subr.bf16.mxu0 %v7579
    %8180 = vmatpush1.bf16.msra.mxu0 %v7578
    %8181 = vmatprep.subr.bf16.mxu0 %v7587
    %8182 = vmatpush1.bf16.msra.mxu0 %v7586
    %8183 = vmatprep.subr.bf16.mxu0 %v7595
    %8184 = vmatpush1.bf16.msra.mxu0 %v7594
    %8185 = vmatprep.subr.bf16.mxu0 %v7603
    %8186 = vmatpush1.bf16.msra.mxu0 %v7602
    %8187 = vmatprep.subr.bf16.mxu0 %v7611
    %8188 = vmatpush1.bf16.msra.mxu0 %v7610
    %8189 = vmatprep.subr.bf16.mxu0 %v7619
    %8190 = vmatpush1.bf16.msra.mxu0 %v7618
    %8191 = vmatprep.subr.bf16.mxu0 %v7627
    %8192 = vmatpush1.bf16.msra.mxu0 %v7626
    %8193 = vmatprep.subr.bf16.mxu0 %v7635
    %8194 = vmatpush1.bf16.msra.mxu0 %v7634
    %8195 = vmatprep.subr.bf16.mxu0 %v7643
    %8196 = vmatpush1.bf16.msra.mxu0 %v7642
    %8197 = vmatprep.subr.bf16.mxu0 %v7651
    %8198 = vmatpush1.bf16.msra.mxu0 %v7650
    %8199 = vmatprep.subr.bf16.mxu0 %v7659
    %8200 = vmatpush1.bf16.msra.mxu0 %v7658
    %8201 = vmatprep.subr.bf16.mxu0 %v7667
    %8202 = vmatpush1.bf16.msra.mxu0 %v7666
    %8203 = vmatprep.subr.bf16.mxu0 %v7675
    %8204 = vmatpush1.bf16.msra.mxu0 %v7674
    %8205 = vmatprep.subr.bf16.mxu0 %v7683
    %8206 = vmatpush1.bf16.msra.mxu0 %v7682
    %8207 = vmatprep.subr.bf16.mxu0 %v7691
    %8208 = vmatpush1.bf16.msra.mxu0 %v7690
    %8209 = vmatprep.subr.bf16.mxu0 %v7699
    %8210 = vmatpush1.bf16.msra.mxu0 %v7698
    %8211 = vmatprep.mubr.bf16.mxu0 %v2918
    %8212 = vmatmul.mubr.bf16.gmra.mrb[0].mxu0 %v2917
    %v8213 = vpop.f32.mrb[0].mxu0
    %v8214 = vadd.f32 %v8141, %v8213
    %v8215 = vpop.f32.mrb[0].mxu0
    %v8216 = vadd.f32 %v8143, %v8215
    %v8217 = vpop.f32.mrb[0].mxu0
    %v8218 = vadd.f32 %v8145, %v8217
    %v8219 = vpop.f32.mrb[0].mxu0
    %v8220 = vadd.f32 %v8147, %v8219
    %8221 = vmatprep.mubr.bf16.mxu0 %v2922
    %8222 = vmatmul.mubr.bf16.gmra.mrb[0].mxu0 %v2921
    %v8223 = vpop.f32.mrb[0].mxu0
    %v8224 = vadd.f32 %v8151, %v8223
    %v8225 = vpop.f32.mrb[0].mxu0
    %v8226 = vadd.f32 %v8153, %v8225
    %v8227 = vpop.f32.mrb[0].mxu0
    %v8228 = vadd.f32 %v8155, %v8227
    %v8229 = vpop.f32.mrb[0].mxu0
    %v8230 = vadd.f32 %v8157, %v8229
    %8231 = vmatprep.mubr.bf16.mxu0 %v2926
    %8232 = vmatmul.mubr.bf16.gmra.mrb[0].mxu0 %v2925
    %v8233 = vpop.f32.mrb[0].mxu0
    %v8234 = vadd.f32 %v8161, %v8233
    %v8235 = vpop.f32.mrb[0].mxu0
    %v8236 = vadd.f32 %v8163, %v8235
    %v8237 = vpop.f32.mrb[0].mxu0
    %v8238 = vadd.f32 %v8165, %v8237
    %v8239 = vpop.f32.mrb[0].mxu0
    %v8240 = vadd.f32 %v8167, %v8239
    %8241 = vmatprep.mubr.bf16.mxu0 %v2930
    %8242 = vmatmul.mubr.bf16.gmra.mrb[0].mxu0 %v2929
    %v8243 = vpop.f32.mrb[0].mxu0
    %v8244 = vadd.f32 %v8171, %v8243
    %v8245 = vpop.f32.mrb[0].mxu0
    %v8246 = vadd.f32 %v8173, %v8245
    %v8247 = vpop.f32.mrb[0].mxu0
    %v8248 = vadd.f32 %v8175, %v8247
    %v8249 = vpop.f32.mrb[0].mxu0
    %v8250 = vadd.f32 %v8177, %v8249
    %8251 = vdwg.mxu0
    %8252 = vmatprep.subr.bf16.mxu0 %v7453
    %8253 = vmatpush1.bf16.msra.mxu0 %v7452
    %8254 = vmatprep.subr.bf16.mxu0 %v7461
    %8255 = vmatpush1.bf16.msra.mxu0 %v7460
    %8256 = vmatprep.subr.bf16.mxu0 %v7469
    %8257 = vmatpush1.bf16.msra.mxu0 %v7468
    %8258 = vmatprep.subr.bf16.mxu0 %v7477
    %8259 = vmatpush1.bf16.msra.mxu0 %v7476
    %8260 = vmatprep.subr.bf16.mxu0 %v7485
    %8261 = vmatpush1.bf16.msra.mxu0 %v7484
    %8262 = vmatprep.subr.bf16.mxu0 %v7493
    %8263 = vmatpush1.bf16.msra.mxu0 %v7492
    %8264 = vmatprep.subr.bf16.mxu0 %v7501
    %8265 = vmatpush1.bf16.msra.mxu0 %v7500
    %8266 = vmatprep.subr.bf16.mxu0 %v7509
    %8267 = vmatpush1.bf16.msra.mxu0 %v7508
    %8268 = vmatprep.subr.bf16.mxu0 %v7517
    %8269 = vmatpush1.bf16.msra.mxu0 %v7516
    %8270 = vmatprep.subr.bf16.mxu0 %v7525
    %8271 = vmatpush1.bf16.msra.mxu0 %v7524
    %8272 = vmatprep.subr.bf16.mxu0 %v7533
    %8273 = vmatpush1.bf16.msra.mxu0 %v7532
    %8274 = vmatprep.subr.bf16.mxu0 %v7541
    %8275 = vmatpush1.bf16.msra.mxu0 %v7540
    %8276 = vmatprep.subr.bf16.mxu0 %v7549
    %8277 = vmatpush1.bf16.msra.mxu0 %v7548
    %8278 = vmatprep.subr.bf16.mxu0 %v7557
    %8279 = vmatpush1.bf16.msra.mxu0 %v7556
    %8280 = vmatprep.subr.bf16.mxu0 %v7565
    %8281 = vmatpush1.bf16.msra.mxu0 %v7564
    %8282 = vmatprep.subr.bf16.mxu0 %v7573
    %8283 = vmatpush1.bf16.msra.mxu0 %v7572
    %8284 = vmatprep.mubr.bf16.mxu0 %v2916
    %8285 = vmatmul.mubr.bf16.gmra.mrb[0].mxu0 %v2915
    %v8286 = vpop.f32.mrb[0].mxu0
    %v8287 = vadd.f32 0.0, %v8286
    %v8288 = vpop.f32.mrb[0].mxu0
    %v8289 = vadd.f32 0.0, %v8288
    %v8290 = vpop.f32.mrb[0].mxu0
    %v8291 = vadd.f32 0.0, %v8290
    %v8292 = vpop.f32.mrb[0].mxu0
    %v8293 = vadd.f32 0.0, %v8292
    %8294 = vmatprep.mubr.bf16.mxu0 %v2920
    %8295 = vmatmul.mubr.bf16.gmra.mrb[0].mxu0 %v2919
    %v8296 = vpop.f32.mrb[0].mxu0
    %v8297 = vadd.f32 0.0, %v8296
    %v8298 = vpop.f32.mrb[0].mxu0
    %v8299 = vadd.f32 0.0, %v8298
    %v8300 = vpop.f32.mrb[0].mxu0
    %v8301 = vadd.f32 0.0, %v8300
    %v8302 = vpop.f32.mrb[0].mxu0
    %v8303 = vadd.f32 0.0, %v8302
    %8304 = vmatprep.mubr.bf16.mxu0 %v2924
    %8305 = vmatmul.mubr.bf16.gmra.mrb[0].mxu0 %v2923
    %v8306 = vpop.f32.mrb[0].mxu0
    %v8307 = vadd.f32 0.0, %v8306
    %v8308 = vpop.f32.mrb[0].mxu0
    %v8309 = vadd.f32 0.0, %v8308
    %v8310 = vpop.f32.mrb[0].mxu0
    %v8311 = vadd.f32 0.0, %v8310
    %v8312 = vpop.f32.mrb[0].mxu0
    %v8313 = vadd.f32 0.0, %v8312
    %8314 = vmatprep.mubr.bf16.mxu0 %v2928
    %8315 = vmatmul.mubr.bf16.gmra.mrb[0].mxu0 %v2927
    %v8316 = vpop.f32.mrb[0].mxu0
    %v8317 = vadd.f32 0.0, %v8316
    %v8318 = vpop.f32.mrb[0].mxu0
    %v8319 = vadd.f32 0.0, %v8318
    %v8320 = vpop.f32.mrb[0].mxu0
    %v8321 = vadd.f32 0.0, %v8320
    %v8322 = vpop.f32.mrb[0].mxu0
    %v8323 = vadd.f32 0.0, %v8322
    %8324 = vdwg.mxu0
    %8325 = vmatprep.subr.bf16.mxu0 %v7581
    %8326 = vmatpush1.bf16.msra.mxu0 %v7580
    %8327 = vmatprep.subr.bf16.mxu0 %v7589
    %8328 = vmatpush1.bf16.msra.mxu0 %v7588
    %8329 = vmatprep.subr.bf16.mxu0 %v7597
    %8330 = vmatpush1.bf16.msra.mxu0 %v7596
    %8331 = vmatprep.subr.bf16.mxu0 %v7605
    %8332 = vmatpush1.bf16.msra.mxu0 %v7604
    %8333 = vmatprep.subr.bf16.mxu0 %v7613
    %8334 = vmatpush1.bf16.msra.mxu0 %v7612
    %8335 = vmatprep.subr.bf16.mxu0 %v7621
    %8336 = vmatpush1.bf16.msra.mxu0 %v7620
    %8337 = vmatprep.subr.bf16.mxu0 %v7629
    %8338 = vmatpush1.bf16.msra.mxu0 %v7628
    %8339 = vmatprep.subr.bf16.mxu0 %v7637
    %8340 = vmatpush1.bf16.msra.mxu0 %v7636
    %8341 = vmatprep.subr.bf16.mxu0 %v7645
    %8342 = vmatpush1.bf16.msra.mxu0 %v7644
    %8343 = vmatprep.subr.bf16.mxu0 %v7653
    %8344 = vmatpush1.bf16.msra.mxu0 %v7652
    %8345 = vmatprep.subr.bf16.mxu0 %v7661
    %8346 = vmatpush1.bf16.msra.mxu0 %v7660
    %8347 = vmatprep.subr.bf16.mxu0 %v7669
    %8348 = vmatpush1.bf16.msra.mxu0 %v7668
    %8349 = vmatprep.subr.bf16.mxu0 %v7677
    %8350 = vmatpush1.bf16.msra.mxu0 %v7676
    %8351 = vmatprep.subr.bf16.mxu0 %v7685
    %8352 = vmatpush1.bf16.msra.mxu0 %v7684
    %8353 = vmatprep.subr.bf16.mxu0 %v7693
    %8354 = vmatpush1.bf16.msra.mxu0 %v7692
    %8355 = vmatprep.subr.bf16.mxu0 %v7701
    %8356 = vmatpush1.bf16.msra.mxu0 %v7700
    %8357 = vmatprep.mubr.bf16.mxu0 %v2918
    %8358 = vmatmul.mubr.bf16.gmra.mrb[0].mxu0 %v2917
    %v8359 = vpop.f32.mrb[0].mxu0
    %v8360 = vadd.f32 %v8287, %v8359
    %v8361 = vpop.f32.mrb[0].mxu0
    %v8362 = vadd.f32 %v8289, %v8361
    %v8363 = vpop.f32.mrb[0].mxu0
    %v8364 = vadd.f32 %v8291, %v8363
    %v8365 = vpop.f32.mrb[0].mxu0
    %v8366 = vadd.f32 %v8293, %v8365
    %8367 = vmatprep.mubr.bf16.mxu0 %v2922
    %8368 = vmatmul.mubr.bf16.gmra.mrb[0].mxu0 %v2921
    %v8369 = vpop.f32.mrb[0].mxu0
    %v8370 = vadd.f32 %v8297, %v8369
    %v8371 = vpop.f32.mrb[0].mxu0
    %v8372 = vadd.f32 %v8299, %v8371
    %v8373 = vpop.f32.mrb[0].mxu0
    %v8374 = vadd.f32 %v8301, %v8373
    %v8375 = vpop.f32.mrb[0].mxu0
    %v8376 = vadd.f32 %v8303, %v8375
    %8377 = vmatprep.mubr.bf16.mxu0 %v2926
    %8378 = vmatmul.mubr.bf16.gmra.mrb[0].mxu0 %v2925
    %v8379 = vpop.f32.mrb[0].mxu0
    %v8380 = vadd.f32 %v8307, %v8379
    %v8381 = vpop.f32.mrb[0].mxu0
    %v8382 = vadd.f32 %v8309, %v8381
    %v8383 = vpop.f32.mrb[0].mxu0
    %v8384 = vadd.f32 %v8311, %v8383
    %v8385 = vpop.f32.mrb[0].mxu0
    %v8386 = vadd.f32 %v8313, %v8385
    %8387 = vmatprep.mubr.bf16.mxu0 %v2930
    %8388 = vmatmul.mubr.bf16.gmra.mrb[0].mxu0 %v2929
    %v8389 = vpop.f32.mrb[0].mxu0
    %v8390 = vadd.f32 %v8317, %v8389
    %v8391 = vpop.f32.mrb[0].mxu0
    %v8392 = vadd.f32 %v8319, %v8391
    %v8393 = vpop.f32.mrb[0].mxu0
    %v8394 = vadd.f32 %v8321, %v8393
    %v8395 = vpop.f32.mrb[0].mxu0
    %v8396 = vadd.f32 %v8323, %v8395
    %8397 = vdwg.mxu0
    %8398 = vmatprep.subr.bf16.mxu0 %v7455
    %8399 = vmatpush1.bf16.msra.mxu0 %v7454
    %8400 = vmatprep.subr.bf16.mxu0 %v7463
    %8401 = vmatpush1.bf16.msra.mxu0 %v7462
    %8402 = vmatprep.subr.bf16.mxu0 %v7471
    %8403 = vmatpush1.bf16.msra.mxu0 %v7470
    %8404 = vmatprep.subr.bf16.mxu0 %v7479
    %8405 = vmatpush1.bf16.msra.mxu0 %v7478
    %8406 = vmatprep.subr.bf16.mxu0 %v7487
    %8407 = vmatpush1.bf16.msra.mxu0 %v7486
    %8408 = vmatprep.subr.bf16.mxu0 %v7495
    %8409 = vmatpush1.bf16.msra.mxu0 %v7494
    %8410 = vmatprep.subr.bf16.mxu0 %v7503
    %8411 = vmatpush1.bf16.msra.mxu0 %v7502
    %8412 = vmatprep.subr.bf16.mxu0 %v7511
    %8413 = vmatpush1.bf16.msra.mxu0 %v7510
    %8414 = vmatprep.subr.bf16.mxu0 %v7519
    %8415 = vmatpush1.bf16.msra.mxu0 %v7518
    %8416 = vmatprep.subr.bf16.mxu0 %v7527
    %8417 = vmatpush1.bf16.msra.mxu0 %v7526
    %8418 = vmatprep.subr.bf16.mxu0 %v7535
    %8419 = vmatpush1.bf16.msra.mxu0 %v7534
    %8420 = vmatprep.subr.bf16.mxu0 %v7543
    %8421 = vmatpush1.bf16.msra.mxu0 %v7542
    %8422 = vmatprep.subr.bf16.mxu0 %v7551
    %8423 = vmatpush1.bf16.msra.mxu0 %v7550
    %8424 = vmatprep.subr.bf16.mxu0 %v7559
    %8425 = vmatpush1.bf16.msra.mxu0 %v7558
    %8426 = vmatprep.subr.bf16.mxu0 %v7567
    %8427 = vmatpush1.bf16.msra.mxu0 %v7566
    %8428 = vmatprep.subr.bf16.mxu0 %v7575
    %8429 = vmatpush1.bf16.msra.mxu0 %v7574
    %8430 = vmatprep.mubr.bf16.mxu0 %v2916
    %8431 = vmatmul.mubr.bf16.gmra.mrb[0].mxu0 %v2915
    %v8432 = vpop.f32.mrb[0].mxu0
    %v8433 = vadd.f32 0.0, %v8432
    %v8434 = vpop.f32.mrb[0].mxu0
    %v8435 = vadd.f32 0.0, %v8434
    %v8436 = vpop.f32.mrb[0].mxu0
    %v8437 = vadd.f32 0.0, %v8436
    %v8438 = vpop.f32.mrb[0].mxu0
    %v8439 = vadd.f32 0.0, %v8438
    %8440 = vmatprep.mubr.bf16.mxu0 %v2920
    %8441 = vmatmul.mubr.bf16.gmra.mrb[0].mxu0 %v2919
    %v8442 = vpop.f32.mrb[0].mxu0
    %v8443 = vadd.f32 0.0, %v8442
    %v8444 = vpop.f32.mrb[0].mxu0
    %v8445 = vadd.f32 0.0, %v8444
    %v8446 = vpop.f32.mrb[0].mxu0
    %v8447 = vadd.f32 0.0, %v8446
    %v8448 = vpop.f32.mrb[0].mxu0
    %v8449 = vadd.f32 0.0, %v8448
    %8450 = vmatprep.mubr.bf16.mxu0 %v2924
    %8451 = vmatmul.mubr.bf16.gmra.mrb[0].mxu0 %v2923
    %v8452 = vpop.f32.mrb[0].mxu0
    %v8453 = vadd.f32 0.0, %v8452
    %v8454 = vpop.f32.mrb[0].mxu0
    %v8455 = vadd.f32 0.0, %v8454
    %v8456 = vpop.f32.mrb[0].mxu0
    %v8457 = vadd.f32 0.0, %v8456
    %v8458 = vpop.f32.mrb[0].mxu0
    %v8459 = vadd.f32 0.0, %v8458
    %8460 = vmatprep.mubr.bf16.mxu0 %v2928
    %8461 = vmatmul.mubr.bf16.gmra.mrb[0].mxu0 %v2927
    %v8462 = vpop.f32.mrb[0].mxu0
    %v8463 = vadd.f32 0.0, %v8462
    %v8464 = vpop.f32.mrb[0].mxu0
    %v8465 = vadd.f32 0.0, %v8464
    %v8466 = vpop.f32.mrb[0].mxu0
    %v8467 = vadd.f32 0.0, %v8466
    %v8468 = vpop.f32.mrb[0].mxu0
    %v8469 = vadd.f32 0.0, %v8468
    %8470 = vdwg.mxu0
    %8471 = vmatprep.subr.bf16.mxu0 %v7583
    %8472 = vmatpush1.bf16.msra.mxu0 %v7582
    %8473 = vmatprep.subr.bf16.mxu0 %v7591
    %8474 = vmatpush1.bf16.msra.mxu0 %v7590
    %8475 = vmatprep.subr.bf16.mxu0 %v7599
    %8476 = vmatpush1.bf16.msra.mxu0 %v7598
    %8477 = vmatprep.subr.bf16.mxu0 %v7607
    %8478 = vmatpush1.bf16.msra.mxu0 %v7606
    %8479 = vmatprep.subr.bf16.mxu0 %v7615
    %8480 = vmatpush1.bf16.msra.mxu0 %v7614
    %8481 = vmatprep.subr.bf16.mxu0 %v7623
    %8482 = vmatpush1.bf16.msra.mxu0 %v7622
    %8483 = vmatprep.subr.bf16.mxu0 %v7631
    %8484 = vmatpush1.bf16.msra.mxu0 %v7630
    %8485 = vmatprep.subr.bf16.mxu0 %v7639
    %8486 = vmatpush1.bf16.msra.mxu0 %v7638
    %8487 = vmatprep.subr.bf16.mxu0 %v7647
    %8488 = vmatpush1.bf16.msra.mxu0 %v7646
    %8489 = vmatprep.subr.bf16.mxu0 %v7655
    %8490 = vmatpush1.bf16.msra.mxu0 %v7654
    %8491 = vmatprep.subr.bf16.mxu0 %v7663
    %8492 = vmatpush1.bf16.msra.mxu0 %v7662
    %8493 = vmatprep.subr.bf16.mxu0 %v7671
    %8494 = vmatpush1.bf16.msra.mxu0 %v7670
    %8495 = vmatprep.subr.bf16.mxu0 %v7679
    %8496 = vmatpush1.bf16.msra.mxu0 %v7678
    %8497 = vmatprep.subr.bf16.mxu0 %v7687
    %8498 = vmatpush1.bf16.msra.mxu0 %v7686
    %8499 = vmatprep.subr.bf16.mxu0 %v7695
    %8500 = vmatpush1.bf16.msra.mxu0 %v7694
    %8501 = vmatprep.subr.bf16.mxu0 %v7703
    %8502 = vmatpush1.bf16.msra.mxu0 %v7702
    %8503 = vmatprep.mubr.bf16.mxu0 %v2918
    %8504 = vmatmul.mubr.bf16.gmra.mrb[0].mxu0 %v2917
    %v8505 = vpop.f32.mrb[0].mxu0
    %v8506 = vadd.f32 %v8433, %v8505
    %v8507 = vpop.f32.mrb[0].mxu0
    %v8508 = vadd.f32 %v8435, %v8507
    %v8509 = vpop.f32.mrb[0].mxu0
    %v8510 = vadd.f32 %v8437, %v8509
    %v8511 = vpop.f32.mrb[0].mxu0
    %v8512 = vadd.f32 %v8439, %v8511
    %8513 = vmatprep.mubr.bf16.mxu0 %v2922
    %8514 = vmatmul.mubr.bf16.gmra.mrb[0].mxu0 %v2921
    %v8515 = vpop.f32.mrb[0].mxu0
    %v8516 = vadd.f32 %v8443, %v8515
    %v8517 = vpop.f32.mrb[0].mxu0
    %v8518 = vadd.f32 %v8445, %v8517
    %v8519 = vpop.f32.mrb[0].mxu0
    %v8520 = vadd.f32 %v8447, %v8519
    %v8521 = vpop.f32.mrb[0].mxu0
    %v8522 = vadd.f32 %v8449, %v8521
    %8523 = vmatprep.mubr.bf16.mxu0 %v2926
    %8524 = vmatmul.mubr.bf16.gmra.mrb[0].mxu0 %v2925
    %v8525 = vpop.f32.mrb[0].mxu0
    %v8526 = vadd.f32 %v8453, %v8525
    %v8527 = vpop.f32.mrb[0].mxu0
    %v8528 = vadd.f32 %v8455, %v8527
    %v8529 = vpop.f32.mrb[0].mxu0
    %v8530 = vadd.f32 %v8457, %v8529
    %v8531 = vpop.f32.mrb[0].mxu0
    %v8532 = vadd.f32 %v8459, %v8531
    %8533 = vmatprep.mubr.bf16.mxu0 %v2930
    %8534 = vmatmul.mubr.bf16.gmra.mrb[0].mxu0 %v2929
    %v8535 = vpop.f32.mrb[0].mxu0
    %v8536 = vadd.f32 %v8463, %v8535
    %v8537 = vpop.f32.mrb[0].mxu0
    %v8538 = vadd.f32 %v8465, %v8537
    %v8539 = vpop.f32.mrb[0].mxu0
    %v8540 = vadd.f32 %v8467, %v8539
    %v8541 = vpop.f32.mrb[0].mxu0
    %v8542 = vadd.f32 %v8469, %v8541
    %8543 = vdwg.mxu0
    %v8544 = vadd.f32 %v6204, %v8068
    %v8545 = vadd.f32 %v6206, %v8070
    %v8546 = vadd.f32 %v6350, %v8214
    %v8547 = vadd.f32 %v6352, %v8216
    %v8548 = vadd.f32 %v6496, %v8360
    %v8549 = vadd.f32 %v6498, %v8362
    %v8550 = vadd.f32 %v6642, %v8506
    %v8551 = vadd.f32 %v6644, %v8508
    %v8552 = vadd.f32 %v6208, %v8072
    %v8553 = vadd.f32 %v6210, %v8074
    %v8554 = vadd.f32 %v6354, %v8218
    %v8555 = vadd.f32 %v6356, %v8220
    %v8556 = vadd.f32 %v6500, %v8364
    %v8557 = vadd.f32 %v6502, %v8366
    %v8558 = vadd.f32 %v6646, %v8510
    %v8559 = vadd.f32 %v6648, %v8512
    %v8560 = vadd.f32 %v6214, %v8078
    %v8561 = vadd.f32 %v6216, %v8080
    %v8562 = vadd.f32 %v6360, %v8224
    %v8563 = vadd.f32 %v6362, %v8226
    %v8564 = vadd.f32 %v6506, %v8370
    %v8565 = vadd.f32 %v6508, %v8372
    %v8566 = vadd.f32 %v6652, %v8516
    %v8567 = vadd.f32 %v6654, %v8518
    %v8568 = vadd.f32 %v6218, %v8082
    %v8569 = vadd.f32 %v6220, %v8084
    %v8570 = vadd.f32 %v6364, %v8228
    %v8571 = vadd.f32 %v6366, %v8230
    %v8572 = vadd.f32 %v6510, %v8374
    %v8573 = vadd.f32 %v6512, %v8376
    %v8574 = vadd.f32 %v6656, %v8520
    %v8575 = vadd.f32 %v6658, %v8522
    %v8576 = vadd.f32 %v6224, %v8088
    %v8577 = vadd.f32 %v6226, %v8090
    %v8578 = vadd.f32 %v6370, %v8234
    %v8579 = vadd.f32 %v6372, %v8236
    %v8580 = vadd.f32 %v6516, %v8380
    %v8581 = vadd.f32 %v6518, %v8382
    %v8582 = vadd.f32 %v6662, %v8526
    %v8583 = vadd.f32 %v6664, %v8528
    %v8584 = vadd.f32 %v6228, %v8092
    %v8585 = vadd.f32 %v6230, %v8094
    %v8586 = vadd.f32 %v6374, %v8238
    %v8587 = vadd.f32 %v6376, %v8240
    %v8588 = vadd.f32 %v6520, %v8384
    %v8589 = vadd.f32 %v6522, %v8386
    %v8590 = vadd.f32 %v6666, %v8530
    %v8591 = vadd.f32 %v6668, %v8532
    %v8592 = vadd.f32 %v6234, %v8098
    %v8593 = vadd.f32 %v6236, %v8100
    %v8594 = vadd.f32 %v6380, %v8244
    %v8595 = vadd.f32 %v6382, %v8246
    %v8596 = vadd.f32 %v6526, %v8390
    %v8597 = vadd.f32 %v6528, %v8392
    %v8598 = vadd.f32 %v6672, %v8536
    %v8599 = vadd.f32 %v6674, %v8538
    %v8600 = vadd.f32 %v6238, %v8102
    %v8601 = vadd.f32 %v6240, %v8104
    %v8602 = vadd.f32 %v6384, %v8248
    %v8603 = vadd.f32 %v6386, %v8250
    %v8604 = vadd.f32 %v6530, %v8394
    %v8605 = vadd.f32 %v6532, %v8396
    %v8606 = vadd.f32 %v6676, %v8540
    %v8607 = vadd.f32 %v6678, %v8542
    %v8608 = vmax.f32 %v8544, %v8548
    %v8609 = vmax.f32 %v8545, %v8549
    %v8610 = vmax.f32 %v8546, %v8550
    %v8611 = vmax.f32 %v8547, %v8551
    %v8612 = vmax.f32 %v8552, %v8556
    %v8613 = vmax.f32 %v8553, %v8557
    %v8614 = vmax.f32 %v8554, %v8558
    %v8615 = vmax.f32 %v8555, %v8559
    %v8616 = vmax.f32 %v8560, %v8564
    %v8617 = vmax.f32 %v8561, %v8565
    %v8618 = vmax.f32 %v8562, %v8566
    %v8619 = vmax.f32 %v8563, %v8567
    %v8620 = vmax.f32 %v8568, %v8572
    %v8621 = vmax.f32 %v8569, %v8573
    %v8622 = vmax.f32 %v8570, %v8574
    %v8623 = vmax.f32 %v8571, %v8575
    %v8624 = vmax.f32 %v8576, %v8580
    %v8625 = vmax.f32 %v8577, %v8581
    %v8626 = vmax.f32 %v8578, %v8582
    %v8627 = vmax.f32 %v8579, %v8583
    %v8628 = vmax.f32 %v8584, %v8588
    %v8629 = vmax.f32 %v8585, %v8589
    %v8630 = vmax.f32 %v8586, %v8590
    %v8631 = vmax.f32 %v8587, %v8591
    %v8632 = vmax.f32 %v8592, %v8596
    %v8633 = vmax.f32 %v8593, %v8597
    %v8634 = vmax.f32 %v8594, %v8598
    %v8635 = vmax.f32 %v8595, %v8599
    %v8636 = vmax.f32 %v8600, %v8604
    %v8637 = vmax.f32 %v8601, %v8605
    %v8638 = vmax.f32 %v8602, %v8606
    %v8639 = vmax.f32 %v8603, %v8607
    %8640 = vmatprep.subr.bf16.mxu0 %v3721
    %8641 = vmatpush1.bf16.msra.mxu0 %v3720
    %8642 = vmatprep.subr.bf16.mxu0 %v3729
    %8643 = vmatpush1.bf16.msra.mxu0 %v3728
    %8644 = vmatprep.subr.bf16.mxu0 %v3737
    %8645 = vmatpush1.bf16.msra.mxu0 %v3736
    %8646 = vmatprep.subr.bf16.mxu0 %v3745
    %8647 = vmatpush1.bf16.msra.mxu0 %v3744
    %8648 = vmatprep.subr.bf16.mxu0 %v3753
    %8649 = vmatpush1.bf16.msra.mxu0 %v3752
    %8650 = vmatprep.subr.bf16.mxu0 %v3761
    %8651 = vmatpush1.bf16.msra.mxu0 %v3760
    %8652 = vmatprep.subr.bf16.mxu0 %v3769
    %8653 = vmatpush1.bf16.msra.mxu0 %v3768
    %8654 = vmatprep.subr.bf16.mxu0 %v3777
    %8655 = vmatpush1.bf16.msra.mxu0 %v3776
    %8656 = vmatprep.subr.bf16.mxu0 %v3785
    %8657 = vmatpush1.bf16.msra.mxu0 %v3784
    %8658 = vmatprep.subr.bf16.mxu0 %v3793
    %8659 = vmatpush1.bf16.msra.mxu0 %v3792
    %8660 = vmatprep.subr.bf16.mxu0 %v3801
    %8661 = vmatpush1.bf16.msra.mxu0 %v3800
    %8662 = vmatprep.subr.bf16.mxu0 %v3809
    %8663 = vmatpush1.bf16.msra.mxu0 %v3808
    %8664 = vmatprep.subr.bf16.mxu0 %v3817
    %8665 = vmatpush1.bf16.msra.mxu0 %v3816
    %8666 = vmatprep.subr.bf16.mxu0 %v3825
    %8667 = vmatpush1.bf16.msra.mxu0 %v3824
    %8668 = vmatprep.subr.bf16.mxu0 %v3833
    %8669 = vmatpush1.bf16.msra.mxu0 %v3832
    %8670 = vmatprep.subr.bf16.mxu0 %v3841
    %8671 = vmatpush1.bf16.msra.mxu0 %v3840
    %8672 = vmatprep.mubr.bf16.mxu0 %v2916
    %8673 = vmatmul.mubr.bf16.gmra.mrb[0].mxu0 %v2915
    %v8674 = vpop.f32.mrb[0].mxu0
    %v8675 = vadd.f32 0.0, %v8674
    %v8676 = vpop.f32.mrb[0].mxu0
    %v8677 = vadd.f32 0.0, %v8676
    %v8678 = vpop.f32.mrb[0].mxu0
    %v8679 = vadd.f32 0.0, %v8678
    %v8680 = vpop.f32.mrb[0].mxu0
    %v8681 = vadd.f32 0.0, %v8680
    %8682 = vmatprep.mubr.bf16.mxu0 %v2920
    %8683 = vmatmul.mubr.bf16.gmra.mrb[0].mxu0 %v2919
    %v8684 = vpop.f32.mrb[0].mxu0
    %v8685 = vadd.f32 0.0, %v8684
    %v8686 = vpop.f32.mrb[0].mxu0
    %v8687 = vadd.f32 0.0, %v8686
    %v8688 = vpop.f32.mrb[0].mxu0
    %v8689 = vadd.f32 0.0, %v8688
    %v8690 = vpop.f32.mrb[0].mxu0
    %v8691 = vadd.f32 0.0, %v8690
    %8692 = vmatprep.mubr.bf16.mxu0 %v2924
    %8693 = vmatmul.mubr.bf16.gmra.mrb[0].mxu0 %v2923
    %v8694 = vpop.f32.mrb[0].mxu0
    %v8695 = vadd.f32 0.0, %v8694
    %v8696 = vpop.f32.mrb[0].mxu0
    %v8697 = vadd.f32 0.0, %v8696
    %v8698 = vpop.f32.mrb[0].mxu0
    %v8699 = vadd.f32 0.0, %v8698
    %v8700 = vpop.f32.mrb[0].mxu0
    %v8701 = vadd.f32 0.0, %v8700
    %8702 = vmatprep.mubr.bf16.mxu0 %v2928
    %8703 = vmatmul.mubr.bf16.gmra.mrb[0].mxu0 %v2927
    %v8704 = vpop.f32.mrb[0].mxu0
    %v8705 = vadd.f32 0.0, %v8704
    %v8706 = vpop.f32.mrb[0].mxu0
    %v8707 = vadd.f32 0.0, %v8706
    %v8708 = vpop.f32.mrb[0].mxu0
    %v8709 = vadd.f32 0.0, %v8708
    %v8710 = vpop.f32.mrb[0].mxu0
    %v8711 = vadd.f32 0.0, %v8710
    %8712 = vdwg.mxu0
    %8713 = vmatprep.subr.bf16.mxu0 %v3849
    %8714 = vmatpush1.bf16.msra.mxu0 %v3848
    %8715 = vmatprep.subr.bf16.mxu0 %v3857
    %8716 = vmatpush1.bf16.msra.mxu0 %v3856
    %8717 = vmatprep.subr.bf16.mxu0 %v3865
    %8718 = vmatpush1.bf16.msra.mxu0 %v3864
    %8719 = vmatprep.subr.bf16.mxu0 %v3873
    %8720 = vmatpush1.bf16.msra.mxu0 %v3872
    %8721 = vmatprep.subr.bf16.mxu0 %v3881
    %8722 = vmatpush1.bf16.msra.mxu0 %v3880
    %8723 = vmatprep.subr.bf16.mxu0 %v3889
    %8724 = vmatpush1.bf16.msra.mxu0 %v3888
    %8725 = vmatprep.subr.bf16.mxu0 %v3897
    %8726 = vmatpush1.bf16.msra.mxu0 %v3896
    %8727 = vmatprep.subr.bf16.mxu0 %v3905
    %8728 = vmatpush1.bf16.msra.mxu0 %v3904
    %8729 = vmatprep.subr.bf16.mxu0 %v3913
    %8730 = vmatpush1.bf16.msra.mxu0 %v3912
    %8731 = vmatprep.subr.bf16.mxu0 %v3921
    %8732 = vmatpush1.bf16.msra.mxu0 %v3920
    %8733 = vmatprep.subr.bf16.mxu0 %v3929
    %8734 = vmatpush1.bf16.msra.mxu0 %v3928
    %8735 = vmatprep.subr.bf16.mxu0 %v3937
    %8736 = vmatpush1.bf16.msra.mxu0 %v3936
    %8737 = vmatprep.subr.bf16.mxu0 %v3945
    %8738 = vmatpush1.bf16.msra.mxu0 %v3944
    %8739 = vmatprep.subr.bf16.mxu0 %v3953
    %8740 = vmatpush1.bf16.msra.mxu0 %v3952
    %8741 = vmatprep.subr.bf16.mxu0 %v3961
    %8742 = vmatpush1.bf16.msra.mxu0 %v3960
    %8743 = vmatprep.subr.bf16.mxu0 %v3969
    %8744 = vmatpush1.bf16.msra.mxu0 %v3968
    %8745 = vmatprep.mubr.bf16.mxu0 %v2918
    %8746 = vmatmul.mubr.bf16.gmra.mrb[0].mxu0 %v2917
    %v8747 = vpop.f32.mrb[0].mxu0
    %v8748 = vadd.f32 %v8675, %v8747
    %v8749 = vpop.f32.mrb[0].mxu0
    %v8750 = vadd.f32 %v8677, %v8749
    %v8751 = vpop.f32.mrb[0].mxu0
    %v8752 = vadd.f32 %v8679, %v8751
    %v8753 = vpop.f32.mrb[0].mxu0
    %v8754 = vadd.f32 %v8681, %v8753
    %8755 = vmatprep.mubr.bf16.mxu0 %v2922
    %8756 = vmatmul.mubr.bf16.gmra.mrb[0].mxu0 %v2921
    %v8757 = vpop.f32.mrb[0].mxu0
    %v8758 = vadd.f32 %v8685, %v8757
    %v8759 = vpop.f32.mrb[0].mxu0
    %v8760 = vadd.f32 %v8687, %v8759
    %v8761 = vpop.f32.mrb[0].mxu0
    %v8762 = vadd.f32 %v8689, %v8761
    %v8763 = vpop.f32.mrb[0].mxu0
    %v8764 = vadd.f32 %v8691, %v8763
    %8765 = vmatprep.mubr.bf16.mxu0 %v2926
    %8766 = vmatmul.mubr.bf16.gmra.mrb[0].mxu0 %v2925
    %v8767 = vpop.f32.mrb[0].mxu0
    %v8768 = vadd.f32 %v8695, %v8767
    %v8769 = vpop.f32.mrb[0].mxu0
    %v8770 = vadd.f32 %v8697, %v8769
    %v8771 = vpop.f32.mrb[0].mxu0
    %v8772 = vadd.f32 %v8699, %v8771
    %v8773 = vpop.f32.mrb[0].mxu0
    %v8774 = vadd.f32 %v8701, %v8773
    %8775 = vmatprep.mubr.bf16.mxu0 %v2930
    %8776 = vmatmul.mubr.bf16.gmra.mrb[0].mxu0 %v2929
    %v8777 = vpop.f32.mrb[0].mxu0
    %v8778 = vadd.f32 %v8705, %v8777
    %v8779 = vpop.f32.mrb[0].mxu0
    %v8780 = vadd.f32 %v8707, %v8779
    %v8781 = vpop.f32.mrb[0].mxu0
    %v8782 = vadd.f32 %v8709, %v8781
    %v8783 = vpop.f32.mrb[0].mxu0
    %v8784 = vadd.f32 %v8711, %v8783
    %8785 = vdwg.mxu0
    %8786 = vmatprep.subr.bf16.mxu0 %v3723
    %8787 = vmatpush1.bf16.msra.mxu0 %v3722
    %8788 = vmatprep.subr.bf16.mxu0 %v3731
    %8789 = vmatpush1.bf16.msra.mxu0 %v3730
    %8790 = vmatprep.subr.bf16.mxu0 %v3739
    %8791 = vmatpush1.bf16.msra.mxu0 %v3738
    %8792 = vmatprep.subr.bf16.mxu0 %v3747
    %8793 = vmatpush1.bf16.msra.mxu0 %v3746
    %8794 = vmatprep.subr.bf16.mxu0 %v3755
    %8795 = vmatpush1.bf16.msra.mxu0 %v3754
    %8796 = vmatprep.subr.bf16.mxu0 %v3763
    %8797 = vmatpush1.bf16.msra.mxu0 %v3762
    %8798 = vmatprep.subr.bf16.mxu0 %v3771
    %8799 = vmatpush1.bf16.msra.mxu0 %v3770
    %8800 = vmatprep.subr.bf16.mxu0 %v3779
    %8801 = vmatpush1.bf16.msra.mxu0 %v3778
    %8802 = vmatprep.subr.bf16.mxu0 %v3787
    %8803 = vmatpush1.bf16.msra.mxu0 %v3786
    %8804 = vmatprep.subr.bf16.mxu0 %v3795
    %8805 = vmatpush1.bf16.msra.mxu0 %v3794
    %8806 = vmatprep.subr.bf16.mxu0 %v3803
    %8807 = vmatpush1.bf16.msra.mxu0 %v3802
    %8808 = vmatprep.subr.bf16.mxu0 %v3811
    %8809 = vmatpush1.bf16.msra.mxu0 %v3810
    %8810 = vmatprep.subr.bf16.mxu0 %v3819
    %8811 = vmatpush1.bf16.msra.mxu0 %v3818
    %8812 = vmatprep.subr.bf16.mxu0 %v3827
    %8813 = vmatpush1.bf16.msra.mxu0 %v3826
    %8814 = vmatprep.subr.bf16.mxu0 %v3835
    %8815 = vmatpush1.bf16.msra.mxu0 %v3834
    %8816 = vmatprep.subr.bf16.mxu0 %v3843
    %8817 = vmatpush1.bf16.msra.mxu0 %v3842
    %8818 = vmatprep.mubr.bf16.mxu0 %v2916
    %8819 = vmatmul.mubr.bf16.gmra.mrb[0].mxu0 %v2915
    %v8820 = vpop.f32.mrb[0].mxu0
    %v8821 = vadd.f32 0.0, %v8820
    %v8822 = vpop.f32.mrb[0].mxu0
    %v8823 = vadd.f32 0.0, %v8822
    %v8824 = vpop.f32.mrb[0].mxu0
    %v8825 = vadd.f32 0.0, %v8824
    %v8826 = vpop.f32.mrb[0].mxu0
    %v8827 = vadd.f32 0.0, %v8826
    %8828 = vmatprep.mubr.bf16.mxu0 %v2920
    %8829 = vmatmul.mubr.bf16.gmra.mrb[0].mxu0 %v2919
    %v8830 = vpop.f32.mrb[0].mxu0
    %v8831 = vadd.f32 0.0, %v8830
    %v8832 = vpop.f32.mrb[0].mxu0
    %v8833 = vadd.f32 0.0, %v8832
    %v8834 = vpop.f32.mrb[0].mxu0
    %v8835 = vadd.f32 0.0, %v8834
    %v8836 = vpop.f32.mrb[0].mxu0
    %v8837 = vadd.f32 0.0, %v8836
    %8838 = vmatprep.mubr.bf16.mxu0 %v2924
    %8839 = vmatmul.mubr.bf16.gmra.mrb[0].mxu0 %v2923
    %v8840 = vpop.f32.mrb[0].mxu0
    %v8841 = vadd.f32 0.0, %v8840
    %v8842 = vpop.f32.mrb[0].mxu0
    %v8843 = vadd.f32 0.0, %v8842
    %v8844 = vpop.f32.mrb[0].mxu0
    %v8845 = vadd.f32 0.0, %v8844
    %v8846 = vpop.f32.mrb[0].mxu0
    %v8847 = vadd.f32 0.0, %v8846
    %8848 = vmatprep.mubr.bf16.mxu0 %v2928
    %8849 = vmatmul.mubr.bf16.gmra.mrb[0].mxu0 %v2927
    %v8850 = vpop.f32.mrb[0].mxu0
    %v8851 = vadd.f32 0.0, %v8850
    %v8852 = vpop.f32.mrb[0].mxu0
    %v8853 = vadd.f32 0.0, %v8852
    %v8854 = vpop.f32.mrb[0].mxu0
    %v8855 = vadd.f32 0.0, %v8854
    %v8856 = vpop.f32.mrb[0].mxu0
    %v8857 = vadd.f32 0.0, %v8856
    %8858 = vdwg.mxu0
    %8859 = vmatprep.subr.bf16.mxu0 %v3851
    %8860 = vmatpush1.bf16.msra.mxu0 %v3850
    %8861 = vmatprep.subr.bf16.mxu0 %v3859
    %8862 = vmatpush1.bf16.msra.mxu0 %v3858
    %8863 = vmatprep.subr.bf16.mxu0 %v3867
    %8864 = vmatpush1.bf16.msra.mxu0 %v3866
    %8865 = vmatprep.subr.bf16.mxu0 %v3875
    %8866 = vmatpush1.bf16.msra.mxu0 %v3874
    %8867 = vmatprep.subr.bf16.mxu0 %v3883
    %8868 = vmatpush1.bf16.msra.mxu0 %v3882
    %8869 = vmatprep.subr.bf16.mxu0 %v3891
    %8870 = vmatpush1.bf16.msra.mxu0 %v3890
    %8871 = vmatprep.subr.bf16.mxu0 %v3899
    %8872 = vmatpush1.bf16.msra.mxu0 %v3898
    %8873 = vmatprep.subr.bf16.mxu0 %v3907
    %8874 = vmatpush1.bf16.msra.mxu0 %v3906
    %8875 = vmatprep.subr.bf16.mxu0 %v3915
    %8876 = vmatpush1.bf16.msra.mxu0 %v3914
    %8877 = vmatprep.subr.bf16.mxu0 %v3923
    %8878 = vmatpush1.bf16.msra.mxu0 %v3922
    %8879 = vmatprep.subr.bf16.mxu0 %v3931
    %8880 = vmatpush1.bf16.msra.mxu0 %v3930
    %8881 = vmatprep.subr.bf16.mxu0 %v3939
    %8882 = vmatpush1.bf16.msra.mxu0 %v3938
    %8883 = vmatprep.subr.bf16.mxu0 %v3947
    %8884 = vmatpush1.bf16.msra.mxu0 %v3946
    %8885 = vmatprep.subr.bf16.mxu0 %v3955
    %8886 = vmatpush1.bf16.msra.mxu0 %v3954
    %8887 = vmatprep.subr.bf16.mxu0 %v3963
    %8888 = vmatpush1.bf16.msra.mxu0 %v3962
    %8889 = vmatprep.subr.bf16.mxu0 %v3971
    %8890 = vmatpush1.bf16.msra.mxu0 %v3970
    %8891 = vmatprep.mubr.bf16.mxu0 %v2918
    %8892 = vmatmul.mubr.bf16.gmra.mrb[0].mxu0 %v2917
    %v8893 = vpop.f32.mrb[0].mxu0
    %v8894 = vadd.f32 %v8821, %v8893
    %v8895 = vpop.f32.mrb[0].mxu0
    %v8896 = vadd.f32 %v8823, %v8895
    %v8897 = vpop.f32.mrb[0].mxu0
    %v8898 = vadd.f32 %v8825, %v8897
    %v8899 = vpop.f32.mrb[0].mxu0
    %v8900 = vadd.f32 %v8827, %v8899
    %8901 = vmatprep.mubr.bf16.mxu0 %v2922
    %8902 = vmatmul.mubr.bf16.gmra.mrb[0].mxu0 %v2921
    %v8903 = vpop.f32.mrb[0].mxu0
    %v8904 = vadd.f32 %v8831, %v8903
    %v8905 = vpop.f32.mrb[0].mxu0
    %v8906 = vadd.f32 %v8833, %v8905
    %v8907 = vpop.f32.mrb[0].mxu0
    %v8908 = vadd.f32 %v8835, %v8907
    %v8909 = vpop.f32.mrb[0].mxu0
    %v8910 = vadd.f32 %v8837, %v8909
    %8911 = vmatprep.mubr.bf16.mxu0 %v2926
    %8912 = vmatmul.mubr.bf16.gmra.mrb[0].mxu0 %v2925
    %v8913 = vpop.f32.mrb[0].mxu0
    %v8914 = vadd.f32 %v8841, %v8913
    %v8915 = vpop.f32.mrb[0].mxu0
    %v8916 = vadd.f32 %v8843, %v8915
    %v8917 = vpop.f32.mrb[0].mxu0
    %v8918 = vadd.f32 %v8845, %v8917
    %v8919 = vpop.f32.mrb[0].mxu0
    %v8920 = vadd.f32 %v8847, %v8919
    %8921 = vmatprep.mubr.bf16.mxu0 %v2930
    %8922 = vmatmul.mubr.bf16.gmra.mrb[0].mxu0 %v2929
    %v8923 = vpop.f32.mrb[0].mxu0
    %v8924 = vadd.f32 %v8851, %v8923
    %v8925 = vpop.f32.mrb[0].mxu0
    %v8926 = vadd.f32 %v8853, %v8925
    %v8927 = vpop.f32.mrb[0].mxu0
    %v8928 = vadd.f32 %v8855, %v8927
    %v8929 = vpop.f32.mrb[0].mxu0
    %v8930 = vadd.f32 %v8857, %v8929
    %8931 = vdwg.mxu0
    %8932 = vmatprep.subr.bf16.mxu0 %v3725
    %8933 = vmatpush1.bf16.msra.mxu0 %v3724
    %8934 = vmatprep.subr.bf16.mxu0 %v3733
    %8935 = vmatpush1.bf16.msra.mxu0 %v3732
    %8936 = vmatprep.subr.bf16.mxu0 %v3741
    %8937 = vmatpush1.bf16.msra.mxu0 %v3740
    %8938 = vmatprep.subr.bf16.mxu0 %v3749
    %8939 = vmatpush1.bf16.msra.mxu0 %v3748
    %8940 = vmatprep.subr.bf16.mxu0 %v3757
    %8941 = vmatpush1.bf16.msra.mxu0 %v3756
    %8942 = vmatprep.subr.bf16.mxu0 %v3765
    %8943 = vmatpush1.bf16.msra.mxu0 %v3764
    %8944 = vmatprep.subr.bf16.mxu0 %v3773
    %8945 = vmatpush1.bf16.msra.mxu0 %v3772
    %8946 = vmatprep.subr.bf16.mxu0 %v3781
    %8947 = vmatpush1.bf16.msra.mxu0 %v3780
    %8948 = vmatprep.subr.bf16.mxu0 %v3789
    %8949 = vmatpush1.bf16.msra.mxu0 %v3788
    %8950 = vmatprep.subr.bf16.mxu0 %v3797
    %8951 = vmatpush1.bf16.msra.mxu0 %v3796
    %8952 = vmatprep.subr.bf16.mxu0 %v3805
    %8953 = vmatpush1.bf16.msra.mxu0 %v3804
    %8954 = vmatprep.subr.bf16.mxu0 %v3813
    %8955 = vmatpush1.bf16.msra.mxu0 %v3812
    %8956 = vmatprep.subr.bf16.mxu0 %v3821
    %8957 = vmatpush1.bf16.msra.mxu0 %v3820
    %8958 = vmatprep.subr.bf16.mxu0 %v3829
    %8959 = vmatpush1.bf16.msra.mxu0 %v3828
    %8960 = vmatprep.subr.bf16.mxu0 %v3837
    %8961 = vmatpush1.bf16.msra.mxu0 %v3836
    %8962 = vmatprep.subr.bf16.mxu0 %v3845
    %8963 = vmatpush1.bf16.msra.mxu0 %v3844
    %8964 = vmatprep.mubr.bf16.mxu0 %v2916
    %8965 = vmatmul.mubr.bf16.gmra.mrb[0].mxu0 %v2915
    %v8966 = vpop.f32.mrb[0].mxu0
    %v8967 = vadd.f32 0.0, %v8966
    %v8968 = vpop.f32.mrb[0].mxu0
    %v8969 = vadd.f32 0.0, %v8968
    %v8970 = vpop.f32.mrb[0].mxu0
    %v8971 = vadd.f32 0.0, %v8970
    %v8972 = vpop.f32.mrb[0].mxu0
    %v8973 = vadd.f32 0.0, %v8972
    %8974 = vmatprep.mubr.bf16.mxu0 %v2920
    %8975 = vmatmul.mubr.bf16.gmra.mrb[0].mxu0 %v2919
    %v8976 = vpop.f32.mrb[0].mxu0
    %v8977 = vadd.f32 0.0, %v8976
    %v8978 = vpop.f32.mrb[0].mxu0
    %v8979 = vadd.f32 0.0, %v8978
    %v8980 = vpop.f32.mrb[0].mxu0
    %v8981 = vadd.f32 0.0, %v8980
    %v8982 = vpop.f32.mrb[0].mxu0
    %v8983 = vadd.f32 0.0, %v8982
    %8984 = vmatprep.mubr.bf16.mxu0 %v2924
    %8985 = vmatmul.mubr.bf16.gmra.mrb[0].mxu0 %v2923
    %v8986 = vpop.f32.mrb[0].mxu0
    %v8987 = vadd.f32 0.0, %v8986
    %v8988 = vpop.f32.mrb[0].mxu0
    %v8989 = vadd.f32 0.0, %v8988
    %v8990 = vpop.f32.mrb[0].mxu0
    %v8991 = vadd.f32 0.0, %v8990
    %v8992 = vpop.f32.mrb[0].mxu0
    %v8993 = vadd.f32 0.0, %v8992
    %8994 = vmatprep.mubr.bf16.mxu0 %v2928
    %8995 = vmatmul.mubr.bf16.gmra.mrb[0].mxu0 %v2927
    %v8996 = vpop.f32.mrb[0].mxu0
    %v8997 = vadd.f32 0.0, %v8996
    %v8998 = vpop.f32.mrb[0].mxu0
    %v8999 = vadd.f32 0.0, %v8998
    %v9000 = vpop.f32.mrb[0].mxu0
    %v9001 = vadd.f32 0.0, %v9000
    %v9002 = vpop.f32.mrb[0].mxu0
    %v9003 = vadd.f32 0.0, %v9002
    %9004 = vdwg.mxu0
    %9005 = vmatprep.subr.bf16.mxu0 %v3853
    %9006 = vmatpush1.bf16.msra.mxu0 %v3852
    %9007 = vmatprep.subr.bf16.mxu0 %v3861
    %9008 = vmatpush1.bf16.msra.mxu0 %v3860
    %9009 = vmatprep.subr.bf16.mxu0 %v3869
    %9010 = vmatpush1.bf16.msra.mxu0 %v3868
    %9011 = vmatprep.subr.bf16.mxu0 %v3877
    %9012 = vmatpush1.bf16.msra.mxu0 %v3876
    %9013 = vmatprep.subr.bf16.mxu0 %v3885
    %9014 = vmatpush1.bf16.msra.mxu0 %v3884
    %9015 = vmatprep.subr.bf16.mxu0 %v3893
    %9016 = vmatpush1.bf16.msra.mxu0 %v3892
    %9017 = vmatprep.subr.bf16.mxu0 %v3901
    %9018 = vmatpush1.bf16.msra.mxu0 %v3900
    %9019 = vmatprep.subr.bf16.mxu0 %v3909
    %9020 = vmatpush1.bf16.msra.mxu0 %v3908
    %9021 = vmatprep.subr.bf16.mxu0 %v3917
    %9022 = vmatpush1.bf16.msra.mxu0 %v3916
    %9023 = vmatprep.subr.bf16.mxu0 %v3925
    %9024 = vmatpush1.bf16.msra.mxu0 %v3924
    %9025 = vmatprep.subr.bf16.mxu0 %v3933
    %9026 = vmatpush1.bf16.msra.mxu0 %v3932
    %9027 = vmatprep.subr.bf16.mxu0 %v3941
    %9028 = vmatpush1.bf16.msra.mxu0 %v3940
    %9029 = vmatprep.subr.bf16.mxu0 %v3949
    %9030 = vmatpush1.bf16.msra.mxu0 %v3948
    %9031 = vmatprep.subr.bf16.mxu0 %v3957
    %9032 = vmatpush1.bf16.msra.mxu0 %v3956
    %9033 = vmatprep.subr.bf16.mxu0 %v3965
    %9034 = vmatpush1.bf16.msra.mxu0 %v3964
    %9035 = vmatprep.subr.bf16.mxu0 %v3973
    %9036 = vmatpush1.bf16.msra.mxu0 %v3972
    %9037 = vmatprep.mubr.bf16.mxu0 %v2918
    %9038 = vmatmul.mubr.bf16.gmra.mrb[0].mxu0 %v2917
    %v9039 = vpop.f32.mrb[0].mxu0
    %v9040 = vadd.f32 %v8967, %v9039
    %v9041 = vpop.f32.mrb[0].mxu0
    %v9042 = vadd.f32 %v8969, %v9041
    %v9043 = vpop.f32.mrb[0].mxu0
    %v9044 = vadd.f32 %v8971, %v9043
    %v9045 = vpop.f32.mrb[0].mxu0
    %v9046 = vadd.f32 %v8973, %v9045
    %9047 = vmatprep.mubr.bf16.mxu0 %v2922
    %9048 = vmatmul.mubr.bf16.gmra.mrb[0].mxu0 %v2921
    %v9049 = vpop.f32.mrb[0].mxu0
    %v9050 = vadd.f32 %v8977, %v9049
    %v9051 = vpop.f32.mrb[0].mxu0
    %v9052 = vadd.f32 %v8979, %v9051
    %v9053 = vpop.f32.mrb[0].mxu0
    %v9054 = vadd.f32 %v8981, %v9053
    %v9055 = vpop.f32.mrb[0].mxu0
    %v9056 = vadd.f32 %v8983, %v9055
    %9057 = vmatprep.mubr.bf16.mxu0 %v2926
    %9058 = vmatmul.mubr.bf16.gmra.mrb[0].mxu0 %v2925
    %v9059 = vpop.f32.mrb[0].mxu0
    %v9060 = vadd.f32 %v8987, %v9059
    %v9061 = vpop.f32.mrb[0].mxu0
    %v9062 = vadd.f32 %v8989, %v9061
    %v9063 = vpop.f32.mrb[0].mxu0
    %v9064 = vadd.f32 %v8991, %v9063
    %v9065 = vpop.f32.mrb[0].mxu0
    %v9066 = vadd.f32 %v8993, %v9065
    %9067 = vmatprep.mubr.bf16.mxu0 %v2930
    %9068 = vmatmul.mubr.bf16.gmra.mrb[0].mxu0 %v2929
    %v9069 = vpop.f32.mrb[0].mxu0
    %v9070 = vadd.f32 %v8997, %v9069
    %v9071 = vpop.f32.mrb[0].mxu0
    %v9072 = vadd.f32 %v8999, %v9071
    %v9073 = vpop.f32.mrb[0].mxu0
    %v9074 = vadd.f32 %v9001, %v9073
    %v9075 = vpop.f32.mrb[0].mxu0
    %v9076 = vadd.f32 %v9003, %v9075
    %9077 = vdwg.mxu0
    %9078 = vmatprep.subr.bf16.mxu0 %v3727
    %9079 = vmatpush1.bf16.msra.mxu0 %v3726
    %9080 = vmatprep.subr.bf16.mxu0 %v3735
    %9081 = vmatpush1.bf16.msra.mxu0 %v3734
    %9082 = vmatprep.subr.bf16.mxu0 %v3743
    %9083 = vmatpush1.bf16.msra.mxu0 %v3742
    %9084 = vmatprep.subr.bf16.mxu0 %v3751
    %9085 = vmatpush1.bf16.msra.mxu0 %v3750
    %9086 = vmatprep.subr.bf16.mxu0 %v3759
    %9087 = vmatpush1.bf16.msra.mxu0 %v3758
    %9088 = vmatprep.subr.bf16.mxu0 %v3767
    %9089 = vmatpush1.bf16.msra.mxu0 %v3766
    %9090 = vmatprep.subr.bf16.mxu0 %v3775
    %9091 = vmatpush1.bf16.msra.mxu0 %v3774
    %9092 = vmatprep.subr.bf16.mxu0 %v3783
    %9093 = vmatpush1.bf16.msra.mxu0 %v3782
    %9094 = vmatprep.subr.bf16.mxu0 %v3791
    %9095 = vmatpush1.bf16.msra.mxu0 %v3790
    %9096 = vmatprep.subr.bf16.mxu0 %v3799
    %9097 = vmatpush1.bf16.msra.mxu0 %v3798
    %9098 = vmatprep.subr.bf16.mxu0 %v3807
    %9099 = vmatpush1.bf16.msra.mxu0 %v3806
    %9100 = vmatprep.subr.bf16.mxu0 %v3815
    %9101 = vmatpush1.bf16.msra.mxu0 %v3814
    %9102 = vmatprep.subr.bf16.mxu0 %v3823
    %9103 = vmatpush1.bf16.msra.mxu0 %v3822
    %9104 = vmatprep.subr.bf16.mxu0 %v3831
    %9105 = vmatpush1.bf16.msra.mxu0 %v3830
    %9106 = vmatprep.subr.bf16.mxu0 %v3839
    %9107 = vmatpush1.bf16.msra.mxu0 %v3838
    %9108 = vmatprep.subr.bf16.mxu0 %v3847
    %9109 = vmatpush1.bf16.msra.mxu0 %v3846
    %9110 = vmatprep.mubr.bf16.mxu0 %v2916
    %9111 = vmatmul.mubr.bf16.gmra.mrb[0].mxu0 %v2915
    %v9112 = vpop.f32.mrb[0].mxu0
    %v9113 = vadd.f32 0.0, %v9112
    %v9114 = vpop.f32.mrb[0].mxu0
    %v9115 = vadd.f32 0.0, %v9114
    %v9116 = vpop.f32.mrb[0].mxu0
    %v9117 = vadd.f32 0.0, %v9116
    %v9118 = vpop.f32.mrb[0].mxu0
    %v9119 = vadd.f32 0.0, %v9118
    %9120 = vmatprep.mubr.bf16.mxu0 %v2920
    %9121 = vmatmul.mubr.bf16.gmra.mrb[0].mxu0 %v2919
    %v9122 = vpop.f32.mrb[0].mxu0
    %v9123 = vadd.f32 0.0, %v9122
    %v9124 = vpop.f32.mrb[0].mxu0
    %v9125 = vadd.f32 0.0, %v9124
    %v9126 = vpop.f32.mrb[0].mxu0
    %v9127 = vadd.f32 0.0, %v9126
    %v9128 = vpop.f32.mrb[0].mxu0
    %v9129 = vadd.f32 0.0, %v9128
    %9130 = vmatprep.mubr.bf16.mxu0 %v2924
    %9131 = vmatmul.mubr.bf16.gmra.mrb[0].mxu0 %v2923
    %v9132 = vpop.f32.mrb[0].mxu0
    %v9133 = vadd.f32 0.0, %v9132
    %v9134 = vpop.f32.mrb[0].mxu0
    %v9135 = vadd.f32 0.0, %v9134
    %v9136 = vpop.f32.mrb[0].mxu0
    %v9137 = vadd.f32 0.0, %v9136
    %v9138 = vpop.f32.mrb[0].mxu0
    %v9139 = vadd.f32 0.0, %v9138
    %9140 = vmatprep.mubr.bf16.mxu0 %v2928
    %9141 = vmatmul.mubr.bf16.gmra.mrb[0].mxu0 %v2927
    %v9142 = vpop.f32.mrb[0].mxu0
    %v9143 = vadd.f32 0.0, %v9142
    %v9144 = vpop.f32.mrb[0].mxu0
    %v9145 = vadd.f32 0.0, %v9144
    %v9146 = vpop.f32.mrb[0].mxu0
    %v9147 = vadd.f32 0.0, %v9146
    %v9148 = vpop.f32.mrb[0].mxu0
    %v9149 = vadd.f32 0.0, %v9148
    %9150 = vdwg.mxu0
    %9151 = vmatprep.subr.bf16.mxu0 %v3855
    %9152 = vmatpush1.bf16.msra.mxu0 %v3854
    %9153 = vmatprep.subr.bf16.mxu0 %v3863
    %9154 = vmatpush1.bf16.msra.mxu0 %v3862
    %9155 = vmatprep.subr.bf16.mxu0 %v3871
    %9156 = vmatpush1.bf16.msra.mxu0 %v3870
    %9157 = vmatprep.subr.bf16.mxu0 %v3879
    %9158 = vmatpush1.bf16.msra.mxu0 %v3878
    %9159 = vmatprep.subr.bf16.mxu0 %v3887
    %9160 = vmatpush1.bf16.msra.mxu0 %v3886
    %9161 = vmatprep.subr.bf16.mxu0 %v3895
    %9162 = vmatpush1.bf16.msra.mxu0 %v3894
    %9163 = vmatprep.subr.bf16.mxu0 %v3903
    %9164 = vmatpush1.bf16.msra.mxu0 %v3902
    %9165 = vmatprep.subr.bf16.mxu0 %v3911
    %9166 = vmatpush1.bf16.msra.mxu0 %v3910
    %9167 = vmatprep.subr.bf16.mxu0 %v3919
    %9168 = vmatpush1.bf16.msra.mxu0 %v3918
    %9169 = vmatprep.subr.bf16.mxu0 %v3927
    %9170 = vmatpush1.bf16.msra.mxu0 %v3926
    %9171 = vmatprep.subr.bf16.mxu0 %v3935
    %9172 = vmatpush1.bf16.msra.mxu0 %v3934
    %9173 = vmatprep.subr.bf16.mxu0 %v3943
    %9174 = vmatpush1.bf16.msra.mxu0 %v3942
    %9175 = vmatprep.subr.bf16.mxu0 %v3951
    %9176 = vmatpush1.bf16.msra.mxu0 %v3950
    %9177 = vmatprep.subr.bf16.mxu0 %v3959
    %9178 = vmatpush1.bf16.msra.mxu0 %v3958
    %9179 = vmatprep.subr.bf16.mxu0 %v3967
    %9180 = vmatpush1.bf16.msra.mxu0 %v3966
    %9181 = vmatprep.subr.bf16.mxu0 %v3975
    %9182 = vmatpush1.bf16.msra.mxu0 %v3974
    %9183 = vmatprep.mubr.bf16.mxu0 %v2918
    %9184 = vmatmul.mubr.bf16.gmra.mrb[0].mxu0 %v2917
    %v9185 = vpop.f32.mrb[0].mxu0
    %v9186 = vadd.f32 %v9113, %v9185
    %v9187 = vpop.f32.mrb[0].mxu0
    %v9188 = vadd.f32 %v9115, %v9187
    %v9189 = vpop.f32.mrb[0].mxu0
    %v9190 = vadd.f32 %v9117, %v9189
    %v9191 = vpop.f32.mrb[0].mxu0
    %v9192 = vadd.f32 %v9119, %v9191
    %9193 = vmatprep.mubr.bf16.mxu0 %v2922
    %9194 = vmatmul.mubr.bf16.gmra.mrb[0].mxu0 %v2921
    %v9195 = vpop.f32.mrb[0].mxu0
    %v9196 = vadd.f32 %v9123, %v9195
    %v9197 = vpop.f32.mrb[0].mxu0
    %v9198 = vadd.f32 %v9125, %v9197
    %v9199 = vpop.f32.mrb[0].mxu0
    %v9200 = vadd.f32 %v9127, %v9199
    %v9201 = vpop.f32.mrb[0].mxu0
    %v9202 = vadd.f32 %v9129, %v9201
    %9203 = vmatprep.mubr.bf16.mxu0 %v2926
    %9204 = vmatmul.mubr.bf16.gmra.mrb[0].mxu0 %v2925
    %v9205 = vpop.f32.mrb[0].mxu0
    %v9206 = vadd.f32 %v9133, %v9205
    %v9207 = vpop.f32.mrb[0].mxu0
    %v9208 = vadd.f32 %v9135, %v9207
    %v9209 = vpop.f32.mrb[0].mxu0
    %v9210 = vadd.f32 %v9137, %v9209
    %v9211 = vpop.f32.mrb[0].mxu0
    %v9212 = vadd.f32 %v9139, %v9211
    %9213 = vmatprep.mubr.bf16.mxu0 %v2930
    %9214 = vmatmul.mubr.bf16.gmra.mrb[0].mxu0 %v2929
    %v9215 = vpop.f32.mrb[0].mxu0
    %v9216 = vadd.f32 %v9143, %v9215
    %v9217 = vpop.f32.mrb[0].mxu0
    %v9218 = vadd.f32 %v9145, %v9217
    %v9219 = vpop.f32.mrb[0].mxu0
    %v9220 = vadd.f32 %v9147, %v9219
    %v9221 = vpop.f32.mrb[0].mxu0
    %v9222 = vadd.f32 %v9149, %v9221
    %9223 = vdwg.mxu0
    %9224 = vmatprep.subr.bf16.mxu0 %v5585
    %9225 = vmatpush1.bf16.msra.mxu0 %v5584
    %9226 = vmatprep.subr.bf16.mxu0 %v5593
    %9227 = vmatpush1.bf16.msra.mxu0 %v5592
    %9228 = vmatprep.subr.bf16.mxu0 %v5601
    %9229 = vmatpush1.bf16.msra.mxu0 %v5600
    %9230 = vmatprep.subr.bf16.mxu0 %v5609
    %9231 = vmatpush1.bf16.msra.mxu0 %v5608
    %9232 = vmatprep.subr.bf16.mxu0 %v5617
    %9233 = vmatpush1.bf16.msra.mxu0 %v5616
    %9234 = vmatprep.subr.bf16.mxu0 %v5625
    %9235 = vmatpush1.bf16.msra.mxu0 %v5624
    %9236 = vmatprep.subr.bf16.mxu0 %v5633
    %9237 = vmatpush1.bf16.msra.mxu0 %v5632
    %9238 = vmatprep.subr.bf16.mxu0 %v5641
    %9239 = vmatpush1.bf16.msra.mxu0 %v5640
    %9240 = vmatprep.subr.bf16.mxu0 %v5649
    %9241 = vmatpush1.bf16.msra.mxu0 %v5648
    %9242 = vmatprep.subr.bf16.mxu0 %v5657
    %9243 = vmatpush1.bf16.msra.mxu0 %v5656
    %9244 = vmatprep.subr.bf16.mxu0 %v5665
    %9245 = vmatpush1.bf16.msra.mxu0 %v5664
    %9246 = vmatprep.subr.bf16.mxu0 %v5673
    %9247 = vmatpush1.bf16.msra.mxu0 %v5672
    %9248 = vmatprep.subr.bf16.mxu0 %v5681
    %9249 = vmatpush1.bf16.msra.mxu0 %v5680
    %9250 = vmatprep.subr.bf16.mxu0 %v5689
    %9251 = vmatpush1.bf16.msra.mxu0 %v5688
    %9252 = vmatprep.subr.bf16.mxu0 %v5697
    %9253 = vmatpush1.bf16.msra.mxu0 %v5696
    %9254 = vmatprep.subr.bf16.mxu0 %v5705
    %9255 = vmatpush1.bf16.msra.mxu0 %v5704
    %9256 = vmatprep.mubr.bf16.mxu0 %v2896
    %9257 = vmatmul.mubr.bf16.gmra.mrb[0].mxu0 %v2895
    %v9258 = vpop.f32.mrb[0].mxu0
    %v9259 = vadd.f32 %v8748, %v9258
    %v9260 = vpop.f32.mrb[0].mxu0
    %v9261 = vadd.f32 %v8750, %v9260
    %v9262 = vpop.f32.mrb[0].mxu0
    %v9263 = vadd.f32 %v8752, %v9262
    %v9264 = vpop.f32.mrb[0].mxu0
    %v9265 = vadd.f32 %v8754, %v9264
    %9266 = vmatprep.mubr.bf16.mxu0 %v2900
    %9267 = vmatmul.mubr.bf16.gmra.mrb[0].mxu0 %v2899
    %v9268 = vpop.f32.mrb[0].mxu0
    %v9269 = vadd.f32 %v8758, %v9268
    %v9270 = vpop.f32.mrb[0].mxu0
    %v9271 = vadd.f32 %v8760, %v9270
    %v9272 = vpop.f32.mrb[0].mxu0
    %v9273 = vadd.f32 %v8762, %v9272
    %v9274 = vpop.f32.mrb[0].mxu0
    %v9275 = vadd.f32 %v8764, %v9274
    %9276 = vmatprep.mubr.bf16.mxu0 %v2904
    %9277 = vmatmul.mubr.bf16.gmra.mrb[0].mxu0 %v2903
    %v9278 = vpop.f32.mrb[0].mxu0
    %v9279 = vadd.f32 %v8768, %v9278
    %v9280 = vpop.f32.mrb[0].mxu0
    %v9281 = vadd.f32 %v8770, %v9280
    %v9282 = vpop.f32.mrb[0].mxu0
    %v9283 = vadd.f32 %v8772, %v9282
    %v9284 = vpop.f32.mrb[0].mxu0
    %v9285 = vadd.f32 %v8774, %v9284
    %9286 = vmatprep.mubr.bf16.mxu0 %v2908
    %9287 = vmatmul.mubr.bf16.gmra.mrb[0].mxu0 %v2907
    %v9288 = vpop.f32.mrb[0].mxu0
    %v9289 = vadd.f32 %v8778, %v9288
    %v9290 = vpop.f32.mrb[0].mxu0
    %v9291 = vadd.f32 %v8780, %v9290
    %v9292 = vpop.f32.mrb[0].mxu0
    %v9293 = vadd.f32 %v8782, %v9292
    %v9294 = vpop.f32.mrb[0].mxu0
    %v9295 = vadd.f32 %v8784, %v9294
    %9296 = vdwg.mxu0
    %9297 = vmatprep.subr.bf16.mxu0 %v5713
    %9298 = vmatpush1.bf16.msra.mxu0 %v5712
    %9299 = vmatprep.subr.bf16.mxu0 %v5721
    %9300 = vmatpush1.bf16.msra.mxu0 %v5720
    %9301 = vmatprep.subr.bf16.mxu0 %v5729
    %9302 = vmatpush1.bf16.msra.mxu0 %v5728
    %9303 = vmatprep.subr.bf16.mxu0 %v5737
    %9304 = vmatpush1.bf16.msra.mxu0 %v5736
    %9305 = vmatprep.subr.bf16.mxu0 %v5745
    %9306 = vmatpush1.bf16.msra.mxu0 %v5744
    %9307 = vmatprep.subr.bf16.mxu0 %v5753
    %9308 = vmatpush1.bf16.msra.mxu0 %v5752
    %9309 = vmatprep.subr.bf16.mxu0 %v5761
    %9310 = vmatpush1.bf16.msra.mxu0 %v5760
    %9311 = vmatprep.subr.bf16.mxu0 %v5769
    %9312 = vmatpush1.bf16.msra.mxu0 %v5768
    %9313 = vmatprep.subr.bf16.mxu0 %v5777
    %9314 = vmatpush1.bf16.msra.mxu0 %v5776
    %9315 = vmatprep.subr.bf16.mxu0 %v5785
    %9316 = vmatpush1.bf16.msra.mxu0 %v5784
    %9317 = vmatprep.subr.bf16.mxu0 %v5793
    %9318 = vmatpush1.bf16.msra.mxu0 %v5792
    %9319 = vmatprep.subr.bf16.mxu0 %v5801
    %9320 = vmatpush1.bf16.msra.mxu0 %v5800
    %9321 = vmatprep.subr.bf16.mxu0 %v5809
    %9322 = vmatpush1.bf16.msra.mxu0 %v5808
    %9323 = vmatprep.subr.bf16.mxu0 %v5817
    %9324 = vmatpush1.bf16.msra.mxu0 %v5816
    %9325 = vmatprep.subr.bf16.mxu0 %v5825
    %9326 = vmatpush1.bf16.msra.mxu0 %v5824
    %9327 = vmatprep.subr.bf16.mxu0 %v5833
    %9328 = vmatpush1.bf16.msra.mxu0 %v5832
    %9329 = vmatprep.mubr.bf16.mxu0 %v2898
    %9330 = vmatmul.mubr.bf16.gmra.mrb[0].mxu0 %v2897
    %v9331 = vpop.f32.mrb[0].mxu0
    %v9332 = vadd.f32 %v9259, %v9331
    %v9333 = vpop.f32.mrb[0].mxu0
    %v9334 = vadd.f32 %v9261, %v9333
    %v9335 = vpop.f32.mrb[0].mxu0
    %v9336 = vadd.f32 %v9263, %v9335
    %v9337 = vpop.f32.mrb[0].mxu0
    %v9338 = vadd.f32 %v9265, %v9337
    %9339 = vmatprep.mubr.bf16.mxu0 %v2902
    %9340 = vmatmul.mubr.bf16.gmra.mrb[0].mxu0 %v2901
    %v9341 = vpop.f32.mrb[0].mxu0
    %v9342 = vadd.f32 %v9269, %v9341
    %v9343 = vpop.f32.mrb[0].mxu0
    %v9344 = vadd.f32 %v9271, %v9343
    %v9345 = vpop.f32.mrb[0].mxu0
    %v9346 = vadd.f32 %v9273, %v9345
    %v9347 = vpop.f32.mrb[0].mxu0
    %v9348 = vadd.f32 %v9275, %v9347
    %9349 = vmatprep.mubr.bf16.mxu0 %v2906
    %9350 = vmatmul.mubr.bf16.gmra.mrb[0].mxu0 %v2905
    %v9351 = vpop.f32.mrb[0].mxu0
    %v9352 = vadd.f32 %v9279, %v9351
    %v9353 = vpop.f32.mrb[0].mxu0
    %v9354 = vadd.f32 %v9281, %v9353
    %v9355 = vpop.f32.mrb[0].mxu0
    %v9356 = vadd.f32 %v9283, %v9355
    %v9357 = vpop.f32.mrb[0].mxu0
    %v9358 = vadd.f32 %v9285, %v9357
    %9359 = vmatprep.mubr.bf16.mxu0 %v2910
    %9360 = vmatmul.mubr.bf16.gmra.mrb[0].mxu0 %v2909
    %v9361 = vpop.f32.mrb[0].mxu0
    %v9362 = vadd.f32 %v9289, %v9361
    %v9363 = vpop.f32.mrb[0].mxu0
    %v9364 = vadd.f32 %v9291, %v9363
    %v9365 = vpop.f32.mrb[0].mxu0
    %v9366 = vadd.f32 %v9293, %v9365
    %v9367 = vpop.f32.mrb[0].mxu0
    %v9368 = vadd.f32 %v9295, %v9367
    %9369 = vdwg.mxu0
    %9370 = vmatprep.subr.bf16.mxu0 %v5587
    %9371 = vmatpush1.bf16.msra.mxu0 %v5586
    %9372 = vmatprep.subr.bf16.mxu0 %v5595
    %9373 = vmatpush1.bf16.msra.mxu0 %v5594
    %9374 = vmatprep.subr.bf16.mxu0 %v5603
    %9375 = vmatpush1.bf16.msra.mxu0 %v5602
    %9376 = vmatprep.subr.bf16.mxu0 %v5611
    %9377 = vmatpush1.bf16.msra.mxu0 %v5610
    %9378 = vmatprep.subr.bf16.mxu0 %v5619
    %9379 = vmatpush1.bf16.msra.mxu0 %v5618
    %9380 = vmatprep.subr.bf16.mxu0 %v5627
    %9381 = vmatpush1.bf16.msra.mxu0 %v5626
    %9382 = vmatprep.subr.bf16.mxu0 %v5635
    %9383 = vmatpush1.bf16.msra.mxu0 %v5634
    %9384 = vmatprep.subr.bf16.mxu0 %v5643
    %9385 = vmatpush1.bf16.msra.mxu0 %v5642
    %9386 = vmatprep.subr.bf16.mxu0 %v5651
    %9387 = vmatpush1.bf16.msra.mxu0 %v5650
    %9388 = vmatprep.subr.bf16.mxu0 %v5659
    %9389 = vmatpush1.bf16.msra.mxu0 %v5658
    %9390 = vmatprep.subr.bf16.mxu0 %v5667
    %9391 = vmatpush1.bf16.msra.mxu0 %v5666
    %9392 = vmatprep.subr.bf16.mxu0 %v5675
    %9393 = vmatpush1.bf16.msra.mxu0 %v5674
    %9394 = vmatprep.subr.bf16.mxu0 %v5683
    %9395 = vmatpush1.bf16.msra.mxu0 %v5682
    %9396 = vmatprep.subr.bf16.mxu0 %v5691
    %9397 = vmatpush1.bf16.msra.mxu0 %v5690
    %9398 = vmatprep.subr.bf16.mxu0 %v5699
    %9399 = vmatpush1.bf16.msra.mxu0 %v5698
    %9400 = vmatprep.subr.bf16.mxu0 %v5707
    %9401 = vmatpush1.bf16.msra.mxu0 %v5706
    %9402 = vmatprep.mubr.bf16.mxu0 %v2896
    %9403 = vmatmul.mubr.bf16.gmra.mrb[0].mxu0 %v2895
    %v9404 = vpop.f32.mrb[0].mxu0
    %v9405 = vadd.f32 %v8894, %v9404
    %v9406 = vpop.f32.mrb[0].mxu0
    %v9407 = vadd.f32 %v8896, %v9406
    %v9408 = vpop.f32.mrb[0].mxu0
    %v9409 = vadd.f32 %v8898, %v9408
    %v9410 = vpop.f32.mrb[0].mxu0
    %v9411 = vadd.f32 %v8900, %v9410
    %9412 = vmatprep.mubr.bf16.mxu0 %v2900
    %9413 = vmatmul.mubr.bf16.gmra.mrb[0].mxu0 %v2899
    %v9414 = vpop.f32.mrb[0].mxu0
    %v9415 = vadd.f32 %v8904, %v9414
    %v9416 = vpop.f32.mrb[0].mxu0
    %v9417 = vadd.f32 %v8906, %v9416
    %v9418 = vpop.f32.mrb[0].mxu0
    %v9419 = vadd.f32 %v8908, %v9418
    %v9420 = vpop.f32.mrb[0].mxu0
    %v9421 = vadd.f32 %v8910, %v9420
    %9422 = vmatprep.mubr.bf16.mxu0 %v2904
    %9423 = vmatmul.mubr.bf16.gmra.mrb[0].mxu0 %v2903
    %v9424 = vpop.f32.mrb[0].mxu0
    %v9425 = vadd.f32 %v8914, %v9424
    %v9426 = vpop.f32.mrb[0].mxu0
    %v9427 = vadd.f32 %v8916, %v9426
    %v9428 = vpop.f32.mrb[0].mxu0
    %v9429 = vadd.f32 %v8918, %v9428
    %v9430 = vpop.f32.mrb[0].mxu0
    %v9431 = vadd.f32 %v8920, %v9430
    %9432 = vmatprep.mubr.bf16.mxu0 %v2908
    %9433 = vmatmul.mubr.bf16.gmra.mrb[0].mxu0 %v2907
    %v9434 = vpop.f32.mrb[0].mxu0
    %v9435 = vadd.f32 %v8924, %v9434
    %v9436 = vpop.f32.mrb[0].mxu0
    %v9437 = vadd.f32 %v8926, %v9436
    %v9438 = vpop.f32.mrb[0].mxu0
    %v9439 = vadd.f32 %v8928, %v9438
    %v9440 = vpop.f32.mrb[0].mxu0
    %v9441 = vadd.f32 %v8930, %v9440
    %9442 = vdwg.mxu0
    %9443 = vmatprep.subr.bf16.mxu0 %v5715
    %9444 = vmatpush1.bf16.msra.mxu0 %v5714
    %9445 = vmatprep.subr.bf16.mxu0 %v5723
    %9446 = vmatpush1.bf16.msra.mxu0 %v5722
    %9447 = vmatprep.subr.bf16.mxu0 %v5731
    %9448 = vmatpush1.bf16.msra.mxu0 %v5730
    %9449 = vmatprep.subr.bf16.mxu0 %v5739
    %9450 = vmatpush1.bf16.msra.mxu0 %v5738
    %9451 = vmatprep.subr.bf16.mxu0 %v5747
    %9452 = vmatpush1.bf16.msra.mxu0 %v5746
    %9453 = vmatprep.subr.bf16.mxu0 %v5755
    %9454 = vmatpush1.bf16.msra.mxu0 %v5754
    %9455 = vmatprep.subr.bf16.mxu0 %v5763
    %9456 = vmatpush1.bf16.msra.mxu0 %v5762
    %9457 = vmatprep.subr.bf16.mxu0 %v5771
    %9458 = vmatpush1.bf16.msra.mxu0 %v5770
    %9459 = vmatprep.subr.bf16.mxu0 %v5779
    %9460 = vmatpush1.bf16.msra.mxu0 %v5778
    %9461 = vmatprep.subr.bf16.mxu0 %v5787
    %9462 = vmatpush1.bf16.msra.mxu0 %v5786
    %9463 = vmatprep.subr.bf16.mxu0 %v5795
    %9464 = vmatpush1.bf16.msra.mxu0 %v5794
    %9465 = vmatprep.subr.bf16.mxu0 %v5803
    %9466 = vmatpush1.bf16.msra.mxu0 %v5802
    %9467 = vmatprep.subr.bf16.mxu0 %v5811
    %9468 = vmatpush1.bf16.msra.mxu0 %v5810
    %9469 = vmatprep.subr.bf16.mxu0 %v5819
    %9470 = vmatpush1.bf16.msra.mxu0 %v5818
    %9471 = vmatprep.subr.bf16.mxu0 %v5827
    %9472 = vmatpush1.bf16.msra.mxu0 %v5826
    %9473 = vmatprep.subr.bf16.mxu0 %v5835
    %9474 = vmatpush1.bf16.msra.mxu0 %v5834
    %9475 = vmatprep.mubr.bf16.mxu0 %v2898
    %9476 = vmatmul.mubr.bf16.gmra.mrb[0].mxu0 %v2897
    %v9477 = vpop.f32.mrb[0].mxu0
    %v9478 = vadd.f32 %v9405, %v9477
    %v9479 = vpop.f32.mrb[0].mxu0
    %v9480 = vadd.f32 %v9407, %v9479
    %v9481 = vpop.f32.mrb[0].mxu0
    %v9482 = vadd.f32 %v9409, %v9481
    %v9483 = vpop.f32.mrb[0].mxu0
    %v9484 = vadd.f32 %v9411, %v9483
    %9485 = vmatprep.mubr.bf16.mxu0 %v2902
    %9486 = vmatmul.mubr.bf16.gmra.mrb[0].mxu0 %v2901
    %v9487 = vpop.f32.mrb[0].mxu0
    %v9488 = vadd.f32 %v9415, %v9487
    %v9489 = vpop.f32.mrb[0].mxu0
    %v9490 = vadd.f32 %v9417, %v9489
    %v9491 = vpop.f32.mrb[0].mxu0
    %v9492 = vadd.f32 %v9419, %v9491
    %v9493 = vpop.f32.mrb[0].mxu0
    %v9494 = vadd.f32 %v9421, %v9493
    %9495 = vmatprep.mubr.bf16.mxu0 %v2906
    %9496 = vmatmul.mubr.bf16.gmra.mrb[0].mxu0 %v2905
    %v9497 = vpop.f32.mrb[0].mxu0
    %v9498 = vadd.f32 %v9425, %v9497
    %v9499 = vpop.f32.mrb[0].mxu0
    %v9500 = vadd.f32 %v9427, %v9499
    %v9501 = vpop.f32.mrb[0].mxu0
    %v9502 = vadd.f32 %v9429, %v9501
    %v9503 = vpop.f32.mrb[0].mxu0
    %v9504 = vadd.f32 %v9431, %v9503
    %9505 = vmatprep.mubr.bf16.mxu0 %v2910
    %9506 = vmatmul.mubr.bf16.gmra.mrb[0].mxu0 %v2909
    %v9507 = vpop.f32.mrb[0].mxu0
    %v9508 = vadd.f32 %v9435, %v9507
    %v9509 = vpop.f32.mrb[0].mxu0
    %v9510 = vadd.f32 %v9437, %v9509
    %v9511 = vpop.f32.mrb[0].mxu0
    %v9512 = vadd.f32 %v9439, %v9511
    %v9513 = vpop.f32.mrb[0].mxu0
    %v9514 = vadd.f32 %v9441, %v9513
    %9515 = vdwg.mxu0
    %9516 = vmatprep.subr.bf16.mxu0 %v5589
    %9517 = vmatpush1.bf16.msra.mxu0 %v5588
    %9518 = vmatprep.subr.bf16.mxu0 %v5597
    %9519 = vmatpush1.bf16.msra.mxu0 %v5596
    %9520 = vmatprep.subr.bf16.mxu0 %v5605
    %9521 = vmatpush1.bf16.msra.mxu0 %v5604
    %9522 = vmatprep.subr.bf16.mxu0 %v5613
    %9523 = vmatpush1.bf16.msra.mxu0 %v5612
    %9524 = vmatprep.subr.bf16.mxu0 %v5621
    %9525 = vmatpush1.bf16.msra.mxu0 %v5620
    %9526 = vmatprep.subr.bf16.mxu0 %v5629
    %9527 = vmatpush1.bf16.msra.mxu0 %v5628
    %9528 = vmatprep.subr.bf16.mxu0 %v5637
    %9529 = vmatpush1.bf16.msra.mxu0 %v5636
    %9530 = vmatprep.subr.bf16.mxu0 %v5645
    %9531 = vmatpush1.bf16.msra.mxu0 %v5644
    %9532 = vmatprep.subr.bf16.mxu0 %v5653
    %9533 = vmatpush1.bf16.msra.mxu0 %v5652
    %9534 = vmatprep.subr.bf16.mxu0 %v5661
    %9535 = vmatpush1.bf16.msra.mxu0 %v5660
    %9536 = vmatprep.subr.bf16.mxu0 %v5669
    %9537 = vmatpush1.bf16.msra.mxu0 %v5668
    %9538 = vmatprep.subr.bf16.mxu0 %v5677
    %9539 = vmatpush1.bf16.msra.mxu0 %v5676
    %9540 = vmatprep.subr.bf16.mxu0 %v5685
    %9541 = vmatpush1.bf16.msra.mxu0 %v5684
    %9542 = vmatprep.subr.bf16.mxu0 %v5693
    %9543 = vmatpush1.bf16.msra.mxu0 %v5692
    %9544 = vmatprep.subr.bf16.mxu0 %v5701
    %9545 = vmatpush1.bf16.msra.mxu0 %v5700
    %9546 = vmatprep.subr.bf16.mxu0 %v5709
    %9547 = vmatpush1.bf16.msra.mxu0 %v5708
    %9548 = vmatprep.mubr.bf16.mxu0 %v2896
    %9549 = vmatmul.mubr.bf16.gmra.mrb[0].mxu0 %v2895
    %v9550 = vpop.f32.mrb[0].mxu0
    %v9551 = vadd.f32 %v9040, %v9550
    %v9552 = vpop.f32.mrb[0].mxu0
    %v9553 = vadd.f32 %v9042, %v9552
    %v9554 = vpop.f32.mrb[0].mxu0
    %v9555 = vadd.f32 %v9044, %v9554
    %v9556 = vpop.f32.mrb[0].mxu0
    %v9557 = vadd.f32 %v9046, %v9556
    %9558 = vmatprep.mubr.bf16.mxu0 %v2900
    %9559 = vmatmul.mubr.bf16.gmra.mrb[0].mxu0 %v2899
    %v9560 = vpop.f32.mrb[0].mxu0
    %v9561 = vadd.f32 %v9050, %v9560
    %v9562 = vpop.f32.mrb[0].mxu0
    %v9563 = vadd.f32 %v9052, %v9562
    %v9564 = vpop.f32.mrb[0].mxu0
    %v9565 = vadd.f32 %v9054, %v9564
    %v9566 = vpop.f32.mrb[0].mxu0
    %v9567 = vadd.f32 %v9056, %v9566
    %9568 = vmatprep.mubr.bf16.mxu0 %v2904
    %9569 = vmatmul.mubr.bf16.gmra.mrb[0].mxu0 %v2903
    %v9570 = vpop.f32.mrb[0].mxu0
    %v9571 = vadd.f32 %v9060, %v9570
    %v9572 = vpop.f32.mrb[0].mxu0
    %v9573 = vadd.f32 %v9062, %v9572
    %v9574 = vpop.f32.mrb[0].mxu0
    %v9575 = vadd.f32 %v9064, %v9574
    %v9576 = vpop.f32.mrb[0].mxu0
    %v9577 = vadd.f32 %v9066, %v9576
    %9578 = vmatprep.mubr.bf16.mxu0 %v2908
    %9579 = vmatmul.mubr.bf16.gmra.mrb[0].mxu0 %v2907
    %v9580 = vpop.f32.mrb[0].mxu0
    %v9581 = vadd.f32 %v9070, %v9580
    %v9582 = vpop.f32.mrb[0].mxu0
    %v9583 = vadd.f32 %v9072, %v9582
    %v9584 = vpop.f32.mrb[0].mxu0
    %v9585 = vadd.f32 %v9074, %v9584
    %v9586 = vpop.f32.mrb[0].mxu0
    %v9587 = vadd.f32 %v9076, %v9586
    %9588 = vdwg.mxu0
    %9589 = vmatprep.subr.bf16.mxu0 %v5717
    %9590 = vmatpush1.bf16.msra.mxu0 %v5716
    %9591 = vmatprep.subr.bf16.mxu0 %v5725
    %9592 = vmatpush1.bf16.msra.mxu0 %v5724
    %9593 = vmatprep.subr.bf16.mxu0 %v5733
    %9594 = vmatpush1.bf16.msra.mxu0 %v5732
    %9595 = vmatprep.subr.bf16.mxu0 %v5741
    %9596 = vmatpush1.bf16.msra.mxu0 %v5740
    %9597 = vmatprep.subr.bf16.mxu0 %v5749
    %9598 = vmatpush1.bf16.msra.mxu0 %v5748
    %9599 = vmatprep.subr.bf16.mxu0 %v5757
    %9600 = vmatpush1.bf16.msra.mxu0 %v5756
    %9601 = vmatprep.subr.bf16.mxu0 %v5765
    %9602 = vmatpush1.bf16.msra.mxu0 %v5764
    %9603 = vmatprep.subr.bf16.mxu0 %v5773
    %9604 = vmatpush1.bf16.msra.mxu0 %v5772
    %9605 = vmatprep.subr.bf16.mxu0 %v5781
    %9606 = vmatpush1.bf16.msra.mxu0 %v5780
    %9607 = vmatprep.subr.bf16.mxu0 %v5789
    %9608 = vmatpush1.bf16.msra.mxu0 %v5788
    %9609 = vmatprep.subr.bf16.mxu0 %v5797
    %9610 = vmatpush1.bf16.msra.mxu0 %v5796
    %9611 = vmatprep.subr.bf16.mxu0 %v5805
    %9612 = vmatpush1.bf16.msra.mxu0 %v5804
    %9613 = vmatprep.subr.bf16.mxu0 %v5813
    %9614 = vmatpush1.bf16.msra.mxu0 %v5812
    %9615 = vmatprep.subr.bf16.mxu0 %v5821
    %9616 = vmatpush1.bf16.msra.mxu0 %v5820
    %9617 = vmatprep.subr.bf16.mxu0 %v5829
    %9618 = vmatpush1.bf16.msra.mxu0 %v5828
    %9619 = vmatprep.subr.bf16.mxu0 %v5837
    %9620 = vmatpush1.bf16.msra.mxu0 %v5836
    %9621 = vmatprep.mubr.bf16.mxu0 %v2898
    %9622 = vmatmul.mubr.bf16.gmra.mrb[0].mxu0 %v2897
    %v9623 = vpop.f32.mrb[0].mxu0
    %v9624 = vadd.f32 %v9551, %v9623
    %v9625 = vpop.f32.mrb[0].mxu0
    %v9626 = vadd.f32 %v9553, %v9625
    %v9627 = vpop.f32.mrb[0].mxu0
    %v9628 = vadd.f32 %v9555, %v9627
    %v9629 = vpop.f32.mrb[0].mxu0
    %v9630 = vadd.f32 %v9557, %v9629
    %9631 = vmatprep.mubr.bf16.mxu0 %v2902
    %9632 = vmatmul.mubr.bf16.gmra.mrb[0].mxu0 %v2901
    %v9633 = vpop.f32.mrb[0].mxu0
    %v9634 = vadd.f32 %v9561, %v9633
    %v9635 = vpop.f32.mrb[0].mxu0
    %v9636 = vadd.f32 %v9563, %v9635
    %v9637 = vpop.f32.mrb[0].mxu0
    %v9638 = vadd.f32 %v9565, %v9637
    %v9639 = vpop.f32.mrb[0].mxu0
    %v9640 = vadd.f32 %v9567, %v9639
    %9641 = vmatprep.mubr.bf16.mxu0 %v2906
    %9642 = vmatmul.mubr.bf16.gmra.mrb[0].mxu0 %v2905
    %v9643 = vpop.f32.mrb[0].mxu0
    %v9644 = vadd.f32 %v9571, %v9643
    %v9645 = vpop.f32.mrb[0].mxu0
    %v9646 = vadd.f32 %v9573, %v9645
    %v9647 = vpop.f32.mrb[0].mxu0
    %v9648 = vadd.f32 %v9575, %v9647
    %v9649 = vpop.f32.mrb[0].mxu0
    %v9650 = vadd.f32 %v9577, %v9649
    %9651 = vmatprep.mubr.bf16.mxu0 %v2910
    %9652 = vmatmul.mubr.bf16.gmra.mrb[0].mxu0 %v2909
    %v9653 = vpop.f32.mrb[0].mxu0
    %v9654 = vadd.f32 %v9581, %v9653
    %v9655 = vpop.f32.mrb[0].mxu0
    %v9656 = vadd.f32 %v9583, %v9655
    %v9657 = vpop.f32.mrb[0].mxu0
    %v9658 = vadd.f32 %v9585, %v9657
    %v9659 = vpop.f32.mrb[0].mxu0
    %v9660 = vadd.f32 %v9587, %v9659
    %9661 = vdwg.mxu0
    %9662 = vmatprep.subr.bf16.mxu0 %v5591
    %9663 = vmatpush1.bf16.msra.mxu0 %v5590
    %9664 = vmatprep.subr.bf16.mxu0 %v5599
    %9665 = vmatpush1.bf16.msra.mxu0 %v5598
    %9666 = vmatprep.subr.bf16.mxu0 %v5607
    %9667 = vmatpush1.bf16.msra.mxu0 %v5606
    %9668 = vmatprep.subr.bf16.mxu0 %v5615
    %9669 = vmatpush1.bf16.msra.mxu0 %v5614
    %9670 = vmatprep.subr.bf16.mxu0 %v5623
    %9671 = vmatpush1.bf16.msra.mxu0 %v5622
    %9672 = vmatprep.subr.bf16.mxu0 %v5631
    %9673 = vmatpush1.bf16.msra.mxu0 %v5630
    %9674 = vmatprep.subr.bf16.mxu0 %v5639
    %9675 = vmatpush1.bf16.msra.mxu0 %v5638
    %9676 = vmatprep.subr.bf16.mxu0 %v5647
    %9677 = vmatpush1.bf16.msra.mxu0 %v5646
    %9678 = vmatprep.subr.bf16.mxu0 %v5655
    %9679 = vmatpush1.bf16.msra.mxu0 %v5654
    %9680 = vmatprep.subr.bf16.mxu0 %v5663
    %9681 = vmatpush1.bf16.msra.mxu0 %v5662
    %9682 = vmatprep.subr.bf16.mxu0 %v5671
    %9683 = vmatpush1.bf16.msra.mxu0 %v5670
    %9684 = vmatprep.subr.bf16.mxu0 %v5679
    %9685 = vmatpush1.bf16.msra.mxu0 %v5678
    %9686 = vmatprep.subr.bf16.mxu0 %v5687
    %9687 = vmatpush1.bf16.msra.mxu0 %v5686
    %9688 = vmatprep.subr.bf16.mxu0 %v5695
    %9689 = vmatpush1.bf16.msra.mxu0 %v5694
    %9690 = vmatprep.subr.bf16.mxu0 %v5703
    %9691 = vmatpush1.bf16.msra.mxu0 %v5702
    %9692 = vmatprep.subr.bf16.mxu0 %v5711
    %9693 = vmatpush1.bf16.msra.mxu0 %v5710
    %9694 = vmatprep.mubr.bf16.mxu0 %v2896
    %9695 = vmatmul.mubr.bf16.gmra.mrb[0].mxu0 %v2895
    %v9696 = vpop.f32.mrb[0].mxu0
    %v9697 = vadd.f32 %v9186, %v9696
    %v9698 = vpop.f32.mrb[0].mxu0
    %v9699 = vadd.f32 %v9188, %v9698
    %v9700 = vpop.f32.mrb[0].mxu0
    %v9701 = vadd.f32 %v9190, %v9700
    %v9702 = vpop.f32.mrb[0].mxu0
    %v9703 = vadd.f32 %v9192, %v9702
    %9704 = vmatprep.mubr.bf16.mxu0 %v2900
    %9705 = vmatmul.mubr.bf16.gmra.mrb[0].mxu0 %v2899
    %v9706 = vpop.f32.mrb[0].mxu0
    %v9707 = vadd.f32 %v9196, %v9706
    %v9708 = vpop.f32.mrb[0].mxu0
    %v9709 = vadd.f32 %v9198, %v9708
    %v9710 = vpop.f32.mrb[0].mxu0
    %v9711 = vadd.f32 %v9200, %v9710
    %v9712 = vpop.f32.mrb[0].mxu0
    %v9713 = vadd.f32 %v9202, %v9712
    %9714 = vmatprep.mubr.bf16.mxu0 %v2904
    %9715 = vmatmul.mubr.bf16.gmra.mrb[0].mxu0 %v2903
    %v9716 = vpop.f32.mrb[0].mxu0
    %v9717 = vadd.f32 %v9206, %v9716
    %v9718 = vpop.f32.mrb[0].mxu0
    %v9719 = vadd.f32 %v9208, %v9718
    %v9720 = vpop.f32.mrb[0].mxu0
    %v9721 = vadd.f32 %v9210, %v9720
    %v9722 = vpop.f32.mrb[0].mxu0
    %v9723 = vadd.f32 %v9212, %v9722
    %9724 = vmatprep.mubr.bf16.mxu0 %v2908
    %9725 = vmatmul.mubr.bf16.gmra.mrb[0].mxu0 %v2907
    %v9726 = vpop.f32.mrb[0].mxu0
    %v9727 = vadd.f32 %v9216, %v9726
    %v9728 = vpop.f32.mrb[0].mxu0
    %v9729 = vadd.f32 %v9218, %v9728
    %v9730 = vpop.f32.mrb[0].mxu0
    %v9731 = vadd.f32 %v9220, %v9730
    %v9732 = vpop.f32.mrb[0].mxu0
    %v9733 = vadd.f32 %v9222, %v9732
    %9734 = vdwg.mxu0
    %9735 = vmatprep.subr.bf16.mxu0 %v5719
    %9736 = vmatpush1.bf16.msra.mxu0 %v5718
    %9737 = vmatprep.subr.bf16.mxu0 %v5727
    %9738 = vmatpush1.bf16.msra.mxu0 %v5726
    %9739 = vmatprep.subr.bf16.mxu0 %v5735
    %9740 = vmatpush1.bf16.msra.mxu0 %v5734
    %9741 = vmatprep.subr.bf16.mxu0 %v5743
    %9742 = vmatpush1.bf16.msra.mxu0 %v5742
    %9743 = vmatprep.subr.bf16.mxu0 %v5751
    %9744 = vmatpush1.bf16.msra.mxu0 %v5750
    %9745 = vmatprep.subr.bf16.mxu0 %v5759
    %9746 = vmatpush1.bf16.msra.mxu0 %v5758
    %9747 = vmatprep.subr.bf16.mxu0 %v5767
    %9748 = vmatpush1.bf16.msra.mxu0 %v5766
    %9749 = vmatprep.subr.bf16.mxu0 %v5775
    %9750 = vmatpush1.bf16.msra.mxu0 %v5774
    %9751 = vmatprep.subr.bf16.mxu0 %v5783
    %9752 = vmatpush1.bf16.msra.mxu0 %v5782
    %9753 = vmatprep.subr.bf16.mxu0 %v5791
    %9754 = vmatpush1.bf16.msra.mxu0 %v5790
    %9755 = vmatprep.subr.bf16.mxu0 %v5799
    %9756 = vmatpush1.bf16.msra.mxu0 %v5798
    %9757 = vmatprep.subr.bf16.mxu0 %v5807
    %9758 = vmatpush1.bf16.msra.mxu0 %v5806
    %9759 = vmatprep.subr.bf16.mxu0 %v5815
    %9760 = vmatpush1.bf16.msra.mxu0 %v5814
    %9761 = vmatprep.subr.bf16.mxu0 %v5823
    %9762 = vmatpush1.bf16.msra.mxu0 %v5822
    %9763 = vmatprep.subr.bf16.mxu0 %v5831
    %9764 = vmatpush1.bf16.msra.mxu0 %v5830
    %9765 = vmatprep.subr.bf16.mxu0 %v5839
    %9766 = vmatpush1.bf16.msra.mxu0 %v5838
    %9767 = vmatprep.mubr.bf16.mxu0 %v2898
    %9768 = vmatmul.mubr.bf16.gmra.mrb[0].mxu0 %v2897
    %v9769 = vpop.f32.mrb[0].mxu0
    %v9770 = vadd.f32 %v9697, %v9769
    %v9771 = vpop.f32.mrb[0].mxu0
    %v9772 = vadd.f32 %v9699, %v9771
    %v9773 = vpop.f32.mrb[0].mxu0
    %v9774 = vadd.f32 %v9701, %v9773
    %v9775 = vpop.f32.mrb[0].mxu0
    %v9776 = vadd.f32 %v9703, %v9775
    %9777 = vmatprep.mubr.bf16.mxu0 %v2902
    %9778 = vmatmul.mubr.bf16.gmra.mrb[0].mxu0 %v2901
    %v9779 = vpop.f32.mrb[0].mxu0
    %v9780 = vadd.f32 %v9707, %v9779
    %v9781 = vpop.f32.mrb[0].mxu0
    %v9782 = vadd.f32 %v9709, %v9781
    %v9783 = vpop.f32.mrb[0].mxu0
    %v9784 = vadd.f32 %v9711, %v9783
    %v9785 = vpop.f32.mrb[0].mxu0
    %v9786 = vadd.f32 %v9713, %v9785
    %9787 = vmatprep.mubr.bf16.mxu0 %v2906
    %9788 = vmatmul.mubr.bf16.gmra.mrb[0].mxu0 %v2905
    %v9789 = vpop.f32.mrb[0].mxu0
    %v9790 = vadd.f32 %v9717, %v9789
    %v9791 = vpop.f32.mrb[0].mxu0
    %v9792 = vadd.f32 %v9719, %v9791
    %v9793 = vpop.f32.mrb[0].mxu0
    %v9794 = vadd.f32 %v9721, %v9793
    %v9795 = vpop.f32.mrb[0].mxu0
    %v9796 = vadd.f32 %v9723, %v9795
    %9797 = vmatprep.mubr.bf16.mxu0 %v2910
    %9798 = vmatmul.mubr.bf16.gmra.mrb[0].mxu0 %v2909
    %v9799 = vpop.f32.mrb[0].mxu0
    %v9800 = vadd.f32 %v9727, %v9799
    %v9801 = vpop.f32.mrb[0].mxu0
    %v9802 = vadd.f32 %v9729, %v9801
    %v9803 = vpop.f32.mrb[0].mxu0
    %v9804 = vadd.f32 %v9731, %v9803
    %v9805 = vpop.f32.mrb[0].mxu0
    %v9806 = vadd.f32 %v9733, %v9805
    %9807 = vdwg.mxu0
    %9808 = vmatprep.subr.bf16.mxu0 %v7449
    %9809 = vmatpush1.bf16.msra.mxu0 %v7448
    %9810 = vmatprep.subr.bf16.mxu0 %v7457
    %9811 = vmatpush1.bf16.msra.mxu0 %v7456
    %9812 = vmatprep.subr.bf16.mxu0 %v7465
    %9813 = vmatpush1.bf16.msra.mxu0 %v7464
    %9814 = vmatprep.subr.bf16.mxu0 %v7473
    %9815 = vmatpush1.bf16.msra.mxu0 %v7472
    %9816 = vmatprep.subr.bf16.mxu0 %v7481
    %9817 = vmatpush1.bf16.msra.mxu0 %v7480
    %9818 = vmatprep.subr.bf16.mxu0 %v7489
    %9819 = vmatpush1.bf16.msra.mxu0 %v7488
    %9820 = vmatprep.subr.bf16.mxu0 %v7497
    %9821 = vmatpush1.bf16.msra.mxu0 %v7496
    %9822 = vmatprep.subr.bf16.mxu0 %v7505
    %9823 = vmatpush1.bf16.msra.mxu0 %v7504
    %9824 = vmatprep.subr.bf16.mxu0 %v7513
    %9825 = vmatpush1.bf16.msra.mxu0 %v7512
    %9826 = vmatprep.subr.bf16.mxu0 %v7521
    %9827 = vmatpush1.bf16.msra.mxu0 %v7520
    %9828 = vmatprep.subr.bf16.mxu0 %v7529
    %9829 = vmatpush1.bf16.msra.mxu0 %v7528
    %9830 = vmatprep.subr.bf16.mxu0 %v7537
    %9831 = vmatpush1.bf16.msra.mxu0 %v7536
    %9832 = vmatprep.subr.bf16.mxu0 %v7545
    %9833 = vmatpush1.bf16.msra.mxu0 %v7544
    %9834 = vmatprep.subr.bf16.mxu0 %v7553
    %9835 = vmatpush1.bf16.msra.mxu0 %v7552
    %9836 = vmatprep.subr.bf16.mxu0 %v7561
    %9837 = vmatpush1.bf16.msra.mxu0 %v7560
    %9838 = vmatprep.subr.bf16.mxu0 %v7569
    %9839 = vmatpush1.bf16.msra.mxu0 %v7568
    %9840 = vmatprep.mubr.bf16.mxu0 %v2936
    %9841 = vmatmul.mubr.bf16.gmra.mrb[0].mxu0 %v2935
    %v9842 = vpop.f32.mrb[0].mxu0
    %v9843 = vadd.f32 0.0, %v9842
    %v9844 = vpop.f32.mrb[0].mxu0
    %v9845 = vadd.f32 0.0, %v9844
    %v9846 = vpop.f32.mrb[0].mxu0
    %v9847 = vadd.f32 0.0, %v9846
    %v9848 = vpop.f32.mrb[0].mxu0
    %v9849 = vadd.f32 0.0, %v9848
    %9850 = vmatprep.mubr.bf16.mxu0 %v2940
    %9851 = vmatmul.mubr.bf16.gmra.mrb[0].mxu0 %v2939
    %v9852 = vpop.f32.mrb[0].mxu0
    %v9853 = vadd.f32 0.0, %v9852
    %v9854 = vpop.f32.mrb[0].mxu0
    %v9855 = vadd.f32 0.0, %v9854
    %v9856 = vpop.f32.mrb[0].mxu0
    %v9857 = vadd.f32 0.0, %v9856
    %v9858 = vpop.f32.mrb[0].mxu0
    %v9859 = vadd.f32 0.0, %v9858
    %9860 = vmatprep.mubr.bf16.mxu0 %v2944
    %9861 = vmatmul.mubr.bf16.gmra.mrb[0].mxu0 %v2943
    %v9862 = vpop.f32.mrb[0].mxu0
    %v9863 = vadd.f32 0.0, %v9862
    %v9864 = vpop.f32.mrb[0].mxu0
    %v9865 = vadd.f32 0.0, %v9864
    %v9866 = vpop.f32.mrb[0].mxu0
    %v9867 = vadd.f32 0.0, %v9866
    %v9868 = vpop.f32.mrb[0].mxu0
    %v9869 = vadd.f32 0.0, %v9868
    %9870 = vmatprep.mubr.bf16.mxu0 %v2948
    %9871 = vmatmul.mubr.bf16.gmra.mrb[0].mxu0 %v2947
    %v9872 = vpop.f32.mrb[0].mxu0
    %v9873 = vadd.f32 0.0, %v9872
    %v9874 = vpop.f32.mrb[0].mxu0
    %v9875 = vadd.f32 0.0, %v9874
    %v9876 = vpop.f32.mrb[0].mxu0
    %v9877 = vadd.f32 0.0, %v9876
    %v9878 = vpop.f32.mrb[0].mxu0
    %v9879 = vadd.f32 0.0, %v9878
    %9880 = vdwg.mxu0
    %9881 = vmatprep.subr.bf16.mxu0 %v7577
    %9882 = vmatpush1.bf16.msra.mxu0 %v7576
    %9883 = vmatprep.subr.bf16.mxu0 %v7585
    %9884 = vmatpush1.bf16.msra.mxu0 %v7584
    %9885 = vmatprep.subr.bf16.mxu0 %v7593
    %9886 = vmatpush1.bf16.msra.mxu0 %v7592
    %9887 = vmatprep.subr.bf16.mxu0 %v7601
    %9888 = vmatpush1.bf16.msra.mxu0 %v7600
    %9889 = vmatprep.subr.bf16.mxu0 %v7609
    %9890 = vmatpush1.bf16.msra.mxu0 %v7608
    %9891 = vmatprep.subr.bf16.mxu0 %v7617
    %9892 = vmatpush1.bf16.msra.mxu0 %v7616
    %9893 = vmatprep.subr.bf16.mxu0 %v7625
    %9894 = vmatpush1.bf16.msra.mxu0 %v7624
    %9895 = vmatprep.subr.bf16.mxu0 %v7633
    %9896 = vmatpush1.bf16.msra.mxu0 %v7632
    %9897 = vmatprep.subr.bf16.mxu0 %v7641
    %9898 = vmatpush1.bf16.msra.mxu0 %v7640
    %9899 = vmatprep.subr.bf16.mxu0 %v7649
    %9900 = vmatpush1.bf16.msra.mxu0 %v7648
    %9901 = vmatprep.subr.bf16.mxu0 %v7657
    %9902 = vmatpush1.bf16.msra.mxu0 %v7656
    %9903 = vmatprep.subr.bf16.mxu0 %v7665
    %9904 = vmatpush1.bf16.msra.mxu0 %v7664
    %9905 = vmatprep.subr.bf16.mxu0 %v7673
    %9906 = vmatpush1.bf16.msra.mxu0 %v7672
    %9907 = vmatprep.subr.bf16.mxu0 %v7681
    %9908 = vmatpush1.bf16.msra.mxu0 %v7680
    %9909 = vmatprep.subr.bf16.mxu0 %v7689
    %9910 = vmatpush1.bf16.msra.mxu0 %v7688
    %9911 = vmatprep.subr.bf16.mxu0 %v7697
    %9912 = vmatpush1.bf16.msra.mxu0 %v7696
    %9913 = vmatprep.mubr.bf16.mxu0 %v2938
    %9914 = vmatmul.mubr.bf16.gmra.mrb[0].mxu0 %v2937
    %v9915 = vpop.f32.mrb[0].mxu0
    %v9916 = vadd.f32 %v9843, %v9915
    %v9917 = vpop.f32.mrb[0].mxu0
    %v9918 = vadd.f32 %v9845, %v9917
    %v9919 = vpop.f32.mrb[0].mxu0
    %v9920 = vadd.f32 %v9847, %v9919
    %v9921 = vpop.f32.mrb[0].mxu0
    %v9922 = vadd.f32 %v9849, %v9921
    %9923 = vmatprep.mubr.bf16.mxu0 %v2942
    %9924 = vmatmul.mubr.bf16.gmra.mrb[0].mxu0 %v2941
    %v9925 = vpop.f32.mrb[0].mxu0
    %v9926 = vadd.f32 %v9853, %v9925
    %v9927 = vpop.f32.mrb[0].mxu0
    %v9928 = vadd.f32 %v9855, %v9927
    %v9929 = vpop.f32.mrb[0].mxu0
    %v9930 = vadd.f32 %v9857, %v9929
    %v9931 = vpop.f32.mrb[0].mxu0
    %v9932 = vadd.f32 %v9859, %v9931
    %9933 = vmatprep.mubr.bf16.mxu0 %v2946
    %9934 = vmatmul.mubr.bf16.gmra.mrb[0].mxu0 %v2945
    %v9935 = vpop.f32.mrb[0].mxu0
    %v9936 = vadd.f32 %v9863, %v9935
    %v9937 = vpop.f32.mrb[0].mxu0
    %v9938 = vadd.f32 %v9865, %v9937
    %v9939 = vpop.f32.mrb[0].mxu0
    %v9940 = vadd.f32 %v9867, %v9939
    %v9941 = vpop.f32.mrb[0].mxu0
    %v9942 = vadd.f32 %v9869, %v9941
    %9943 = vmatprep.mubr.bf16.mxu0 %v2950
    %9944 = vmatmul.mubr.bf16.gmra.mrb[0].mxu0 %v2949
    %v9945 = vpop.f32.mrb[0].mxu0
    %v9946 = vadd.f32 %v9873, %v9945
    %v9947 = vpop.f32.mrb[0].mxu0
    %v9948 = vadd.f32 %v9875, %v9947
    %v9949 = vpop.f32.mrb[0].mxu0
    %v9950 = vadd.f32 %v9877, %v9949
    %v9951 = vpop.f32.mrb[0].mxu0
    %v9952 = vadd.f32 %v9879, %v9951
    %9953 = vdwg.mxu0
    %9954 = vmatprep.subr.bf16.mxu0 %v7451
    %9955 = vmatpush1.bf16.msra.mxu0 %v7450
    %9956 = vmatprep.subr.bf16.mxu0 %v7459
    %9957 = vmatpush1.bf16.msra.mxu0 %v7458
    %9958 = vmatprep.subr.bf16.mxu0 %v7467
    %9959 = vmatpush1.bf16.msra.mxu0 %v7466
    %9960 = vmatprep.subr.bf16.mxu0 %v7475
    %9961 = vmatpush1.bf16.msra.mxu0 %v7474
    %9962 = vmatprep.subr.bf16.mxu0 %v7483
    %9963 = vmatpush1.bf16.msra.mxu0 %v7482
    %9964 = vmatprep.subr.bf16.mxu0 %v7491
    %9965 = vmatpush1.bf16.msra.mxu0 %v7490
    %9966 = vmatprep.subr.bf16.mxu0 %v7499
    %9967 = vmatpush1.bf16.msra.mxu0 %v7498
    %9968 = vmatprep.subr.bf16.mxu0 %v7507
    %9969 = vmatpush1.bf16.msra.mxu0 %v7506
    %9970 = vmatprep.subr.bf16.mxu0 %v7515
    %9971 = vmatpush1.bf16.msra.mxu0 %v7514
    %9972 = vmatprep.subr.bf16.mxu0 %v7523
    %9973 = vmatpush1.bf16.msra.mxu0 %v7522
    %9974 = vmatprep.subr.bf16.mxu0 %v7531
    %9975 = vmatpush1.bf16.msra.mxu0 %v7530
    %9976 = vmatprep.subr.bf16.mxu0 %v7539
    %9977 = vmatpush1.bf16.msra.mxu0 %v7538
    %9978 = vmatprep.subr.bf16.mxu0 %v7547
    %9979 = vmatpush1.bf16.msra.mxu0 %v7546
    %9980 = vmatprep.subr.bf16.mxu0 %v7555
    %9981 = vmatpush1.bf16.msra.mxu0 %v7554
    %9982 = vmatprep.subr.bf16.mxu0 %v7563
    %9983 = vmatpush1.bf16.msra.mxu0 %v7562
    %9984 = vmatprep.subr.bf16.mxu0 %v7571
    %9985 = vmatpush1.bf16.msra.mxu0 %v7570
    %9986 = vmatprep.mubr.bf16.mxu0 %v2936
    %9987 = vmatmul.mubr.bf16.gmra.mrb[0].mxu0 %v2935
    %v9988 = vpop.f32.mrb[0].mxu0
    %v9989 = vadd.f32 0.0, %v9988
    %v9990 = vpop.f32.mrb[0].mxu0
    %v9991 = vadd.f32 0.0, %v9990
    %v9992 = vpop.f32.mrb[0].mxu0
    %v9993 = vadd.f32 0.0, %v9992
    %v9994 = vpop.f32.mrb[0].mxu0
    %v9995 = vadd.f32 0.0, %v9994
    %9996 = vmatprep.mubr.bf16.mxu0 %v2940
    %9997 = vmatmul.mubr.bf16.gmra.mrb[0].mxu0 %v2939
    %v9998 = vpop.f32.mrb[0].mxu0
    %v9999 = vadd.f32 0.0, %v9998
    %v10000 = vpop.f32.mrb[0].mxu0
    %v10001 = vadd.f32 0.0, %v10000
    %v10002 = vpop.f32.mrb[0].mxu0
    %v10003 = vadd.f32 0.0, %v10002
    %v10004 = vpop.f32.mrb[0].mxu0
    %v10005 = vadd.f32 0.0, %v10004
    %10006 = vmatprep.mubr.bf16.mxu0 %v2944
    %10007 = vmatmul.mubr.bf16.gmra.mrb[0].mxu0 %v2943
    %v10008 = vpop.f32.mrb[0].mxu0
    %v10009 = vadd.f32 0.0, %v10008
    %v10010 = vpop.f32.mrb[0].mxu0
    %v10011 = vadd.f32 0.0, %v10010
    %v10012 = vpop.f32.mrb[0].mxu0
    %v10013 = vadd.f32 0.0, %v10012
    %v10014 = vpop.f32.mrb[0].mxu0
    %v10015 = vadd.f32 0.0, %v10014
    %10016 = vmatprep.mubr.bf16.mxu0 %v2948
    %10017 = vmatmul.mubr.bf16.gmra.mrb[0].mxu0 %v2947
    %v10018 = vpop.f32.mrb[0].mxu0
    %v10019 = vadd.f32 0.0, %v10018
    %v10020 = vpop.f32.mrb[0].mxu0
    %v10021 = vadd.f32 0.0, %v10020
    %v10022 = vpop.f32.mrb[0].mxu0
    %v10023 = vadd.f32 0.0, %v10022
    %v10024 = vpop.f32.mrb[0].mxu0
    %v10025 = vadd.f32 0.0, %v10024
    %10026 = vdwg.mxu0
    %10027 = vmatprep.subr.bf16.mxu0 %v7579
    %10028 = vmatpush1.bf16.msra.mxu0 %v7578
    %10029 = vmatprep.subr.bf16.mxu0 %v7587
    %10030 = vmatpush1.bf16.msra.mxu0 %v7586
    %10031 = vmatprep.subr.bf16.mxu0 %v7595
    %10032 = vmatpush1.bf16.msra.mxu0 %v7594
    %10033 = vmatprep.subr.bf16.mxu0 %v7603
    %10034 = vmatpush1.bf16.msra.mxu0 %v7602
    %10035 = vmatprep.subr.bf16.mxu0 %v7611
    %10036 = vmatpush1.bf16.msra.mxu0 %v7610
    %10037 = vmatprep.subr.bf16.mxu0 %v7619
    %10038 = vmatpush1.bf16.msra.mxu0 %v7618
    %10039 = vmatprep.subr.bf16.mxu0 %v7627
    %10040 = vmatpush1.bf16.msra.mxu0 %v7626
    %10041 = vmatprep.subr.bf16.mxu0 %v7635
    %10042 = vmatpush1.bf16.msra.mxu0 %v7634
    %10043 = vmatprep.subr.bf16.mxu0 %v7643
    %10044 = vmatpush1.bf16.msra.mxu0 %v7642
    %10045 = vmatprep.subr.bf16.mxu0 %v7651
    %10046 = vmatpush1.bf16.msra.mxu0 %v7650
    %10047 = vmatprep.subr.bf16.mxu0 %v7659
    %10048 = vmatpush1.bf16.msra.mxu0 %v7658
    %10049 = vmatprep.subr.bf16.mxu0 %v7667
    %10050 = vmatpush1.bf16.msra.mxu0 %v7666
    %10051 = vmatprep.subr.bf16.mxu0 %v7675
    %10052 = vmatpush1.bf16.msra.mxu0 %v7674
    %10053 = vmatprep.subr.bf16.mxu0 %v7683
    %10054 = vmatpush1.bf16.msra.mxu0 %v7682
    %10055 = vmatprep.subr.bf16.mxu0 %v7691
    %10056 = vmatpush1.bf16.msra.mxu0 %v7690
    %10057 = vmatprep.subr.bf16.mxu0 %v7699
    %10058 = vmatpush1.bf16.msra.mxu0 %v7698
    %10059 = vmatprep.mubr.bf16.mxu0 %v2938
    %10060 = vmatmul.mubr.bf16.gmra.mrb[0].mxu0 %v2937
    %v10061 = vpop.f32.mrb[0].mxu0
    %v10062 = vadd.f32 %v9989, %v10061
    %v10063 = vpop.f32.mrb[0].mxu0
    %v10064 = vadd.f32 %v9991, %v10063
    %v10065 = vpop.f32.mrb[0].mxu0
    %v10066 = vadd.f32 %v9993, %v10065
    %v10067 = vpop.f32.mrb[0].mxu0
    %v10068 = vadd.f32 %v9995, %v10067
    %10069 = vmatprep.mubr.bf16.mxu0 %v2942
    %10070 = vmatmul.mubr.bf16.gmra.mrb[0].mxu0 %v2941
    %v10071 = vpop.f32.mrb[0].mxu0
    %v10072 = vadd.f32 %v9999, %v10071
    %v10073 = vpop.f32.mrb[0].mxu0
    %v10074 = vadd.f32 %v10001, %v10073
    %v10075 = vpop.f32.mrb[0].mxu0
    %v10076 = vadd.f32 %v10003, %v10075
    %v10077 = vpop.f32.mrb[0].mxu0
    %v10078 = vadd.f32 %v10005, %v10077
    %10079 = vmatprep.mubr.bf16.mxu0 %v2946
    %10080 = vmatmul.mubr.bf16.gmra.mrb[0].mxu0 %v2945
    %v10081 = vpop.f32.mrb[0].mxu0
    %v10082 = vadd.f32 %v10009, %v10081
    %v10083 = vpop.f32.mrb[0].mxu0
    %v10084 = vadd.f32 %v10011, %v10083
    %v10085 = vpop.f32.mrb[0].mxu0
    %v10086 = vadd.f32 %v10013, %v10085
    %v10087 = vpop.f32.mrb[0].mxu0
    %v10088 = vadd.f32 %v10015, %v10087
    %10089 = vmatprep.mubr.bf16.mxu0 %v2950
    %10090 = vmatmul.mubr.bf16.gmra.mrb[0].mxu0 %v2949
    %v10091 = vpop.f32.mrb[0].mxu0
    %v10092 = vadd.f32 %v10019, %v10091
    %v10093 = vpop.f32.mrb[0].mxu0
    %v10094 = vadd.f32 %v10021, %v10093
    %v10095 = vpop.f32.mrb[0].mxu0
    %v10096 = vadd.f32 %v10023, %v10095
    %v10097 = vpop.f32.mrb[0].mxu0
    %v10098 = vadd.f32 %v10025, %v10097
    %10099 = vdwg.mxu0
    %10100 = vmatprep.subr.bf16.mxu0 %v7453
    %10101 = vmatpush1.bf16.msra.mxu0 %v7452
    %10102 = vmatprep.subr.bf16.mxu0 %v7461
    %10103 = vmatpush1.bf16.msra.mxu0 %v7460
    %10104 = vmatprep.subr.bf16.mxu0 %v7469
    %10105 = vmatpush1.bf16.msra.mxu0 %v7468
    %10106 = vmatprep.subr.bf16.mxu0 %v7477
    %10107 = vmatpush1.bf16.msra.mxu0 %v7476
    %10108 = vmatprep.subr.bf16.mxu0 %v7485
    %10109 = vmatpush1.bf16.msra.mxu0 %v7484
    %10110 = vmatprep.subr.bf16.mxu0 %v7493
    %10111 = vmatpush1.bf16.msra.mxu0 %v7492
    %10112 = vmatprep.subr.bf16.mxu0 %v7501
    %10113 = vmatpush1.bf16.msra.mxu0 %v7500
    %10114 = vmatprep.subr.bf16.mxu0 %v7509
    %10115 = vmatpush1.bf16.msra.mxu0 %v7508
    %10116 = vmatprep.subr.bf16.mxu0 %v7517
    %10117 = vmatpush1.bf16.msra.mxu0 %v7516
    %10118 = vmatprep.subr.bf16.mxu0 %v7525
    %10119 = vmatpush1.bf16.msra.mxu0 %v7524
    %10120 = vmatprep.subr.bf16.mxu0 %v7533
    %10121 = vmatpush1.bf16.msra.mxu0 %v7532
    %10122 = vmatprep.subr.bf16.mxu0 %v7541
    %10123 = vmatpush1.bf16.msra.mxu0 %v7540
    %10124 = vmatprep.subr.bf16.mxu0 %v7549
    %10125 = vmatpush1.bf16.msra.mxu0 %v7548
    %10126 = vmatprep.subr.bf16.mxu0 %v7557
    %10127 = vmatpush1.bf16.msra.mxu0 %v7556
    %10128 = vmatprep.subr.bf16.mxu0 %v7565
    %10129 = vmatpush1.bf16.msra.mxu0 %v7564
    %10130 = vmatprep.subr.bf16.mxu0 %v7573
    %10131 = vmatpush1.bf16.msra.mxu0 %v7572
    %10132 = vmatprep.mubr.bf16.mxu0 %v2936
    %10133 = vmatmul.mubr.bf16.gmra.mrb[0].mxu0 %v2935
    %v10134 = vpop.f32.mrb[0].mxu0
    %v10135 = vadd.f32 0.0, %v10134
    %v10136 = vpop.f32.mrb[0].mxu0
    %v10137 = vadd.f32 0.0, %v10136
    %v10138 = vpop.f32.mrb[0].mxu0
    %v10139 = vadd.f32 0.0, %v10138
    %v10140 = vpop.f32.mrb[0].mxu0
    %v10141 = vadd.f32 0.0, %v10140
    %10142 = vmatprep.mubr.bf16.mxu0 %v2940
    %10143 = vmatmul.mubr.bf16.gmra.mrb[0].mxu0 %v2939
    %v10144 = vpop.f32.mrb[0].mxu0
    %v10145 = vadd.f32 0.0, %v10144
    %v10146 = vpop.f32.mrb[0].mxu0
    %v10147 = vadd.f32 0.0, %v10146
    %v10148 = vpop.f32.mrb[0].mxu0
    %v10149 = vadd.f32 0.0, %v10148
    %v10150 = vpop.f32.mrb[0].mxu0
    %v10151 = vadd.f32 0.0, %v10150
    %10152 = vmatprep.mubr.bf16.mxu0 %v2944
    %10153 = vmatmul.mubr.bf16.gmra.mrb[0].mxu0 %v2943
    %v10154 = vpop.f32.mrb[0].mxu0
    %v10155 = vadd.f32 0.0, %v10154
    %v10156 = vpop.f32.mrb[0].mxu0
    %v10157 = vadd.f32 0.0, %v10156
    %v10158 = vpop.f32.mrb[0].mxu0
    %v10159 = vadd.f32 0.0, %v10158
    %v10160 = vpop.f32.mrb[0].mxu0
    %v10161 = vadd.f32 0.0, %v10160
    %10162 = vmatprep.mubr.bf16.mxu0 %v2948
    %10163 = vmatmul.mubr.bf16.gmra.mrb[0].mxu0 %v2947
    %v10164 = vpop.f32.mrb[0].mxu0
    %v10165 = vadd.f32 0.0, %v10164
    %v10166 = vpop.f32.mrb[0].mxu0
    %v10167 = vadd.f32 0.0, %v10166
    %v10168 = vpop.f32.mrb[0].mxu0
    %v10169 = vadd.f32 0.0, %v10168
    %v10170 = vpop.f32.mrb[0].mxu0
    %v10171 = vadd.f32 0.0, %v10170
    %10172 = vdwg.mxu0
    %10173 = vmatprep.subr.bf16.mxu0 %v7581
    %10174 = vmatpush1.bf16.msra.mxu0 %v7580
    %10175 = vmatprep.subr.bf16.mxu0 %v7589
    %10176 = vmatpush1.bf16.msra.mxu0 %v7588
    %10177 = vmatprep.subr.bf16.mxu0 %v7597
    %10178 = vmatpush1.bf16.msra.mxu0 %v7596
    %10179 = vmatprep.subr.bf16.mxu0 %v7605
    %10180 = vmatpush1.bf16.msra.mxu0 %v7604
    %10181 = vmatprep.subr.bf16.mxu0 %v7613
    %10182 = vmatpush1.bf16.msra.mxu0 %v7612
    %10183 = vmatprep.subr.bf16.mxu0 %v7621
    %10184 = vmatpush1.bf16.msra.mxu0 %v7620
    %10185 = vmatprep.subr.bf16.mxu0 %v7629
    %10186 = vmatpush1.bf16.msra.mxu0 %v7628
    %10187 = vmatprep.subr.bf16.mxu0 %v7637
    %10188 = vmatpush1.bf16.msra.mxu0 %v7636
    %10189 = vmatprep.subr.bf16.mxu0 %v7645
    %10190 = vmatpush1.bf16.msra.mxu0 %v7644
    %10191 = vmatprep.subr.bf16.mxu0 %v7653
    %10192 = vmatpush1.bf16.msra.mxu0 %v7652
    %10193 = vmatprep.subr.bf16.mxu0 %v7661
    %10194 = vmatpush1.bf16.msra.mxu0 %v7660
    %10195 = vmatprep.subr.bf16.mxu0 %v7669
    %10196 = vmatpush1.bf16.msra.mxu0 %v7668
    %10197 = vmatprep.subr.bf16.mxu0 %v7677
    %10198 = vmatpush1.bf16.msra.mxu0 %v7676
    %10199 = vmatprep.subr.bf16.mxu0 %v7685
    %10200 = vmatpush1.bf16.msra.mxu0 %v7684
    %10201 = vmatprep.subr.bf16.mxu0 %v7693
    %10202 = vmatpush1.bf16.msra.mxu0 %v7692
    %10203 = vmatprep.subr.bf16.mxu0 %v7701
    %10204 = vmatpush1.bf16.msra.mxu0 %v7700
    %10205 = vmatprep.mubr.bf16.mxu0 %v2938
    %10206 = vmatmul.mubr.bf16.gmra.mrb[0].mxu0 %v2937
    %v10207 = vpop.f32.mrb[0].mxu0
    %v10208 = vadd.f32 %v10135, %v10207
    %v10209 = vpop.f32.mrb[0].mxu0
    %v10210 = vadd.f32 %v10137, %v10209
    %v10211 = vpop.f32.mrb[0].mxu0
    %v10212 = vadd.f32 %v10139, %v10211
    %v10213 = vpop.f32.mrb[0].mxu0
    %v10214 = vadd.f32 %v10141, %v10213
    %10215 = vmatprep.mubr.bf16.mxu0 %v2942
    %10216 = vmatmul.mubr.bf16.gmra.mrb[0].mxu0 %v2941
    %v10217 = vpop.f32.mrb[0].mxu0
    %v10218 = vadd.f32 %v10145, %v10217
    %v10219 = vpop.f32.mrb[0].mxu0
    %v10220 = vadd.f32 %v10147, %v10219
    %v10221 = vpop.f32.mrb[0].mxu0
    %v10222 = vadd.f32 %v10149, %v10221
    %v10223 = vpop.f32.mrb[0].mxu0
    %v10224 = vadd.f32 %v10151, %v10223
    %10225 = vmatprep.mubr.bf16.mxu0 %v2946
    %10226 = vmatmul.mubr.bf16.gmra.mrb[0].mxu0 %v2945
    %v10227 = vpop.f32.mrb[0].mxu0
    %v10228 = vadd.f32 %v10155, %v10227
    %v10229 = vpop.f32.mrb[0].mxu0
    %v10230 = vadd.f32 %v10157, %v10229
    %v10231 = vpop.f32.mrb[0].mxu0
    %v10232 = vadd.f32 %v10159, %v10231
    %v10233 = vpop.f32.mrb[0].mxu0
    %v10234 = vadd.f32 %v10161, %v10233
    %10235 = vmatprep.mubr.bf16.mxu0 %v2950
    %10236 = vmatmul.mubr.bf16.gmra.mrb[0].mxu0 %v2949
    %v10237 = vpop.f32.mrb[0].mxu0
    %v10238 = vadd.f32 %v10165, %v10237
    %v10239 = vpop.f32.mrb[0].mxu0
    %v10240 = vadd.f32 %v10167, %v10239
    %v10241 = vpop.f32.mrb[0].mxu0
    %v10242 = vadd.f32 %v10169, %v10241
    %v10243 = vpop.f32.mrb[0].mxu0
    %v10244 = vadd.f32 %v10171, %v10243
    %10245 = vdwg.mxu0
    %10246 = vmatprep.subr.bf16.mxu0 %v7455
    %10247 = vmatpush1.bf16.msra.mxu0 %v7454
    %10248 = vmatprep.subr.bf16.mxu0 %v7463
    %10249 = vmatpush1.bf16.msra.mxu0 %v7462
    %10250 = vmatprep.subr.bf16.mxu0 %v7471
    %10251 = vmatpush1.bf16.msra.mxu0 %v7470
    %10252 = vmatprep.subr.bf16.mxu0 %v7479
    %10253 = vmatpush1.bf16.msra.mxu0 %v7478
    %10254 = vmatprep.subr.bf16.mxu0 %v7487
    %10255 = vmatpush1.bf16.msra.mxu0 %v7486
    %10256 = vmatprep.subr.bf16.mxu0 %v7495
    %10257 = vmatpush1.bf16.msra.mxu0 %v7494
    %10258 = vmatprep.subr.bf16.mxu0 %v7503
    %10259 = vmatpush1.bf16.msra.mxu0 %v7502
    %10260 = vmatprep.subr.bf16.mxu0 %v7511
    %10261 = vmatpush1.bf16.msra.mxu0 %v7510
    %10262 = vmatprep.subr.bf16.mxu0 %v7519
    %10263 = vmatpush1.bf16.msra.mxu0 %v7518
    %10264 = vmatprep.subr.bf16.mxu0 %v7527
    %10265 = vmatpush1.bf16.msra.mxu0 %v7526
    %10266 = vmatprep.subr.bf16.mxu0 %v7535
    %10267 = vmatpush1.bf16.msra.mxu0 %v7534
    %10268 = vmatprep.subr.bf16.mxu0 %v7543
    %10269 = vmatpush1.bf16.msra.mxu0 %v7542
    %10270 = vmatprep.subr.bf16.mxu0 %v7551
    %10271 = vmatpush1.bf16.msra.mxu0 %v7550
    %10272 = vmatprep.subr.bf16.mxu0 %v7559
    %10273 = vmatpush1.bf16.msra.mxu0 %v7558
    %10274 = vmatprep.subr.bf16.mxu0 %v7567
    %10275 = vmatpush1.bf16.msra.mxu0 %v7566
    %10276 = vmatprep.subr.bf16.mxu0 %v7575
    %10277 = vmatpush1.bf16.msra.mxu0 %v7574
    %10278 = vmatprep.mubr.bf16.mxu0 %v2936
    %10279 = vmatmul.mubr.bf16.gmra.mrb[0].mxu0 %v2935
    %v10280 = vpop.f32.mrb[0].mxu0
    %v10281 = vadd.f32 0.0, %v10280
    %v10282 = vpop.f32.mrb[0].mxu0
    %v10283 = vadd.f32 0.0, %v10282
    %v10284 = vpop.f32.mrb[0].mxu0
    %v10285 = vadd.f32 0.0, %v10284
    %v10286 = vpop.f32.mrb[0].mxu0
    %v10287 = vadd.f32 0.0, %v10286
    %10288 = vmatprep.mubr.bf16.mxu0 %v2940
    %10289 = vmatmul.mubr.bf16.gmra.mrb[0].mxu0 %v2939
    %v10290 = vpop.f32.mrb[0].mxu0
    %v10291 = vadd.f32 0.0, %v10290
    %v10292 = vpop.f32.mrb[0].mxu0
    %v10293 = vadd.f32 0.0, %v10292
    %v10294 = vpop.f32.mrb[0].mxu0
    %v10295 = vadd.f32 0.0, %v10294
    %v10296 = vpop.f32.mrb[0].mxu0
    %v10297 = vadd.f32 0.0, %v10296
    %10298 = vmatprep.mubr.bf16.mxu0 %v2944
    %10299 = vmatmul.mubr.bf16.gmra.mrb[0].mxu0 %v2943
    %v10300 = vpop.f32.mrb[0].mxu0
    %v10301 = vadd.f32 0.0, %v10300
    %v10302 = vpop.f32.mrb[0].mxu0
    %v10303 = vadd.f32 0.0, %v10302
    %v10304 = vpop.f32.mrb[0].mxu0
    %v10305 = vadd.f32 0.0, %v10304
    %v10306 = vpop.f32.mrb[0].mxu0
    %v10307 = vadd.f32 0.0, %v10306
    %10308 = vmatprep.mubr.bf16.mxu0 %v2948
    %10309 = vmatmul.mubr.bf16.gmra.mrb[0].mxu0 %v2947
    %v10310 = vpop.f32.mrb[0].mxu0
    %v10311 = vadd.f32 0.0, %v10310
    %v10312 = vpop.f32.mrb[0].mxu0
    %v10313 = vadd.f32 0.0, %v10312
    %v10314 = vpop.f32.mrb[0].mxu0
    %v10315 = vadd.f32 0.0, %v10314
    %v10316 = vpop.f32.mrb[0].mxu0
    %v10317 = vadd.f32 0.0, %v10316
    %10318 = vdwg.mxu0
    %10319 = vmatprep.subr.bf16.mxu0 %v7583
    %10320 = vmatpush1.bf16.msra.mxu0 %v7582
    %10321 = vmatprep.subr.bf16.mxu0 %v7591
    %10322 = vmatpush1.bf16.msra.mxu0 %v7590
    %10323 = vmatprep.subr.bf16.mxu0 %v7599
    %10324 = vmatpush1.bf16.msra.mxu0 %v7598
    %10325 = vmatprep.subr.bf16.mxu0 %v7607
    %10326 = vmatpush1.bf16.msra.mxu0 %v7606
    %10327 = vmatprep.subr.bf16.mxu0 %v7615
    %10328 = vmatpush1.bf16.msra.mxu0 %v7614
    %10329 = vmatprep.subr.bf16.mxu0 %v7623
    %10330 = vmatpush1.bf16.msra.mxu0 %v7622
    %10331 = vmatprep.subr.bf16.mxu0 %v7631
    %10332 = vmatpush1.bf16.msra.mxu0 %v7630
    %10333 = vmatprep.subr.bf16.mxu0 %v7639
    %10334 = vmatpush1.bf16.msra.mxu0 %v7638
    %10335 = vmatprep.subr.bf16.mxu0 %v7647
    %10336 = vmatpush1.bf16.msra.mxu0 %v7646
    %10337 = vmatprep.subr.bf16.mxu0 %v7655
    %10338 = vmatpush1.bf16.msra.mxu0 %v7654
    %10339 = vmatprep.subr.bf16.mxu0 %v7663
    %10340 = vmatpush1.bf16.msra.mxu0 %v7662
    %10341 = vmatprep.subr.bf16.mxu0 %v7671
    %10342 = vmatpush1.bf16.msra.mxu0 %v7670
    %10343 = vmatprep.subr.bf16.mxu0 %v7679
    %10344 = vmatpush1.bf16.msra.mxu0 %v7678
    %10345 = vmatprep.subr.bf16.mxu0 %v7687
    %10346 = vmatpush1.bf16.msra.mxu0 %v7686
    %10347 = vmatprep.subr.bf16.mxu0 %v7695
    %10348 = vmatpush1.bf16.msra.mxu0 %v7694
    %10349 = vmatprep.subr.bf16.mxu0 %v7703
    %10350 = vmatpush1.bf16.msra.mxu0 %v7702
    %10351 = vmatprep.mubr.bf16.mxu0 %v2938
    %10352 = vmatmul.mubr.bf16.gmra.mrb[0].mxu0 %v2937
    %v10353 = vpop.f32.mrb[0].mxu0
    %v10354 = vadd.f32 %v10281, %v10353
    %v10355 = vpop.f32.mrb[0].mxu0
    %v10356 = vadd.f32 %v10283, %v10355
    %v10357 = vpop.f32.mrb[0].mxu0
    %v10358 = vadd.f32 %v10285, %v10357
    %v10359 = vpop.f32.mrb[0].mxu0
    %v10360 = vadd.f32 %v10287, %v10359
    %10361 = vmatprep.mubr.bf16.mxu0 %v2942
    %10362 = vmatmul.mubr.bf16.gmra.mrb[0].mxu0 %v2941
    %v10363 = vpop.f32.mrb[0].mxu0
    %v10364 = vadd.f32 %v10291, %v10363
    %v10365 = vpop.f32.mrb[0].mxu0
    %v10366 = vadd.f32 %v10293, %v10365
    %v10367 = vpop.f32.mrb[0].mxu0
    %v10368 = vadd.f32 %v10295, %v10367
    %v10369 = vpop.f32.mrb[0].mxu0
    %v10370 = vadd.f32 %v10297, %v10369
    %10371 = vmatprep.mubr.bf16.mxu0 %v2946
    %10372 = vmatmul.mubr.bf16.gmra.mrb[0].mxu0 %v2945
    %v10373 = vpop.f32.mrb[0].mxu0
    %v10374 = vadd.f32 %v10301, %v10373
    %v10375 = vpop.f32.mrb[0].mxu0
    %v10376 = vadd.f32 %v10303, %v10375
    %v10377 = vpop.f32.mrb[0].mxu0
    %v10378 = vadd.f32 %v10305, %v10377
    %v10379 = vpop.f32.mrb[0].mxu0
    %v10380 = vadd.f32 %v10307, %v10379
    %10381 = vmatprep.mubr.bf16.mxu0 %v2950
    %10382 = vmatmul.mubr.bf16.gmra.mrb[0].mxu0 %v2949
    %v10383 = vpop.f32.mrb[0].mxu0
    %v10384 = vadd.f32 %v10311, %v10383
    %v10385 = vpop.f32.mrb[0].mxu0
    %v10386 = vadd.f32 %v10313, %v10385
    %v10387 = vpop.f32.mrb[0].mxu0
    %v10388 = vadd.f32 %v10315, %v10387
    %v10389 = vpop.f32.mrb[0].mxu0
    %v10390 = vadd.f32 %v10317, %v10389
    %10391 = vdwg.mxu0
    %v10392 = vadd.f32 %v9332, %v9916
    %v10393 = vadd.f32 %v9334, %v9918
    %v10394 = vadd.f32 %v9478, %v10062
    %v10395 = vadd.f32 %v9480, %v10064
    %v10396 = vadd.f32 %v9624, %v10208
    %v10397 = vadd.f32 %v9626, %v10210
    %v10398 = vadd.f32 %v9770, %v10354
    %v10399 = vadd.f32 %v9772, %v10356
    %v10400 = vadd.f32 %v9336, %v9920
    %v10401 = vadd.f32 %v9338, %v9922
    %v10402 = vadd.f32 %v9482, %v10066
    %v10403 = vadd.f32 %v9484, %v10068
    %v10404 = vadd.f32 %v9628, %v10212
    %v10405 = vadd.f32 %v9630, %v10214
    %v10406 = vadd.f32 %v9774, %v10358
    %v10407 = vadd.f32 %v9776, %v10360
    %v10408 = vadd.f32 %v9342, %v9926
    %v10409 = vadd.f32 %v9344, %v9928
    %v10410 = vadd.f32 %v9488, %v10072
    %v10411 = vadd.f32 %v9490, %v10074
    %v10412 = vadd.f32 %v9634, %v10218
    %v10413 = vadd.f32 %v9636, %v10220
    %v10414 = vadd.f32 %v9780, %v10364
    %v10415 = vadd.f32 %v9782, %v10366
    %v10416 = vadd.f32 %v9346, %v9930
    %v10417 = vadd.f32 %v9348, %v9932
    %v10418 = vadd.f32 %v9492, %v10076
    %v10419 = vadd.f32 %v9494, %v10078
    %v10420 = vadd.f32 %v9638, %v10222
    %v10421 = vadd.f32 %v9640, %v10224
    %v10422 = vadd.f32 %v9784, %v10368
    %v10423 = vadd.f32 %v9786, %v10370
    %v10424 = vadd.f32 %v9352, %v9936
    %v10425 = vadd.f32 %v9354, %v9938
    %v10426 = vadd.f32 %v9498, %v10082
    %v10427 = vadd.f32 %v9500, %v10084
    %v10428 = vadd.f32 %v9644, %v10228
    %v10429 = vadd.f32 %v9646, %v10230
    %v10430 = vadd.f32 %v9790, %v10374
    %v10431 = vadd.f32 %v9792, %v10376
    %v10432 = vadd.f32 %v9356, %v9940
    %v10433 = vadd.f32 %v9358, %v9942
    %v10434 = vadd.f32 %v9502, %v10086
    %v10435 = vadd.f32 %v9504, %v10088
    %v10436 = vadd.f32 %v9648, %v10232
    %v10437 = vadd.f32 %v9650, %v10234
    %v10438 = vadd.f32 %v9794, %v10378
    %v10439 = vadd.f32 %v9796, %v10380
    %v10440 = vadd.f32 %v9362, %v9946
    %v10441 = vadd.f32 %v9364, %v9948
    %v10442 = vadd.f32 %v9508, %v10092
    %v10443 = vadd.f32 %v9510, %v10094
    %v10444 = vadd.f32 %v9654, %v10238
    %v10445 = vadd.f32 %v9656, %v10240
    %v10446 = vadd.f32 %v9800, %v10384
    %v10447 = vadd.f32 %v9802, %v10386
    %v10448 = vadd.f32 %v9366, %v9950
    %v10449 = vadd.f32 %v9368, %v9952
    %v10450 = vadd.f32 %v9512, %v10096
    %v10451 = vadd.f32 %v9514, %v10098
    %v10452 = vadd.f32 %v9658, %v10242
    %v10453 = vadd.f32 %v9660, %v10244
    %v10454 = vadd.f32 %v9804, %v10388
    %v10455 = vadd.f32 %v9806, %v10390
    %v10456 = vmax.f32 %v10392, %v10396
    %v10457 = vmax.f32 %v10393, %v10397
    %v10458 = vmax.f32 %v10394, %v10398
    %v10459 = vmax.f32 %v10395, %v10399
    %v10460 = vmax.f32 %v10400, %v10404
    %v10461 = vmax.f32 %v10401, %v10405
    %v10462 = vmax.f32 %v10402, %v10406
    %v10463 = vmax.f32 %v10403, %v10407
    %v10464 = vmax.f32 %v10408, %v10412
    %v10465 = vmax.f32 %v10409, %v10413
    %v10466 = vmax.f32 %v10410, %v10414
    %v10467 = vmax.f32 %v10411, %v10415
    %v10468 = vmax.f32 %v10416, %v10420
    %v10469 = vmax.f32 %v10417, %v10421
    %v10470 = vmax.f32 %v10418, %v10422
    %v10471 = vmax.f32 %v10419, %v10423
    %v10472 = vmax.f32 %v10424, %v10428
    %v10473 = vmax.f32 %v10425, %v10429
    %v10474 = vmax.f32 %v10426, %v10430
    %v10475 = vmax.f32 %v10427, %v10431
    %v10476 = vmax.f32 %v10432, %v10436
    %v10477 = vmax.f32 %v10433, %v10437
    %v10478 = vmax.f32 %v10434, %v10438
    %v10479 = vmax.f32 %v10435, %v10439
    %v10480 = vmax.f32 %v10440, %v10444
    %v10481 = vmax.f32 %v10441, %v10445
    %v10482 = vmax.f32 %v10442, %v10446
    %v10483 = vmax.f32 %v10443, %v10447
    %v10484 = vmax.f32 %v10448, %v10452
    %v10485 = vmax.f32 %v10449, %v10453
    %v10486 = vmax.f32 %v10450, %v10454
    %v10487 = vmax.f32 %v10451, %v10455
    %v10488 = vmax.f32 %v8608, %v10456
    %v10489 = vmax.f32 %v8609, %v10457
    %v10490 = vmax.f32 %v8610, %v10458
    %v10491 = vmax.f32 %v8611, %v10459
    %v10492 = vmax.f32 %v8612, %v10460
    %v10493 = vmax.f32 %v8613, %v10461
    %v10494 = vmax.f32 %v8614, %v10462
    %v10495 = vmax.f32 %v8615, %v10463
    %v10496 = vmax.f32 %v8616, %v10464
    %v10497 = vmax.f32 %v8617, %v10465
    %v10498 = vmax.f32 %v8618, %v10466
    %v10499 = vmax.f32 %v8619, %v10467
    %v10500 = vmax.f32 %v8620, %v10468
    %v10501 = vmax.f32 %v8621, %v10469
    %v10502 = vmax.f32 %v8622, %v10470
    %v10503 = vmax.f32 %v8623, %v10471
    %v10504 = vmax.f32 %v8624, %v10472
    %v10505 = vmax.f32 %v8625, %v10473
    %v10506 = vmax.f32 %v8626, %v10474
    %v10507 = vmax.f32 %v8627, %v10475
    %v10508 = vmax.f32 %v8628, %v10476
    %v10509 = vmax.f32 %v8629, %v10477
    %v10510 = vmax.f32 %v8630, %v10478
    %v10511 = vmax.f32 %v8631, %v10479
    %v10512 = vmax.f32 %v8632, %v10480
    %v10513 = vmax.f32 %v8633, %v10481
    %v10514 = vmax.f32 %v8634, %v10482
    %v10515 = vmax.f32 %v8635, %v10483
    %v10516 = vmax.f32 %v8636, %v10484
    %v10517 = vmax.f32 %v8637, %v10485
    %v10518 = vmax.f32 %v8638, %v10486
    %v10519 = vmax.f32 %v8639, %v10487
    %v10521 = vlaneseq
    %v10522 = vshrl.u32 %v10521, 7
    %v10523 = vsub.s32 0, %v10522
    %v10524 = vrot.slane %v2951, %v10523
    %v10525 = vlaneseq
    %v10526 = vshrl.u32 %v10525, 7
    %v10527 = vsub.s32 1, %v10526
    %v10528 = vrot.slane %v2951, %v10527
    %v10529 = vlaneseq
    %v10530 = vshrl.u32 %v10529, 7
    %v10531 = vsub.s32 2, %v10530
    %v10532 = vrot.slane %v2951, %v10531
    %v10533 = vlaneseq
    %v10534 = vshrl.u32 %v10533, 7
    %v10535 = vsub.s32 3, %v10534
    %v10536 = vrot.slane %v2951, %v10535
    %v10541 = vadd.f32 %v10488, %v10524
    %v10542 = vadd.f32 %v10489, %v10528
    %v10543 = vadd.f32 %v10490, %v10532
    %v10544 = vadd.f32 %v10491, %v10536
    %v10545 = vadd.f32 %v10492, %v10524
    %v10546 = vadd.f32 %v10493, %v10528
    %v10547 = vadd.f32 %v10494, %v10532
    %v10548 = vadd.f32 %v10495, %v10536
    %v10549 = vadd.f32 %v10496, %v10524
    %v10550 = vadd.f32 %v10497, %v10528
    %v10551 = vadd.f32 %v10498, %v10532
    %v10552 = vadd.f32 %v10499, %v10536
    %v10553 = vadd.f32 %v10500, %v10524
    %v10554 = vadd.f32 %v10501, %v10528
    %v10555 = vadd.f32 %v10502, %v10532
    %v10556 = vadd.f32 %v10503, %v10536
    %v10557 = vadd.f32 %v10504, %v10524
    %v10558 = vadd.f32 %v10505, %v10528
    %v10559 = vadd.f32 %v10506, %v10532
    %v10560 = vadd.f32 %v10507, %v10536
    %v10561 = vadd.f32 %v10508, %v10524
    %v10562 = vadd.f32 %v10509, %v10528
    %v10563 = vadd.f32 %v10510, %v10532
    %v10564 = vadd.f32 %v10511, %v10536
    %v10565 = vadd.f32 %v10512, %v10524
    %v10566 = vadd.f32 %v10513, %v10528
    %v10567 = vadd.f32 %v10514, %v10532
    %v10568 = vadd.f32 %v10515, %v10536
    %v10569 = vadd.f32 %v10516, %v10524
    %v10570 = vadd.f32 %v10517, %v10528
    %v10571 = vadd.f32 %v10518, %v10532
    %v10572 = vadd.f32 %v10519, %v10536
    %v10573 = vmax.f32 %v10541, 0.0
    %v10574 = vmax.f32 %v10542, 0.0
    %v10575 = vmax.f32 %v10543, 0.0
    %v10576 = vmax.f32 %v10544, 0.0
    %v10577 = vmax.f32 %v10545, 0.0
    %v10578 = vmax.f32 %v10546, 0.0
    %v10579 = vmax.f32 %v10547, 0.0
    %v10580 = vmax.f32 %v10548, 0.0
    %v10581 = vmax.f32 %v10549, 0.0
    %v10582 = vmax.f32 %v10550, 0.0
    %v10583 = vmax.f32 %v10551, 0.0
    %v10584 = vmax.f32 %v10552, 0.0
    %v10585 = vmax.f32 %v10553, 0.0
    %v10586 = vmax.f32 %v10554, 0.0
    %v10587 = vmax.f32 %v10555, 0.0
    %v10588 = vmax.f32 %v10556, 0.0
    %v10589 = vmax.f32 %v10557, 0.0
    %v10590 = vmax.f32 %v10558, 0.0
    %v10591 = vmax.f32 %v10559, 0.0
    %v10592 = vmax.f32 %v10560, 0.0
    %v10593 = vmax.f32 %v10561, 0.0
    %v10594 = vmax.f32 %v10562, 0.0
    %v10595 = vmax.f32 %v10563, 0.0
    %v10596 = vmax.f32 %v10564, 0.0
    %v10597 = vmax.f32 %v10565, 0.0
    %v10598 = vmax.f32 %v10566, 0.0
    %v10599 = vmax.f32 %v10567, 0.0
    %v10600 = vmax.f32 %v10568, 0.0
    %v10601 = vmax.f32 %v10569, 0.0
    %v10602 = vmax.f32 %v10570, 0.0
    %v10603 = vmax.f32 %v10571, 0.0
    %v10604 = vmax.f32 %v10572, 0.0
    %v10605 = vpack.c.bf16 %v10573, %v10573
    %v10606 = vpack.c.bf16 %v10574, %v10574
    %v10607 = vpack.c.bf16 %v10575, %v10575
    %v10608 = vpack.c.bf16 %v10576, %v10576
    %v10609 = vld [vmem:[#allocation5] sm:$0xf]
    %v10610 = vld [vmem:[#allocation5 + $0x4] sm:$0xf]
    %v10611 = vld [vmem:[#allocation5 + $0x8] sm:$0xf]
    %v10612 = vld [vmem:[#allocation5 + $0xc] sm:$0xf]
    %v10613 = vld [vmem:[#allocation5 + $0x10] sm:$0xf]
    %v10614 = vld [vmem:[#allocation5 + $0x14] sm:$0xf]
    %v10615 = vld [vmem:[#allocation5 + $0x18] sm:$0xf]
    %v10616 = vld [vmem:[#allocation5 + $0x1c] sm:$0xf]
    %v10617 = vld [vmem:[#allocation5 + $0x20] sm:$0xf]
    %v10618 = vld [vmem:[#allocation5 + $0x24] sm:$0xf]
    %v10619 = vld [vmem:[#allocation5 + $0x28] sm:$0xf]
    %v10620 = vld [vmem:[#allocation5 + $0x2c] sm:$0xf]
    %v10621 = vld [vmem:[#allocation5 + $0x30] sm:$0xf]
    %v10622 = vld [vmem:[#allocation5 + $0x34] sm:$0xf]
    %v10623 = vld [vmem:[#allocation5 + $0x38] sm:$0xf]
    %v10624 = vld [vmem:[#allocation5 + $0x3c] sm:$0xf]
    %v10625 = vld [vmem:[#allocation5 + $0x40] sm:$0xf]
    %v10626 = vld [vmem:[#allocation5 + $0x44] sm:$0xf]
    %v10627 = vld [vmem:[#allocation5 + $0x48] sm:$0xf]
    %v10628 = vld [vmem:[#allocation5 + $0x4c] sm:$0xf]
    %v10629 = vld [vmem:[#allocation5 + $0x50] sm:$0xf]
    %v10630 = vld [vmem:[#allocation5 + $0x54] sm:$0xf]
    %v10631 = vld [vmem:[#allocation5 + $0x58] sm:$0xf]
    %v10632 = vld [vmem:[#allocation5 + $0x5c] sm:$0xf]
    %v10633 = vld [vmem:[#allocation5 + $0x60] sm:$0xf]
    %v10634 = vld [vmem:[#allocation5 + $0x64] sm:$0xf]
    %v10635 = vld [vmem:[#allocation5 + $0x68] sm:$0xf]
    %v10636 = vld [vmem:[#allocation5 + $0x6c] sm:$0xf]
    %v10637 = vld [vmem:[#allocation5 + $0x70] sm:$0xf]
    %v10638 = vld [vmem:[#allocation5 + $0x74] sm:$0xf]
    %v10639 = vld [vmem:[#allocation5 + $0x78] sm:$0xf]
    %v10640 = vld [vmem:[#allocation5 + $0x7c] sm:$0xf]
    %v10641 = vld [vmem:[#allocation5 + $0x80] sm:$0xf]
    %v10642 = vld [vmem:[#allocation5 + $0x84] sm:$0xf]
    %v10643 = vld [vmem:[#allocation5 + $0x88] sm:$0xf]
    %v10644 = vld [vmem:[#allocation5 + $0x8c] sm:$0xf]
    %v10645 = vld [vmem:[#allocation5 + $0x90] sm:$0xf]
    %v10646 = vld [vmem:[#allocation5 + $0x94] sm:$0xf]
    %v10647 = vld [vmem:[#allocation5 + $0x98] sm:$0xf]
    %v10648 = vld [vmem:[#allocation5 + $0x9c] sm:$0xf]
    %v10649 = vld [vmem:[#allocation5 + $0xa0] sm:$0xf]
    %v10650 = vld [vmem:[#allocation5 + $0xa4] sm:$0xf]
    %v10651 = vld [vmem:[#allocation5 + $0xa8] sm:$0xf]
    %v10652 = vld [vmem:[#allocation5 + $0xac] sm:$0xf]
    %v10653 = vld [vmem:[#allocation5 + $0xb0] sm:$0xf]
    %v10654 = vld [vmem:[#allocation5 + $0xb4] sm:$0xf]
    %v10655 = vld [vmem:[#allocation5 + $0xb8] sm:$0xf]
    %v10656 = vld [vmem:[#allocation5 + $0xbc] sm:$0xf]
    %v10657 = vld [vmem:[#allocation5 + $0xc0] sm:$0xf]
    %v10658 = vld [vmem:[#allocation5 + $0xc4] sm:$0xf]
    %v10659 = vld [vmem:[#allocation5 + $0xc8] sm:$0xf]
    %v10660 = vld [vmem:[#allocation5 + $0xcc] sm:$0xf]
    %v10661 = vld [vmem:[#allocation5 + $0xd0] sm:$0xf]
    %v10662 = vld [vmem:[#allocation5 + $0xd4] sm:$0xf]
    %v10663 = vld [vmem:[#allocation5 + $0xd8] sm:$0xf]
    %v10664 = vld [vmem:[#allocation5 + $0xdc] sm:$0xf]
    %v10665 = vld [vmem:[#allocation5 + $0xe0] sm:$0xf]
    %v10666 = vld [vmem:[#allocation5 + $0xe4] sm:$0xf]
    %v10667 = vld [vmem:[#allocation5 + $0xe8] sm:$0xf]
    %v10668 = vld [vmem:[#allocation5 + $0xec] sm:$0xf]
    %v10669 = vld [vmem:[#allocation5 + $0xf0] sm:$0xf]
    %v10670 = vld [vmem:[#allocation5 + $0xf4] sm:$0xf]
    %v10671 = vld [vmem:[#allocation5 + $0xf8] sm:$0xf]
    %v10672 = vld [vmem:[#allocation5 + $0xfc] sm:$0xf]
    %v10673 = vpack.c.bf16 %v10577, %v10577
    %v10674 = vpack.c.bf16 %v10578, %v10578
    %v10675 = vpack.c.bf16 %v10579, %v10579
    %v10676 = vpack.c.bf16 %v10580, %v10580
    %s10677 = scalar_lea.vmem [#allocation5], 256
    %v10678 = vld [vmem:[%s10677] sm:$0xf]
    %v10679 = vld [vmem:[%s10677 + $0x4] sm:$0xf]
    %v10680 = vld [vmem:[%s10677 + $0x8] sm:$0xf]
    %v10681 = vld [vmem:[%s10677 + $0xc] sm:$0xf]
    %v10682 = vld [vmem:[%s10677 + $0x10] sm:$0xf]
    %v10683 = vld [vmem:[%s10677 + $0x14] sm:$0xf]
    %v10684 = vld [vmem:[%s10677 + $0x18] sm:$0xf]
    %v10685 = vld [vmem:[%s10677 + $0x1c] sm:$0xf]
    %v10686 = vld [vmem:[%s10677 + $0x20] sm:$0xf]
    %v10687 = vld [vmem:[%s10677 + $0x24] sm:$0xf]
    %v10688 = vld [vmem:[%s10677 + $0x28] sm:$0xf]
    %v10689 = vld [vmem:[%s10677 + $0x2c] sm:$0xf]
    %v10690 = vld [vmem:[%s10677 + $0x30] sm:$0xf]
    %v10691 = vld [vmem:[%s10677 + $0x34] sm:$0xf]
    %v10692 = vld [vmem:[%s10677 + $0x38] sm:$0xf]
    %v10693 = vld [vmem:[%s10677 + $0x3c] sm:$0xf]
    %v10694 = vld [vmem:[%s10677 + $0x40] sm:$0xf]
    %v10695 = vld [vmem:[%s10677 + $0x44] sm:$0xf]
    %v10696 = vld [vmem:[%s10677 + $0x48] sm:$0xf]
    %v10697 = vld [vmem:[%s10677 + $0x4c] sm:$0xf]
    %v10698 = vld [vmem:[%s10677 + $0x50] sm:$0xf]
    %v10699 = vld [vmem:[%s10677 + $0x54] sm:$0xf]
    %v10700 = vld [vmem:[%s10677 + $0x58] sm:$0xf]
    %v10701 = vld [vmem:[%s10677 + $0x5c] sm:$0xf]
    %v10702 = vld [vmem:[%s10677 + $0x60] sm:$0xf]
    %v10703 = vld [vmem:[%s10677 + $0x64] sm:$0xf]
    %v10704 = vld [vmem:[%s10677 + $0x68] sm:$0xf]
    %v10705 = vld [vmem:[%s10677 + $0x6c] sm:$0xf]
    %v10706 = vld [vmem:[%s10677 + $0x70] sm:$0xf]
    %v10707 = vld [vmem:[%s10677 + $0x74] sm:$0xf]
    %v10708 = vld [vmem:[%s10677 + $0x78] sm:$0xf]
    %v10709 = vld [vmem:[%s10677 + $0x7c] sm:$0xf]
    %v10710 = vld [vmem:[%s10677 + $0x80] sm:$0xf]
    %v10711 = vld [vmem:[%s10677 + $0x84] sm:$0xf]
    %v10712 = vld [vmem:[%s10677 + $0x88] sm:$0xf]
    %v10713 = vld [vmem:[%s10677 + $0x8c] sm:$0xf]
    %v10714 = vld [vmem:[%s10677 + $0x90] sm:$0xf]
    %v10715 = vld [vmem:[%s10677 + $0x94] sm:$0xf]
    %v10716 = vld [vmem:[%s10677 + $0x98] sm:$0xf]
    %v10717 = vld [vmem:[%s10677 + $0x9c] sm:$0xf]
    %v10718 = vld [vmem:[%s10677 + $0xa0] sm:$0xf]
    %v10719 = vld [vmem:[%s10677 + $0xa4] sm:$0xf]
    %v10720 = vld [vmem:[%s10677 + $0xa8] sm:$0xf]
    %v10721 = vld [vmem:[%s10677 + $0xac] sm:$0xf]
    %v10722 = vld [vmem:[%s10677 + $0xb0] sm:$0xf]
    %v10723 = vld [vmem:[%s10677 + $0xb4] sm:$0xf]
    %v10724 = vld [vmem:[%s10677 + $0xb8] sm:$0xf]
    %v10725 = vld [vmem:[%s10677 + $0xbc] sm:$0xf]
    %v10726 = vld [vmem:[%s10677 + $0xc0] sm:$0xf]
    %v10727 = vld [vmem:[%s10677 + $0xc4] sm:$0xf]
    %v10728 = vld [vmem:[%s10677 + $0xc8] sm:$0xf]
    %v10729 = vld [vmem:[%s10677 + $0xcc] sm:$0xf]
    %v10730 = vld [vmem:[%s10677 + $0xd0] sm:$0xf]
    %v10731 = vld [vmem:[%s10677 + $0xd4] sm:$0xf]
    %v10732 = vld [vmem:[%s10677 + $0xd8] sm:$0xf]
    %v10733 = vld [vmem:[%s10677 + $0xdc] sm:$0xf]
    %v10734 = vld [vmem:[%s10677 + $0xe0] sm:$0xf]
    %v10735 = vld [vmem:[%s10677 + $0xe4] sm:$0xf]
    %v10736 = vld [vmem:[%s10677 + $0xe8] sm:$0xf]
    %v10737 = vld [vmem:[%s10677 + $0xec] sm:$0xf]
    %v10738 = vld [vmem:[%s10677 + $0xf0] sm:$0xf]
    %v10739 = vld [vmem:[%s10677 + $0xf4] sm:$0xf]
    %v10740 = vld [vmem:[%s10677 + $0xf8] sm:$0xf]
    %v10741 = vld [vmem:[%s10677 + $0xfc] sm:$0xf]
    %v10806 = vunpack.c.l.b16 %v10678
    %v10807 = vunpack.c.l.b16 %v10679
    %v10808 = vunpack.c.l.b16 %v10680
    %v10809 = vunpack.c.l.b16 %v10681
    %v10810 = vunpack.c.l.b16 %v10682
    %v10811 = vunpack.c.l.b16 %v10683
    %v10812 = vunpack.c.l.b16 %v10684
    %v10813 = vunpack.c.l.b16 %v10685
    %v10814 = vunpack.c.l.b16 %v10686
    %v10815 = vunpack.c.l.b16 %v10687
    %v10816 = vunpack.c.l.b16 %v10688
    %v10817 = vunpack.c.l.b16 %v10689
    %v10818 = vunpack.c.l.b16 %v10690
    %v10819 = vunpack.c.l.b16 %v10691
    %v10820 = vunpack.c.l.b16 %v10692
    %v10821 = vunpack.c.l.b16 %v10693
    %v10822 = vunpack.c.l.b16 %v10694
    %v10823 = vunpack.c.l.b16 %v10695
    %v10824 = vunpack.c.l.b16 %v10696
    %v10825 = vunpack.c.l.b16 %v10697
    %v10826 = vunpack.c.l.b16 %v10698
    %v10827 = vunpack.c.l.b16 %v10699
    %v10828 = vunpack.c.l.b16 %v10700
    %v10829 = vunpack.c.l.b16 %v10701
    %v10830 = vunpack.c.l.b16 %v10702
    %v10831 = vunpack.c.l.b16 %v10703
    %v10832 = vunpack.c.l.b16 %v10704
    %v10833 = vunpack.c.l.b16 %v10705
    %v10834 = vunpack.c.l.b16 %v10706
    %v10835 = vunpack.c.l.b16 %v10707
    %v10836 = vunpack.c.l.b16 %v10708
    %v10837 = vunpack.c.l.b16 %v10709
    %v10838 = vunpack.c.l.b16 %v10710
    %v10839 = vunpack.c.l.b16 %v10711
    %v10840 = vunpack.c.l.b16 %v10712
    %v10841 = vunpack.c.l.b16 %v10713
    %v10842 = vunpack.c.l.b16 %v10714
    %v10843 = vunpack.c.l.b16 %v10715
    %v10844 = vunpack.c.l.b16 %v10716
    %v10845 = vunpack.c.l.b16 %v10717
    %v10846 = vunpack.c.l.b16 %v10718
    %v10847 = vunpack.c.l.b16 %v10719
    %v10848 = vunpack.c.l.b16 %v10720
    %v10849 = vunpack.c.l.b16 %v10721
    %v10850 = vunpack.c.l.b16 %v10722
    %v10851 = vunpack.c.l.b16 %v10723
    %v10852 = vunpack.c.l.b16 %v10724
    %v10853 = vunpack.c.l.b16 %v10725
    %v10854 = vunpack.c.l.b16 %v10726
    %v10855 = vunpack.c.l.b16 %v10727
    %v10856 = vunpack.c.l.b16 %v10728
    %v10857 = vunpack.c.l.b16 %v10729
    %v10858 = vunpack.c.l.b16 %v10730
    %v10859 = vunpack.c.l.b16 %v10731
    %v10860 = vunpack.c.l.b16 %v10732
    %v10861 = vunpack.c.l.b16 %v10733
    %v10862 = vunpack.c.l.b16 %v10734
    %v10863 = vunpack.c.l.b16 %v10735
    %v10864 = vunpack.c.l.b16 %v10736
    %v10865 = vunpack.c.l.b16 %v10737
    %v10866 = vunpack.c.l.b16 %v10738
    %v10867 = vunpack.c.l.b16 %v10739
    %v10868 = vunpack.c.l.b16 %v10740
    %v10869 = vunpack.c.l.b16 %v10741
    %v10870 = vpack.c.b16 %v10807, %v10806
    %v10871 = vpack.c.b16 %v10809, %v10808
    %v10872 = vpack.c.b16 %v10811, %v10810
    %v10873 = vpack.c.b16 %v10813, %v10812
    %v10874 = vpack.c.b16 %v10815, %v10814
    %v10875 = vpack.c.b16 %v10817, %v10816
    %v10876 = vpack.c.b16 %v10819, %v10818
    %v10877 = vpack.c.b16 %v10821, %v10820
    %v10878 = vpack.c.b16 %v10823, %v10822
    %v10879 = vpack.c.b16 %v10825, %v10824
    %v10880 = vpack.c.b16 %v10827, %v10826
    %v10881 = vpack.c.b16 %v10829, %v10828
    %v10882 = vpack.c.b16 %v10831, %v10830
    %v10883 = vpack.c.b16 %v10833, %v10832
    %v10884 = vpack.c.b16 %v10835, %v10834
    %v10885 = vpack.c.b16 %v10837, %v10836
    %v10886 = vpack.c.b16 %v10839, %v10838
    %v10887 = vpack.c.b16 %v10841, %v10840
    %v10888 = vpack.c.b16 %v10843, %v10842
    %v10889 = vpack.c.b16 %v10845, %v10844
    %v10890 = vpack.c.b16 %v10847, %v10846
    %v10891 = vpack.c.b16 %v10849, %v10848
    %v10892 = vpack.c.b16 %v10851, %v10850
    %v10893 = vpack.c.b16 %v10853, %v10852
    %v10894 = vpack.c.b16 %v10855, %v10854
    %v10895 = vpack.c.b16 %v10857, %v10856
    %v10896 = vpack.c.b16 %v10859, %v10858
    %v10897 = vpack.c.b16 %v10861, %v10860
    %v10898 = vpack.c.b16 %v10863, %v10862
    %v10899 = vpack.c.b16 %v10865, %v10864
    %v10900 = vpack.c.b16 %v10867, %v10866
    %v10901 = vpack.c.b16 %v10869, %v10868
    %10934 = vmatprep.subr.bf16.mxu0 0
    %10935 = vmatpush1.bf16.msra.mxu0 %v10870
    %10936 = vmatprep.subr.bf16.mxu0 0
    %10937 = vmatpush1.bf16.msra.mxu0 %v10871
    %10938 = vmatprep.subr.bf16.mxu0 0
    %10939 = vmatpush1.bf16.msra.mxu0 %v10872
    %10940 = vmatprep.subr.bf16.mxu0 0
    %10941 = vmatpush1.bf16.msra.mxu0 %v10873
    %10942 = vmatprep.subr.bf16.mxu0 0
    %10943 = vmatpush1.bf16.msra.mxu0 %v10874
    %10944 = vmatprep.subr.bf16.mxu0 0
    %10945 = vmatpush1.bf16.msra.mxu0 %v10875
    %10946 = vmatprep.subr.bf16.mxu0 0
    %10947 = vmatpush1.bf16.msra.mxu0 %v10876
    %10948 = vmatprep.subr.bf16.mxu0 0
    %10949 = vmatpush1.bf16.msra.mxu0 %v10877
    %10950 = vmatprep.subr.bf16.mxu0 0
    %10951 = vmatpush1.bf16.msra.mxu0 %v10878
    %10952 = vmatprep.subr.bf16.mxu0 0
    %10953 = vmatpush1.bf16.msra.mxu0 %v10879
    %10954 = vmatprep.subr.bf16.mxu0 0
    %10955 = vmatpush1.bf16.msra.mxu0 %v10880
    %10956 = vmatprep.subr.bf16.mxu0 0
    %10957 = vmatpush1.bf16.msra.mxu0 %v10881
    %10958 = vmatprep.subr.bf16.mxu0 0
    %10959 = vmatpush1.bf16.msra.mxu0 %v10882
    %10960 = vmatprep.subr.bf16.mxu0 0
    %10961 = vmatpush1.bf16.msra.mxu0 %v10883
    %10962 = vmatprep.subr.bf16.mxu0 0
    %10963 = vmatpush1.bf16.msra.mxu0 %v10884
    %10964 = vmatprep.subr.bf16.mxu0 0
    %10965 = vmatpush1.bf16.msra.mxu0 %v10885
    %10966 = vmatprep.mubr.bf16.mxu0 %v10674
    %10967 = vmatmul.mubr.bf16.gmra.mrb[0].mxu0 %v10673
    %v10968 = vpop.f32.mrb[0].mxu0
    %v10969 = vadd.f32 0.0, %v10968
    %v10970 = vpop.f32.mrb[0].mxu0
    %v10971 = vpop.f32.mrb[0].mxu0
    %v10972 = vpop.f32.mrb[0].mxu0
    %10973 = vdwg.mxu0
    %10974 = vmatprep.subr.bf16.mxu0 0
    %10975 = vmatpush1.bf16.msra.mxu0 %v10886
    %10976 = vmatprep.subr.bf16.mxu0 0
    %10977 = vmatpush1.bf16.msra.mxu0 %v10887
    %10978 = vmatprep.subr.bf16.mxu0 0
    %10979 = vmatpush1.bf16.msra.mxu0 %v10888
    %10980 = vmatprep.subr.bf16.mxu0 0
    %10981 = vmatpush1.bf16.msra.mxu0 %v10889
    %10982 = vmatprep.subr.bf16.mxu0 0
    %10983 = vmatpush1.bf16.msra.mxu0 %v10890
    %10984 = vmatprep.subr.bf16.mxu0 0
    %10985 = vmatpush1.bf16.msra.mxu0 %v10891
    %10986 = vmatprep.subr.bf16.mxu0 0
    %10987 = vmatpush1.bf16.msra.mxu0 %v10892
    %10988 = vmatprep.subr.bf16.mxu0 0
    %10989 = vmatpush1.bf16.msra.mxu0 %v10893
    %10990 = vmatprep.subr.bf16.mxu0 0
    %10991 = vmatpush1.bf16.msra.mxu0 %v10894
    %10992 = vmatprep.subr.bf16.mxu0 0
    %10993 = vmatpush1.bf16.msra.mxu0 %v10895
    %10994 = vmatprep.subr.bf16.mxu0 0
    %10995 = vmatpush1.bf16.msra.mxu0 %v10896
    %10996 = vmatprep.subr.bf16.mxu0 0
    %10997 = vmatpush1.bf16.msra.mxu0 %v10897
    %10998 = vmatprep.subr.bf16.mxu0 0
    %10999 = vmatpush1.bf16.msra.mxu0 %v10898
    %11000 = vmatprep.subr.bf16.mxu0 0
    %11001 = vmatpush1.bf16.msra.mxu0 %v10899
    %11002 = vmatprep.subr.bf16.mxu0 0
    %11003 = vmatpush1.bf16.msra.mxu0 %v10900
    %11004 = vmatprep.subr.bf16.mxu0 0
    %11005 = vmatpush1.bf16.msra.mxu0 %v10901
    %11006 = vmatprep.mubr.bf16.mxu0 %v10676
    %11007 = vmatmul.mubr.bf16.gmra.mrb[0].mxu0 %v10675
    %v11008 = vpop.f32.mrb[0].mxu0
    %v11009 = vadd.f32 %v10969, %v11008
    %v11010 = vpop.f32.mrb[0].mxu0
    %v11011 = vpop.f32.mrb[0].mxu0
    %v11012 = vpop.f32.mrb[0].mxu0
    %11013 = vdwg.mxu0
    %v11078 = vunpack.c.l.b16 %v10609
    %v11079 = vunpack.c.l.b16 %v10610
    %v11080 = vunpack.c.l.b16 %v10611
    %v11081 = vunpack.c.l.b16 %v10612
    %v11082 = vunpack.c.l.b16 %v10613
    %v11083 = vunpack.c.l.b16 %v10614
    %v11084 = vunpack.c.l.b16 %v10615
    %v11085 = vunpack.c.l.b16 %v10616
    %v11086 = vunpack.c.l.b16 %v10617
    %v11087 = vunpack.c.l.b16 %v10618
    %v11088 = vunpack.c.l.b16 %v10619
    %v11089 = vunpack.c.l.b16 %v10620
    %v11090 = vunpack.c.l.b16 %v10621
    %v11091 = vunpack.c.l.b16 %v10622
    %v11092 = vunpack.c.l.b16 %v10623
    %v11093 = vunpack.c.l.b16 %v10624
    %v11094 = vunpack.c.l.b16 %v10625
    %v11095 = vunpack.c.l.b16 %v10626
    %v11096 = vunpack.c.l.b16 %v10627
    %v11097 = vunpack.c.l.b16 %v10628
    %v11098 = vunpack.c.l.b16 %v10629
    %v11099 = vunpack.c.l.b16 %v10630
    %v11100 = vunpack.c.l.b16 %v10631
    %v11101 = vunpack.c.l.b16 %v10632
    %v11102 = vunpack.c.l.b16 %v10633
    %v11103 = vunpack.c.l.b16 %v10634
    %v11104 = vunpack.c.l.b16 %v10635
    %v11105 = vunpack.c.l.b16 %v10636
    %v11106 = vunpack.c.l.b16 %v10637
    %v11107 = vunpack.c.l.b16 %v10638
    %v11108 = vunpack.c.l.b16 %v10639
    %v11109 = vunpack.c.l.b16 %v10640
    %v11110 = vunpack.c.l.b16 %v10641
    %v11111 = vunpack.c.l.b16 %v10642
    %v11112 = vunpack.c.l.b16 %v10643
    %v11113 = vunpack.c.l.b16 %v10644
    %v11114 = vunpack.c.l.b16 %v10645
    %v11115 = vunpack.c.l.b16 %v10646
    %v11116 = vunpack.c.l.b16 %v10647
    %v11117 = vunpack.c.l.b16 %v10648
    %v11118 = vunpack.c.l.b16 %v10649
    %v11119 = vunpack.c.l.b16 %v10650
    %v11120 = vunpack.c.l.b16 %v10651
    %v11121 = vunpack.c.l.b16 %v10652
    %v11122 = vunpack.c.l.b16 %v10653
    %v11123 = vunpack.c.l.b16 %v10654
    %v11124 = vunpack.c.l.b16 %v10655
    %v11125 = vunpack.c.l.b16 %v10656
    %v11126 = vunpack.c.l.b16 %v10657
    %v11127 = vunpack.c.l.b16 %v10658
    %v11128 = vunpack.c.l.b16 %v10659
    %v11129 = vunpack.c.l.b16 %v10660
    %v11130 = vunpack.c.l.b16 %v10661
    %v11131 = vunpack.c.l.b16 %v10662
    %v11132 = vunpack.c.l.b16 %v10663
    %v11133 = vunpack.c.l.b16 %v10664
    %v11134 = vunpack.c.l.b16 %v10665
    %v11135 = vunpack.c.l.b16 %v10666
    %v11136 = vunpack.c.l.b16 %v10667
    %v11137 = vunpack.c.l.b16 %v10668
    %v11138 = vunpack.c.l.b16 %v10669
    %v11139 = vunpack.c.l.b16 %v10670
    %v11140 = vunpack.c.l.b16 %v10671
    %v11141 = vunpack.c.l.b16 %v10672
    %v11142 = vpack.c.b16 %v11079, %v11078
    %v11143 = vpack.c.b16 %v11081, %v11080
    %v11144 = vpack.c.b16 %v11083, %v11082
    %v11145 = vpack.c.b16 %v11085, %v11084
    %v11146 = vpack.c.b16 %v11087, %v11086
    %v11147 = vpack.c.b16 %v11089, %v11088
    %v11148 = vpack.c.b16 %v11091, %v11090
    %v11149 = vpack.c.b16 %v11093, %v11092
    %v11150 = vpack.c.b16 %v11095, %v11094
    %v11151 = vpack.c.b16 %v11097, %v11096
    %v11152 = vpack.c.b16 %v11099, %v11098
    %v11153 = vpack.c.b16 %v11101, %v11100
    %v11154 = vpack.c.b16 %v11103, %v11102
    %v11155 = vpack.c.b16 %v11105, %v11104
    %v11156 = vpack.c.b16 %v11107, %v11106
    %v11157 = vpack.c.b16 %v11109, %v11108
    %v11158 = vpack.c.b16 %v11111, %v11110
    %v11159 = vpack.c.b16 %v11113, %v11112
    %v11160 = vpack.c.b16 %v11115, %v11114
    %v11161 = vpack.c.b16 %v11117, %v11116
    %v11162 = vpack.c.b16 %v11119, %v11118
    %v11163 = vpack.c.b16 %v11121, %v11120
    %v11164 = vpack.c.b16 %v11123, %v11122
    %v11165 = vpack.c.b16 %v11125, %v11124
    %v11166 = vpack.c.b16 %v11127, %v11126
    %v11167 = vpack.c.b16 %v11129, %v11128
    %v11168 = vpack.c.b16 %v11131, %v11130
    %v11169 = vpack.c.b16 %v11133, %v11132
    %v11170 = vpack.c.b16 %v11135, %v11134
    %v11171 = vpack.c.b16 %v11137, %v11136
    %v11172 = vpack.c.b16 %v11139, %v11138
    %v11173 = vpack.c.b16 %v11141, %v11140
    %11206 = vmatprep.subr.bf16.mxu0 0
    %11207 = vmatpush1.bf16.msra.mxu0 %v11142
    %11208 = vmatprep.subr.bf16.mxu0 0
    %11209 = vmatpush1.bf16.msra.mxu0 %v11143
    %11210 = vmatprep.subr.bf16.mxu0 0
    %11211 = vmatpush1.bf16.msra.mxu0 %v11144
    %11212 = vmatprep.subr.bf16.mxu0 0
    %11213 = vmatpush1.bf16.msra.mxu0 %v11145
    %11214 = vmatprep.subr.bf16.mxu0 0
    %11215 = vmatpush1.bf16.msra.mxu0 %v11146
    %11216 = vmatprep.subr.bf16.mxu0 0
    %11217 = vmatpush1.bf16.msra.mxu0 %v11147
    %11218 = vmatprep.subr.bf16.mxu0 0
    %11219 = vmatpush1.bf16.msra.mxu0 %v11148
    %11220 = vmatprep.subr.bf16.mxu0 0
    %11221 = vmatpush1.bf16.msra.mxu0 %v11149
    %11222 = vmatprep.subr.bf16.mxu0 0
    %11223 = vmatpush1.bf16.msra.mxu0 %v11150
    %11224 = vmatprep.subr.bf16.mxu0 0
    %11225 = vmatpush1.bf16.msra.mxu0 %v11151
    %11226 = vmatprep.subr.bf16.mxu0 0
    %11227 = vmatpush1.bf16.msra.mxu0 %v11152
    %11228 = vmatprep.subr.bf16.mxu0 0
    %11229 = vmatpush1.bf16.msra.mxu0 %v11153
    %11230 = vmatprep.subr.bf16.mxu0 0
    %11231 = vmatpush1.bf16.msra.mxu0 %v11154
    %11232 = vmatprep.subr.bf16.mxu0 0
    %11233 = vmatpush1.bf16.msra.mxu0 %v11155
    %11234 = vmatprep.subr.bf16.mxu0 0
    %11235 = vmatpush1.bf16.msra.mxu0 %v11156
    %11236 = vmatprep.subr.bf16.mxu0 0
    %11237 = vmatpush1.bf16.msra.mxu0 %v11157
    %11238 = vmatprep.mubr.bf16.mxu0 %v10606
    %11239 = vmatmul.mubr.bf16.gmra.mrb[0].mxu0 %v10605
    %v11240 = vpop.f32.mrb[0].mxu0
    %v11241 = vadd.f32 %v11009, %v11240
    %v11242 = vpop.f32.mrb[0].mxu0
    %v11243 = vpop.f32.mrb[0].mxu0
    %v11244 = vpop.f32.mrb[0].mxu0
    %11245 = vdwg.mxu0
    %11246 = vmatprep.subr.bf16.mxu0 0
    %11247 = vmatpush1.bf16.msra.mxu0 %v11158
    %11248 = vmatprep.subr.bf16.mxu0 0
    %11249 = vmatpush1.bf16.msra.mxu0 %v11159
    %11250 = vmatprep.subr.bf16.mxu0 0
    %11251 = vmatpush1.bf16.msra.mxu0 %v11160
    %11252 = vmatprep.subr.bf16.mxu0 0
    %11253 = vmatpush1.bf16.msra.mxu0 %v11161
    %11254 = vmatprep.subr.bf16.mxu0 0
    %11255 = vmatpush1.bf16.msra.mxu0 %v11162
    %11256 = vmatprep.subr.bf16.mxu0 0
    %11257 = vmatpush1.bf16.msra.mxu0 %v11163
    %11258 = vmatprep.subr.bf16.mxu0 0
    %11259 = vmatpush1.bf16.msra.mxu0 %v11164
    %11260 = vmatprep.subr.bf16.mxu0 0
    %11261 = vmatpush1.bf16.msra.mxu0 %v11165
    %11262 = vmatprep.subr.bf16.mxu0 0
    %11263 = vmatpush1.bf16.msra.mxu0 %v11166
    %11264 = vmatprep.subr.bf16.mxu0 0
    %11265 = vmatpush1.bf16.msra.mxu0 %v11167
    %11266 = vmatprep.subr.bf16.mxu0 0
    %11267 = vmatpush1.bf16.msra.mxu0 %v11168
    %11268 = vmatprep.subr.bf16.mxu0 0
    %11269 = vmatpush1.bf16.msra.mxu0 %v11169
    %11270 = vmatprep.subr.bf16.mxu0 0
    %11271 = vmatpush1.bf16.msra.mxu0 %v11170
    %11272 = vmatprep.subr.bf16.mxu0 0
    %11273 = vmatpush1.bf16.msra.mxu0 %v11171
    %11274 = vmatprep.subr.bf16.mxu0 0
    %11275 = vmatpush1.bf16.msra.mxu0 %v11172
    %11276 = vmatprep.subr.bf16.mxu0 0
    %11277 = vmatpush1.bf16.msra.mxu0 %v11173
    %11278 = vmatprep.mubr.bf16.mxu0 %v10608
    %11279 = vmatmul.mubr.bf16.gmra.mrb[0].mxu0 %v10607
    %v11280 = vpop.f32.mrb[0].mxu0
    %v11281 = vadd.f32 %v11241, %v11280
    %v11282 = vpop.f32.mrb[0].mxu0
    %v11283 = vpop.f32.mrb[0].mxu0
    %v11284 = vpop.f32.mrb[0].mxu0
    %11285 = vdwg.mxu0
    %v11286 = vpack.c.bf16 %v10581, %v10581
    %v11287 = vpack.c.bf16 %v10582, %v10582
    %v11288 = vpack.c.bf16 %v10583, %v10583
    %v11289 = vpack.c.bf16 %v10584, %v10584
    %s11290 = scalar_lea.vmem [#allocation5], 512
    %v11291 = vld [vmem:[%s11290] sm:$0xf]
    %v11292 = vld [vmem:[%s11290 + $0x4] sm:$0xf]
    %v11293 = vld [vmem:[%s11290 + $0x8] sm:$0xf]
    %v11294 = vld [vmem:[%s11290 + $0xc] sm:$0xf]
    %v11295 = vld [vmem:[%s11290 + $0x10] sm:$0xf]
    %v11296 = vld [vmem:[%s11290 + $0x14] sm:$0xf]
    %v11297 = vld [vmem:[%s11290 + $0x18] sm:$0xf]
    %v11298 = vld [vmem:[%s11290 + $0x1c] sm:$0xf]
    %v11299 = vld [vmem:[%s11290 + $0x20] sm:$0xf]
    %v11300 = vld [vmem:[%s11290 + $0x24] sm:$0xf]
    %v11301 = vld [vmem:[%s11290 + $0x28] sm:$0xf]
    %v11302 = vld [vmem:[%s11290 + $0x2c] sm:$0xf]
    %v11303 = vld [vmem:[%s11290 + $0x30] sm:$0xf]
    %v11304 = vld [vmem:[%s11290 + $0x34] sm:$0xf]
    %v11305 = vld [vmem:[%s11290 + $0x38] sm:$0xf]
    %v11306 = vld [vmem:[%s11290 + $0x3c] sm:$0xf]
    %v11307 = vld [vmem:[%s11290 + $0x40] sm:$0xf]
    %v11308 = vld [vmem:[%s11290 + $0x44] sm:$0xf]
    %v11309 = vld [vmem:[%s11290 + $0x48] sm:$0xf]
    %v11310 = vld [vmem:[%s11290 + $0x4c] sm:$0xf]
    %v11311 = vld [vmem:[%s11290 + $0x50] sm:$0xf]
    %v11312 = vld [vmem:[%s11290 + $0x54] sm:$0xf]
    %v11313 = vld [vmem:[%s11290 + $0x58] sm:$0xf]
    %v11314 = vld [vmem:[%s11290 + $0x5c] sm:$0xf]
    %v11315 = vld [vmem:[%s11290 + $0x60] sm:$0xf]
    %v11316 = vld [vmem:[%s11290 + $0x64] sm:$0xf]
    %v11317 = vld [vmem:[%s11290 + $0x68] sm:$0xf]
    %v11318 = vld [vmem:[%s11290 + $0x6c] sm:$0xf]
    %v11319 = vld [vmem:[%s11290 + $0x70] sm:$0xf]
    %v11320 = vld [vmem:[%s11290 + $0x74] sm:$0xf]
    %v11321 = vld [vmem:[%s11290 + $0x78] sm:$0xf]
    %v11322 = vld [vmem:[%s11290 + $0x7c] sm:$0xf]
    %v11323 = vld [vmem:[%s11290 + $0x80] sm:$0xf]
    %v11324 = vld [vmem:[%s11290 + $0x84] sm:$0xf]
    %v11325 = vld [vmem:[%s11290 + $0x88] sm:$0xf]
    %v11326 = vld [vmem:[%s11290 + $0x8c] sm:$0xf]
    %v11327 = vld [vmem:[%s11290 + $0x90] sm:$0xf]
    %v11328 = vld [vmem:[%s11290 + $0x94] sm:$0xf]
    %v11329 = vld [vmem:[%s11290 + $0x98] sm:$0xf]
    %v11330 = vld [vmem:[%s11290 + $0x9c] sm:$0xf]
    %v11331 = vld [vmem:[%s11290 + $0xa0] sm:$0xf]
    %v11332 = vld [vmem:[%s11290 + $0xa4] sm:$0xf]
    %v11333 = vld [vmem:[%s11290 + $0xa8] sm:$0xf]
    %v11334 = vld [vmem:[%s11290 + $0xac] sm:$0xf]
    %v11335 = vld [vmem:[%s11290 + $0xb0] sm:$0xf]
    %v11336 = vld [vmem:[%s11290 + $0xb4] sm:$0xf]
    %v11337 = vld [vmem:[%s11290 + $0xb8] sm:$0xf]
    %v11338 = vld [vmem:[%s11290 + $0xbc] sm:$0xf]
    %v11339 = vld [vmem:[%s11290 + $0xc0] sm:$0xf]
    %v11340 = vld [vmem:[%s11290 + $0xc4] sm:$0xf]
    %v11341 = vld [vmem:[%s11290 + $0xc8] sm:$0xf]
    %v11342 = vld [vmem:[%s11290 + $0xcc] sm:$0xf]
    %v11343 = vld [vmem:[%s11290 + $0xd0] sm:$0xf]
    %v11344 = vld [vmem:[%s11290 + $0xd4] sm:$0xf]
    %v11345 = vld [vmem:[%s11290 + $0xd8] sm:$0xf]
    %v11346 = vld [vmem:[%s11290 + $0xdc] sm:$0xf]
    %v11347 = vld [vmem:[%s11290 + $0xe0] sm:$0xf]
    %v11348 = vld [vmem:[%s11290 + $0xe4] sm:$0xf]
    %v11349 = vld [vmem:[%s11290 + $0xe8] sm:$0xf]
    %v11350 = vld [vmem:[%s11290 + $0xec] sm:$0xf]
    %v11351 = vld [vmem:[%s11290 + $0xf0] sm:$0xf]
    %v11352 = vld [vmem:[%s11290 + $0xf4] sm:$0xf]
    %v11353 = vld [vmem:[%s11290 + $0xf8] sm:$0xf]
    %v11354 = vld [vmem:[%s11290 + $0xfc] sm:$0xf]
    %v11419 = vunpack.c.l.b16 %v11291
    %v11420 = vunpack.c.l.b16 %v11292
    %v11421 = vunpack.c.l.b16 %v11293
    %v11422 = vunpack.c.l.b16 %v11294
    %v11423 = vunpack.c.l.b16 %v11295
    %v11424 = vunpack.c.l.b16 %v11296
    %v11425 = vunpack.c.l.b16 %v11297
    %v11426 = vunpack.c.l.b16 %v11298
    %v11427 = vunpack.c.l.b16 %v11299
    %v11428 = vunpack.c.l.b16 %v11300
    %v11429 = vunpack.c.l.b16 %v11301
    %v11430 = vunpack.c.l.b16 %v11302
    %v11431 = vunpack.c.l.b16 %v11303
    %v11432 = vunpack.c.l.b16 %v11304
    %v11433 = vunpack.c.l.b16 %v11305
    %v11434 = vunpack.c.l.b16 %v11306
    %v11435 = vunpack.c.l.b16 %v11307
    %v11436 = vunpack.c.l.b16 %v11308
    %v11437 = vunpack.c.l.b16 %v11309
    %v11438 = vunpack.c.l.b16 %v11310
    %v11439 = vunpack.c.l.b16 %v11311
    %v11440 = vunpack.c.l.b16 %v11312
    %v11441 = vunpack.c.l.b16 %v11313
    %v11442 = vunpack.c.l.b16 %v11314
    %v11443 = vunpack.c.l.b16 %v11315
    %v11444 = vunpack.c.l.b16 %v11316
    %v11445 = vunpack.c.l.b16 %v11317
    %v11446 = vunpack.c.l.b16 %v11318
    %v11447 = vunpack.c.l.b16 %v11319
    %v11448 = vunpack.c.l.b16 %v11320
    %v11449 = vunpack.c.l.b16 %v11321
    %v11450 = vunpack.c.l.b16 %v11322
    %v11451 = vunpack.c.l.b16 %v11323
    %v11452 = vunpack.c.l.b16 %v11324
    %v11453 = vunpack.c.l.b16 %v11325
    %v11454 = vunpack.c.l.b16 %v11326
    %v11455 = vunpack.c.l.b16 %v11327
    %v11456 = vunpack.c.l.b16 %v11328
    %v11457 = vunpack.c.l.b16 %v11329
    %v11458 = vunpack.c.l.b16 %v11330
    %v11459 = vunpack.c.l.b16 %v11331
    %v11460 = vunpack.c.l.b16 %v11332
    %v11461 = vunpack.c.l.b16 %v11333
    %v11462 = vunpack.c.l.b16 %v11334
    %v11463 = vunpack.c.l.b16 %v11335
    %v11464 = vunpack.c.l.b16 %v11336
    %v11465 = vunpack.c.l.b16 %v11337
    %v11466 = vunpack.c.l.b16 %v11338
    %v11467 = vunpack.c.l.b16 %v11339
    %v11468 = vunpack.c.l.b16 %v11340
    %v11469 = vunpack.c.l.b16 %v11341
    %v11470 = vunpack.c.l.b16 %v11342
    %v11471 = vunpack.c.l.b16 %v11343
    %v11472 = vunpack.c.l.b16 %v11344
    %v11473 = vunpack.c.l.b16 %v11345
    %v11474 = vunpack.c.l.b16 %v11346
    %v11475 = vunpack.c.l.b16 %v11347
    %v11476 = vunpack.c.l.b16 %v11348
    %v11477 = vunpack.c.l.b16 %v11349
    %v11478 = vunpack.c.l.b16 %v11350
    %v11479 = vunpack.c.l.b16 %v11351
    %v11480 = vunpack.c.l.b16 %v11352
    %v11481 = vunpack.c.l.b16 %v11353
    %v11482 = vunpack.c.l.b16 %v11354
    %v11483 = vpack.c.b16 %v11420, %v11419
    %v11484 = vpack.c.b16 %v11422, %v11421
    %v11485 = vpack.c.b16 %v11424, %v11423
    %v11486 = vpack.c.b16 %v11426, %v11425
    %v11487 = vpack.c.b16 %v11428, %v11427
    %v11488 = vpack.c.b16 %v11430, %v11429
    %v11489 = vpack.c.b16 %v11432, %v11431
    %v11490 = vpack.c.b16 %v11434, %v11433
    %v11491 = vpack.c.b16 %v11436, %v11435
    %v11492 = vpack.c.b16 %v11438, %v11437
    %v11493 = vpack.c.b16 %v11440, %v11439
    %v11494 = vpack.c.b16 %v11442, %v11441
    %v11495 = vpack.c.b16 %v11444, %v11443
    %v11496 = vpack.c.b16 %v11446, %v11445
    %v11497 = vpack.c.b16 %v11448, %v11447
    %v11498 = vpack.c.b16 %v11450, %v11449
    %v11499 = vpack.c.b16 %v11452, %v11451
    %v11500 = vpack.c.b16 %v11454, %v11453
    %v11501 = vpack.c.b16 %v11456, %v11455
    %v11502 = vpack.c.b16 %v11458, %v11457
    %v11503 = vpack.c.b16 %v11460, %v11459
    %v11504 = vpack.c.b16 %v11462, %v11461
    %v11505 = vpack.c.b16 %v11464, %v11463
    %v11506 = vpack.c.b16 %v11466, %v11465
    %v11507 = vpack.c.b16 %v11468, %v11467
    %v11508 = vpack.c.b16 %v11470, %v11469
    %v11509 = vpack.c.b16 %v11472, %v11471
    %v11510 = vpack.c.b16 %v11474, %v11473
    %v11511 = vpack.c.b16 %v11476, %v11475
    %v11512 = vpack.c.b16 %v11478, %v11477
    %v11513 = vpack.c.b16 %v11480, %v11479
    %v11514 = vpack.c.b16 %v11482, %v11481
    %11547 = vmatprep.subr.bf16.mxu0 0
    %11548 = vmatpush1.bf16.msra.mxu0 %v11483
    %11549 = vmatprep.subr.bf16.mxu0 0
    %11550 = vmatpush1.bf16.msra.mxu0 %v11484
    %11551 = vmatprep.subr.bf16.mxu0 0
    %11552 = vmatpush1.bf16.msra.mxu0 %v11485
    %11553 = vmatprep.subr.bf16.mxu0 0
    %11554 = vmatpush1.bf16.msra.mxu0 %v11486
    %11555 = vmatprep.subr.bf16.mxu0 0
    %11556 = vmatpush1.bf16.msra.mxu0 %v11487
    %11557 = vmatprep.subr.bf16.mxu0 0
    %11558 = vmatpush1.bf16.msra.mxu0 %v11488
    %11559 = vmatprep.subr.bf16.mxu0 0
    %11560 = vmatpush1.bf16.msra.mxu0 %v11489
    %11561 = vmatprep.subr.bf16.mxu0 0
    %11562 = vmatpush1.bf16.msra.mxu0 %v11490
    %11563 = vmatprep.subr.bf16.mxu0 0
    %11564 = vmatpush1.bf16.msra.mxu0 %v11491
    %11565 = vmatprep.subr.bf16.mxu0 0
    %11566 = vmatpush1.bf16.msra.mxu0 %v11492
    %11567 = vmatprep.subr.bf16.mxu0 0
    %11568 = vmatpush1.bf16.msra.mxu0 %v11493
    %11569 = vmatprep.subr.bf16.mxu0 0
    %11570 = vmatpush1.bf16.msra.mxu0 %v11494
    %11571 = vmatprep.subr.bf16.mxu0 0
    %11572 = vmatpush1.bf16.msra.mxu0 %v11495
    %11573 = vmatprep.subr.bf16.mxu0 0
    %11574 = vmatpush1.bf16.msra.mxu0 %v11496
    %11575 = vmatprep.subr.bf16.mxu0 0
    %11576 = vmatpush1.bf16.msra.mxu0 %v11497
    %11577 = vmatprep.subr.bf16.mxu0 0
    %11578 = vmatpush1.bf16.msra.mxu0 %v11498
    %11579 = vmatprep.mubr.bf16.mxu0 %v11287
    %11580 = vmatmul.mubr.bf16.gmra.mrb[0].mxu0 %v11286
    %v11581 = vpop.f32.mrb[0].mxu0
    %v11582 = vadd.f32 0.0, %v11581
    %v11583 = vpop.f32.mrb[0].mxu0
    %v11584 = vpop.f32.mrb[0].mxu0
    %v11585 = vpop.f32.mrb[0].mxu0
    %11586 = vdwg.mxu0
    %11587 = vmatprep.subr.bf16.mxu0 0
    %11588 = vmatpush1.bf16.msra.mxu0 %v11499
    %11589 = vmatprep.subr.bf16.mxu0 0
    %11590 = vmatpush1.bf16.msra.mxu0 %v11500
    %11591 = vmatprep.subr.bf16.mxu0 0
    %11592 = vmatpush1.bf16.msra.mxu0 %v11501
    %11593 = vmatprep.subr.bf16.mxu0 0
    %11594 = vmatpush1.bf16.msra.mxu0 %v11502
    %11595 = vmatprep.subr.bf16.mxu0 0
    %11596 = vmatpush1.bf16.msra.mxu0 %v11503
    %11597 = vmatprep.subr.bf16.mxu0 0
    %11598 = vmatpush1.bf16.msra.mxu0 %v11504
    %11599 = vmatprep.subr.bf16.mxu0 0
    %11600 = vmatpush1.bf16.msra.mxu0 %v11505
    %11601 = vmatprep.subr.bf16.mxu0 0
    %11602 = vmatpush1.bf16.msra.mxu0 %v11506
    %11603 = vmatprep.subr.bf16.mxu0 0
    %11604 = vmatpush1.bf16.msra.mxu0 %v11507
    %11605 = vmatprep.subr.bf16.mxu0 0
    %11606 = vmatpush1.bf16.msra.mxu0 %v11508
    %11607 = vmatprep.subr.bf16.mxu0 0
    %11608 = vmatpush1.bf16.msra.mxu0 %v11509
    %11609 = vmatprep.subr.bf16.mxu0 0
    %11610 = vmatpush1.bf16.msra.mxu0 %v11510
    %11611 = vmatprep.subr.bf16.mxu0 0
    %11612 = vmatpush1.bf16.msra.mxu0 %v11511
    %11613 = vmatprep.subr.bf16.mxu0 0
    %11614 = vmatpush1.bf16.msra.mxu0 %v11512
    %11615 = vmatprep.subr.bf16.mxu0 0
    %11616 = vmatpush1.bf16.msra.mxu0 %v11513
    %11617 = vmatprep.subr.bf16.mxu0 0
    %11618 = vmatpush1.bf16.msra.mxu0 %v11514
    %11619 = vmatprep.mubr.bf16.mxu0 %v11289
    %11620 = vmatmul.mubr.bf16.gmra.mrb[0].mxu0 %v11288
    %v11621 = vpop.f32.mrb[0].mxu0
    %v11622 = vadd.f32 %v11582, %v11621
    %v11623 = vpop.f32.mrb[0].mxu0
    %v11624 = vpop.f32.mrb[0].mxu0
    %v11625 = vpop.f32.mrb[0].mxu0
    %11626 = vdwg.mxu0
    %v11627 = vadd.f32 %v11281, %v11622
    %v11628 = vpack.c.bf16 %v10585, %v10585
    %v11629 = vpack.c.bf16 %v10586, %v10586
    %v11630 = vpack.c.bf16 %v10587, %v10587
    %v11631 = vpack.c.bf16 %v10588, %v10588
    %s11632 = scalar_lea.vmem [#allocation5], 768
    %v11633 = vld [vmem:[%s11632] sm:$0xf]
    %v11634 = vld [vmem:[%s11632 + $0x4] sm:$0xf]
    %v11635 = vld [vmem:[%s11632 + $0x8] sm:$0xf]
    %v11636 = vld [vmem:[%s11632 + $0xc] sm:$0xf]
    %v11637 = vld [vmem:[%s11632 + $0x10] sm:$0xf]
    %v11638 = vld [vmem:[%s11632 + $0x14] sm:$0xf]
    %v11639 = vld [vmem:[%s11632 + $0x18] sm:$0xf]
    %v11640 = vld [vmem:[%s11632 + $0x1c] sm:$0xf]
    %v11641 = vld [vmem:[%s11632 + $0x20] sm:$0xf]
    %v11642 = vld [vmem:[%s11632 + $0x24] sm:$0xf]
    %v11643 = vld [vmem:[%s11632 + $0x28] sm:$0xf]
    %v11644 = vld [vmem:[%s11632 + $0x2c] sm:$0xf]
    %v11645 = vld [vmem:[%s11632 + $0x30] sm:$0xf]
    %v11646 = vld [vmem:[%s11632 + $0x34] sm:$0xf]
    %v11647 = vld [vmem:[%s11632 + $0x38] sm:$0xf]
    %v11648 = vld [vmem:[%s11632 + $0x3c] sm:$0xf]
    %v11649 = vld [vmem:[%s11632 + $0x40] sm:$0xf]
    %v11650 = vld [vmem:[%s11632 + $0x44] sm:$0xf]
    %v11651 = vld [vmem:[%s11632 + $0x48] sm:$0xf]
    %v11652 = vld [vmem:[%s11632 + $0x4c] sm:$0xf]
    %v11653 = vld [vmem:[%s11632 + $0x50] sm:$0xf]
    %v11654 = vld [vmem:[%s11632 + $0x54] sm:$0xf]
    %v11655 = vld [vmem:[%s11632 + $0x58] sm:$0xf]
    %v11656 = vld [vmem:[%s11632 + $0x5c] sm:$0xf]
    %v11657 = vld [vmem:[%s11632 + $0x60] sm:$0xf]
    %v11658 = vld [vmem:[%s11632 + $0x64] sm:$0xf]
    %v11659 = vld [vmem:[%s11632 + $0x68] sm:$0xf]
    %v11660 = vld [vmem:[%s11632 + $0x6c] sm:$0xf]
    %v11661 = vld [vmem:[%s11632 + $0x70] sm:$0xf]
    %v11662 = vld [vmem:[%s11632 + $0x74] sm:$0xf]
    %v11663 = vld [vmem:[%s11632 + $0x78] sm:$0xf]
    %v11664 = vld [vmem:[%s11632 + $0x7c] sm:$0xf]
    %v11665 = vld [vmem:[%s11632 + $0x80] sm:$0xf]
    %v11666 = vld [vmem:[%s11632 + $0x84] sm:$0xf]
    %v11667 = vld [vmem:[%s11632 + $0x88] sm:$0xf]
    %v11668 = vld [vmem:[%s11632 + $0x8c] sm:$0xf]
    %v11669 = vld [vmem:[%s11632 + $0x90] sm:$0xf]
    %v11670 = vld [vmem:[%s11632 + $0x94] sm:$0xf]
    %v11671 = vld [vmem:[%s11632 + $0x98] sm:$0xf]
    %v11672 = vld [vmem:[%s11632 + $0x9c] sm:$0xf]
    %v11673 = vld [vmem:[%s11632 + $0xa0] sm:$0xf]
    %v11674 = vld [vmem:[%s11632 + $0xa4] sm:$0xf]
    %v11675 = vld [vmem:[%s11632 + $0xa8] sm:$0xf]
    %v11676 = vld [vmem:[%s11632 + $0xac] sm:$0xf]
    %v11677 = vld [vmem:[%s11632 + $0xb0] sm:$0xf]
    %v11678 = vld [vmem:[%s11632 + $0xb4] sm:$0xf]
    %v11679 = vld [vmem:[%s11632 + $0xb8] sm:$0xf]
    %v11680 = vld [vmem:[%s11632 + $0xbc] sm:$0xf]
    %v11681 = vld [vmem:[%s11632 + $0xc0] sm:$0xf]
    %v11682 = vld [vmem:[%s11632 + $0xc4] sm:$0xf]
    %v11683 = vld [vmem:[%s11632 + $0xc8] sm:$0xf]
    %v11684 = vld [vmem:[%s11632 + $0xcc] sm:$0xf]
    %v11685 = vld [vmem:[%s11632 + $0xd0] sm:$0xf]
    %v11686 = vld [vmem:[%s11632 + $0xd4] sm:$0xf]
    %v11687 = vld [vmem:[%s11632 + $0xd8] sm:$0xf]
    %v11688 = vld [vmem:[%s11632 + $0xdc] sm:$0xf]
    %v11689 = vld [vmem:[%s11632 + $0xe0] sm:$0xf]
    %v11690 = vld [vmem:[%s11632 + $0xe4] sm:$0xf]
    %v11691 = vld [vmem:[%s11632 + $0xe8] sm:$0xf]
    %v11692 = vld [vmem:[%s11632 + $0xec] sm:$0xf]
    %v11693 = vld [vmem:[%s11632 + $0xf0] sm:$0xf]
    %v11694 = vld [vmem:[%s11632 + $0xf4] sm:$0xf]
    %v11695 = vld [vmem:[%s11632 + $0xf8] sm:$0xf]
    %v11696 = vld [vmem:[%s11632 + $0xfc] sm:$0xf]
    %v11761 = vunpack.c.l.b16 %v11633
    %v11762 = vunpack.c.l.b16 %v11634
    %v11763 = vunpack.c.l.b16 %v11635
    %v11764 = vunpack.c.l.b16 %v11636
    %v11765 = vunpack.c.l.b16 %v11637
    %v11766 = vunpack.c.l.b16 %v11638
    %v11767 = vunpack.c.l.b16 %v11639
    %v11768 = vunpack.c.l.b16 %v11640
    %v11769 = vunpack.c.l.b16 %v11641
    %v11770 = vunpack.c.l.b16 %v11642
    %v11771 = vunpack.c.l.b16 %v11643
    %v11772 = vunpack.c.l.b16 %v11644
    %v11773 = vunpack.c.l.b16 %v11645
    %v11774 = vunpack.c.l.b16 %v11646
    %v11775 = vunpack.c.l.b16 %v11647
    %v11776 = vunpack.c.l.b16 %v11648
    %v11777 = vunpack.c.l.b16 %v11649
    %v11778 = vunpack.c.l.b16 %v11650
    %v11779 = vunpack.c.l.b16 %v11651
    %v11780 = vunpack.c.l.b16 %v11652
    %v11781 = vunpack.c.l.b16 %v11653
    %v11782 = vunpack.c.l.b16 %v11654
    %v11783 = vunpack.c.l.b16 %v11655
    %v11784 = vunpack.c.l.b16 %v11656
    %v11785 = vunpack.c.l.b16 %v11657
    %v11786 = vunpack.c.l.b16 %v11658
    %v11787 = vunpack.c.l.b16 %v11659
    %v11788 = vunpack.c.l.b16 %v11660
    %v11789 = vunpack.c.l.b16 %v11661
    %v11790 = vunpack.c.l.b16 %v11662
    %v11791 = vunpack.c.l.b16 %v11663
    %v11792 = vunpack.c.l.b16 %v11664
    %v11793 = vunpack.c.l.b16 %v11665
    %v11794 = vunpack.c.l.b16 %v11666
    %v11795 = vunpack.c.l.b16 %v11667
    %v11796 = vunpack.c.l.b16 %v11668
    %v11797 = vunpack.c.l.b16 %v11669
    %v11798 = vunpack.c.l.b16 %v11670
    %v11799 = vunpack.c.l.b16 %v11671
    %v11800 = vunpack.c.l.b16 %v11672
    %v11801 = vunpack.c.l.b16 %v11673
    %v11802 = vunpack.c.l.b16 %v11674
    %v11803 = vunpack.c.l.b16 %v11675
    %v11804 = vunpack.c.l.b16 %v11676
    %v11805 = vunpack.c.l.b16 %v11677
    %v11806 = vunpack.c.l.b16 %v11678
    %v11807 = vunpack.c.l.b16 %v11679
    %v11808 = vunpack.c.l.b16 %v11680
    %v11809 = vunpack.c.l.b16 %v11681
    %v11810 = vunpack.c.l.b16 %v11682
    %v11811 = vunpack.c.l.b16 %v11683
    %v11812 = vunpack.c.l.b16 %v11684
    %v11813 = vunpack.c.l.b16 %v11685
    %v11814 = vunpack.c.l.b16 %v11686
    %v11815 = vunpack.c.l.b16 %v11687
    %v11816 = vunpack.c.l.b16 %v11688
    %v11817 = vunpack.c.l.b16 %v11689
    %v11818 = vunpack.c.l.b16 %v11690
    %v11819 = vunpack.c.l.b16 %v11691
    %v11820 = vunpack.c.l.b16 %v11692
    %v11821 = vunpack.c.l.b16 %v11693
    %v11822 = vunpack.c.l.b16 %v11694
    %v11823 = vunpack.c.l.b16 %v11695
    %v11824 = vunpack.c.l.b16 %v11696
    %v11825 = vpack.c.b16 %v11762, %v11761
    %v11826 = vpack.c.b16 %v11764, %v11763
    %v11827 = vpack.c.b16 %v11766, %v11765
    %v11828 = vpack.c.b16 %v11768, %v11767
    %v11829 = vpack.c.b16 %v11770, %v11769
    %v11830 = vpack.c.b16 %v11772, %v11771
    %v11831 = vpack.c.b16 %v11774, %v11773
    %v11832 = vpack.c.b16 %v11776, %v11775
    %v11833 = vpack.c.b16 %v11778, %v11777
    %v11834 = vpack.c.b16 %v11780, %v11779
    %v11835 = vpack.c.b16 %v11782, %v11781
    %v11836 = vpack.c.b16 %v11784, %v11783
    %v11837 = vpack.c.b16 %v11786, %v11785
    %v11838 = vpack.c.b16 %v11788, %v11787
    %v11839 = vpack.c.b16 %v11790, %v11789
    %v11840 = vpack.c.b16 %v11792, %v11791
    %v11841 = vpack.c.b16 %v11794, %v11793
    %v11842 = vpack.c.b16 %v11796, %v11795
    %v11843 = vpack.c.b16 %v11798, %v11797
    %v11844 = vpack.c.b16 %v11800, %v11799
    %v11845 = vpack.c.b16 %v11802, %v11801
    %v11846 = vpack.c.b16 %v11804, %v11803
    %v11847 = vpack.c.b16 %v11806, %v11805
    %v11848 = vpack.c.b16 %v11808, %v11807
    %v11849 = vpack.c.b16 %v11810, %v11809
    %v11850 = vpack.c.b16 %v11812, %v11811
    %v11851 = vpack.c.b16 %v11814, %v11813
    %v11852 = vpack.c.b16 %v11816, %v11815
    %v11853 = vpack.c.b16 %v11818, %v11817
    %v11854 = vpack.c.b16 %v11820, %v11819
    %v11855 = vpack.c.b16 %v11822, %v11821
    %v11856 = vpack.c.b16 %v11824, %v11823
    %11889 = vmatprep.subr.bf16.mxu0 0
    %11890 = vmatpush1.bf16.msra.mxu0 %v11825
    %11891 = vmatprep.subr.bf16.mxu0 0
    %11892 = vmatpush1.bf16.msra.mxu0 %v11826
    %11893 = vmatprep.subr.bf16.mxu0 0
    %11894 = vmatpush1.bf16.msra.mxu0 %v11827
    %11895 = vmatprep.subr.bf16.mxu0 0
    %11896 = vmatpush1.bf16.msra.mxu0 %v11828
    %11897 = vmatprep.subr.bf16.mxu0 0
    %11898 = vmatpush1.bf16.msra.mxu0 %v11829
    %11899 = vmatprep.subr.bf16.mxu0 0
    %11900 = vmatpush1.bf16.msra.mxu0 %v11830
    %11901 = vmatprep.subr.bf16.mxu0 0
    %11902 = vmatpush1.bf16.msra.mxu0 %v11831
    %11903 = vmatprep.subr.bf16.mxu0 0
    %11904 = vmatpush1.bf16.msra.mxu0 %v11832
    %11905 = vmatprep.subr.bf16.mxu0 0
    %11906 = vmatpush1.bf16.msra.mxu0 %v11833
    %11907 = vmatprep.subr.bf16.mxu0 0
    %11908 = vmatpush1.bf16.msra.mxu0 %v11834
    %11909 = vmatprep.subr.bf16.mxu0 0
    %11910 = vmatpush1.bf16.msra.mxu0 %v11835
    %11911 = vmatprep.subr.bf16.mxu0 0
    %11912 = vmatpush1.bf16.msra.mxu0 %v11836
    %11913 = vmatprep.subr.bf16.mxu0 0
    %11914 = vmatpush1.bf16.msra.mxu0 %v11837
    %11915 = vmatprep.subr.bf16.mxu0 0
    %11916 = vmatpush1.bf16.msra.mxu0 %v11838
    %11917 = vmatprep.subr.bf16.mxu0 0
    %11918 = vmatpush1.bf16.msra.mxu0 %v11839
    %11919 = vmatprep.subr.bf16.mxu0 0
    %11920 = vmatpush1.bf16.msra.mxu0 %v11840
    %11921 = vmatprep.mubr.bf16.mxu0 %v11629
    %11922 = vmatmul.mubr.bf16.gmra.mrb[0].mxu0 %v11628
    %v11923 = vpop.f32.mrb[0].mxu0
    %v11924 = vadd.f32 0.0, %v11923
    %v11925 = vpop.f32.mrb[0].mxu0
    %v11926 = vpop.f32.mrb[0].mxu0
    %v11927 = vpop.f32.mrb[0].mxu0
    %11928 = vdwg.mxu0
    %11929 = vmatprep.subr.bf16.mxu0 0
    %11930 = vmatpush1.bf16.msra.mxu0 %v11841
    %11931 = vmatprep.subr.bf16.mxu0 0
    %11932 = vmatpush1.bf16.msra.mxu0 %v11842
    %11933 = vmatprep.subr.bf16.mxu0 0
    %11934 = vmatpush1.bf16.msra.mxu0 %v11843
    %11935 = vmatprep.subr.bf16.mxu0 0
    %11936 = vmatpush1.bf16.msra.mxu0 %v11844
    %11937 = vmatprep.subr.bf16.mxu0 0
    %11938 = vmatpush1.bf16.msra.mxu0 %v11845
    %11939 = vmatprep.subr.bf16.mxu0 0
    %11940 = vmatpush1.bf16.msra.mxu0 %v11846
    %11941 = vmatprep.subr.bf16.mxu0 0
    %11942 = vmatpush1.bf16.msra.mxu0 %v11847
    %11943 = vmatprep.subr.bf16.mxu0 0
    %11944 = vmatpush1.bf16.msra.mxu0 %v11848
    %11945 = vmatprep.subr.bf16.mxu0 0
    %11946 = vmatpush1.bf16.msra.mxu0 %v11849
    %11947 = vmatprep.subr.bf16.mxu0 0
    %11948 = vmatpush1.bf16.msra.mxu0 %v11850
    %11949 = vmatprep.subr.bf16.mxu0 0
    %11950 = vmatpush1.bf16.msra.mxu0 %v11851
    %11951 = vmatprep.subr.bf16.mxu0 0
    %11952 = vmatpush1.bf16.msra.mxu0 %v11852
    %11953 = vmatprep.subr.bf16.mxu0 0
    %11954 = vmatpush1.bf16.msra.mxu0 %v11853
    %11955 = vmatprep.subr.bf16.mxu0 0
    %11956 = vmatpush1.bf16.msra.mxu0 %v11854
    %11957 = vmatprep.subr.bf16.mxu0 0
    %11958 = vmatpush1.bf16.msra.mxu0 %v11855
    %11959 = vmatprep.subr.bf16.mxu0 0
    %11960 = vmatpush1.bf16.msra.mxu0 %v11856
    %11961 = vmatprep.mubr.bf16.mxu0 %v11631
    %11962 = vmatmul.mubr.bf16.gmra.mrb[0].mxu0 %v11630
    %v11963 = vpop.f32.mrb[0].mxu0
    %v11964 = vadd.f32 %v11924, %v11963
    %v11965 = vpop.f32.mrb[0].mxu0
    %v11966 = vpop.f32.mrb[0].mxu0
    %v11967 = vpop.f32.mrb[0].mxu0
    %11968 = vdwg.mxu0
    %v11969 = vadd.f32 %v11627, %v11964
    %v11970 = vpack.c.bf16 %v10589, %v10589
    %v11971 = vpack.c.bf16 %v10590, %v10590
    %v11972 = vpack.c.bf16 %v10591, %v10591
    %v11973 = vpack.c.bf16 %v10592, %v10592
    %s11974 = scalar_lea.vmem [#allocation5], 1024
    %v11975 = vld [vmem:[%s11974] sm:$0xf]
    %v11976 = vld [vmem:[%s11974 + $0x4] sm:$0xf]
    %v11977 = vld [vmem:[%s11974 + $0x8] sm:$0xf]
    %v11978 = vld [vmem:[%s11974 + $0xc] sm:$0xf]
    %v11979 = vld [vmem:[%s11974 + $0x10] sm:$0xf]
    %v11980 = vld [vmem:[%s11974 + $0x14] sm:$0xf]
    %v11981 = vld [vmem:[%s11974 + $0x18] sm:$0xf]
    %v11982 = vld [vmem:[%s11974 + $0x1c] sm:$0xf]
    %v11983 = vld [vmem:[%s11974 + $0x20] sm:$0xf]
    %v11984 = vld [vmem:[%s11974 + $0x24] sm:$0xf]
    %v11985 = vld [vmem:[%s11974 + $0x28] sm:$0xf]
    %v11986 = vld [vmem:[%s11974 + $0x2c] sm:$0xf]
    %v11987 = vld [vmem:[%s11974 + $0x30] sm:$0xf]
    %v11988 = vld [vmem:[%s11974 + $0x34] sm:$0xf]
    %v11989 = vld [vmem:[%s11974 + $0x38] sm:$0xf]
    %v11990 = vld [vmem:[%s11974 + $0x3c] sm:$0xf]
    %v11991 = vld [vmem:[%s11974 + $0x40] sm:$0xf]
    %v11992 = vld [vmem:[%s11974 + $0x44] sm:$0xf]
    %v11993 = vld [vmem:[%s11974 + $0x48] sm:$0xf]
    %v11994 = vld [vmem:[%s11974 + $0x4c] sm:$0xf]
    %v11995 = vld [vmem:[%s11974 + $0x50] sm:$0xf]
    %v11996 = vld [vmem:[%s11974 + $0x54] sm:$0xf]
    %v11997 = vld [vmem:[%s11974 + $0x58] sm:$0xf]
    %v11998 = vld [vmem:[%s11974 + $0x5c] sm:$0xf]
    %v11999 = vld [vmem:[%s11974 + $0x60] sm:$0xf]
    %v12000 = vld [vmem:[%s11974 + $0x64] sm:$0xf]
    %v12001 = vld [vmem:[%s11974 + $0x68] sm:$0xf]
    %v12002 = vld [vmem:[%s11974 + $0x6c] sm:$0xf]
    %v12003 = vld [vmem:[%s11974 + $0x70] sm:$0xf]
    %v12004 = vld [vmem:[%s11974 + $0x74] sm:$0xf]
    %v12005 = vld [vmem:[%s11974 + $0x78] sm:$0xf]
    %v12006 = vld [vmem:[%s11974 + $0x7c] sm:$0xf]
    %v12007 = vld [vmem:[%s11974 + $0x80] sm:$0xf]
    %v12008 = vld [vmem:[%s11974 + $0x84] sm:$0xf]
    %v12009 = vld [vmem:[%s11974 + $0x88] sm:$0xf]
    %v12010 = vld [vmem:[%s11974 + $0x8c] sm:$0xf]
    %v12011 = vld [vmem:[%s11974 + $0x90] sm:$0xf]
    %v12012 = vld [vmem:[%s11974 + $0x94] sm:$0xf]
    %v12013 = vld [vmem:[%s11974 + $0x98] sm:$0xf]
    %v12014 = vld [vmem:[%s11974 + $0x9c] sm:$0xf]
    %v12015 = vld [vmem:[%s11974 + $0xa0] sm:$0xf]
    %v12016 = vld [vmem:[%s11974 + $0xa4] sm:$0xf]
    %v12017 = vld [vmem:[%s11974 + $0xa8] sm:$0xf]
    %v12018 = vld [vmem:[%s11974 + $0xac] sm:$0xf]
    %v12019 = vld [vmem:[%s11974 + $0xb0] sm:$0xf]
    %v12020 = vld [vmem:[%s11974 + $0xb4] sm:$0xf]
    %v12021 = vld [vmem:[%s11974 + $0xb8] sm:$0xf]
    %v12022 = vld [vmem:[%s11974 + $0xbc] sm:$0xf]
    %v12023 = vld [vmem:[%s11974 + $0xc0] sm:$0xf]
    %v12024 = vld [vmem:[%s11974 + $0xc4] sm:$0xf]
    %v12025 = vld [vmem:[%s11974 + $0xc8] sm:$0xf]
    %v12026 = vld [vmem:[%s11974 + $0xcc] sm:$0xf]
    %v12027 = vld [vmem:[%s11974 + $0xd0] sm:$0xf]
    %v12028 = vld [vmem:[%s11974 + $0xd4] sm:$0xf]
    %v12029 = vld [vmem:[%s11974 + $0xd8] sm:$0xf]
    %v12030 = vld [vmem:[%s11974 + $0xdc] sm:$0xf]
    %v12031 = vld [vmem:[%s11974 + $0xe0] sm:$0xf]
    %v12032 = vld [vmem:[%s11974 + $0xe4] sm:$0xf]
    %v12033 = vld [vmem:[%s11974 + $0xe8] sm:$0xf]
    %v12034 = vld [vmem:[%s11974 + $0xec] sm:$0xf]
    %v12035 = vld [vmem:[%s11974 + $0xf0] sm:$0xf]
    %v12036 = vld [vmem:[%s11974 + $0xf4] sm:$0xf]
    %v12037 = vld [vmem:[%s11974 + $0xf8] sm:$0xf]
    %v12038 = vld [vmem:[%s11974 + $0xfc] sm:$0xf]
    %v12103 = vunpack.c.l.b16 %v11975
    %v12104 = vunpack.c.l.b16 %v11976
    %v12105 = vunpack.c.l.b16 %v11977
    %v12106 = vunpack.c.l.b16 %v11978
    %v12107 = vunpack.c.l.b16 %v11979
    %v12108 = vunpack.c.l.b16 %v11980
    %v12109 = vunpack.c.l.b16 %v11981
    %v12110 = vunpack.c.l.b16 %v11982
    %v12111 = vunpack.c.l.b16 %v11983
    %v12112 = vunpack.c.l.b16 %v11984
    %v12113 = vunpack.c.l.b16 %v11985
    %v12114 = vunpack.c.l.b16 %v11986
    %v12115 = vunpack.c.l.b16 %v11987
    %v12116 = vunpack.c.l.b16 %v11988
    %v12117 = vunpack.c.l.b16 %v11989
    %v12118 = vunpack.c.l.b16 %v11990
    %v12119 = vunpack.c.l.b16 %v11991
    %v12120 = vunpack.c.l.b16 %v11992
    %v12121 = vunpack.c.l.b16 %v11993
    %v12122 = vunpack.c.l.b16 %v11994
    %v12123 = vunpack.c.l.b16 %v11995
    %v12124 = vunpack.c.l.b16 %v11996
    %v12125 = vunpack.c.l.b16 %v11997
    %v12126 = vunpack.c.l.b16 %v11998
    %v12127 = vunpack.c.l.b16 %v11999
    %v12128 = vunpack.c.l.b16 %v12000
    %v12129 = vunpack.c.l.b16 %v12001
    %v12130 = vunpack.c.l.b16 %v12002
    %v12131 = vunpack.c.l.b16 %v12003
    %v12132 = vunpack.c.l.b16 %v12004
    %v12133 = vunpack.c.l.b16 %v12005
    %v12134 = vunpack.c.l.b16 %v12006
    %v12135 = vunpack.c.l.b16 %v12007
    %v12136 = vunpack.c.l.b16 %v12008
    %v12137 = vunpack.c.l.b16 %v12009
    %v12138 = vunpack.c.l.b16 %v12010
    %v12139 = vunpack.c.l.b16 %v12011
    %v12140 = vunpack.c.l.b16 %v12012
    %v12141 = vunpack.c.l.b16 %v12013
    %v12142 = vunpack.c.l.b16 %v12014
    %v12143 = vunpack.c.l.b16 %v12015
    %v12144 = vunpack.c.l.b16 %v12016
    %v12145 = vunpack.c.l.b16 %v12017
    %v12146 = vunpack.c.l.b16 %v12018
    %v12147 = vunpack.c.l.b16 %v12019
    %v12148 = vunpack.c.l.b16 %v12020
    %v12149 = vunpack.c.l.b16 %v12021
    %v12150 = vunpack.c.l.b16 %v12022
    %v12151 = vunpack.c.l.b16 %v12023
    %v12152 = vunpack.c.l.b16 %v12024
    %v12153 = vunpack.c.l.b16 %v12025
    %v12154 = vunpack.c.l.b16 %v12026
    %v12155 = vunpack.c.l.b16 %v12027
    %v12156 = vunpack.c.l.b16 %v12028
    %v12157 = vunpack.c.l.b16 %v12029
    %v12158 = vunpack.c.l.b16 %v12030
    %v12159 = vunpack.c.l.b16 %v12031
    %v12160 = vunpack.c.l.b16 %v12032
    %v12161 = vunpack.c.l.b16 %v12033
    %v12162 = vunpack.c.l.b16 %v12034
    %v12163 = vunpack.c.l.b16 %v12035
    %v12164 = vunpack.c.l.b16 %v12036
    %v12165 = vunpack.c.l.b16 %v12037
    %v12166 = vunpack.c.l.b16 %v12038
    %v12167 = vpack.c.b16 %v12104, %v12103
    %v12168 = vpack.c.b16 %v12106, %v12105
    %v12169 = vpack.c.b16 %v12108, %v12107
    %v12170 = vpack.c.b16 %v12110, %v12109
    %v12171 = vpack.c.b16 %v12112, %v12111
    %v12172 = vpack.c.b16 %v12114, %v12113
    %v12173 = vpack.c.b16 %v12116, %v12115
    %v12174 = vpack.c.b16 %v12118, %v12117
    %v12175 = vpack.c.b16 %v12120, %v12119
    %v12176 = vpack.c.b16 %v12122, %v12121
    %v12177 = vpack.c.b16 %v12124, %v12123
    %v12178 = vpack.c.b16 %v12126, %v12125
    %v12179 = vpack.c.b16 %v12128, %v12127
    %v12180 = vpack.c.b16 %v12130, %v12129
    %v12181 = vpack.c.b16 %v12132, %v12131
    %v12182 = vpack.c.b16 %v12134, %v12133
    %v12183 = vpack.c.b16 %v12136, %v12135
    %v12184 = vpack.c.b16 %v12138, %v12137
    %v12185 = vpack.c.b16 %v12140, %v12139
    %v12186 = vpack.c.b16 %v12142, %v12141
    %v12187 = vpack.c.b16 %v12144, %v12143
    %v12188 = vpack.c.b16 %v12146, %v12145
    %v12189 = vpack.c.b16 %v12148, %v12147
    %v12190 = vpack.c.b16 %v12150, %v12149
    %v12191 = vpack.c.b16 %v12152, %v12151
    %v12192 = vpack.c.b16 %v12154, %v12153
    %v12193 = vpack.c.b16 %v12156, %v12155
    %v12194 = vpack.c.b16 %v12158, %v12157
    %v12195 = vpack.c.b16 %v12160, %v12159
    %v12196 = vpack.c.b16 %v12162, %v12161
    %v12197 = vpack.c.b16 %v12164, %v12163
    %v12198 = vpack.c.b16 %v12166, %v12165
    %12231 = vmatprep.subr.bf16.mxu0 0
    %12232 = vmatpush1.bf16.msra.mxu0 %v12167
    %12233 = vmatprep.subr.bf16.mxu0 0
    %12234 = vmatpush1.bf16.msra.mxu0 %v12168
    %12235 = vmatprep.subr.bf16.mxu0 0
    %12236 = vmatpush1.bf16.msra.mxu0 %v12169
    %12237 = vmatprep.subr.bf16.mxu0 0
    %12238 = vmatpush1.bf16.msra.mxu0 %v12170
    %12239 = vmatprep.subr.bf16.mxu0 0
    %12240 = vmatpush1.bf16.msra.mxu0 %v12171
    %12241 = vmatprep.subr.bf16.mxu0 0
    %12242 = vmatpush1.bf16.msra.mxu0 %v12172
    %12243 = vmatprep.subr.bf16.mxu0 0
    %12244 = vmatpush1.bf16.msra.mxu0 %v12173
    %12245 = vmatprep.subr.bf16.mxu0 0
    %12246 = vmatpush1.bf16.msra.mxu0 %v12174
    %12247 = vmatprep.subr.bf16.mxu0 0
    %12248 = vmatpush1.bf16.msra.mxu0 %v12175
    %12249 = vmatprep.subr.bf16.mxu0 0
    %12250 = vmatpush1.bf16.msra.mxu0 %v12176
    %12251 = vmatprep.subr.bf16.mxu0 0
    %12252 = vmatpush1.bf16.msra.mxu0 %v12177
    %12253 = vmatprep.subr.bf16.mxu0 0
    %12254 = vmatpush1.bf16.msra.mxu0 %v12178
    %12255 = vmatprep.subr.bf16.mxu0 0
    %12256 = vmatpush1.bf16.msra.mxu0 %v12179
    %12257 = vmatprep.subr.bf16.mxu0 0
    %12258 = vmatpush1.bf16.msra.mxu0 %v12180
    %12259 = vmatprep.subr.bf16.mxu0 0
    %12260 = vmatpush1.bf16.msra.mxu0 %v12181
    %12261 = vmatprep.subr.bf16.mxu0 0
    %12262 = vmatpush1.bf16.msra.mxu0 %v12182
    %12263 = vmatprep.mubr.bf16.mxu0 %v11971
    %12264 = vmatmul.mubr.bf16.gmra.mrb[0].mxu0 %v11970
    %v12265 = vpop.f32.mrb[0].mxu0
    %v12266 = vadd.f32 0.0, %v12265
    %v12267 = vpop.f32.mrb[0].mxu0
    %v12268 = vpop.f32.mrb[0].mxu0
    %v12269 = vpop.f32.mrb[0].mxu0
    %12270 = vdwg.mxu0
    %12271 = vmatprep.subr.bf16.mxu0 0
    %12272 = vmatpush1.bf16.msra.mxu0 %v12183
    %12273 = vmatprep.subr.bf16.mxu0 0
    %12274 = vmatpush1.bf16.msra.mxu0 %v12184
    %12275 = vmatprep.subr.bf16.mxu0 0
    %12276 = vmatpush1.bf16.msra.mxu0 %v12185
    %12277 = vmatprep.subr.bf16.mxu0 0
    %12278 = vmatpush1.bf16.msra.mxu0 %v12186
    %12279 = vmatprep.subr.bf16.mxu0 0
    %12280 = vmatpush1.bf16.msra.mxu0 %v12187
    %12281 = vmatprep.subr.bf16.mxu0 0
    %12282 = vmatpush1.bf16.msra.mxu0 %v12188
    %12283 = vmatprep.subr.bf16.mxu0 0
    %12284 = vmatpush1.bf16.msra.mxu0 %v12189
    %12285 = vmatprep.subr.bf16.mxu0 0
    %12286 = vmatpush1.bf16.msra.mxu0 %v12190
    %12287 = vmatprep.subr.bf16.mxu0 0
    %12288 = vmatpush1.bf16.msra.mxu0 %v12191
    %12289 = vmatprep.subr.bf16.mxu0 0
    %12290 = vmatpush1.bf16.msra.mxu0 %v12192
    %12291 = vmatprep.subr.bf16.mxu0 0
    %12292 = vmatpush1.bf16.msra.mxu0 %v12193
    %12293 = vmatprep.subr.bf16.mxu0 0
    %12294 = vmatpush1.bf16.msra.mxu0 %v12194
    %12295 = vmatprep.subr.bf16.mxu0 0
    %12296 = vmatpush1.bf16.msra.mxu0 %v12195
    %12297 = vmatprep.subr.bf16.mxu0 0
    %12298 = vmatpush1.bf16.msra.mxu0 %v12196
    %12299 = vmatprep.subr.bf16.mxu0 0
    %12300 = vmatpush1.bf16.msra.mxu0 %v12197
    %12301 = vmatprep.subr.bf16.mxu0 0
    %12302 = vmatpush1.bf16.msra.mxu0 %v12198
    %12303 = vmatprep.mubr.bf16.mxu0 %v11973
    %12304 = vmatmul.mubr.bf16.gmra.mrb[0].mxu0 %v11972
    %v12305 = vpop.f32.mrb[0].mxu0
    %v12306 = vadd.f32 %v12266, %v12305
    %v12307 = vpop.f32.mrb[0].mxu0
    %v12308 = vpop.f32.mrb[0].mxu0
    %v12309 = vpop.f32.mrb[0].mxu0
    %12310 = vdwg.mxu0
    %v12311 = vadd.f32 %v11969, %v12306
    %v12312 = vpack.c.bf16 %v10593, %v10593
    %v12313 = vpack.c.bf16 %v10594, %v10594
    %v12314 = vpack.c.bf16 %v10595, %v10595
    %v12315 = vpack.c.bf16 %v10596, %v10596
    %s12316 = scalar_lea.vmem [#allocation5], 1280
    %v12317 = vld [vmem:[%s12316] sm:$0xf]
    %v12318 = vld [vmem:[%s12316 + $0x4] sm:$0xf]
    %v12319 = vld [vmem:[%s12316 + $0x8] sm:$0xf]
    %v12320 = vld [vmem:[%s12316 + $0xc] sm:$0xf]
    %v12321 = vld [vmem:[%s12316 + $0x10] sm:$0xf]
    %v12322 = vld [vmem:[%s12316 + $0x14] sm:$0xf]
    %v12323 = vld [vmem:[%s12316 + $0x18] sm:$0xf]
    %v12324 = vld [vmem:[%s12316 + $0x1c] sm:$0xf]
    %v12325 = vld [vmem:[%s12316 + $0x20] sm:$0xf]
    %v12326 = vld [vmem:[%s12316 + $0x24] sm:$0xf]
    %v12327 = vld [vmem:[%s12316 + $0x28] sm:$0xf]
    %v12328 = vld [vmem:[%s12316 + $0x2c] sm:$0xf]
    %v12329 = vld [vmem:[%s12316 + $0x30] sm:$0xf]
    %v12330 = vld [vmem:[%s12316 + $0x34] sm:$0xf]
    %v12331 = vld [vmem:[%s12316 + $0x38] sm:$0xf]
    %v12332 = vld [vmem:[%s12316 + $0x3c] sm:$0xf]
    %v12333 = vld [vmem:[%s12316 + $0x40] sm:$0xf]
    %v12334 = vld [vmem:[%s12316 + $0x44] sm:$0xf]
    %v12335 = vld [vmem:[%s12316 + $0x48] sm:$0xf]
    %v12336 = vld [vmem:[%s12316 + $0x4c] sm:$0xf]
    %v12337 = vld [vmem:[%s12316 + $0x50] sm:$0xf]
    %v12338 = vld [vmem:[%s12316 + $0x54] sm:$0xf]
    %v12339 = vld [vmem:[%s12316 + $0x58] sm:$0xf]
    %v12340 = vld [vmem:[%s12316 + $0x5c] sm:$0xf]
    %v12341 = vld [vmem:[%s12316 + $0x60] sm:$0xf]
    %v12342 = vld [vmem:[%s12316 + $0x64] sm:$0xf]
    %v12343 = vld [vmem:[%s12316 + $0x68] sm:$0xf]
    %v12344 = vld [vmem:[%s12316 + $0x6c] sm:$0xf]
    %v12345 = vld [vmem:[%s12316 + $0x70] sm:$0xf]
    %v12346 = vld [vmem:[%s12316 + $0x74] sm:$0xf]
    %v12347 = vld [vmem:[%s12316 + $0x78] sm:$0xf]
    %v12348 = vld [vmem:[%s12316 + $0x7c] sm:$0xf]
    %v12349 = vld [vmem:[%s12316 + $0x80] sm:$0xf]
    %v12350 = vld [vmem:[%s12316 + $0x84] sm:$0xf]
    %v12351 = vld [vmem:[%s12316 + $0x88] sm:$0xf]
    %v12352 = vld [vmem:[%s12316 + $0x8c] sm:$0xf]
    %v12353 = vld [vmem:[%s12316 + $0x90] sm:$0xf]
    %v12354 = vld [vmem:[%s12316 + $0x94] sm:$0xf]
    %v12355 = vld [vmem:[%s12316 + $0x98] sm:$0xf]
    %v12356 = vld [vmem:[%s12316 + $0x9c] sm:$0xf]
    %v12357 = vld [vmem:[%s12316 + $0xa0] sm:$0xf]
    %v12358 = vld [vmem:[%s12316 + $0xa4] sm:$0xf]
    %v12359 = vld [vmem:[%s12316 + $0xa8] sm:$0xf]
    %v12360 = vld [vmem:[%s12316 + $0xac] sm:$0xf]
    %v12361 = vld [vmem:[%s12316 + $0xb0] sm:$0xf]
    %v12362 = vld [vmem:[%s12316 + $0xb4] sm:$0xf]
    %v12363 = vld [vmem:[%s12316 + $0xb8] sm:$0xf]
    %v12364 = vld [vmem:[%s12316 + $0xbc] sm:$0xf]
    %v12365 = vld [vmem:[%s12316 + $0xc0] sm:$0xf]
    %v12366 = vld [vmem:[%s12316 + $0xc4] sm:$0xf]
    %v12367 = vld [vmem:[%s12316 + $0xc8] sm:$0xf]
    %v12368 = vld [vmem:[%s12316 + $0xcc] sm:$0xf]
    %v12369 = vld [vmem:[%s12316 + $0xd0] sm:$0xf]
    %v12370 = vld [vmem:[%s12316 + $0xd4] sm:$0xf]
    %v12371 = vld [vmem:[%s12316 + $0xd8] sm:$0xf]
    %v12372 = vld [vmem:[%s12316 + $0xdc] sm:$0xf]
    %v12373 = vld [vmem:[%s12316 + $0xe0] sm:$0xf]
    %v12374 = vld [vmem:[%s12316 + $0xe4] sm:$0xf]
    %v12375 = vld [vmem:[%s12316 + $0xe8] sm:$0xf]
    %v12376 = vld [vmem:[%s12316 + $0xec] sm:$0xf]
    %v12377 = vld [vmem:[%s12316 + $0xf0] sm:$0xf]
    %v12378 = vld [vmem:[%s12316 + $0xf4] sm:$0xf]
    %v12379 = vld [vmem:[%s12316 + $0xf8] sm:$0xf]
    %v12380 = vld [vmem:[%s12316 + $0xfc] sm:$0xf]
    %v12445 = vunpack.c.l.b16 %v12317
    %v12446 = vunpack.c.l.b16 %v12318
    %v12447 = vunpack.c.l.b16 %v12319
    %v12448 = vunpack.c.l.b16 %v12320
    %v12449 = vunpack.c.l.b16 %v12321
    %v12450 = vunpack.c.l.b16 %v12322
    %v12451 = vunpack.c.l.b16 %v12323
    %v12452 = vunpack.c.l.b16 %v12324
    %v12453 = vunpack.c.l.b16 %v12325
    %v12454 = vunpack.c.l.b16 %v12326
    %v12455 = vunpack.c.l.b16 %v12327
    %v12456 = vunpack.c.l.b16 %v12328
    %v12457 = vunpack.c.l.b16 %v12329
    %v12458 = vunpack.c.l.b16 %v12330
    %v12459 = vunpack.c.l.b16 %v12331
    %v12460 = vunpack.c.l.b16 %v12332
    %v12461 = vunpack.c.l.b16 %v12333
    %v12462 = vunpack.c.l.b16 %v12334
    %v12463 = vunpack.c.l.b16 %v12335
    %v12464 = vunpack.c.l.b16 %v12336
    %v12465 = vunpack.c.l.b16 %v12337
    %v12466 = vunpack.c.l.b16 %v12338
    %v12467 = vunpack.c.l.b16 %v12339
    %v12468 = vunpack.c.l.b16 %v12340
    %v12469 = vunpack.c.l.b16 %v12341
    %v12470 = vunpack.c.l.b16 %v12342
    %v12471 = vunpack.c.l.b16 %v12343
    %v12472 = vunpack.c.l.b16 %v12344
    %v12473 = vunpack.c.l.b16 %v12345
    %v12474 = vunpack.c.l.b16 %v12346
    %v12475 = vunpack.c.l.b16 %v12347
    %v12476 = vunpack.c.l.b16 %v12348
    %v12477 = vunpack.c.l.b16 %v12349
    %v12478 = vunpack.c.l.b16 %v12350
    %v12479 = vunpack.c.l.b16 %v12351
    %v12480 = vunpack.c.l.b16 %v12352
    %v12481 = vunpack.c.l.b16 %v12353
    %v12482 = vunpack.c.l.b16 %v12354
    %v12483 = vunpack.c.l.b16 %v12355
    %v12484 = vunpack.c.l.b16 %v12356
    %v12485 = vunpack.c.l.b16 %v12357
    %v12486 = vunpack.c.l.b16 %v12358
    %v12487 = vunpack.c.l.b16 %v12359
    %v12488 = vunpack.c.l.b16 %v12360
    %v12489 = vunpack.c.l.b16 %v12361
    %v12490 = vunpack.c.l.b16 %v12362
    %v12491 = vunpack.c.l.b16 %v12363
    %v12492 = vunpack.c.l.b16 %v12364
    %v12493 = vunpack.c.l.b16 %v12365
    %v12494 = vunpack.c.l.b16 %v12366
    %v12495 = vunpack.c.l.b16 %v12367
    %v12496 = vunpack.c.l.b16 %v12368
    %v12497 = vunpack.c.l.b16 %v12369
    %v12498 = vunpack.c.l.b16 %v12370
    %v12499 = vunpack.c.l.b16 %v12371
    %v12500 = vunpack.c.l.b16 %v12372
    %v12501 = vunpack.c.l.b16 %v12373
    %v12502 = vunpack.c.l.b16 %v12374
    %v12503 = vunpack.c.l.b16 %v12375
    %v12504 = vunpack.c.l.b16 %v12376
    %v12505 = vunpack.c.l.b16 %v12377
    %v12506 = vunpack.c.l.b16 %v12378
    %v12507 = vunpack.c.l.b16 %v12379
    %v12508 = vunpack.c.l.b16 %v12380
    %v12509 = vpack.c.b16 %v12446, %v12445
    %v12510 = vpack.c.b16 %v12448, %v12447
    %v12511 = vpack.c.b16 %v12450, %v12449
    %v12512 = vpack.c.b16 %v12452, %v12451
    %v12513 = vpack.c.b16 %v12454, %v12453
    %v12514 = vpack.c.b16 %v12456, %v12455
    %v12515 = vpack.c.b16 %v12458, %v12457
    %v12516 = vpack.c.b16 %v12460, %v12459
    %v12517 = vpack.c.b16 %v12462, %v12461
    %v12518 = vpack.c.b16 %v12464, %v12463
    %v12519 = vpack.c.b16 %v12466, %v12465
    %v12520 = vpack.c.b16 %v12468, %v12467
    %v12521 = vpack.c.b16 %v12470, %v12469
    %v12522 = vpack.c.b16 %v12472, %v12471
    %v12523 = vpack.c.b16 %v12474, %v12473
    %v12524 = vpack.c.b16 %v12476, %v12475
    %v12525 = vpack.c.b16 %v12478, %v12477
    %v12526 = vpack.c.b16 %v12480, %v12479
    %v12527 = vpack.c.b16 %v12482, %v12481
    %v12528 = vpack.c.b16 %v12484, %v12483
    %v12529 = vpack.c.b16 %v12486, %v12485
    %v12530 = vpack.c.b16 %v12488, %v12487
    %v12531 = vpack.c.b16 %v12490, %v12489
    %v12532 = vpack.c.b16 %v12492, %v12491
    %v12533 = vpack.c.b16 %v12494, %v12493
    %v12534 = vpack.c.b16 %v12496, %v12495
    %v12535 = vpack.c.b16 %v12498, %v12497
    %v12536 = vpack.c.b16 %v12500, %v12499
    %v12537 = vpack.c.b16 %v12502, %v12501
    %v12538 = vpack.c.b16 %v12504, %v12503
    %v12539 = vpack.c.b16 %v12506, %v12505
    %v12540 = vpack.c.b16 %v12508, %v12507
    %12573 = vmatprep.subr.bf16.mxu0 0
    %12574 = vmatpush1.bf16.msra.mxu0 %v12509
    %12575 = vmatprep.subr.bf16.mxu0 0
    %12576 = vmatpush1.bf16.msra.mxu0 %v12510
    %12577 = vmatprep.subr.bf16.mxu0 0
    %12578 = vmatpush1.bf16.msra.mxu0 %v12511
    %12579 = vmatprep.subr.bf16.mxu0 0
    %12580 = vmatpush1.bf16.msra.mxu0 %v12512
    %12581 = vmatprep.subr.bf16.mxu0 0
    %12582 = vmatpush1.bf16.msra.mxu0 %v12513
    %12583 = vmatprep.subr.bf16.mxu0 0
    %12584 = vmatpush1.bf16.msra.mxu0 %v12514
    %12585 = vmatprep.subr.bf16.mxu0 0
    %12586 = vmatpush1.bf16.msra.mxu0 %v12515
    %12587 = vmatprep.subr.bf16.mxu0 0
    %12588 = vmatpush1.bf16.msra.mxu0 %v12516
    %12589 = vmatprep.subr.bf16.mxu0 0
    %12590 = vmatpush1.bf16.msra.mxu0 %v12517
    %12591 = vmatprep.subr.bf16.mxu0 0
    %12592 = vmatpush1.bf16.msra.mxu0 %v12518
    %12593 = vmatprep.subr.bf16.mxu0 0
    %12594 = vmatpush1.bf16.msra.mxu0 %v12519
    %12595 = vmatprep.subr.bf16.mxu0 0
    %12596 = vmatpush1.bf16.msra.mxu0 %v12520
    %12597 = vmatprep.subr.bf16.mxu0 0
    %12598 = vmatpush1.bf16.msra.mxu0 %v12521
    %12599 = vmatprep.subr.bf16.mxu0 0
    %12600 = vmatpush1.bf16.msra.mxu0 %v12522
    %12601 = vmatprep.subr.bf16.mxu0 0
    %12602 = vmatpush1.bf16.msra.mxu0 %v12523
    %12603 = vmatprep.subr.bf16.mxu0 0
    %12604 = vmatpush1.bf16.msra.mxu0 %v12524
    %12605 = vmatprep.mubr.bf16.mxu0 %v12313
    %12606 = vmatmul.mubr.bf16.gmra.mrb[0].mxu0 %v12312
    %v12607 = vpop.f32.mrb[0].mxu0
    %v12608 = vadd.f32 0.0, %v12607
    %v12609 = vpop.f32.mrb[0].mxu0
    %v12610 = vpop.f32.mrb[0].mxu0
    %v12611 = vpop.f32.mrb[0].mxu0
    %12612 = vdwg.mxu0
    %12613 = vmatprep.subr.bf16.mxu0 0
    %12614 = vmatpush1.bf16.msra.mxu0 %v12525
    %12615 = vmatprep.subr.bf16.mxu0 0
    %12616 = vmatpush1.bf16.msra.mxu0 %v12526
    %12617 = vmatprep.subr.bf16.mxu0 0
    %12618 = vmatpush1.bf16.msra.mxu0 %v12527
    %12619 = vmatprep.subr.bf16.mxu0 0
    %12620 = vmatpush1.bf16.msra.mxu0 %v12528
    %12621 = vmatprep.subr.bf16.mxu0 0
    %12622 = vmatpush1.bf16.msra.mxu0 %v12529
    %12623 = vmatprep.subr.bf16.mxu0 0
    %12624 = vmatpush1.bf16.msra.mxu0 %v12530
    %12625 = vmatprep.subr.bf16.mxu0 0
    %12626 = vmatpush1.bf16.msra.mxu0 %v12531
    %12627 = vmatprep.subr.bf16.mxu0 0
    %12628 = vmatpush1.bf16.msra.mxu0 %v12532
    %12629 = vmatprep.subr.bf16.mxu0 0
    %12630 = vmatpush1.bf16.msra.mxu0 %v12533
    %12631 = vmatprep.subr.bf16.mxu0 0
    %12632 = vmatpush1.bf16.msra.mxu0 %v12534
    %12633 = vmatprep.subr.bf16.mxu0 0
    %12634 = vmatpush1.bf16.msra.mxu0 %v12535
    %12635 = vmatprep.subr.bf16.mxu0 0
    %12636 = vmatpush1.bf16.msra.mxu0 %v12536
    %12637 = vmatprep.subr.bf16.mxu0 0
    %12638 = vmatpush1.bf16.msra.mxu0 %v12537
    %12639 = vmatprep.subr.bf16.mxu0 0
    %12640 = vmatpush1.bf16.msra.mxu0 %v12538
    %12641 = vmatprep.subr.bf16.mxu0 0
    %12642 = vmatpush1.bf16.msra.mxu0 %v12539
    %12643 = vmatprep.subr.bf16.mxu0 0
    %12644 = vmatpush1.bf16.msra.mxu0 %v12540
    %12645 = vmatprep.mubr.bf16.mxu0 %v12315
    %12646 = vmatmul.mubr.bf16.gmra.mrb[0].mxu0 %v12314
    %v12647 = vpop.f32.mrb[0].mxu0
    %v12648 = vadd.f32 %v12608, %v12647
    %v12649 = vpop.f32.mrb[0].mxu0
    %v12650 = vpop.f32.mrb[0].mxu0
    %v12651 = vpop.f32.mrb[0].mxu0
    %12652 = vdwg.mxu0
    %v12653 = vadd.f32 %v12311, %v12648
    %v12654 = vpack.c.bf16 %v10597, %v10597
    %v12655 = vpack.c.bf16 %v10598, %v10598
    %v12656 = vpack.c.bf16 %v10599, %v10599
    %v12657 = vpack.c.bf16 %v10600, %v10600
    %s12658 = scalar_lea.vmem [#allocation5], 1536
    %v12659 = vld [vmem:[%s12658] sm:$0xf]
    %v12660 = vld [vmem:[%s12658 + $0x4] sm:$0xf]
    %v12661 = vld [vmem:[%s12658 + $0x8] sm:$0xf]
    %v12662 = vld [vmem:[%s12658 + $0xc] sm:$0xf]
    %v12663 = vld [vmem:[%s12658 + $0x10] sm:$0xf]
    %v12664 = vld [vmem:[%s12658 + $0x14] sm:$0xf]
    %v12665 = vld [vmem:[%s12658 + $0x18] sm:$0xf]
    %v12666 = vld [vmem:[%s12658 + $0x1c] sm:$0xf]
    %v12667 = vld [vmem:[%s12658 + $0x20] sm:$0xf]
    %v12668 = vld [vmem:[%s12658 + $0x24] sm:$0xf]
    %v12669 = vld [vmem:[%s12658 + $0x28] sm:$0xf]
    %v12670 = vld [vmem:[%s12658 + $0x2c] sm:$0xf]
    %v12671 = vld [vmem:[%s12658 + $0x30] sm:$0xf]
    %v12672 = vld [vmem:[%s12658 + $0x34] sm:$0xf]
    %v12673 = vld [vmem:[%s12658 + $0x38] sm:$0xf]
    %v12674 = vld [vmem:[%s12658 + $0x3c] sm:$0xf]
    %v12675 = vld [vmem:[%s12658 + $0x40] sm:$0xf]
    %v12676 = vld [vmem:[%s12658 + $0x44] sm:$0xf]
    %v12677 = vld [vmem:[%s12658 + $0x48] sm:$0xf]
    %v12678 = vld [vmem:[%s12658 + $0x4c] sm:$0xf]
    %v12679 = vld [vmem:[%s12658 + $0x50] sm:$0xf]
    %v12680 = vld [vmem:[%s12658 + $0x54] sm:$0xf]
    %v12681 = vld [vmem:[%s12658 + $0x58] sm:$0xf]
    %v12682 = vld [vmem:[%s12658 + $0x5c] sm:$0xf]
    %v12683 = vld [vmem:[%s12658 + $0x60] sm:$0xf]
    %v12684 = vld [vmem:[%s12658 + $0x64] sm:$0xf]
    %v12685 = vld [vmem:[%s12658 + $0x68] sm:$0xf]
    %v12686 = vld [vmem:[%s12658 + $0x6c] sm:$0xf]
    %v12687 = vld [vmem:[%s12658 + $0x70] sm:$0xf]
    %v12688 = vld [vmem:[%s12658 + $0x74] sm:$0xf]
    %v12689 = vld [vmem:[%s12658 + $0x78] sm:$0xf]
    %v12690 = vld [vmem:[%s12658 + $0x7c] sm:$0xf]
    %v12691 = vld [vmem:[%s12658 + $0x80] sm:$0xf]
    %v12692 = vld [vmem:[%s12658 + $0x84] sm:$0xf]
    %v12693 = vld [vmem:[%s12658 + $0x88] sm:$0xf]
    %v12694 = vld [vmem:[%s12658 + $0x8c] sm:$0xf]
    %v12695 = vld [vmem:[%s12658 + $0x90] sm:$0xf]
    %v12696 = vld [vmem:[%s12658 + $0x94] sm:$0xf]
    %v12697 = vld [vmem:[%s12658 + $0x98] sm:$0xf]
    %v12698 = vld [vmem:[%s12658 + $0x9c] sm:$0xf]
    %v12699 = vld [vmem:[%s12658 + $0xa0] sm:$0xf]
    %v12700 = vld [vmem:[%s12658 + $0xa4] sm:$0xf]
    %v12701 = vld [vmem:[%s12658 + $0xa8] sm:$0xf]
    %v12702 = vld [vmem:[%s12658 + $0xac] sm:$0xf]
    %v12703 = vld [vmem:[%s12658 + $0xb0] sm:$0xf]
    %v12704 = vld [vmem:[%s12658 + $0xb4] sm:$0xf]
    %v12705 = vld [vmem:[%s12658 + $0xb8] sm:$0xf]
    %v12706 = vld [vmem:[%s12658 + $0xbc] sm:$0xf]
    %v12707 = vld [vmem:[%s12658 + $0xc0] sm:$0xf]
    %v12708 = vld [vmem:[%s12658 + $0xc4] sm:$0xf]
    %v12709 = vld [vmem:[%s12658 + $0xc8] sm:$0xf]
    %v12710 = vld [vmem:[%s12658 + $0xcc] sm:$0xf]
    %v12711 = vld [vmem:[%s12658 + $0xd0] sm:$0xf]
    %v12712 = vld [vmem:[%s12658 + $0xd4] sm:$0xf]
    %v12713 = vld [vmem:[%s12658 + $0xd8] sm:$0xf]
    %v12714 = vld [vmem:[%s12658 + $0xdc] sm:$0xf]
    %v12715 = vld [vmem:[%s12658 + $0xe0] sm:$0xf]
    %v12716 = vld [vmem:[%s12658 + $0xe4] sm:$0xf]
    %v12717 = vld [vmem:[%s12658 + $0xe8] sm:$0xf]
    %v12718 = vld [vmem:[%s12658 + $0xec] sm:$0xf]
    %v12719 = vld [vmem:[%s12658 + $0xf0] sm:$0xf]
    %v12720 = vld [vmem:[%s12658 + $0xf4] sm:$0xf]
    %v12721 = vld [vmem:[%s12658 + $0xf8] sm:$0xf]
    %v12722 = vld [vmem:[%s12658 + $0xfc] sm:$0xf]
    %v12787 = vunpack.c.l.b16 %v12659
    %v12788 = vunpack.c.l.b16 %v12660
    %v12789 = vunpack.c.l.b16 %v12661
    %v12790 = vunpack.c.l.b16 %v12662
    %v12791 = vunpack.c.l.b16 %v12663
    %v12792 = vunpack.c.l.b16 %v12664
    %v12793 = vunpack.c.l.b16 %v12665
    %v12794 = vunpack.c.l.b16 %v12666
    %v12795 = vunpack.c.l.b16 %v12667
    %v12796 = vunpack.c.l.b16 %v12668
    %v12797 = vunpack.c.l.b16 %v12669
    %v12798 = vunpack.c.l.b16 %v12670
    %v12799 = vunpack.c.l.b16 %v12671
    %v12800 = vunpack.c.l.b16 %v12672
    %v12801 = vunpack.c.l.b16 %v12673
    %v12802 = vunpack.c.l.b16 %v12674
    %v12803 = vunpack.c.l.b16 %v12675
    %v12804 = vunpack.c.l.b16 %v12676
    %v12805 = vunpack.c.l.b16 %v12677
    %v12806 = vunpack.c.l.b16 %v12678
    %v12807 = vunpack.c.l.b16 %v12679
    %v12808 = vunpack.c.l.b16 %v12680
    %v12809 = vunpack.c.l.b16 %v12681
    %v12810 = vunpack.c.l.b16 %v12682
    %v12811 = vunpack.c.l.b16 %v12683
    %v12812 = vunpack.c.l.b16 %v12684
    %v12813 = vunpack.c.l.b16 %v12685
    %v12814 = vunpack.c.l.b16 %v12686
    %v12815 = vunpack.c.l.b16 %v12687
    %v12816 = vunpack.c.l.b16 %v12688
    %v12817 = vunpack.c.l.b16 %v12689
    %v12818 = vunpack.c.l.b16 %v12690
    %v12819 = vunpack.c.l.b16 %v12691
    %v12820 = vunpack.c.l.b16 %v12692
    %v12821 = vunpack.c.l.b16 %v12693
    %v12822 = vunpack.c.l.b16 %v12694
    %v12823 = vunpack.c.l.b16 %v12695
    %v12824 = vunpack.c.l.b16 %v12696
    %v12825 = vunpack.c.l.b16 %v12697
    %v12826 = vunpack.c.l.b16 %v12698
    %v12827 = vunpack.c.l.b16 %v12699
    %v12828 = vunpack.c.l.b16 %v12700
    %v12829 = vunpack.c.l.b16 %v12701
    %v12830 = vunpack.c.l.b16 %v12702
    %v12831 = vunpack.c.l.b16 %v12703
    %v12832 = vunpack.c.l.b16 %v12704
    %v12833 = vunpack.c.l.b16 %v12705
    %v12834 = vunpack.c.l.b16 %v12706
    %v12835 = vunpack.c.l.b16 %v12707
    %v12836 = vunpack.c.l.b16 %v12708
    %v12837 = vunpack.c.l.b16 %v12709
    %v12838 = vunpack.c.l.b16 %v12710
    %v12839 = vunpack.c.l.b16 %v12711
    %v12840 = vunpack.c.l.b16 %v12712
    %v12841 = vunpack.c.l.b16 %v12713
    %v12842 = vunpack.c.l.b16 %v12714
    %v12843 = vunpack.c.l.b16 %v12715
    %v12844 = vunpack.c.l.b16 %v12716
    %v12845 = vunpack.c.l.b16 %v12717
    %v12846 = vunpack.c.l.b16 %v12718
    %v12847 = vunpack.c.l.b16 %v12719
    %v12848 = vunpack.c.l.b16 %v12720
    %v12849 = vunpack.c.l.b16 %v12721
    %v12850 = vunpack.c.l.b16 %v12722
    %v12851 = vpack.c.b16 %v12788, %v12787
    %v12852 = vpack.c.b16 %v12790, %v12789
    %v12853 = vpack.c.b16 %v12792, %v12791
    %v12854 = vpack.c.b16 %v12794, %v12793
    %v12855 = vpack.c.b16 %v12796, %v12795
    %v12856 = vpack.c.b16 %v12798, %v12797
    %v12857 = vpack.c.b16 %v12800, %v12799
    %v12858 = vpack.c.b16 %v12802, %v12801
    %v12859 = vpack.c.b16 %v12804, %v12803
    %v12860 = vpack.c.b16 %v12806, %v12805
    %v12861 = vpack.c.b16 %v12808, %v12807
    %v12862 = vpack.c.b16 %v12810, %v12809
    %v12863 = vpack.c.b16 %v12812, %v12811
    %v12864 = vpack.c.b16 %v12814, %v12813
    %v12865 = vpack.c.b16 %v12816, %v12815
    %v12866 = vpack.c.b16 %v12818, %v12817
    %v12867 = vpack.c.b16 %v12820, %v12819
    %v12868 = vpack.c.b16 %v12822, %v12821
    %v12869 = vpack.c.b16 %v12824, %v12823
    %v12870 = vpack.c.b16 %v12826, %v12825
    %v12871 = vpack.c.b16 %v12828, %v12827
    %v12872 = vpack.c.b16 %v12830, %v12829
    %v12873 = vpack.c.b16 %v12832, %v12831
    %v12874 = vpack.c.b16 %v12834, %v12833
    %v12875 = vpack.c.b16 %v12836, %v12835
    %v12876 = vpack.c.b16 %v12838, %v12837
    %v12877 = vpack.c.b16 %v12840, %v12839
    %v12878 = vpack.c.b16 %v12842, %v12841
    %v12879 = vpack.c.b16 %v12844, %v12843
    %v12880 = vpack.c.b16 %v12846, %v12845
    %v12881 = vpack.c.b16 %v12848, %v12847
    %v12882 = vpack.c.b16 %v12850, %v12849
    %12915 = vmatprep.subr.bf16.mxu0 0
    %12916 = vmatpush1.bf16.msra.mxu0 %v12851
    %12917 = vmatprep.subr.bf16.mxu0 0
    %12918 = vmatpush1.bf16.msra.mxu0 %v12852
    %12919 = vmatprep.subr.bf16.mxu0 0
    %12920 = vmatpush1.bf16.msra.mxu0 %v12853
    %12921 = vmatprep.subr.bf16.mxu0 0
    %12922 = vmatpush1.bf16.msra.mxu0 %v12854
    %12923 = vmatprep.subr.bf16.mxu0 0
    %12924 = vmatpush1.bf16.msra.mxu0 %v12855
    %12925 = vmatprep.subr.bf16.mxu0 0
    %12926 = vmatpush1.bf16.msra.mxu0 %v12856
    %12927 = vmatprep.subr.bf16.mxu0 0
    %12928 = vmatpush1.bf16.msra.mxu0 %v12857
    %12929 = vmatprep.subr.bf16.mxu0 0
    %12930 = vmatpush1.bf16.msra.mxu0 %v12858
    %12931 = vmatprep.subr.bf16.mxu0 0
    %12932 = vmatpush1.bf16.msra.mxu0 %v12859
    %12933 = vmatprep.subr.bf16.mxu0 0
    %12934 = vmatpush1.bf16.msra.mxu0 %v12860
    %12935 = vmatprep.subr.bf16.mxu0 0
    %12936 = vmatpush1.bf16.msra.mxu0 %v12861
    %12937 = vmatprep.subr.bf16.mxu0 0
    %12938 = vmatpush1.bf16.msra.mxu0 %v12862
    %12939 = vmatprep.subr.bf16.mxu0 0
    %12940 = vmatpush1.bf16.msra.mxu0 %v12863
    %12941 = vmatprep.subr.bf16.mxu0 0
    %12942 = vmatpush1.bf16.msra.mxu0 %v12864
    %12943 = vmatprep.subr.bf16.mxu0 0
    %12944 = vmatpush1.bf16.msra.mxu0 %v12865
    %12945 = vmatprep.subr.bf16.mxu0 0
    %12946 = vmatpush1.bf16.msra.mxu0 %v12866
    %12947 = vmatprep.mubr.bf16.mxu0 %v12655
    %12948 = vmatmul.mubr.bf16.gmra.mrb[0].mxu0 %v12654
    %v12949 = vpop.f32.mrb[0].mxu0
    %v12950 = vadd.f32 0.0, %v12949
    %v12951 = vpop.f32.mrb[0].mxu0
    %v12952 = vpop.f32.mrb[0].mxu0
    %v12953 = vpop.f32.mrb[0].mxu0
    %12954 = vdwg.mxu0
    %12955 = vmatprep.subr.bf16.mxu0 0
    %12956 = vmatpush1.bf16.msra.mxu0 %v12867
    %12957 = vmatprep.subr.bf16.mxu0 0
    %12958 = vmatpush1.bf16.msra.mxu0 %v12868
    %12959 = vmatprep.subr.bf16.mxu0 0
    %12960 = vmatpush1.bf16.msra.mxu0 %v12869
    %12961 = vmatprep.subr.bf16.mxu0 0
    %12962 = vmatpush1.bf16.msra.mxu0 %v12870
    %12963 = vmatprep.subr.bf16.mxu0 0
    %12964 = vmatpush1.bf16.msra.mxu0 %v12871
    %12965 = vmatprep.subr.bf16.mxu0 0
    %12966 = vmatpush1.bf16.msra.mxu0 %v12872
    %12967 = vmatprep.subr.bf16.mxu0 0
    %12968 = vmatpush1.bf16.msra.mxu0 %v12873
    %12969 = vmatprep.subr.bf16.mxu0 0
    %12970 = vmatpush1.bf16.msra.mxu0 %v12874
    %12971 = vmatprep.subr.bf16.mxu0 0
    %12972 = vmatpush1.bf16.msra.mxu0 %v12875
    %12973 = vmatprep.subr.bf16.mxu0 0
    %12974 = vmatpush1.bf16.msra.mxu0 %v12876
    %12975 = vmatprep.subr.bf16.mxu0 0
    %12976 = vmatpush1.bf16.msra.mxu0 %v12877
    %12977 = vmatprep.subr.bf16.mxu0 0
    %12978 = vmatpush1.bf16.msra.mxu0 %v12878
    %12979 = vmatprep.subr.bf16.mxu0 0
    %12980 = vmatpush1.bf16.msra.mxu0 %v12879
    %12981 = vmatprep.subr.bf16.mxu0 0
    %12982 = vmatpush1.bf16.msra.mxu0 %v12880
    %12983 = vmatprep.subr.bf16.mxu0 0
    %12984 = vmatpush1.bf16.msra.mxu0 %v12881
    %12985 = vmatprep.subr.bf16.mxu0 0
    %12986 = vmatpush1.bf16.msra.mxu0 %v12882
    %12987 = vmatprep.mubr.bf16.mxu0 %v12657
    %12988 = vmatmul.mubr.bf16.gmra.mrb[0].mxu0 %v12656
    %v12989 = vpop.f32.mrb[0].mxu0
    %v12990 = vadd.f32 %v12950, %v12989
    %v12991 = vpop.f32.mrb[0].mxu0
    %v12992 = vpop.f32.mrb[0].mxu0
    %v12993 = vpop.f32.mrb[0].mxu0
    %12994 = vdwg.mxu0
    %v12995 = vadd.f32 %v12653, %v12990
    %v12996 = vpack.c.bf16 %v10601, %v10601
    %v12997 = vpack.c.bf16 %v10602, %v10602
    %v12998 = vpack.c.bf16 %v10603, %v10603
    %v12999 = vpack.c.bf16 %v10604, %v10604
    %s13000 = scalar_lea.vmem [#allocation5], 1792
    %v13001 = vld [vmem:[%s13000] sm:$0xf]
    %v13002 = vld [vmem:[%s13000 + $0x4] sm:$0xf]
    %v13003 = vld [vmem:[%s13000 + $0x8] sm:$0xf]
    %v13004 = vld [vmem:[%s13000 + $0xc] sm:$0xf]
    %v13005 = vld [vmem:[%s13000 + $0x10] sm:$0xf]
    %v13006 = vld [vmem:[%s13000 + $0x14] sm:$0xf]
    %v13007 = vld [vmem:[%s13000 + $0x18] sm:$0xf]
    %v13008 = vld [vmem:[%s13000 + $0x1c] sm:$0xf]
    %v13009 = vld [vmem:[%s13000 + $0x20] sm:$0xf]
    %v13010 = vld [vmem:[%s13000 + $0x24] sm:$0xf]
    %v13011 = vld [vmem:[%s13000 + $0x28] sm:$0xf]
    %v13012 = vld [vmem:[%s13000 + $0x2c] sm:$0xf]
    %v13013 = vld [vmem:[%s13000 + $0x30] sm:$0xf]
    %v13014 = vld [vmem:[%s13000 + $0x34] sm:$0xf]
    %v13015 = vld [vmem:[%s13000 + $0x38] sm:$0xf]
    %v13016 = vld [vmem:[%s13000 + $0x3c] sm:$0xf]
    %v13017 = vld [vmem:[%s13000 + $0x40] sm:$0xf]
    %v13018 = vld [vmem:[%s13000 + $0x44] sm:$0xf]
    %v13019 = vld [vmem:[%s13000 + $0x48] sm:$0xf]
    %v13020 = vld [vmem:[%s13000 + $0x4c] sm:$0xf]
    %v13021 = vld [vmem:[%s13000 + $0x50] sm:$0xf]
    %v13022 = vld [vmem:[%s13000 + $0x54] sm:$0xf]
    %v13023 = vld [vmem:[%s13000 + $0x58] sm:$0xf]
    %v13024 = vld [vmem:[%s13000 + $0x5c] sm:$0xf]
    %v13025 = vld [vmem:[%s13000 + $0x60] sm:$0xf]
    %v13026 = vld [vmem:[%s13000 + $0x64] sm:$0xf]
    %v13027 = vld [vmem:[%s13000 + $0x68] sm:$0xf]
    %v13028 = vld [vmem:[%s13000 + $0x6c] sm:$0xf]
    %v13029 = vld [vmem:[%s13000 + $0x70] sm:$0xf]
    %v13030 = vld [vmem:[%s13000 + $0x74] sm:$0xf]
    %v13031 = vld [vmem:[%s13000 + $0x78] sm:$0xf]
    %v13032 = vld [vmem:[%s13000 + $0x7c] sm:$0xf]
    %v13033 = vld [vmem:[%s13000 + $0x80] sm:$0xf]
    %v13034 = vld [vmem:[%s13000 + $0x84] sm:$0xf]
    %v13035 = vld [vmem:[%s13000 + $0x88] sm:$0xf]
    %v13036 = vld [vmem:[%s13000 + $0x8c] sm:$0xf]
    %v13037 = vld [vmem:[%s13000 + $0x90] sm:$0xf]
    %v13038 = vld [vmem:[%s13000 + $0x94] sm:$0xf]
    %v13039 = vld [vmem:[%s13000 + $0x98] sm:$0xf]
    %v13040 = vld [vmem:[%s13000 + $0x9c] sm:$0xf]
    %v13041 = vld [vmem:[%s13000 + $0xa0] sm:$0xf]
    %v13042 = vld [vmem:[%s13000 + $0xa4] sm:$0xf]
    %v13043 = vld [vmem:[%s13000 + $0xa8] sm:$0xf]
    %v13044 = vld [vmem:[%s13000 + $0xac] sm:$0xf]
    %v13045 = vld [vmem:[%s13000 + $0xb0] sm:$0xf]
    %v13046 = vld [vmem:[%s13000 + $0xb4] sm:$0xf]
    %v13047 = vld [vmem:[%s13000 + $0xb8] sm:$0xf]
    %v13048 = vld [vmem:[%s13000 + $0xbc] sm:$0xf]
    %v13049 = vld [vmem:[%s13000 + $0xc0] sm:$0xf]
    %v13050 = vld [vmem:[%s13000 + $0xc4] sm:$0xf]
    %v13051 = vld [vmem:[%s13000 + $0xc8] sm:$0xf]
    %v13052 = vld [vmem:[%s13000 + $0xcc] sm:$0xf]
    %v13053 = vld [vmem:[%s13000 + $0xd0] sm:$0xf]
    %v13054 = vld [vmem:[%s13000 + $0xd4] sm:$0xf]
    %v13055 = vld [vmem:[%s13000 + $0xd8] sm:$0xf]
    %v13056 = vld [vmem:[%s13000 + $0xdc] sm:$0xf]
    %v13057 = vld [vmem:[%s13000 + $0xe0] sm:$0xf]
    %v13058 = vld [vmem:[%s13000 + $0xe4] sm:$0xf]
    %v13059 = vld [vmem:[%s13000 + $0xe8] sm:$0xf]
    %v13060 = vld [vmem:[%s13000 + $0xec] sm:$0xf]
    %v13061 = vld [vmem:[%s13000 + $0xf0] sm:$0xf]
    %v13062 = vld [vmem:[%s13000 + $0xf4] sm:$0xf]
    %v13063 = vld [vmem:[%s13000 + $0xf8] sm:$0xf]
    %v13064 = vld [vmem:[%s13000 + $0xfc] sm:$0xf]
    %v13129 = vunpack.c.l.b16 %v13001
    %v13130 = vunpack.c.l.b16 %v13002
    %v13131 = vunpack.c.l.b16 %v13003
    %v13132 = vunpack.c.l.b16 %v13004
    %v13133 = vunpack.c.l.b16 %v13005
    %v13134 = vunpack.c.l.b16 %v13006
    %v13135 = vunpack.c.l.b16 %v13007
    %v13136 = vunpack.c.l.b16 %v13008
    %v13137 = vunpack.c.l.b16 %v13009
    %v13138 = vunpack.c.l.b16 %v13010
    %v13139 = vunpack.c.l.b16 %v13011
    %v13140 = vunpack.c.l.b16 %v13012
    %v13141 = vunpack.c.l.b16 %v13013
    %v13142 = vunpack.c.l.b16 %v13014
    %v13143 = vunpack.c.l.b16 %v13015
    %v13144 = vunpack.c.l.b16 %v13016
    %v13145 = vunpack.c.l.b16 %v13017
    %v13146 = vunpack.c.l.b16 %v13018
    %v13147 = vunpack.c.l.b16 %v13019
    %v13148 = vunpack.c.l.b16 %v13020
    %v13149 = vunpack.c.l.b16 %v13021
    %v13150 = vunpack.c.l.b16 %v13022
    %v13151 = vunpack.c.l.b16 %v13023
    %v13152 = vunpack.c.l.b16 %v13024
    %v13153 = vunpack.c.l.b16 %v13025
    %v13154 = vunpack.c.l.b16 %v13026
    %v13155 = vunpack.c.l.b16 %v13027
    %v13156 = vunpack.c.l.b16 %v13028
    %v13157 = vunpack.c.l.b16 %v13029
    %v13158 = vunpack.c.l.b16 %v13030
    %v13159 = vunpack.c.l.b16 %v13031
    %v13160 = vunpack.c.l.b16 %v13032
    %v13161 = vunpack.c.l.b16 %v13033
    %v13162 = vunpack.c.l.b16 %v13034
    %v13163 = vunpack.c.l.b16 %v13035
    %v13164 = vunpack.c.l.b16 %v13036
    %v13165 = vunpack.c.l.b16 %v13037
    %v13166 = vunpack.c.l.b16 %v13038
    %v13167 = vunpack.c.l.b16 %v13039
    %v13168 = vunpack.c.l.b16 %v13040
    %v13169 = vunpack.c.l.b16 %v13041
    %v13170 = vunpack.c.l.b16 %v13042
    %v13171 = vunpack.c.l.b16 %v13043
    %v13172 = vunpack.c.l.b16 %v13044
    %v13173 = vunpack.c.l.b16 %v13045
    %v13174 = vunpack.c.l.b16 %v13046
    %v13175 = vunpack.c.l.b16 %v13047
    %v13176 = vunpack.c.l.b16 %v13048
    %v13177 = vunpack.c.l.b16 %v13049
    %v13178 = vunpack.c.l.b16 %v13050
    %v13179 = vunpack.c.l.b16 %v13051
    %v13180 = vunpack.c.l.b16 %v13052
    %v13181 = vunpack.c.l.b16 %v13053
    %v13182 = vunpack.c.l.b16 %v13054
    %v13183 = vunpack.c.l.b16 %v13055
    %v13184 = vunpack.c.l.b16 %v13056
    %v13185 = vunpack.c.l.b16 %v13057
    %v13186 = vunpack.c.l.b16 %v13058
    %v13187 = vunpack.c.l.b16 %v13059
    %v13188 = vunpack.c.l.b16 %v13060
    %v13189 = vunpack.c.l.b16 %v13061
    %v13190 = vunpack.c.l.b16 %v13062
    %v13191 = vunpack.c.l.b16 %v13063
    %v13192 = vunpack.c.l.b16 %v13064
    %v13193 = vpack.c.b16 %v13130, %v13129
    %v13194 = vpack.c.b16 %v13132, %v13131
    %v13195 = vpack.c.b16 %v13134, %v13133
    %v13196 = vpack.c.b16 %v13136, %v13135
    %v13197 = vpack.c.b16 %v13138, %v13137
    %v13198 = vpack.c.b16 %v13140, %v13139
    %v13199 = vpack.c.b16 %v13142, %v13141
    %v13200 = vpack.c.b16 %v13144, %v13143
    %v13201 = vpack.c.b16 %v13146, %v13145
    %v13202 = vpack.c.b16 %v13148, %v13147
    %v13203 = vpack.c.b16 %v13150, %v13149
    %v13204 = vpack.c.b16 %v13152, %v13151
    %v13205 = vpack.c.b16 %v13154, %v13153
    %v13206 = vpack.c.b16 %v13156, %v13155
    %v13207 = vpack.c.b16 %v13158, %v13157
    %v13208 = vpack.c.b16 %v13160, %v13159
    %v13209 = vpack.c.b16 %v13162, %v13161
    %v13210 = vpack.c.b16 %v13164, %v13163
    %v13211 = vpack.c.b16 %v13166, %v13165
    %v13212 = vpack.c.b16 %v13168, %v13167
    %v13213 = vpack.c.b16 %v13170, %v13169
    %v13214 = vpack.c.b16 %v13172, %v13171
    %v13215 = vpack.c.b16 %v13174, %v13173
    %v13216 = vpack.c.b16 %v13176, %v13175
    %v13217 = vpack.c.b16 %v13178, %v13177
    %v13218 = vpack.c.b16 %v13180, %v13179
    %v13219 = vpack.c.b16 %v13182, %v13181
    %v13220 = vpack.c.b16 %v13184, %v13183
    %v13221 = vpack.c.b16 %v13186, %v13185
    %v13222 = vpack.c.b16 %v13188, %v13187
    %v13223 = vpack.c.b16 %v13190, %v13189
    %v13224 = vpack.c.b16 %v13192, %v13191
    %13257 = vmatprep.subr.bf16.mxu0 0
    %13258 = vmatpush1.bf16.msra.mxu0 %v13193
    %13259 = vmatprep.subr.bf16.mxu0 0
    %13260 = vmatpush1.bf16.msra.mxu0 %v13194
    %13261 = vmatprep.subr.bf16.mxu0 0
    %13262 = vmatpush1.bf16.msra.mxu0 %v13195
    %13263 = vmatprep.subr.bf16.mxu0 0
    %13264 = vmatpush1.bf16.msra.mxu0 %v13196
    %13265 = vmatprep.subr.bf16.mxu0 0
    %13266 = vmatpush1.bf16.msra.mxu0 %v13197
    %13267 = vmatprep.subr.bf16.mxu0 0
    %13268 = vmatpush1.bf16.msra.mxu0 %v13198
    %13269 = vmatprep.subr.bf16.mxu0 0
    %13270 = vmatpush1.bf16.msra.mxu0 %v13199
    %13271 = vmatprep.subr.bf16.mxu0 0
    %13272 = vmatpush1.bf16.msra.mxu0 %v13200
    %13273 = vmatprep.subr.bf16.mxu0 0
    %13274 = vmatpush1.bf16.msra.mxu0 %v13201
    %13275 = vmatprep.subr.bf16.mxu0 0
    %13276 = vmatpush1.bf16.msra.mxu0 %v13202
    %13277 = vmatprep.subr.bf16.mxu0 0
    %13278 = vmatpush1.bf16.msra.mxu0 %v13203
    %13279 = vmatprep.subr.bf16.mxu0 0
    %13280 = vmatpush1.bf16.msra.mxu0 %v13204
    %13281 = vmatprep.subr.bf16.mxu0 0
    %13282 = vmatpush1.bf16.msra.mxu0 %v13205
    %13283 = vmatprep.subr.bf16.mxu0 0
    %13284 = vmatpush1.bf16.msra.mxu0 %v13206
    %13285 = vmatprep.subr.bf16.mxu0 0
    %13286 = vmatpush1.bf16.msra.mxu0 %v13207
    %13287 = vmatprep.subr.bf16.mxu0 0
    %13288 = vmatpush1.bf16.msra.mxu0 %v13208
    %13289 = vmatprep.mubr.bf16.mxu0 %v12997
    %13290 = vmatmul.mubr.bf16.gmra.mrb[0].mxu0 %v12996
    %v13291 = vpop.f32.mrb[0].mxu0
    %v13292 = vadd.f32 0.0, %v13291
    %v13293 = vpop.f32.mrb[0].mxu0
    %v13294 = vpop.f32.mrb[0].mxu0
    %v13295 = vpop.f32.mrb[0].mxu0
    %13296 = vdwg.mxu0
    %13297 = vmatprep.subr.bf16.mxu0 0
    %13298 = vmatpush1.bf16.msra.mxu0 %v13209
    %13299 = vmatprep.subr.bf16.mxu0 0
    %13300 = vmatpush1.bf16.msra.mxu0 %v13210
    %13301 = vmatprep.subr.bf16.mxu0 0
    %13302 = vmatpush1.bf16.msra.mxu0 %v13211
    %13303 = vmatprep.subr.bf16.mxu0 0
    %13304 = vmatpush1.bf16.msra.mxu0 %v13212
    %13305 = vmatprep.subr.bf16.mxu0 0
    %13306 = vmatpush1.bf16.msra.mxu0 %v13213
    %13307 = vmatprep.subr.bf16.mxu0 0
    %13308 = vmatpush1.bf16.msra.mxu0 %v13214
    %13309 = vmatprep.subr.bf16.mxu0 0
    %13310 = vmatpush1.bf16.msra.mxu0 %v13215
    %13311 = vmatprep.subr.bf16.mxu0 0
    %13312 = vmatpush1.bf16.msra.mxu0 %v13216
    %13313 = vmatprep.subr.bf16.mxu0 0
    %13314 = vmatpush1.bf16.msra.mxu0 %v13217
    %13315 = vmatprep.subr.bf16.mxu0 0
    %13316 = vmatpush1.bf16.msra.mxu0 %v13218
    %13317 = vmatprep.subr.bf16.mxu0 0
    %13318 = vmatpush1.bf16.msra.mxu0 %v13219
    %13319 = vmatprep.subr.bf16.mxu0 0
    %13320 = vmatpush1.bf16.msra.mxu0 %v13220
    %13321 = vmatprep.subr.bf16.mxu0 0
    %13322 = vmatpush1.bf16.msra.mxu0 %v13221
    %13323 = vmatprep.subr.bf16.mxu0 0
    %13324 = vmatpush1.bf16.msra.mxu0 %v13222
    %13325 = vmatprep.subr.bf16.mxu0 0
    %13326 = vmatpush1.bf16.msra.mxu0 %v13223
    %13327 = vmatprep.subr.bf16.mxu0 0
    %13328 = vmatpush1.bf16.msra.mxu0 %v13224
    %13329 = vmatprep.mubr.bf16.mxu0 %v12999
    %13330 = vmatmul.mubr.bf16.gmra.mrb[0].mxu0 %v12998
    %v13331 = vpop.f32.mrb[0].mxu0
    %v13332 = vadd.f32 %v13292, %v13331
    %v13333 = vpop.f32.mrb[0].mxu0
    %v13334 = vpop.f32.mrb[0].mxu0
    %v13335 = vpop.f32.mrb[0].mxu0
    %13336 = vdwg.mxu0
    %v13337 = vadd.f32 %v12995, %v13332
    %v13338 = vld [vmem:[%s6] sm:$0x1]
    %v13340 = vlaneseq
    %v13341 = vshrl.u32 %v13340, 7
    %v13342 = vsub.s32 0, %v13341
    %v13343 = vrot.slane %v13338, %v13342
    %v13345 = vadd.f32 %v13337, %v13343
    %v13346 = vmax.f32 %v13345, 0.0
    %v13347 = vpack.c.bf16 %v13346, %v13346
    %v13348 = vld [vmem:[#allocation7] sm:$0xf]
    %v13349 = vld [vmem:[#allocation7 + $0x4] sm:$0xf]
    %v13350 = vld [vmem:[#allocation7 + $0x8] sm:$0xf]
    %v13351 = vld [vmem:[#allocation7 + $0xc] sm:$0xf]
    %v13352 = vld [vmem:[#allocation7 + $0x10] sm:$0xf]
    %v13353 = vld [vmem:[#allocation7 + $0x14] sm:$0xf]
    %v13354 = vld [vmem:[#allocation7 + $0x18] sm:$0xf]
    %v13355 = vld [vmem:[#allocation7 + $0x1c] sm:$0xf]
    %v13356 = vld [vmem:[#allocation7 + $0x20] sm:$0xf]
    %v13357 = vld [vmem:[#allocation7 + $0x24] sm:$0xf]
    %v13358 = vld [vmem:[#allocation7 + $0x28] sm:$0xf]
    %v13359 = vld [vmem:[#allocation7 + $0x2c] sm:$0xf]
    %v13360 = vld [vmem:[#allocation7 + $0x30] sm:$0xf]
    %v13361 = vld [vmem:[#allocation7 + $0x34] sm:$0xf]
    %v13362 = vld [vmem:[#allocation7 + $0x38] sm:$0xf]
    %v13363 = vld [vmem:[#allocation7 + $0x3c] sm:$0xf]
    %v13364 = vld [vmem:[%s8] sm:$0x1]
    %v13366 = vlaneseq
    %v13367 = vshrl.u32 %v13366, 7
    %v13368 = vsub.s32 0, %v13367
    %v13369 = vrot.slane %v13364, %v13368
    %v13387 = vunpack.c.l.b16 %v13348
    %v13388 = vunpack.c.l.b16 %v13349
    %v13389 = vunpack.c.l.b16 %v13350
    %v13390 = vunpack.c.l.b16 %v13351
    %v13391 = vunpack.c.l.b16 %v13352
    %v13392 = vunpack.c.l.b16 %v13353
    %v13393 = vunpack.c.l.b16 %v13354
    %v13394 = vunpack.c.l.b16 %v13355
    %v13395 = vunpack.c.l.b16 %v13356
    %v13396 = vunpack.c.l.b16 %v13357
    %v13397 = vunpack.c.l.b16 %v13358
    %v13398 = vunpack.c.l.b16 %v13359
    %v13399 = vunpack.c.l.b16 %v13360
    %v13400 = vunpack.c.l.b16 %v13361
    %v13401 = vunpack.c.l.b16 %v13362
    %v13402 = vunpack.c.l.b16 %v13363
    %v13403 = vpack.c.b16 %v13388, %v13387
    %v13404 = vpack.c.b16 %v13390, %v13389
    %v13405 = vpack.c.b16 %v13392, %v13391
    %v13406 = vpack.c.b16 %v13394, %v13393
    %v13407 = vpack.c.b16 %v13396, %v13395
    %v13408 = vpack.c.b16 %v13398, %v13397
    %v13409 = vpack.c.b16 %v13400, %v13399
    %v13410 = vpack.c.b16 %v13402, %v13401
    %13419 = vmatprep.subr.bf16.mxu0 0
    %13420 = vmatpush1.bf16.msra.mxu0 %v13403
    %13421 = vmatprep.subr.bf16.mxu0 0
    %13422 = vmatpush1.bf16.msra.mxu0 %v13404
    %13423 = vmatprep.subr.bf16.mxu0 0
    %13424 = vmatpush1.bf16.msra.mxu0 %v13405
    %13425 = vmatprep.subr.bf16.mxu0 0
    %13426 = vmatpush1.bf16.msra.mxu0 %v13406
    %13427 = vmatprep.subr.bf16.mxu0 0
    %13428 = vmatpush1.bf16.msra.mxu0 %v13407
    %13429 = vmatprep.subr.bf16.mxu0 0
    %13430 = vmatpush1.bf16.msra.mxu0 %v13408
    %13431 = vmatprep.subr.bf16.mxu0 0
    %13432 = vmatpush1.bf16.msra.mxu0 %v13409
    %13433 = vmatprep.subr.bf16.mxu0 0
    %13434 = vmatpush1.bf16.msra.mxu0 %v13410
    %13435 = vmatprep.subr.bf16.mxu0 0
    %13436 = vmatpush1.bf16.msra.mxu0 0
    %13437 = vmatprep.subr.bf16.mxu0 0
    %13438 = vmatpush1.bf16.msra.mxu0 0
    %13439 = vmatprep.subr.bf16.mxu0 0
    %13440 = vmatpush1.bf16.msra.mxu0 0
    %13441 = vmatprep.subr.bf16.mxu0 0
    %13442 = vmatpush1.bf16.msra.mxu0 0
    %13443 = vmatprep.subr.bf16.mxu0 0
    %13444 = vmatpush1.bf16.msra.mxu0 0
    %13445 = vmatprep.subr.bf16.mxu0 0
    %13446 = vmatpush1.bf16.msra.mxu0 0
    %13447 = vmatprep.subr.bf16.mxu0 0
    %13448 = vmatpush1.bf16.msra.mxu0 0
    %13449 = vmatprep.subr.bf16.mxu0 0
    %13450 = vmatpush1.bf16.msra.mxu0 0
    %13451 = vmatprep.mubr.bf16.mxu0 0
    %13452 = vmatmul.mubr.bf16.gmra.mrb[0].mxu0 %v13347
    %v13453 = vpop.f32.mrb[0].mxu0
    %v13454 = vadd.f32 %v13369, %v13453
    %v13455 = vpop.f32.mrb[0].mxu0
    %v13456 = vpop.f32.mrb[0].mxu0
    %v13457 = vpop.f32.mrb[0].mxu0
    %13458 = vdwg.mxu0
    %13459 = vst [vmem:[%s9] sm:$0xff] %v13454
    // Predicated region
    $region50: #{ocr_forward.1} parent=1 // pred_check
      _
    $region51: #{ocr_forward.1} parent=1 // pred_check_branch
      %13461 = sbr.rel (0) target = $region53
    $region52: #{ocr_forward.1} parent=1 // pred_region
      _
    $region53: #{ocr_forward.1} parent=1 // pred_fallthru
      _
    // Predicated region
    $region54: #{ocr_forward.1} parent=1 // pred_check
      _
    $region55: #{ocr_forward.1} parent=1 // pred_check_branch
      %13463 = sbr.rel (0) target = $region57
    $region56: #{ocr_forward.1} parent=1 // pred_region
      _
    $region57: #{ocr_forward.1} parent=1 // pred_fallthru
      _
    %13464 = vsyncpa [#allocation4], 1
    %13465 = vsyncpa [#allocation6], 1

</llo_original>
